<compile_context>
chip_gen: v7x
topology: tpu7x:2x2x1
jax: 0.10.0
libtpu: 0.0.40
codegen_flags: <defaults>
</compile_context>

<pallas_src>
import functools
import math

import jax
import jax.numpy as jnp
import numpy as np
from jax.experimental import pallas as pl
from jax.experimental.pallas import tpu as pltpu


# ----------------------------------------------------------------------------
# Pallas kernels
# ----------------------------------------------------------------------------
def conv_gemm_silu_kernel(p_ref, w_ref, b_ref, o_ref):
    """Conv3x3/s2 (+folded BN) + SiLU tile as a single fused-K GEMM.

    p_ref: (tr, 9*Cin) bf16 tap-stacked patches (auto-pipelined by BlockSpec).
    w_ref: (9*Cin, Cout) bf16 flattened weights.  One matmul, f32 accumulation.
    Output stored bf16 with the true Cout (no lane padding).
    """
    acc = jnp.dot(p_ref[...], w_ref[...], preferred_element_type=jnp.float32)
    acc = acc + b_ref[...]
    o_ref[...] = (acc * jax.nn.sigmoid(acc)).astype(o_ref.dtype)   # SiLU


def detect_kernel(f_ref, w_ref, meta_ref, raw_ref, z_ref, *,
                  stride, tp, nx_shift, nx, na, no):
    """Detect head tile: 1x1 conv (bf16 matmul, f32 acc) + sigmoid + YOLO decode.

    meta_ref rows: 0 = bias, 1 = x-col mask, 2 = y-col mask, 3 = wh-col mask,
    4 = anchor value per column (cols = na*no, no padding).
    raw/z are written per-anchor so they land directly in (B, na, ny*nx, no);
    no post-kernel permute and no wasted lanes in the HBM store.
    """
    cols = na * no
    f = f_ref[0]                                                    # (tp, C)
    out = jnp.dot(f, w_ref[...], preferred_element_type=jnp.float32)
    out = out + meta_ref[0:1, :]

    sig = jax.nn.sigmoid(out)
    # In-image pixel index of each row of this tile (no HBM grid tensor).
    p = pl.program_id(1) * tp + jax.lax.broadcasted_iota(jnp.int32, (tp, cols), 0)
    gx = (p & (nx - 1)).astype(jnp.float32)
    gy = (p >> nx_shift).astype(jnp.float32)

    xsel = meta_ref[1:2, :]
    ysel = meta_ref[2:3, :]
    whm = meta_ref[3:4, :]
    anc = meta_ref[4:5, :]
    xym = xsel + ysel
    grid = xsel * gx + ysel * gy
    xy = (sig * 2.0 - 0.5 + grid) * stride
    wh = (sig * 2.0) ** 2 * anc
    z = xym * xy + whm * wh + (1.0 - xym - whm) * sig

    for a in range(na):                     # anchor-major output layout
        sl = slice(a * no, (a + 1) * no)
        raw_ref[0, a, :, :] = out[:, sl]    # pre-sigmoid map
        z_ref[0, a, :, :] = z[:, sl]        # decoded boxes (f32, not bf16)


# ----------------------------------------------------------------------------
# Wrappers
# ----------------------------------------------------------------------------
def _build_patches(x_nhwc_bf16):
    """bf16 NHWC -> tap-stacked patches (B*OH*OW, 9*Cin) for conv 3x3/s2/p1.

    Column order is (ky, kx) row-major with Cin minor, matching
    w_hwio.reshape(9*Cin, Cout).  Cheap XLA pass: pad + 9 strided slices.
    """
    B, H, W, C = x_nhwc_bf16.shape
    assert H % 2 == 0 and W % 2 == 0, "even spatial dims required (stride 2)"
    OH, OW = H // 2, W // 2
    xp = jnp.pad(x_nhwc_bf16, ((0, 0), (1, 1), (1, 1), (0, 0)))
    slabs = [xp[:, ky:ky + 2 * OH:2, kx:kx + 2 * OW:2, :]
             for ky in range(3) for kx in range(3)]
    patches = jnp.concatenate(slabs, axis=-1)                # (B, OH, OW, 9C)
    return patches.reshape(B * OH * OW, 9 * C), OH, OW


def conv3x3_s2_silu(x_nhwc, w_hwio, bias, *, tile_rows=256):
    """Conv(3x3, stride 2, pad 1, folded BN) + SiLU via a fused-K Pallas GEMM."""
    B, H, W, C = x_nhwc.shape
    Cout = w_hwio.shape[-1]
    K = 9 * C

    patches, OH, OW = _build_patches(x_nhwc.astype(jnp.bfloat16))
    R = B * OH * OW
    tr = max(8, min(tile_rows, R))          # 256-row tiles: acc <= 32 vregs
    assert tr % 8 == 0
    Rp = pl.cdiv(R, tr) * tr
    if Rp != R:
        patches = jnp.pad(patches, ((0, Rp - R), (0, 0)))

    wflat = w_hwio.reshape(K, Cout).astype(jnp.bfloat16)
    b2 = jnp.asarray(bias, jnp.float32).reshape(1, Cout)

    cost = pl.CostEstimate(
        flops=int(2 * Rp * K * Cout),
        transcendentals=int(Rp * Cout),
        bytes_accessed=int(Rp * K * 2 + K * Cout * 2 + Rp * Cout * 2))
    out = pl.pallas_call(
        conv_gemm_silu_kernel,
        out_shape=jax.ShapeDtypeStruct((Rp, Cout), jnp.bfloat16),
        grid=(Rp // tr,),
        in_specs=[
            # Auto-pipelined (double-buffered) DMA; add pipeline_mode=
            # pl.Buffered(3) here if the input DMA is still exposed.
            pl.BlockSpec((tr, K), lambda i: (i, 0)),
            pl.BlockSpec((K, Cout), lambda i: (0, 0)),
            pl.BlockSpec((1, Cout), lambda i: (0, 0)),
        ],
        out_specs=pl.BlockSpec((tr, Cout), lambda i: (i, 0)),
        compiler_params=pltpu.CompilerParams(
            dimension_semantics=("parallel",)),
        cost_estimate=cost,
    )(patches, wflat, b2)
    if Rp != R:
        out = out[:R]
    return out.reshape(B, OH, OW, Cout)     # bf16, true Cout, NHWC


def detect_level(feat_nhwc, w, b, anchors_lvl, stride, *, tile_pix=256):
    """One Detect level. Returns (raw (B,na,ny,nx,no), z (B, na*ny*nx, no))."""
    B, ny, nx, C = feat_nhwc.shape
    na = anchors_lvl.shape[0]
    no_ = w.shape[1] // na
    cols = na * no_
    npix = ny * nx
    assert (nx & (nx - 1)) == 0 and (ny & (ny - 1)) == 0, "pow2 feature dims"
    tp = max(8, min(tile_pix, npix))
    assert npix % tp == 0 and tp % 8 == 0

    f3 = feat_nhwc.reshape(B, npix, C).astype(jnp.bfloat16)
    wb = w.astype(jnp.bfloat16)                               # (C, cols)

    # per-column metadata: bias / x-mask / y-mask / wh-mask / anchor
    anp = np.asarray(anchors_lvl, np.float32)
    j = np.arange(cols) % no_
    a = np.arange(cols) // no_
    meta = np.zeros((8, cols), np.float32)
    meta[0] = np.asarray(b, np.float32)
    meta[1] = (j == 0).astype(np.float32)
    meta[2] = (j == 1).astype(np.float32)
    meta[3] = ((j == 2) | (j == 3)).astype(np.float32)
    meta[4] = (np.where(j == 2, anp[a, 0], 0.0)
               + np.where(j == 3, anp[a, 1], 0.0))
    meta = jnp.asarray(meta)

    kern = functools.partial(detect_kernel, stride=float(stride), tp=tp,
                             nx_shift=int(math.log2(nx)), nx=nx, na=na, no=no_)
    cost = pl.CostEstimate(
        flops=int(2 * B * npix * C * cols),
        transcendentals=int(B * npix * cols),
        bytes_accessed=int(B * npix * C * 2 + C * cols * 2
                           + 2 * B * na * npix * no_ * 4))
    raw, z = pl.pallas_call(
        kern,
        out_shape=(jax.ShapeDtypeStruct((B, na, npix, no_), jnp.float32),
                   jax.ShapeDtypeStruct((B, na, npix, no_), jnp.float32)),
        grid=(B, npix // tp),
        in_specs=[
            pl.BlockSpec((1, tp, C), lambda bb, i: (bb, i, 0)),
            pl.BlockSpec((C, cols), lambda bb, i: (0, 0)),
            pl.BlockSpec((8, cols), lambda bb, i: (0, 0)),
        ],
        out_specs=(pl.BlockSpec((1, na, tp, no_), lambda bb, i: (bb, 0, i, 0)),
                   pl.BlockSpec((1, na, tp, no_), lambda bb, i: (bb, 0, i, 0))),
        compiler_params=pltpu.CompilerParams(
            dimension_semantics=("parallel", "parallel")),
        cost_estimate=cost,
    )(f3, wb, meta)

    # match torch: view(bs,na,no,ny,nx).permute(0,1,3,4,2); z = view(bs,-1,no)
    raw5 = raw.reshape(B, na, ny, nx, no_)          # pure reshape (no permute)
    z5 = z.reshape(B, na * npix, no_)               # pure reshape
    return raw5, z5


def model_forward(x_nchw, ir_nchw, params, anchors, strides):
    """SRyolo Model.forward, eval mode, input_mode='RGB+IR'.

    Returns (pred, raw_list, features) analogous to (y[0], y[1], features)."""
    steam = jnp.concatenate([x_nchw, ir_nchw[:, 0:1]], axis=1)      # NCHW, 4 ch
    h = jnp.transpose(steam, (0, 2, 3, 1))                          # -> NHWC
    feats = []
    for w, b in params['backbone']:
        h = conv3x3_s2_silu(h, w, b)          # bf16 NHWC, consumed directly
        feats.append(h)
    raws, zs = [], []
    for i, feat in enumerate(feats):
        w, b = params['detect'][i]
        raw, z = detect_level(feat, w, b, anchors[i], strides[i])
        raws.append(raw)
        zs.append(z)
    pred = jnp.concatenate(zs, axis=1)
    return pred, raws, feats


# ----------------------------------------------------------------------------
# Pure-JAX reference (for correctness check)
# ----------------------------------------------------------------------------
def ref_forward(x_nchw, ir_nchw, params, anchors, strides):
    steam = jnp.concatenate([x_nchw, ir_nchw[:, 0:1]], axis=1)
    h = jnp.transpose(steam, (0, 2, 3, 1))
    feats = []
    for w, b in params['backbone']:
        y = jax.lax.conv_general_dilated(
            h, w, window_strides=(2, 2), padding=((1, 1), (1, 1)),
            dimension_numbers=('NHWC', 'HWIO', 'NHWC'),
            precision=jax.lax.Precision.HIGHEST) + b
        h = y * jax.nn.sigmoid(y)
        feats.append(h)
    raws, zs = [], []
    for i, feat in enumerate(feats):
        w, b = params['detect'][i]
        B, ny, nx, C = feat.shape
        na = anchors[i].shape[0]
        no_ = w.shape[1] // na
        out = jnp.einsum('bhwc,co->bhwo', feat, w,
                         precision=jax.lax.Precision.HIGHEST) + b
        raw = out.reshape(B, ny, nx, na, no_).transpose(0, 3, 1, 2, 4)
        y = jax.nn.sigmoid(raw)
        yv, xv = jnp.meshgrid(jnp.arange(ny), jnp.arange(nx), indexing='ij')
        grid = jnp.stack((xv, yv), 2).reshape(1, 1, ny, nx, 2).astype(jnp.float32)
        anchor_grid = jnp.asarray(anchors[i]).reshape(1, na, 1, 1, 2)
        xy = (y[..., 0:2] * 2.0 - 0.5 + grid) * strides[i]
        wh = (y[..., 2:4] * 2.0) ** 2 * anchor_grid
        z = jnp.concatenate([xy, wh, y[..., 4:]], axis=-1).reshape(B, na * ny * nx, no_)
        raws.append(raw)
        zs.append(z)
    return jnp.concatenate(zs, axis=1), raws, feats


# ----------------------------------------------------------------------------
# Deterministic parameter construction
# ----------------------------------------------------------------------------
def make_params(key, ch_list, na, nc, strides):
    no_ = nc + 5
    params = {'backbone': [], 'detect': []}
    eps = 1e-3  # BN eps (YOLO default), folded into weights (BN stats = identity)
    bn_scale = 1.0 / math.sqrt(1.0 + eps)
    keys = jax.random.split(key, 2 * (len(ch_list) - 1))
    # backbone: Conv(3x3, s2) + BN(folded) + SiLU
    for li in range(len(ch_list) - 1):
        cin, cout = ch_list[li], ch_list[li + 1]
        w = jax.random.normal(keys[li], (3, 3, cin, cout), jnp.float32) * 0.05 * bn_scale
        b = jnp.zeros((cout,), jnp.float32)   # conv bias=False, BN beta=0
        params['backbone'].append((w, b))
    # detect: 1x1 conv per level, biases per Model._initialize_biases
    for li in range(len(ch_list) - 1):
        cin = ch_list[li + 1]
        w = jax.random.normal(keys[len(ch_list) - 1 + li],
                              (cin, na * no_), jnp.float32) * 0.01
        b = np.zeros((na, no_), np.float32)
        s = strides[li]
        b[:, 4] += math.log(8.0 / (640.0 / s) ** 2)
        b[:, 5:] += math.log(0.6 / (nc - 0.99))
        params['detect'].append((w, jnp.asarray(b.reshape(-1))))
    return params


# ----------------------------------------------------------------------------
if __name__ == "__main__":
    B, H, W = 2, 64, 64
    nc, na = 3, 3
    ch_list = [4, 16, 32, 64]                     # steam(4ch) -> P1 -> P2 -> P3
    strides = [H / (H // 2), H / (H // 4), H / (H // 8)]     # [2., 4., 8.]
    anchors = [np.array([[10., 13.], [16., 30.], [33., 23.]], np.float32),
               np.array([[30., 61.], [62., 45.], [59., 119.]], np.float32),
               np.array([[116., 90.], [156., 198.], [373., 326.]], np.float32)]

    key = jax.random.PRNGKey(0)
    kx, kir, kp = jax.random.split(key, 3)
    x = jax.random.normal(kx, (B, 3, H, W), jnp.float32)
    ir = jax.random.normal(kir, (B, 3, H, W), jnp.float32)
    params = make_params(kp, ch_list, na, nc, strides)

    fwd = jax.jit(lambda a, b: model_forward(a, b, params, anchors, strides))
    pred, raws, feats = fwd(x, ir)
    jax.block_until_ready(pred)
    jax.block_until_ready(raws)

    # correctness check against pure-JAX f32 reference (kernels use bf16 matmul
    # operands with f32 accumulation; z is stored in f32)
    pred_r, raws_r, _ = jax.jit(
        lambda a, b: ref_forward(a, b, params, anchors, strides))(x, ir)
    np.testing.assert_allclose(np.asarray(pred), np.asarray(pred_r),
                               rtol=2e-2, atol=2e-2)
    for r, rr in zip(raws, raws_r):
        np.testing.assert_allclose(np.asarray(r), np.asarray(rr),
                                   rtol=2e-2, atol=2e-2)

    assert pred.shape == (B, na * ((H // 2) ** 2 + (H // 4) ** 2 + (H // 8) ** 2), nc + 5)
    print("KERNEL_OK")
</pallas_src>

<mosaic_0001>
module attributes {stable_mosaic.version = 11 : i64} {
  func.func @conv_gemm_silu_kernel(%arg0: i32, %arg1: memref<256x36xbf16, #tpu.memory_space<vmem>>, %arg2: memref<36x16xbf16, #tpu.memory_space<vmem>>, %arg3: memref<1x16xf32, #tpu.memory_space<vmem>>, %arg4: memref<256x16xbf16, #tpu.memory_space<vmem>>) attributes {dimension_semantics = [#tpu.dimension_semantics<parallel>], iteration_bounds = array<i64: 8>, scalar_prefetch = 0 : i64, scratch_operands = 0 : i64, tpu.core_type = #tpu.core_type<tc>, window_params = [{transform_indices = @transform_0, window_bounds = array<i64: 256, 36>}, {pipeline_mode = #tpu.pipeline_mode<synchronous>, transform_indices = @transform_1, window_bounds = array<i64: 36, 16>}, {pipeline_mode = #tpu.pipeline_mode<synchronous>, transform_indices = @transform_2, window_bounds = array<i64: 1, 16>}, {transform_indices = @transform_3, window_bounds = array<i64: 256, 16>}]} {
    %c0 = arith.constant 0 : index
    %c0_0 = arith.constant 0 : index
    %0 = vector.load %arg1[%c0, %c0_0] : memref<256x36xbf16, #tpu.memory_space<vmem>>, vector<256x36xbf16>
    %c0_1 = arith.constant 0 : index
    %c0_2 = arith.constant 0 : index
    %1 = vector.load %arg2[%c0_1, %c0_2] : memref<36x16xbf16, #tpu.memory_space<vmem>>, vector<36x16xbf16>
    %cst = arith.constant dense<0.000000e+00> : vector<256x16xf32>
    %2 = tpu.matmul %0, %1, %cst {dimension_numbers = #tpu.dot_dimension_numbers<[1], [0], [0], [1], [0, 0, 1, 1], [], []>} : vector<256x36xbf16>, vector<36x16xbf16>, vector<256x16xf32> -> vector<256x16xf32>
    %c0_3 = arith.constant 0 : index
    %c0_4 = arith.constant 0 : index
    %3 = vector.load %arg3[%c0_3, %c0_4] : memref<1x16xf32, #tpu.memory_space<vmem>>, vector<1x16xf32>
    %4 = vector.broadcast %3 : vector<1x16xf32> to vector<256x16xf32>
    %5 = arith.addf %2, %4 : vector<256x16xf32>
    %6 = arith.negf %5 : vector<256x16xf32>
    %7 = math.exp %6 : vector<256x16xf32>
    %cst_5 = arith.constant 1.000000e+00 : f32
    %8 = vector.broadcast %cst_5 : f32 to vector<256x16xf32>
    %9 = arith.addf %8, %7 : vector<256x16xf32>
    %10 = arith.divf %8, %9 : vector<256x16xf32>
    %11 = arith.mulf %5, %10 : vector<256x16xf32>
    %12 = arith.truncf %11 : vector<256x16xf32> to vector<256x16xbf16>
    %c0_6 = arith.constant 0 : index
    %c0_7 = arith.constant 0 : index
    %13 = vector.load %arg4[%c0_6, %c0_7] : memref<256x16xbf16, #tpu.memory_space<vmem>>, vector<256x16xbf16>
    tpu.vector_store %arg4[%c0_6, %c0_7], %12 {strides = array<i32>} : memref<256x16xbf16, #tpu.memory_space<vmem>>, vector<256x16xbf16>,
    return
  }
  func.func @transform_0(%arg0: i32) -> (i32, i32) {
    %c0_i32 = arith.constant 0 : i32
    %c0_i32_0 = arith.constant 0 : i32
    return %arg0, %c0_i32 : i32, i32
  }
  func.func @transform_1(%arg0: i32) -> (i32, i32) {
    %c0_i32 = arith.constant 0 : i32
    %c0_i32_0 = arith.constant 0 : i32
    %c0_i32_1 = arith.constant 0 : i32
    return %c0_i32, %c0_i32_0 : i32, i32
  }
  func.func @transform_2(%arg0: i32) -> (i32, i32) {
    %c0_i32 = arith.constant 0 : i32
    %c0_i32_0 = arith.constant 0 : i32
    %c0_i32_1 = arith.constant 0 : i32
    return %c0_i32, %c0_i32_0 : i32, i32
  }
  func.func @transform_3(%arg0: i32) -> (i32, i32) {
    %c0_i32 = arith.constant 0 : i32
    %c0_i32_0 = arith.constant 0 : i32
    return %arg0, %c0_i32 : i32, i32
  }
}

module attributes {stable_mosaic.version = 11 : i64} {
  func.func @conv_gemm_silu_kernel(%arg0: i32, %arg1: memref<256x144xbf16, #tpu.memory_space<vmem>>, %arg2: memref<144x32xbf16, #tpu.memory_space<vmem>>, %arg3: memref<1x32xf32, #tpu.memory_space<vmem>>, %arg4: memref<256x32xbf16, #tpu.memory_space<vmem>>) attributes {dimension_semantics = [#tpu.dimension_semantics<parallel>], iteration_bounds = array<i64: 2>, scalar_prefetch = 0 : i64, scratch_operands = 0 : i64, tpu.core_type = #tpu.core_type<tc>, window_params = [{transform_indices = @transform_0, window_bounds = array<i64: 256, 144>}, {pipeline_mode = #tpu.pipeline_mode<synchronous>, transform_indices = @transform_1, window_bounds = array<i64: 144, 32>}, {pipeline_mode = #tpu.pipeline_mode<synchronous>, transform_indices = @transform_2, window_bounds = array<i64: 1, 32>}, {transform_indices = @transform_3, window_bounds = array<i64: 256, 32>}]} {
    %c0 = arith.constant 0 : index
    %c0_0 = arith.constant 0 : index
    %0 = vector.load %arg1[%c0, %c0_0] : memref<256x144xbf16, #tpu.memory_space<vmem>>, vector<256x144xbf16>
    %c0_1 = arith.constant 0 : index
    %c0_2 = arith.constant 0 : index
    %1 = vector.load %arg2[%c0_1, %c0_2] : memref<144x32xbf16, #tpu.memory_space<vmem>>, vector<144x32xbf16>
    %cst = arith.constant dense<0.000000e+00> : vector<256x32xf32>
    %2 = tpu.matmul %0, %1, %cst {dimension_numbers = #tpu.dot_dimension_numbers<[1], [0], [0], [1], [0, 0, 1, 1], [], []>} : vector<256x144xbf16>, vector<144x32xbf16>, vector<256x32xf32> -> vector<256x32xf32>
    %c0_3 = arith.constant 0 : index
    %c0_4 = arith.constant 0 : index
    %3 = vector.load %arg3[%c0_3, %c0_4] : memref<1x32xf32, #tpu.memory_space<vmem>>, vector<1x32xf32>
    %4 = vector.broadcast %3 : vector<1x32xf32> to vector<256x32xf32>
    %5 = arith.addf %2, %4 : vector<256x32xf32>
    %6 = arith.negf %5 : vector<256x32xf32>
    %7 = math.exp %6 : vector<256x32xf32>
    %cst_5 = arith.constant 1.000000e+00 : f32
    %8 = vector.broadcast %cst_5 : f32 to vector<256x32xf32>
    %9 = arith.addf %8, %7 : vector<256x32xf32>
    %10 = arith.divf %8, %9 : vector<256x32xf32>
    %11 = arith.mulf %5, %10 : vector<256x32xf32>
    %12 = arith.truncf %11 : vector<256x32xf32> to vector<256x32xbf16>
    %c0_6 = arith.constant 0 : index
    %c0_7 = arith.constant 0 : index
    %13 = vector.load %arg4[%c0_6, %c0_7] : memref<256x32xbf16, #tpu.memory_space<vmem>>, vector<256x32xbf16>
    tpu.vector_store %arg4[%c0_6, %c0_7], %12 {strides = array<i32>} : memref<256x32xbf16, #tpu.memory_space<vmem>>, vector<256x32xbf16>,
    return
  }
  func.func @transform_0(%arg0: i32) -> (i32, i32) {
    %c0_i32 = arith.constant 0 : i32
    %c0_i32_0 = arith.constant 0 : i32
    return %arg0, %c0_i32 : i32, i32
  }
  func.func @transform_1(%arg0: i32) -> (i32, i32) {
    %c0_i32 = arith.constant 0 : i32
    %c0_i32_0 = arith.constant 0 : i32
    %c0_i32_1 = arith.constant 0 : i32
    return %c0_i32, %c0_i32_0 : i32, i32
  }
  func.func @transform_2(%arg0: i32) -> (i32, i32) {
    %c0_i32 = arith.constant 0 : i32
    %c0_i32_0 = arith.constant 0 : i32
    %c0_i32_1 = arith.constant 0 : i32
    return %c0_i32, %c0_i32_0 : i32, i32
  }
  func.func @transform_3(%arg0: i32) -> (i32, i32) {
    %c0_i32 = arith.constant 0 : i32
    %c0_i32_0 = arith.constant 0 : i32
    return %arg0, %c0_i32 : i32, i32
  }
}

module attributes {stable_mosaic.version = 11 : i64} {
  func.func @conv_gemm_silu_kernel(%arg0: i32, %arg1: memref<128x288xbf16, #tpu.memory_space<vmem>>, %arg2: memref<288x64xbf16, #tpu.memory_space<vmem>>, %arg3: memref<1x64xf32, #tpu.memory_space<vmem>>, %arg4: memref<128x64xbf16, #tpu.memory_space<vmem>>) attributes {dimension_semantics = [#tpu.dimension_semantics<parallel>], iteration_bounds = array<i64: 1>, scalar_prefetch = 0 : i64, scratch_operands = 0 : i64, tpu.core_type = #tpu.core_type<tc>, window_params = [{transform_indices = @transform_0, window_bounds = array<i64: 128, 288>}, {pipeline_mode = #tpu.pipeline_mode<synchronous>, transform_indices = @transform_1, window_bounds = array<i64: 288, 64>}, {pipeline_mode = #tpu.pipeline_mode<synchronous>, transform_indices = @transform_2, window_bounds = array<i64: 1, 64>}, {transform_indices = @transform_3, window_bounds = array<i64: 128, 64>}]} {
    %c0 = arith.constant 0 : index
    %c0_0 = arith.constant 0 : index
    %0 = vector.load %arg1[%c0, %c0_0] : memref<128x288xbf16, #tpu.memory_space<vmem>>, vector<128x288xbf16>
    %c0_1 = arith.constant 0 : index
    %c0_2 = arith.constant 0 : index
    %1 = vector.load %arg2[%c0_1, %c0_2] : memref<288x64xbf16, #tpu.memory_space<vmem>>, vector<288x64xbf16>
    %cst = arith.constant dense<0.000000e+00> : vector<128x64xf32>
    %2 = tpu.matmul %0, %1, %cst {dimension_numbers = #tpu.dot_dimension_numbers<[1], [0], [0], [1], [0, 0, 1, 1], [], []>} : vector<128x288xbf16>, vector<288x64xbf16>, vector<128x64xf32> -> vector<128x64xf32>
    %c0_3 = arith.constant 0 : index
    %c0_4 = arith.constant 0 : index
    %3 = vector.load %arg3[%c0_3, %c0_4] : memref<1x64xf32, #tpu.memory_space<vmem>>, vector<1x64xf32>
    %4 = vector.broadcast %3 : vector<1x64xf32> to vector<128x64xf32>
    %5 = arith.addf %2, %4 : vector<128x64xf32>
    %6 = arith.negf %5 : vector<128x64xf32>
    %7 = math.exp %6 : vector<128x64xf32>
    %cst_5 = arith.constant 1.000000e+00 : f32
    %8 = vector.broadcast %cst_5 : f32 to vector<128x64xf32>
    %9 = arith.addf %8, %7 : vector<128x64xf32>
    %10 = arith.divf %8, %9 : vector<128x64xf32>
    %11 = arith.mulf %5, %10 : vector<128x64xf32>
    %12 = arith.truncf %11 : vector<128x64xf32> to vector<128x64xbf16>
    %c0_6 = arith.constant 0 : index
    %c0_7 = arith.constant 0 : index
    %13 = vector.load %arg4[%c0_6, %c0_7] : memref<128x64xbf16, #tpu.memory_space<vmem>>, vector<128x64xbf16>
    tpu.vector_store %arg4[%c0_6, %c0_7], %12 {strides = array<i32>} : memref<128x64xbf16, #tpu.memory_space<vmem>>, vector<128x64xbf16>,
    return
  }
  func.func @transform_0(%arg0: i32) -> (i32, i32) {
    %c0_i32 = arith.constant 0 : i32
    %c0_i32_0 = arith.constant 0 : i32
    return %arg0, %c0_i32 : i32, i32
  }
  func.func @transform_1(%arg0: i32) -> (i32, i32) {
    %c0_i32 = arith.constant 0 : i32
    %c0_i32_0 = arith.constant 0 : i32
    %c0_i32_1 = arith.constant 0 : i32
    return %c0_i32, %c0_i32_0 : i32, i32
  }
  func.func @transform_2(%arg0: i32) -> (i32, i32) {
    %c0_i32 = arith.constant 0 : i32
    %c0_i32_0 = arith.constant 0 : i32
    %c0_i32_1 = arith.constant 0 : i32
    return %c0_i32, %c0_i32_0 : i32, i32
  }
  func.func @transform_3(%arg0: i32) -> (i32, i32) {
    %c0_i32 = arith.constant 0 : i32
    %c0_i32_0 = arith.constant 0 : i32
    return %arg0, %c0_i32 : i32, i32
  }
}

module attributes {stable_mosaic.version = 11 : i64} {
  func.func @detect_kernel(%arg0: i32, %arg1: i32, %arg2: memref<1x64x64xbf16, #tpu.memory_space<vmem>>, %arg3: memref<64x24xbf16, #tpu.memory_space<vmem>>, %arg4: memref<8x24xf32, #tpu.memory_space<vmem>>, %arg5: memref<1x3x64x8xf32, #tpu.memory_space<vmem>>, %arg6: memref<1x3x64x8xf32, #tpu.memory_space<vmem>>) attributes {dimension_semantics = [#tpu.dimension_semantics<parallel>, #tpu.dimension_semantics<parallel>], iteration_bounds = array<i64: 2, 1>, scalar_prefetch = 0 : i64, scratch_operands = 0 : i64, tpu.core_type = #tpu.core_type<tc>, window_params = [{transform_indices = @transform_0, window_bounds = array<i64: 1, 64, 64>}, {pipeline_mode = #tpu.pipeline_mode<synchronous>, transform_indices = @transform_1, window_bounds = array<i64: 64, 24>}, {pipeline_mode = #tpu.pipeline_mode<synchronous>, transform_indices = @transform_2, window_bounds = array<i64: 8, 24>}, {transform_indices = @transform_3, window_bounds = array<i64: 1, 3, 64, 8>}, {transform_indices = @transform_4, window_bounds = array<i64: 1, 3, 64, 8>}]} {
    %c0 = arith.constant 0 : index
    %c0_0 = arith.constant 0 : index
    %c0_1 = arith.constant 0 : index
    %0 = vector.load %arg2[%c0, %c0_0, %c0_1] : memref<1x64x64xbf16, #tpu.memory_space<vmem>>, vector<1x64x64xbf16>
    %1 = vector.shape_cast %0 : vector<1x64x64xbf16> to vector<64x64xbf16>
    %c0_2 = arith.constant 0 : index
    %c0_3 = arith.constant 0 : index
    %2 = vector.load %arg3[%c0_2, %c0_3] : memref<64x24xbf16, #tpu.memory_space<vmem>>, vector<64x24xbf16>
    %cst = arith.constant dense<0.000000e+00> : vector<64x24xf32>
    %3 = tpu.matmul %1, %2, %cst {dimension_numbers = #tpu.dot_dimension_numbers<[1], [0], [0], [1], [0, 0, 1, 1], [], []>} : vector<64x64xbf16>, vector<64x24xbf16>, vector<64x24xf32> -> vector<64x24xf32>
    %c0_4 = arith.constant 0 : index
    %c0_5 = arith.constant 0 : index
    %4 = vector.load %arg4[%c0_4, %c0_5] : memref<8x24xf32, #tpu.memory_space<vmem>>, vector<1x24xf32>
    %5 = vector.broadcast %4 : vector<1x24xf32> to vector<64x24xf32>
    %6 = arith.addf %3, %5 : vector<64x24xf32>
    %7 = arith.negf %6 : vector<64x24xf32>
    %8 = math.exp %7 : vector<64x24xf32>
    %cst_6 = arith.constant 1.000000e+00 : f32
    %9 = vector.broadcast %cst_6 : f32 to vector<64x24xf32>
    %10 = arith.addf %9, %8 : vector<64x24xf32>
    %11 = arith.divf %9, %10 : vector<64x24xf32>
    %c64_i32 = arith.constant 64 : i32
    %12 = arith.muli %arg1, %c64_i32 : i32
    %13 = tpu.iota {dimensions = array<i32: 0>} : vector<64x24xi32>
    %14 = vector.broadcast %12 : i32 to vector<64x24xi32>
    %15 = arith.addi %14, %13 : vector<64x24xi32>
    %c7_i32 = arith.constant 7 : i32
    %16 = vector.broadcast %c7_i32 : i32 to vector<64x24xi32>
    %17 = arith.andi %15, %16 : vector<64x24xi32>
    %18 = arith.sitofp %17 : vector<64x24xi32> to vector<64x24xf32>
    %c3_i32 = arith.constant 3 : i32
    %19 = vector.broadcast %c3_i32 : i32 to vector<64x24xi32>
    %20 = arith.shrsi %15, %19 : vector<64x24xi32>
    %21 = arith.sitofp %20 : vector<64x24xi32> to vector<64x24xf32>
    %c1 = arith.constant 1 : index
    %c0_7 = arith.constant 0 : index
    %22 = vector.load %arg4[%c1, %c0_7] : memref<8x24xf32, #tpu.memory_space<vmem>>, vector<1x24xf32>
    %c2 = arith.constant 2 : index
    %c0_8 = arith.constant 0 : index
    %23 = vector.load %arg4[%c2, %c0_8] : memref<8x24xf32, #tpu.memory_space<vmem>>, vector<1x24xf32>
    %c3 = arith.constant 3 : index
    %c0_9 = arith.constant 0 : index
    %24 = vector.load %arg4[%c3, %c0_9] : memref<8x24xf32, #tpu.memory_space<vmem>>, vector<1x24xf32>
    %c4 = arith.constant 4 : index
    %c0_10 = arith.constant 0 : index
    %25 = vector.load %arg4[%c4, %c0_10] : memref<8x24xf32, #tpu.memory_space<vmem>>, vector<1x24xf32>
    %26 = arith.addf %22, %23 : vector<1x24xf32>
    %27 = vector.broadcast %22 : vector<1x24xf32> to vector<64x24xf32>
    %28 = arith.mulf %27, %18 : vector<64x24xf32>
    %29 = vector.broadcast %23 : vector<1x24xf32> to vector<64x24xf32>
    %30 = arith.mulf %29, %21 : vector<64x24xf32>
    %31 = arith.addf %28, %30 : vector<64x24xf32>
    %cst_11 = arith.constant 2.000000e+00 : f32
    %32 = vector.broadcast %cst_11 : f32 to vector<64x24xf32>
    %33 = arith.mulf %11, %32 : vector<64x24xf32>
    %cst_12 = arith.constant 5.000000e-01 : f32
    %34 = vector.broadcast %cst_12 : f32 to vector<64x24xf32>
    %35 = arith.subf %33, %34 : vector<64x24xf32>
    %36 = arith.addf %35, %31 : vector<64x24xf32>
    %cst_13 = arith.constant 8.000000e+00 : f32
    %37 = vector.broadcast %cst_13 : f32 to vector<64x24xf32>
    %38 = arith.mulf %36, %37 : vector<64x24xf32>
    %cst_14 = arith.constant 2.000000e+00 : f32
    %39 = vector.broadcast %cst_14 : f32 to vector<64x24xf32>
    %40 = arith.mulf %11, %39 : vector<64x24xf32>
    %41 = arith.mulf %40, %40 : vector<64x24xf32>
    %42 = vector.broadcast %25 : vector<1x24xf32> to vector<64x24xf32>
    %43 = arith.mulf %41, %42 : vector<64x24xf32>
    %44 = vector.broadcast %26 : vector<1x24xf32> to vector<64x24xf32>
    %45 = arith.mulf %44, %38 : vector<64x24xf32>
    %46 = vector.broadcast %24 : vector<1x24xf32> to vector<64x24xf32>
    %47 = arith.mulf %46, %43 : vector<64x24xf32>
    %48 = arith.addf %45, %47 : vector<64x24xf32>
    %cst_15 = arith.constant 1.000000e+00 : f32
    %49 = vector.broadcast %cst_15 : f32 to vector<1x24xf32>
    %50 = arith.subf %49, %26 : vector<1x24xf32>
    %51 = arith.subf %50, %24 : vector<1x24xf32>
    %52 = vector.broadcast %51 : vector<1x24xf32> to vector<64x24xf32>
    %53 = arith.mulf %52, %11 : vector<64x24xf32>
    %54 = arith.addf %48, %53 : vector<64x24xf32>
    %55 = vector.extract_strided_slice %6 {offsets = [0, 0], sizes = [64, 8], strides = [1, 1]} : vector<64x24xf32> to vector<64x8xf32>
    %c0_16 = arith.constant 0 : index
    %c0_17 = arith.constant 0 : index
    %c0_18 = arith.constant 0 : index
    %c0_19 = arith.constant 0 : index
    %56 = vector.load %arg5[%c0_16, %c0_17, %c0_18, %c0_19] : memref<1x3x64x8xf32, #tpu.memory_space<vmem>>, vector<1x1x64x8xf32>
    %57 = vector.shape_cast %56 : vector<1x1x64x8xf32> to vector<64x8xf32>
    %58 = vector.shape_cast %55 : vector<64x8xf32> to vector<1x1x64x8xf32>
    tpu.vector_store %arg5[%c0_16, %c0_17, %c0_18, %c0_19], %58 {strides = array<i32>} : memref<1x3x64x8xf32, #tpu.memory_space<vmem>>, vector<1x1x64x8xf32>,
    %59 = vector.extract_strided_slice %54 {offsets = [0, 0], sizes = [64, 8], strides = [1, 1]} : vector<64x24xf32> to vector<64x8xf32>
    %c0_20 = arith.constant 0 : index
    %c0_21 = arith.constant 0 : index
    %c0_22 = arith.constant 0 : index
    %c0_23 = arith.constant 0 : index
    %60 = vector.load %arg6[%c0_20, %c0_21, %c0_22, %c0_23] : memref<1x3x64x8xf32, #tpu.memory_space<vmem>>, vector<1x1x64x8xf32>
    %61 = vector.shape_cast %60 : vector<1x1x64x8xf32> to vector<64x8xf32>
    %62 = vector.shape_cast %59 : vector<64x8xf32> to vector<1x1x64x8xf32>
    tpu.vector_store %arg6[%c0_20, %c0_21, %c0_22, %c0_23], %62 {strides = array<i32>} : memref<1x3x64x8xf32, #tpu.memory_space<vmem>>, vector<1x1x64x8xf32>,
    %63 = vector.extract_strided_slice %6 {offsets = [0, 8], sizes = [64, 8], strides = [1, 1]} : vector<64x24xf32> to vector<64x8xf32>
    %c0_24 = arith.constant 0 : index
    %c1_25 = arith.constant 1 : index
    %c0_26 = arith.constant 0 : index
    %c0_27 = arith.constant 0 : index
    %64 = vector.load %arg5[%c0_24, %c1_25, %c0_26, %c0_27] : memref<1x3x64x8xf32, #tpu.memory_space<vmem>>, vector<1x1x64x8xf32>
    %65 = vector.shape_cast %64 : vector<1x1x64x8xf32> to vector<64x8xf32>
    %66 = vector.shape_cast %63 : vector<64x8xf32> to vector<1x1x64x8xf32>
    tpu.vector_store %arg5[%c0_24, %c1_25, %c0_26, %c0_27], %66 {strides = array<i32>} : memref<1x3x64x8xf32, #tpu.memory_space<vmem>>, vector<1x1x64x8xf32>,
    %67 = vector.extract_strided_slice %54 {offsets = [0, 8], sizes = [64, 8], strides = [1, 1]} : vector<64x24xf32> to vector<64x8xf32>
    %c0_28 = arith.constant 0 : index
    %c1_29 = arith.constant 1 : index
    %c0_30 = arith.constant 0 : index
    %c0_31 = arith.constant 0 : index
    %68 = vector.load %arg6[%c0_28, %c1_29, %c0_30, %c0_31] : memref<1x3x64x8xf32, #tpu.memory_space<vmem>>, vector<1x1x64x8xf32>
    %69 = vector.shape_cast %68 : vector<1x1x64x8xf32> to vector<64x8xf32>
    %70 = vector.shape_cast %67 : vector<64x8xf32> to vector<1x1x64x8xf32>
    tpu.vector_store %arg6[%c0_28, %c1_29, %c0_30, %c0_31], %70 {strides = array<i32>} : memref<1x3x64x8xf32, #tpu.memory_space<vmem>>, vector<1x1x64x8xf32>,
    %71 = vector.extract_strided_slice %6 {offsets = [0, 16], sizes = [64, 8], strides = [1, 1]} : vector<64x24xf32> to vector<64x8xf32>
    %c0_32 = arith.constant 0 : index
    %c2_33 = arith.constant 2 : index
    %c0_34 = arith.constant 0 : index
    %c0_35 = arith.constant 0 : index
    %72 = vector.load %arg5[%c0_32, %c2_33, %c0_34, %c0_35] : memref<1x3x64x8xf32, #tpu.memory_space<vmem>>, vector<1x1x64x8xf32>
    %73 = vector.shape_cast %72 : vector<1x1x64x8xf32> to vector<64x8xf32>
    %74 = vector.shape_cast %71 : vector<64x8xf32> to vector<1x1x64x8xf32>
    tpu.vector_store %arg5[%c0_32, %c2_33, %c0_34, %c0_35], %74 {strides = array<i32>} : memref<1x3x64x8xf32, #tpu.memory_space<vmem>>, vector<1x1x64x8xf32>,
    %75 = vector.extract_strided_slice %54 {offsets = [0, 16], sizes = [64, 8], strides = [1, 1]} : vector<64x24xf32> to vector<64x8xf32>
    %c0_36 = arith.constant 0 : index
    %c2_37 = arith.constant 2 : index
    %c0_38 = arith.constant 0 : index
    %c0_39 = arith.constant 0 : index
    %76 = vector.load %arg6[%c0_36, %c2_37, %c0_38, %c0_39] : memref<1x3x64x8xf32, #tpu.memory_space<vmem>>, vector<1x1x64x8xf32>
    %77 = vector.shape_cast %76 : vector<1x1x64x8xf32> to vector<64x8xf32>
    %78 = vector.shape_cast %75 : vector<64x8xf32> to vector<1x1x64x8xf32>
    tpu.vector_store %arg6[%c0_36, %c2_37, %c0_38, %c0_39], %78 {strides = array<i32>} : memref<1x3x64x8xf32, #tpu.memory_space<vmem>>, vector<1x1x64x8xf32>,
    return
  }
  func.func @transform_0(%arg0: i32, %arg1: i32) -> (i32, i32, i32) {
    %c0_i32 = arith.constant 0 : i32
    %c0_i32_0 = arith.constant 0 : i32
    return %arg0, %arg1, %c0_i32 : i32, i32, i32
  }
  func.func @transform_1(%arg0: i32, %arg1: i32) -> (i32, i32) {
    %c0_i32 = arith.constant 0 : i32
    %c0_i32_0 = arith.constant 0 : i32
    %c0_i32_1 = arith.constant 0 : i32
    return %c0_i32, %c0_i32_0 : i32, i32
  }
  func.func @transform_2(%arg0: i32, %arg1: i32) -> (i32, i32) {
    %c0_i32 = arith.constant 0 : i32
    %c0_i32_0 = arith.constant 0 : i32
    %c0_i32_1 = arith.constant 0 : i32
    return %c0_i32, %c0_i32_0 : i32, i32
  }
  func.func @transform_3(%arg0: i32, %arg1: i32) -> (i32, i32, i32, i32) {
    %c0_i32 = arith.constant 0 : i32
    %c0_i32_0 = arith.constant 0 : i32
    %c0_i32_1 = arith.constant 0 : i32
    return %arg0, %c0_i32, %arg1, %c0_i32_0 : i32, i32, i32, i32
  }
  func.func @transform_4(%arg0: i32, %arg1: i32) -> (i32, i32, i32, i32) {
    %c0_i32 = arith.constant 0 : i32
    %c0_i32_0 = arith.constant 0 : i32
    %c0_i32_1 = arith.constant 0 : i32
    return %arg0, %c0_i32, %arg1, %c0_i32_0 : i32, i32, i32, i32
  }
}

module attributes {stable_mosaic.version = 11 : i64} {
  func.func @detect_kernel(%arg0: i32, %arg1: i32, %arg2: memref<1x256x32xbf16, #tpu.memory_space<vmem>>, %arg3: memref<32x24xbf16, #tpu.memory_space<vmem>>, %arg4: memref<8x24xf32, #tpu.memory_space<vmem>>, %arg5: memref<1x3x256x8xf32, #tpu.memory_space<vmem>>, %arg6: memref<1x3x256x8xf32, #tpu.memory_space<vmem>>) attributes {dimension_semantics = [#tpu.dimension_semantics<parallel>, #tpu.dimension_semantics<parallel>], iteration_bounds = array<i64: 2, 1>, scalar_prefetch = 0 : i64, scratch_operands = 0 : i64, tpu.core_type = #tpu.core_type<tc>, window_params = [{transform_indices = @transform_0, window_bounds = array<i64: 1, 256, 32>}, {pipeline_mode = #tpu.pipeline_mode<synchronous>, transform_indices = @transform_1, window_bounds = array<i64: 32, 24>}, {pipeline_mode = #tpu.pipeline_mode<synchronous>, transform_indices = @transform_2, window_bounds = array<i64: 8, 24>}, {transform_indices = @transform_3, window_bounds = array<i64: 1, 3, 256, 8>}, {transform_indices = @transform_4, window_bounds = array<i64: 1, 3, 256, 8>}]} {
    %c0 = arith.constant 0 : index
    %c0_0 = arith.constant 0 : index
    %c0_1 = arith.constant 0 : index
    %0 = vector.load %arg2[%c0, %c0_0, %c0_1] : memref<1x256x32xbf16, #tpu.memory_space<vmem>>, vector<1x256x32xbf16>
    %1 = vector.shape_cast %0 : vector<1x256x32xbf16> to vector<256x32xbf16>
    %c0_2 = arith.constant 0 : index
    %c0_3 = arith.constant 0 : index
    %2 = vector.load %arg3[%c0_2, %c0_3] : memref<32x24xbf16, #tpu.memory_space<vmem>>, vector<32x24xbf16>
    %cst = arith.constant dense<0.000000e+00> : vector<256x24xf32>
    %3 = tpu.matmul %1, %2, %cst {dimension_numbers = #tpu.dot_dimension_numbers<[1], [0], [0], [1], [0, 0, 1, 1], [], []>} : vector<256x32xbf16>, vector<32x24xbf16>, vector<256x24xf32> -> vector<256x24xf32>
    %c0_4 = arith.constant 0 : index
    %c0_5 = arith.constant 0 : index
    %4 = vector.load %arg4[%c0_4, %c0_5] : memref<8x24xf32, #tpu.memory_space<vmem>>, vector<1x24xf32>
    %5 = vector.broadcast %4 : vector<1x24xf32> to vector<256x24xf32>
    %6 = arith.addf %3, %5 : vector<256x24xf32>
    %7 = arith.negf %6 : vector<256x24xf32>
    %8 = math.exp %7 : vector<256x24xf32>
    %cst_6 = arith.constant 1.000000e+00 : f32
    %9 = vector.broadcast %cst_6 : f32 to vector<256x24xf32>
    %10 = arith.addf %9, %8 : vector<256x24xf32>
    %11 = arith.divf %9, %10 : vector<256x24xf32>
    %c256_i32 = arith.constant 256 : i32
    %12 = arith.muli %arg1, %c256_i32 : i32
    %13 = tpu.iota {dimensions = array<i32: 0>} : vector<256x24xi32>
    %14 = vector.broadcast %12 : i32 to vector<256x24xi32>
    %15 = arith.addi %14, %13 : vector<256x24xi32>
    %c15_i32 = arith.constant 15 : i32
    %16 = vector.broadcast %c15_i32 : i32 to vector<256x24xi32>
    %17 = arith.andi %15, %16 : vector<256x24xi32>
    %18 = arith.sitofp %17 : vector<256x24xi32> to vector<256x24xf32>
    %c4_i32 = arith.constant 4 : i32
    %19 = vector.broadcast %c4_i32 : i32 to vector<256x24xi32>
    %20 = arith.shrsi %15, %19 : vector<256x24xi32>
    %21 = arith.sitofp %20 : vector<256x24xi32> to vector<256x24xf32>
    %c1 = arith.constant 1 : index
    %c0_7 = arith.constant 0 : index
    %22 = vector.load %arg4[%c1, %c0_7] : memref<8x24xf32, #tpu.memory_space<vmem>>, vector<1x24xf32>
    %c2 = arith.constant 2 : index
    %c0_8 = arith.constant 0 : index
    %23 = vector.load %arg4[%c2, %c0_8] : memref<8x24xf32, #tpu.memory_space<vmem>>, vector<1x24xf32>
    %c3 = arith.constant 3 : index
    %c0_9 = arith.constant 0 : index
    %24 = vector.load %arg4[%c3, %c0_9] : memref<8x24xf32, #tpu.memory_space<vmem>>, vector<1x24xf32>
    %c4 = arith.constant 4 : index
    %c0_10 = arith.constant 0 : index
    %25 = vector.load %arg4[%c4, %c0_10] : memref<8x24xf32, #tpu.memory_space<vmem>>, vector<1x24xf32>
    %26 = arith.addf %22, %23 : vector<1x24xf32>
    %27 = vector.broadcast %22 : vector<1x24xf32> to vector<256x24xf32>
    %28 = arith.mulf %27, %18 : vector<256x24xf32>
    %29 = vector.broadcast %23 : vector<1x24xf32> to vector<256x24xf32>
    %30 = arith.mulf %29, %21 : vector<256x24xf32>
    %31 = arith.addf %28, %30 : vector<256x24xf32>
    %cst_11 = arith.constant 2.000000e+00 : f32
    %32 = vector.broadcast %cst_11 : f32 to vector<256x24xf32>
    %33 = arith.mulf %11, %32 : vector<256x24xf32>
    %cst_12 = arith.constant 5.000000e-01 : f32
    %34 = vector.broadcast %cst_12 : f32 to vector<256x24xf32>
    %35 = arith.subf %33, %34 : vector<256x24xf32>
    %36 = arith.addf %35, %31 : vector<256x24xf32>
    %cst_13 = arith.constant 4.000000e+00 : f32
    %37 = vector.broadcast %cst_13 : f32 to vector<256x24xf32>
    %38 = arith.mulf %36, %37 : vector<256x24xf32>
    %cst_14 = arith.constant 2.000000e+00 : f32
    %39 = vector.broadcast %cst_14 : f32 to vector<256x24xf32>
    %40 = arith.mulf %11, %39 : vector<256x24xf32>
    %41 = arith.mulf %40, %40 : vector<256x24xf32>
    %42 = vector.broadcast %25 : vector<1x24xf32> to vector<256x24xf32>
    %43 = arith.mulf %41, %42 : vector<256x24xf32>
    %44 = vector.broadcast %26 : vector<1x24xf32> to vector<256x24xf32>
    %45 = arith.mulf %44, %38 : vector<256x24xf32>
    %46 = vector.broadcast %24 : vector<1x24xf32> to vector<256x24xf32>
    %47 = arith.mulf %46, %43 : vector<256x24xf32>
    %48 = arith.addf %45, %47 : vector<256x24xf32>
    %cst_15 = arith.constant 1.000000e+00 : f32
    %49 = vector.broadcast %cst_15 : f32 to vector<1x24xf32>
    %50 = arith.subf %49, %26 : vector<1x24xf32>
    %51 = arith.subf %50, %24 : vector<1x24xf32>
    %52 = vector.broadcast %51 : vector<1x24xf32> to vector<256x24xf32>
    %53 = arith.mulf %52, %11 : vector<256x24xf32>
    %54 = arith.addf %48, %53 : vector<256x24xf32>
    %55 = vector.extract_strided_slice %6 {offsets = [0, 0], sizes = [256, 8], strides = [1, 1]} : vector<256x24xf32> to vector<256x8xf32>
    %c0_16 = arith.constant 0 : index
    %c0_17 = arith.constant 0 : index
    %c0_18 = arith.constant 0 : index
    %c0_19 = arith.constant 0 : index
    %56 = vector.load %arg5[%c0_16, %c0_17, %c0_18, %c0_19] : memref<1x3x256x8xf32, #tpu.memory_space<vmem>>, vector<1x1x256x8xf32>
    %57 = vector.shape_cast %56 : vector<1x1x256x8xf32> to vector<256x8xf32>
    %58 = vector.shape_cast %55 : vector<256x8xf32> to vector<1x1x256x8xf32>
    tpu.vector_store %arg5[%c0_16, %c0_17, %c0_18, %c0_19], %58 {strides = array<i32>} : memref<1x3x256x8xf32, #tpu.memory_space<vmem>>, vector<1x1x256x8xf32>,
    %59 = vector.extract_strided_slice %54 {offsets = [0, 0], sizes = [256, 8], strides = [1, 1]} : vector<256x24xf32> to vector<256x8xf32>
    %c0_20 = arith.constant 0 : index
    %c0_21 = arith.constant 0 : index
    %c0_22 = arith.constant 0 : index
    %c0_23 = arith.constant 0 : index
    %60 = vector.load %arg6[%c0_20, %c0_21, %c0_22, %c0_23] : memref<1x3x256x8xf32, #tpu.memory_space<vmem>>, vector<1x1x256x8xf32>
    %61 = vector.shape_cast %60 : vector<1x1x256x8xf32> to vector<256x8xf32>
    %62 = vector.shape_cast %59 : vector<256x8xf32> to vector<1x1x256x8xf32>
    tpu.vector_store %arg6[%c0_20, %c0_21, %c0_22, %c0_23], %62 {strides = array<i32>} : memref<1x3x256x8xf32, #tpu.memory_space<vmem>>, vector<1x1x256x8xf32>,
    %63 = vector.extract_strided_slice %6 {offsets = [0, 8], sizes = [256, 8], strides = [1, 1]} : vector<256x24xf32> to vector<256x8xf32>
    %c0_24 = arith.constant 0 : index
    %c1_25 = arith.constant 1 : index
    %c0_26 = arith.constant 0 : index
    %c0_27 = arith.constant 0 : index
    %64 = vector.load %arg5[%c0_24, %c1_25, %c0_26, %c0_27] : memref<1x3x256x8xf32, #tpu.memory_space<vmem>>, vector<1x1x256x8xf32>
    %65 = vector.shape_cast %64 : vector<1x1x256x8xf32> to vector<256x8xf32>
    %66 = vector.shape_cast %63 : vector<256x8xf32> to vector<1x1x256x8xf32>
    tpu.vector_store %arg5[%c0_24, %c1_25, %c0_26, %c0_27], %66 {strides = array<i32>} : memref<1x3x256x8xf32, #tpu.memory_space<vmem>>, vector<1x1x256x8xf32>,
    %67 = vector.extract_strided_slice %54 {offsets = [0, 8], sizes = [256, 8], strides = [1, 1]} : vector<256x24xf32> to vector<256x8xf32>
    %c0_28 = arith.constant 0 : index
    %c1_29 = arith.constant 1 : index
    %c0_30 = arith.constant 0 : index
    %c0_31 = arith.constant 0 : index
    %68 = vector.load %arg6[%c0_28, %c1_29, %c0_30, %c0_31] : memref<1x3x256x8xf32, #tpu.memory_space<vmem>>, vector<1x1x256x8xf32>
    %69 = vector.shape_cast %68 : vector<1x1x256x8xf32> to vector<256x8xf32>
    %70 = vector.shape_cast %67 : vector<256x8xf32> to vector<1x1x256x8xf32>
    tpu.vector_store %arg6[%c0_28, %c1_29, %c0_30, %c0_31], %70 {strides = array<i32>} : memref<1x3x256x8xf32, #tpu.memory_space<vmem>>, vector<1x1x256x8xf32>,
    %71 = vector.extract_strided_slice %6 {offsets = [0, 16], sizes = [256, 8], strides = [1, 1]} : vector<256x24xf32> to vector<256x8xf32>
    %c0_32 = arith.constant 0 : index
    %c2_33 = arith.constant 2 : index
    %c0_34 = arith.constant 0 : index
    %c0_35 = arith.constant 0 : index
    %72 = vector.load %arg5[%c0_32, %c2_33, %c0_34, %c0_35] : memref<1x3x256x8xf32, #tpu.memory_space<vmem>>, vector<1x1x256x8xf32>
    %73 = vector.shape_cast %72 : vector<1x1x256x8xf32> to vector<256x8xf32>
    %74 = vector.shape_cast %71 : vector<256x8xf32> to vector<1x1x256x8xf32>
    tpu.vector_store %arg5[%c0_32, %c2_33, %c0_34, %c0_35], %74 {strides = array<i32>} : memref<1x3x256x8xf32, #tpu.memory_space<vmem>>, vector<1x1x256x8xf32>,
    %75 = vector.extract_strided_slice %54 {offsets = [0, 16], sizes = [256, 8], strides = [1, 1]} : vector<256x24xf32> to vector<256x8xf32>
    %c0_36 = arith.constant 0 : index
    %c2_37 = arith.constant 2 : index
    %c0_38 = arith.constant 0 : index
    %c0_39 = arith.constant 0 : index
    %76 = vector.load %arg6[%c0_36, %c2_37, %c0_38, %c0_39] : memref<1x3x256x8xf32, #tpu.memory_space<vmem>>, vector<1x1x256x8xf32>
    %77 = vector.shape_cast %76 : vector<1x1x256x8xf32> to vector<256x8xf32>
    %78 = vector.shape_cast %75 : vector<256x8xf32> to vector<1x1x256x8xf32>
    tpu.vector_store %arg6[%c0_36, %c2_37, %c0_38, %c0_39], %78 {strides = array<i32>} : memref<1x3x256x8xf32, #tpu.memory_space<vmem>>, vector<1x1x256x8xf32>,
    return
  }
  func.func @transform_0(%arg0: i32, %arg1: i32) -> (i32, i32, i32) {
    %c0_i32 = arith.constant 0 : i32
    %c0_i32_0 = arith.constant 0 : i32
    return %arg0, %arg1, %c0_i32 : i32, i32, i32
  }
  func.func @transform_1(%arg0: i32, %arg1: i32) -> (i32, i32) {
    %c0_i32 = arith.constant 0 : i32
    %c0_i32_0 = arith.constant 0 : i32
    %c0_i32_1 = arith.constant 0 : i32
    return %c0_i32, %c0_i32_0 : i32, i32
  }
  func.func @transform_2(%arg0: i32, %arg1: i32) -> (i32, i32) {
    %c0_i32 = arith.constant 0 : i32
    %c0_i32_0 = arith.constant 0 : i32
    %c0_i32_1 = arith.constant 0 : i32
    return %c0_i32, %c0_i32_0 : i32, i32
  }
  func.func @transform_3(%arg0: i32, %arg1: i32) -> (i32, i32, i32, i32) {
    %c0_i32 = arith.constant 0 : i32
    %c0_i32_0 = arith.constant 0 : i32
    %c0_i32_1 = arith.constant 0 : i32
    return %arg0, %c0_i32, %arg1, %c0_i32_0 : i32, i32, i32, i32
  }
  func.func @transform_4(%arg0: i32, %arg1: i32) -> (i32, i32, i32, i32) {
    %c0_i32 = arith.constant 0 : i32
    %c0_i32_0 = arith.constant 0 : i32
    %c0_i32_1 = arith.constant 0 : i32
    return %arg0, %c0_i32, %arg1, %c0_i32_0 : i32, i32, i32, i32
  }
}

module attributes {stable_mosaic.version = 11 : i64} {
  func.func @detect_kernel(%arg0: i32, %arg1: i32, %arg2: memref<1x256x16xbf16, #tpu.memory_space<vmem>>, %arg3: memref<16x24xbf16, #tpu.memory_space<vmem>>, %arg4: memref<8x24xf32, #tpu.memory_space<vmem>>, %arg5: memref<1x3x256x8xf32, #tpu.memory_space<vmem>>, %arg6: memref<1x3x256x8xf32, #tpu.memory_space<vmem>>) attributes {dimension_semantics = [#tpu.dimension_semantics<parallel>, #tpu.dimension_semantics<parallel>], iteration_bounds = array<i64: 2, 4>, scalar_prefetch = 0 : i64, scratch_operands = 0 : i64, tpu.core_type = #tpu.core_type<tc>, window_params = [{transform_indices = @transform_0, window_bounds = array<i64: 1, 256, 16>}, {pipeline_mode = #tpu.pipeline_mode<synchronous>, transform_indices = @transform_1, window_bounds = array<i64: 16, 24>}, {pipeline_mode = #tpu.pipeline_mode<synchronous>, transform_indices = @transform_2, window_bounds = array<i64: 8, 24>}, {transform_indices = @transform_3, window_bounds = array<i64: 1, 3, 256, 8>}, {transform_indices = @transform_4, window_bounds = array<i64: 1, 3, 256, 8>}]} {
    %c0 = arith.constant 0 : index
    %c0_0 = arith.constant 0 : index
    %c0_1 = arith.constant 0 : index
    %0 = vector.load %arg2[%c0, %c0_0, %c0_1] : memref<1x256x16xbf16, #tpu.memory_space<vmem>>, vector<1x256x16xbf16>
    %1 = vector.shape_cast %0 : vector<1x256x16xbf16> to vector<256x16xbf16>
    %c0_2 = arith.constant 0 : index
    %c0_3 = arith.constant 0 : index
    %2 = vector.load %arg3[%c0_2, %c0_3] : memref<16x24xbf16, #tpu.memory_space<vmem>>, vector<16x24xbf16>
    %cst = arith.constant dense<0.000000e+00> : vector<256x24xf32>
    %3 = tpu.matmul %1, %2, %cst {dimension_numbers = #tpu.dot_dimension_numbers<[1], [0], [0], [1], [0, 0, 1, 1], [], []>} : vector<256x16xbf16>, vector<16x24xbf16>, vector<256x24xf32> -> vector<256x24xf32>
    %c0_4 = arith.constant 0 : index
    %c0_5 = arith.constant 0 : index
    %4 = vector.load %arg4[%c0_4, %c0_5] : memref<8x24xf32, #tpu.memory_space<vmem>>, vector<1x24xf32>
    %5 = vector.broadcast %4 : vector<1x24xf32> to vector<256x24xf32>
    %6 = arith.addf %3, %5 : vector<256x24xf32>
    %7 = arith.negf %6 : vector<256x24xf32>
    %8 = math.exp %7 : vector<256x24xf32>
    %cst_6 = arith.constant 1.000000e+00 : f32
    %9 = vector.broadcast %cst_6 : f32 to vector<256x24xf32>
    %10 = arith.addf %9, %8 : vector<256x24xf32>
    %11 = arith.divf %9, %10 : vector<256x24xf32>
    %c256_i32 = arith.constant 256 : i32
    %12 = arith.muli %arg1, %c256_i32 : i32
    %13 = tpu.iota {dimensions = array<i32: 0>} : vector<256x24xi32>
    %14 = vector.broadcast %12 : i32 to vector<256x24xi32>
    %15 = arith.addi %14, %13 : vector<256x24xi32>
    %c31_i32 = arith.constant 31 : i32
    %16 = vector.broadcast %c31_i32 : i32 to vector<256x24xi32>
    %17 = arith.andi %15, %16 : vector<256x24xi32>
    %18 = arith.sitofp %17 : vector<256x24xi32> to vector<256x24xf32>
    %c5_i32 = arith.constant 5 : i32
    %19 = vector.broadcast %c5_i32 : i32 to vector<256x24xi32>
    %20 = arith.shrsi %15, %19 : vector<256x24xi32>
    %21 = arith.sitofp %20 : vector<256x24xi32> to vector<256x24xf32>
    %c1 = arith.constant 1 : index
    %c0_7 = arith.constant 0 : index
    %22 = vector.load %arg4[%c1, %c0_7] : memref<8x24xf32, #tpu.memory_space<vmem>>, vector<1x24xf32>
    %c2 = arith.constant 2 : index
    %c0_8 = arith.constant 0 : index
    %23 = vector.load %arg4[%c2, %c0_8] : memref<8x24xf32, #tpu.memory_space<vmem>>, vector<1x24xf32>
    %c3 = arith.constant 3 : index
    %c0_9 = arith.constant 0 : index
    %24 = vector.load %arg4[%c3, %c0_9] : memref<8x24xf32, #tpu.memory_space<vmem>>, vector<1x24xf32>
    %c4 = arith.constant 4 : index
    %c0_10 = arith.constant 0 : index
    %25 = vector.load %arg4[%c4, %c0_10] : memref<8x24xf32, #tpu.memory_space<vmem>>, vector<1x24xf32>
    %26 = arith.addf %22, %23 : vector<1x24xf32>
    %27 = vector.broadcast %22 : vector<1x24xf32> to vector<256x24xf32>
    %28 = arith.mulf %27, %18 : vector<256x24xf32>
    %29 = vector.broadcast %23 : vector<1x24xf32> to vector<256x24xf32>
    %30 = arith.mulf %29, %21 : vector<256x24xf32>
    %31 = arith.addf %28, %30 : vector<256x24xf32>
    %cst_11 = arith.constant 2.000000e+00 : f32
    %32 = vector.broadcast %cst_11 : f32 to vector<256x24xf32>
    %33 = arith.mulf %11, %32 : vector<256x24xf32>
    %cst_12 = arith.constant 5.000000e-01 : f32
    %34 = vector.broadcast %cst_12 : f32 to vector<256x24xf32>
    %35 = arith.subf %33, %34 : vector<256x24xf32>
    %36 = arith.addf %35, %31 : vector<256x24xf32>
    %cst_13 = arith.constant 2.000000e+00 : f32
    %37 = vector.broadcast %cst_13 : f32 to vector<256x24xf32>
    %38 = arith.mulf %36, %37 : vector<256x24xf32>
    %cst_14 = arith.constant 2.000000e+00 : f32
    %39 = vector.broadcast %cst_14 : f32 to vector<256x24xf32>
    %40 = arith.mulf %11, %39 : vector<256x24xf32>
    %41 = arith.mulf %40, %40 : vector<256x24xf32>
    %42 = vector.broadcast %25 : vector<1x24xf32> to vector<256x24xf32>
    %43 = arith.mulf %41, %42 : vector<256x24xf32>
    %44 = vector.broadcast %26 : vector<1x24xf32> to vector<256x24xf32>
    %45 = arith.mulf %44, %38 : vector<256x24xf32>
    %46 = vector.broadcast %24 : vector<1x24xf32> to vector<256x24xf32>
    %47 = arith.mulf %46, %43 : vector<256x24xf32>
    %48 = arith.addf %45, %47 : vector<256x24xf32>
    %cst_15 = arith.constant 1.000000e+00 : f32
    %49 = vector.broadcast %cst_15 : f32 to vector<1x24xf32>
    %50 = arith.subf %49, %26 : vector<1x24xf32>
    %51 = arith.subf %50, %24 : vector<1x24xf32>
    %52 = vector.broadcast %51 : vector<1x24xf32> to vector<256x24xf32>
    %53 = arith.mulf %52, %11 : vector<256x24xf32>
    %54 = arith.addf %48, %53 : vector<256x24xf32>
    %55 = vector.extract_strided_slice %6 {offsets = [0, 0], sizes = [256, 8], strides = [1, 1]} : vector<256x24xf32> to vector<256x8xf32>
    %c0_16 = arith.constant 0 : index
    %c0_17 = arith.constant 0 : index
    %c0_18 = arith.constant 0 : index
    %c0_19 = arith.constant 0 : index
    %56 = vector.load %arg5[%c0_16, %c0_17, %c0_18, %c0_19] : memref<1x3x256x8xf32, #tpu.memory_space<vmem>>, vector<1x1x256x8xf32>
    %57 = vector.shape_cast %56 : vector<1x1x256x8xf32> to vector<256x8xf32>
    %58 = vector.shape_cast %55 : vector<256x8xf32> to vector<1x1x256x8xf32>
    tpu.vector_store %arg5[%c0_16, %c0_17, %c0_18, %c0_19], %58 {strides = array<i32>} : memref<1x3x256x8xf32, #tpu.memory_space<vmem>>, vector<1x1x256x8xf32>,
    %59 = vector.extract_strided_slice %54 {offsets = [0, 0], sizes = [256, 8], strides = [1, 1]} : vector<256x24xf32> to vector<256x8xf32>
    %c0_20 = arith.constant 0 : index
    %c0_21 = arith.constant 0 : index
    %c0_22 = arith.constant 0 : index
    %c0_23 = arith.constant 0 : index
    %60 = vector.load %arg6[%c0_20, %c0_21, %c0_22, %c0_23] : memref<1x3x256x8xf32, #tpu.memory_space<vmem>>, vector<1x1x256x8xf32>
    %61 = vector.shape_cast %60 : vector<1x1x256x8xf32> to vector<256x8xf32>
    %62 = vector.shape_cast %59 : vector<256x8xf32> to vector<1x1x256x8xf32>
    tpu.vector_store %arg6[%c0_20, %c0_21, %c0_22, %c0_23], %62 {strides = array<i32>} : memref<1x3x256x8xf32, #tpu.memory_space<vmem>>, vector<1x1x256x8xf32>,
    %63 = vector.extract_strided_slice %6 {offsets = [0, 8], sizes = [256, 8], strides = [1, 1]} : vector<256x24xf32> to vector<256x8xf32>
    %c0_24 = arith.constant 0 : index
    %c1_25 = arith.constant 1 : index
    %c0_26 = arith.constant 0 : index
    %c0_27 = arith.constant 0 : index
    %64 = vector.load %arg5[%c0_24, %c1_25, %c0_26, %c0_27] : memref<1x3x256x8xf32, #tpu.memory_space<vmem>>, vector<1x1x256x8xf32>
    %65 = vector.shape_cast %64 : vector<1x1x256x8xf32> to vector<256x8xf32>
    %66 = vector.shape_cast %63 : vector<256x8xf32> to vector<1x1x256x8xf32>
    tpu.vector_store %arg5[%c0_24, %c1_25, %c0_26, %c0_27], %66 {strides = array<i32>} : memref<1x3x256x8xf32, #tpu.memory_space<vmem>>, vector<1x1x256x8xf32>,
    %67 = vector.extract_strided_slice %54 {offsets = [0, 8], sizes = [256, 8], strides = [1, 1]} : vector<256x24xf32> to vector<256x8xf32>
    %c0_28 = arith.constant 0 : index
    %c1_29 = arith.constant 1 : index
    %c0_30 = arith.constant 0 : index
    %c0_31 = arith.constant 0 : index
    %68 = vector.load %arg6[%c0_28, %c1_29, %c0_30, %c0_31] : memref<1x3x256x8xf32, #tpu.memory_space<vmem>>, vector<1x1x256x8xf32>
    %69 = vector.shape_cast %68 : vector<1x1x256x8xf32> to vector<256x8xf32>
    %70 = vector.shape_cast %67 : vector<256x8xf32> to vector<1x1x256x8xf32>
    tpu.vector_store %arg6[%c0_28, %c1_29, %c0_30, %c0_31], %70 {strides = array<i32>} : memref<1x3x256x8xf32, #tpu.memory_space<vmem>>, vector<1x1x256x8xf32>,
    %71 = vector.extract_strided_slice %6 {offsets = [0, 16], sizes = [256, 8], strides = [1, 1]} : vector<256x24xf32> to vector<256x8xf32>
    %c0_32 = arith.constant 0 : index
    %c2_33 = arith.constant 2 : index
    %c0_34 = arith.constant 0 : index
    %c0_35 = arith.constant 0 : index
    %72 = vector.load %arg5[%c0_32, %c2_33, %c0_34, %c0_35] : memref<1x3x256x8xf32, #tpu.memory_space<vmem>>, vector<1x1x256x8xf32>
    %73 = vector.shape_cast %72 : vector<1x1x256x8xf32> to vector<256x8xf32>
    %74 = vector.shape_cast %71 : vector<256x8xf32> to vector<1x1x256x8xf32>
    tpu.vector_store %arg5[%c0_32, %c2_33, %c0_34, %c0_35], %74 {strides = array<i32>} : memref<1x3x256x8xf32, #tpu.memory_space<vmem>>, vector<1x1x256x8xf32>,
    %75 = vector.extract_strided_slice %54 {offsets = [0, 16], sizes = [256, 8], strides = [1, 1]} : vector<256x24xf32> to vector<256x8xf32>
    %c0_36 = arith.constant 0 : index
    %c2_37 = arith.constant 2 : index
    %c0_38 = arith.constant 0 : index
    %c0_39 = arith.constant 0 : index
    %76 = vector.load %arg6[%c0_36, %c2_37, %c0_38, %c0_39] : memref<1x3x256x8xf32, #tpu.memory_space<vmem>>, vector<1x1x256x8xf32>
    %77 = vector.shape_cast %76 : vector<1x1x256x8xf32> to vector<256x8xf32>
    %78 = vector.shape_cast %75 : vector<256x8xf32> to vector<1x1x256x8xf32>
    tpu.vector_store %arg6[%c0_36, %c2_37, %c0_38, %c0_39], %78 {strides = array<i32>} : memref<1x3x256x8xf32, #tpu.memory_space<vmem>>, vector<1x1x256x8xf32>,
    return
  }
  func.func @transform_0(%arg0: i32, %arg1: i32) -> (i32, i32, i32) {
    %c0_i32 = arith.constant 0 : i32
    %c0_i32_0 = arith.constant 0 : i32
    return %arg0, %arg1, %c0_i32 : i32, i32, i32
  }
  func.func @transform_1(%arg0: i32, %arg1: i32) -> (i32, i32) {
    %c0_i32 = arith.constant 0 : i32
    %c0_i32_0 = arith.constant 0 : i32
    %c0_i32_1 = arith.constant 0 : i32
    return %c0_i32, %c0_i32_0 : i32, i32
  }
  func.func @transform_2(%arg0: i32, %arg1: i32) -> (i32, i32) {
    %c0_i32 = arith.constant 0 : i32
    %c0_i32_0 = arith.constant 0 : i32
    %c0_i32_1 = arith.constant 0 : i32
    return %c0_i32, %c0_i32_0 : i32, i32
  }
  func.func @transform_3(%arg0: i32, %arg1: i32) -> (i32, i32, i32, i32) {
    %c0_i32 = arith.constant 0 : i32
    %c0_i32_0 = arith.constant 0 : i32
    %c0_i32_1 = arith.constant 0 : i32
    return %arg0, %c0_i32, %arg1, %c0_i32_0 : i32, i32, i32, i32
  }
  func.func @transform_4(%arg0: i32, %arg1: i32) -> (i32, i32, i32, i32) {
    %c0_i32 = arith.constant 0 : i32
    %c0_i32_0 = arith.constant 0 : i32
    %c0_i32_1 = arith.constant 0 : i32
    return %arg0, %c0_i32, %arg1, %c0_i32_0 : i32, i32, i32, i32
  }
}

</mosaic_0001>

<llo_original>
// kernel: _lambda_.6
$region0: #{_lambda_.6}
  #allocation0 [shape = 'u32[]', space=smem, size = 0x4, offset = 0x4, fixed_abs, tag = 'smem constant byte address 0x4 - core index']
  #allocation1 [shape = 'u32[144,128]{1,0:T(1,128)}', space=vmem, size = 0x12000, scoped, tag = 'internal scratch']
  %s0 = inlined_call_operand.vmem [shape: bf16[2048,36], index: 0, kind: input, shape index: {}]
  %s1 = inlined_call_operand.vmem [shape: bf16[36,16], index: 1, kind: input, shape index: {}]
  %s2 = inlined_call_operand.vmem [shape: f32[1,16], index: 2, kind: input, shape index: {}]
  %s3 = inlined_call_operand.vmem [shape: bf16[2048,16], index: 3, kind: output, shape index: {}]
  %s4 = sld [smem:[#allocation0]]
  $region45: #{_lambda_.6} parent=0
    _
  %s6 = ssub.s32 1, %s4
  %s7 = scalar_select 0, %s6, %s4
  loop: start=0, step=1, limit=10
  $region2: #{_lambda_.6} parent=0 // loop_pre_header
    _
  $region3: #{_lambda_.6} parent=0 // loop_header
    %s9 = sphi 0, %s13
    %p10 = scmp.ge.s32.totalorder %s9, 10
    %s19 = sphi 0, %s21
    %s22 = sphi 0, %s19
    %s23 = sphi 0, %s22
    %s39 = sphi 0, %s23
    %s43 = sphi 0, %s43
    %s45 = sphi 0, %s43
    %s46 = sphi 0, %s45
    %s60 = sphi 0, %s46
    %s64 = sphi 0, %s64
    %s66 = sphi 0, %s64
    %s67 = sphi 0, %s66
    %s81 = sphi 0, %s67
    %s87 = sphi 0, %s89
    %s90 = sphi 0, %s87
    %s91 = sphi 0, %s90
    %s107 = sphi 0, %s91
  $region4: #{_lambda_.6} parent=0 // loop_header_branch
    %12 = sbr.rel (%p10) target = $region8
  $region5: #{_lambda_.6} parent=0 // loop_body
    %s14 = ssub.s32 %s9, 1
    %s15 = ssub.s32 %s9, 2
    %s16 = sadd.s32 %s9, 1
    %s17 = ssub.s32 %s9, %s16
    %p18 = scmp.eq.s32.totalorder %s17, 0
    %s20 = sadd.s32 %s19, 1
    %s21 = scalar_select %p18, %s19, %s20
    %p24 = pneg %p18
    %p25 = scmp.eq.s32.totalorder %s9, 7
    %p26 = por %p24, %p25
    %p27 = scmp.ne.s32.totalorder %s19, %s22
    %p28 = scmp.eq.s32.totalorder %s9, 0
    %p29 = por %p27, %p28
    %p30 = scmp.ne.s32.totalorder %s19, %s22
    %p31 = scmp.eq.s32.totalorder %s14, 7
    %p32 = por %p30, %p31
    %p33 = scmp.ne.s32.totalorder %s22, %s23
    %p34 = scmp.eq.s32.totalorder %s14, 0
    %p35 = por %p33, %p34
    %p36 = scmp.ne.s32.totalorder %s22, %s23
    %p37 = scmp.eq.s32.totalorder %s15, 7
    %p38 = por %p36, %p37
    %p40 = scmp.ne.s32.totalorder %s23, %s39
    %p41 = scmp.eq.s32.totalorder %s15, 0
    %p42 = por %p40, %p41
    %s44 = sadd.s32 %s43, 1
    %p47 = scmp.eq.s32.totalorder %s9, 7
    %p48 = scmp.ne.s32.totalorder %s43, %s45
    %p49 = scmp.eq.s32.totalorder %s9, 0
    %p50 = por %p48, %p49
    %p51 = scmp.ne.s32.totalorder %s43, %s45
    %p52 = scmp.eq.s32.totalorder %s14, 7
    %p53 = por %p51, %p52
    %p54 = scmp.ne.s32.totalorder %s45, %s46
    %p55 = scmp.eq.s32.totalorder %s14, 0
    %p56 = por %p54, %p55
    %p57 = scmp.ne.s32.totalorder %s45, %s46
    %p58 = scmp.eq.s32.totalorder %s15, 7
    %p59 = por %p57, %p58
    %p61 = scmp.ne.s32.totalorder %s46, %s60
    %p62 = scmp.eq.s32.totalorder %s15, 0
    %p63 = por %p61, %p62
    %s65 = sadd.s32 %s64, 1
    %p68 = scmp.eq.s32.totalorder %s9, 7
    %p69 = scmp.ne.s32.totalorder %s64, %s66
    %p70 = scmp.eq.s32.totalorder %s9, 0
    %p71 = por %p69, %p70
    %p72 = scmp.ne.s32.totalorder %s64, %s66
    %p73 = scmp.eq.s32.totalorder %s14, 7
    %p74 = por %p72, %p73
    %p75 = scmp.ne.s32.totalorder %s66, %s67
    %p76 = scmp.eq.s32.totalorder %s14, 0
    %p77 = por %p75, %p76
    %p78 = scmp.ne.s32.totalorder %s66, %s67
    %p79 = scmp.eq.s32.totalorder %s15, 7
    %p80 = por %p78, %p79
    %p82 = scmp.ne.s32.totalorder %s67, %s81
    %p83 = scmp.eq.s32.totalorder %s15, 0
    %p84 = por %p82, %p83
    %s85 = ssub.s32 %s9, %s16
    %p86 = scmp.eq.s32.totalorder %s85, 0
    %s88 = sadd.s32 %s87, 1
    %s89 = scalar_select %p86, %s87, %s88
    %p92 = pneg %p86
    %p93 = scmp.eq.s32.totalorder %s9, 7
    %p94 = por %p92, %p93
    %p95 = scmp.ne.s32.totalorder %s87, %s90
    %p96 = scmp.eq.s32.totalorder %s9, 0
    %p97 = por %p95, %p96
    %p98 = scmp.ne.s32.totalorder %s87, %s90
    %p99 = scmp.eq.s32.totalorder %s14, 7
    %p100 = por %p98, %p99
    %p101 = scmp.ne.s32.totalorder %s90, %s91
    %p102 = scmp.eq.s32.totalorder %s14, 0
    %p103 = por %p101, %p102
    %p104 = scmp.ne.s32.totalorder %s90, %s91
    %p105 = scmp.eq.s32.totalorder %s15, 7
    %p106 = por %p104, %p105
    %p108 = scmp.ne.s32.totalorder %s91, %s107
    %p109 = scmp.eq.s32.totalorder %s15, 0
    %p110 = por %p108, %p109
    %p111 = scmp.le.s32.totalorder 1, %s9
    %p112 = scmp.lt.s32.totalorder %s9, 9
    %p113 = pnand %p111, %p112
    %p114 = pneg %p113
    // Predicated region
    $region9: #{_lambda_.6} parent=5 // pred_check
      _
    $region10: #{_lambda_.6} parent=5 // pred_check_branch
      %116 = sbr.rel (%p113) target = $region12
    $region11: #{_lambda_.6} parent=5 // pred_region
      %s117 = ssub.s32 %s9, 1
      // Predicated region
      $region13: #{_lambda_.6} parent=11 // pred_check
        %p118 = pneg %p56
      $region14: #{_lambda_.6} parent=11 // pred_check_branch
        %120 = sbr.rel (%p118) target = $region16
      $region15: #{_lambda_.6} parent=11 // pred_region
        _
      $region16: #{_lambda_.6} parent=11 // pred_fallthru
        _
      // Predicated region
      $region17: #{_lambda_.6} parent=11 // pred_check
        %p121 = pneg %p77
      $region18: #{_lambda_.6} parent=11 // pred_check_branch
        %123 = sbr.rel (%p121) target = $region20
      $region19: #{_lambda_.6} parent=11 // pred_region
        _
      $region20: #{_lambda_.6} parent=11 // pred_fallthru
        _
    $region12: #{_lambda_.6} parent=5 // pred_fallthru
      _
    %p124 = scmp.lt.s32.totalorder %s9, 8
    // Predicated region
    $region21: #{_lambda_.6} parent=5 // pred_check
      %p125 = pneg %p124
    $region22: #{_lambda_.6} parent=5 // pred_check_branch
      %127 = sbr.rel (%p125) target = $region24
    $region23: #{_lambda_.6} parent=5 // pred_region
      // Predicated region
      $region25: #{_lambda_.6} parent=23 // pred_check
        %p128 = pneg %p29
      $region26: #{_lambda_.6} parent=23 // pred_check_branch
        %130 = sbr.rel (%p128) target = $region28
      $region27: #{_lambda_.6} parent=23 // pred_region
        %s131 = smul.u32 32, %s9
        %p132 = scmp.lt.s32.totalorder %s131, 255
        %s133 = scalar_select %p132, %s131, 255
        %s134 = smul.addr %s133, 4
        %s135 = scalar_lea.vmem %s0, %s134
        %s136 = smul.u32 32, %s9
      $region28: #{_lambda_.6} parent=23 // pred_fallthru
        _
    $region24: #{_lambda_.6} parent=5 // pred_fallthru
      _
    %p137 = scmp.le.s32.totalorder 1, %s9
    %p138 = scmp.lt.s32.totalorder %s9, 9
    %p139 = pnand %p137, %p138
    %p140 = pneg %p139
    // Predicated region
    $region29: #{_lambda_.6} parent=5 // pred_check
      _
    $region30: #{_lambda_.6} parent=5 // pred_check_branch
      %142 = sbr.rel (%p139) target = $region32
    $region31: #{_lambda_.6} parent=5 // pred_region
      %s143 = ssub.s32 %s9, 1
      %s144 = smul.u32 32, %s14
      %p145 = scmp.lt.s32.totalorder %s144, 255
      %s146 = scalar_select %p145, %s144, 255
      %s147 = smul.addr %s146, 4
      %s148 = scalar_lea.vmem %s0, %s147
      %p149 = pneg %p35
      %p150 = pneg %p32
      %p151 = pneg %p56
      %p152 = pneg %p53
      %p153 = pneg %p77
      %p154 = pneg %p74
      %p155 = pneg %p103
      %p156 = pneg %p100
      %s157 = smul.u32 32, %s14
      %p158 = scmp.lt.s32.totalorder %s157, 255
      %s159 = scalar_select %p158, %s157, 255
      %s160 = smul.addr %s159, 4
      %s161 = scalar_lea.vmem %s3, %s160
      %s162 = smul.u32 32, %s14
      %p163 = scmp.lt.s32.totalorder %s162, 255
      %s164 = scalar_select %p163, %s162, 255
      %s165 = smul.addr %s164, 4
      %s166 = scalar_lea.vmem %s0, %s165
      %s167 = smul.u32 32, %s14
      %s168 = smul.u32 32, %s14
      %p169 = scmp.lt.s32.totalorder %s168, 255
      %s170 = scalar_select %p169, %s168, 255
      %s171 = smul.addr %s170, 4
      %s172 = scalar_lea.vmem %s3, %s171
      %s173 = smul.u32 32, %s14
      %v175 = vld [vmem:[%s166] sm:$0xf]
      %v176 = vld [vmem:[%s166 + $0x4] sm:$0xf]
      %v177 = vld [vmem:[%s166 + $0x8] sm:$0xf]
      %v178 = vld [vmem:[%s166 + $0xc] sm:$0xf]
      %v179 = vld [vmem:[%s166 + $0x10] sm:$0xf]
      %v180 = vld [vmem:[%s166 + $0x14] sm:$0xf]
      %v181 = vld [vmem:[%s166 + $0x18] sm:$0xf]
      %v182 = vld [vmem:[%s166 + $0x1c] sm:$0xf]
      %v183 = vld [vmem:[%s166 + $0x20] sm:$0xf]
      %v184 = vld [vmem:[%s166 + $0x24] sm:$0xf]
      %v185 = vld [vmem:[%s166 + $0x28] sm:$0xf]
      %v186 = vld [vmem:[%s166 + $0x2c] sm:$0xf]
      %v187 = vld [vmem:[%s166 + $0x30] sm:$0xf]
      %v188 = vld [vmem:[%s166 + $0x34] sm:$0xf]
      %v189 = vld [vmem:[%s166 + $0x38] sm:$0xf]
      %v190 = vld [vmem:[%s166 + $0x3c] sm:$0xf]
      %v191 = vld [vmem:[%s166 + $0x40] sm:$0xf]
      %v192 = vld [vmem:[%s166 + $0x44] sm:$0xf]
      %v193 = vld [vmem:[%s166 + $0x48] sm:$0xf]
      %v194 = vld [vmem:[%s166 + $0x4c] sm:$0xf]
      %v195 = vld [vmem:[%s166 + $0x50] sm:$0xf]
      %v196 = vld [vmem:[%s166 + $0x54] sm:$0xf]
      %v197 = vld [vmem:[%s166 + $0x58] sm:$0xf]
      %v198 = vld [vmem:[%s166 + $0x5c] sm:$0xf]
      %v199 = vld [vmem:[%s166 + $0x60] sm:$0xf]
      %v200 = vld [vmem:[%s166 + $0x64] sm:$0xf]
      %v201 = vld [vmem:[%s166 + $0x68] sm:$0xf]
      %v202 = vld [vmem:[%s166 + $0x6c] sm:$0xf]
      %v203 = vld [vmem:[%s166 + $0x70] sm:$0xf]
      %v204 = vld [vmem:[%s166 + $0x74] sm:$0xf]
      %v205 = vld [vmem:[%s166 + $0x78] sm:$0xf]
      %v206 = vld [vmem:[%s166 + $0x7c] sm:$0xf]
      %v207 = vld [vmem:[%s1] sm:$0xf]
      %v208 = vld [vmem:[%s1 + $0x4] sm:$0xf]
      %v209 = vld [vmem:[%s1 + $0x8] sm:$0xf]
      %v210 = vld [vmem:[%s1 + $0xc] sm:$0xf]
      %v211 = vld [vmem:[%s1 + $0x10] sm:$0x3]
      %v212 = vld [vmem:[%s2] sm:$0x1]
      %v214 = vlaneseq
      %v215 = vshrl.u32 %v214, 7
      %v216 = vsub.s32 0, %v215
      %v217 = vrot.slane %v212, %v216
      %v251 = vunpack.c.l.b16 %v175
      %v252 = vunpack.c.l.b16 %v176
      %v253 = vunpack.c.l.b16 %v177
      %v254 = vunpack.c.l.b16 %v178
      %v255 = vunpack.c.l.b16 %v179
      %v256 = vunpack.c.l.b16 %v180
      %v257 = vunpack.c.l.b16 %v181
      %v258 = vunpack.c.l.b16 %v182
      %v259 = vunpack.c.l.b16 %v183
      %v260 = vunpack.c.l.b16 %v184
      %v261 = vunpack.c.l.b16 %v185
      %v262 = vunpack.c.l.b16 %v186
      %v263 = vunpack.c.l.b16 %v187
      %v264 = vunpack.c.l.b16 %v188
      %v265 = vunpack.c.l.b16 %v189
      %v266 = vunpack.c.l.b16 %v190
      %v267 = vunpack.c.l.b16 %v191
      %v268 = vunpack.c.l.b16 %v192
      %v269 = vunpack.c.l.b16 %v193
      %v270 = vunpack.c.l.b16 %v194
      %v271 = vunpack.c.l.b16 %v195
      %v272 = vunpack.c.l.b16 %v196
      %v273 = vunpack.c.l.b16 %v197
      %v274 = vunpack.c.l.b16 %v198
      %v275 = vunpack.c.l.b16 %v199
      %v276 = vunpack.c.l.b16 %v200
      %v277 = vunpack.c.l.b16 %v201
      %v278 = vunpack.c.l.b16 %v202
      %v279 = vunpack.c.l.b16 %v203
      %v280 = vunpack.c.l.b16 %v204
      %v281 = vunpack.c.l.b16 %v205
      %v282 = vunpack.c.l.b16 %v206
      %v283 = vpack.c.b16 %v252, %v251
      %v284 = vpack.c.b16 %v254, %v253
      %v285 = vpack.c.b16 %v256, %v255
      %v286 = vpack.c.b16 %v258, %v257
      %v287 = vpack.c.b16 %v260, %v259
      %v288 = vpack.c.b16 %v262, %v261
      %v289 = vpack.c.b16 %v264, %v263
      %v290 = vpack.c.b16 %v266, %v265
      %v291 = vpack.c.b16 %v268, %v267
      %v292 = vpack.c.b16 %v270, %v269
      %v293 = vpack.c.b16 %v272, %v271
      %v294 = vpack.c.b16 %v274, %v273
      %v295 = vpack.c.b16 %v276, %v275
      %v296 = vpack.c.b16 %v278, %v277
      %v297 = vpack.c.b16 %v280, %v279
      %v298 = vpack.c.b16 %v282, %v281
      %v304 = vunpack.c.l.b16 %v207
      %v305 = vunpack.c.l.b16 %v208
      %v306 = vunpack.c.l.b16 %v209
      %v307 = vunpack.c.l.b16 %v210
      %v308 = vunpack.c.l.b16 %v211
      %v309 = vpack.c.b16 %v305, %v304
      %v310 = vpack.c.b16 %v307, %v306
      %v311 = vpack.c.b16 %v308, %v308
      %vm314 = vcmask 293888
      %v316 = vsel %vm314, %v283, 0
      %v319 = vsel %vm314, %v284, 0
      %v322 = vsel %vm314, %v285, 0
      %v325 = vsel %vm314, %v286, 0
      %v328 = vsel %vm314, %v287, 0
      %v331 = vsel %vm314, %v288, 0
      %v334 = vsel %vm314, %v289, 0
      %v337 = vsel %vm314, %v290, 0
      %v340 = vsel %vm314, %v291, 0
      %v343 = vsel %vm314, %v292, 0
      %v346 = vsel %vm314, %v293, 0
      %v349 = vsel %vm314, %v294, 0
      %v352 = vsel %vm314, %v295, 0
      %v355 = vsel %vm314, %v296, 0
      %v358 = vsel %vm314, %v297, 0
      %v361 = vsel %vm314, %v298, 0
      %vm363 = vcmask 1041408
      %v365 = vsel %vm363, %v311, 0
      %367 = vmatprep.subr.bf16.mxu0 0
      %368 = vmatpush1.bf16.msra.mxu0 %v309
      %369 = vmatprep.subr.bf16.mxu0 0
      %370 = vmatpush1.bf16.msra.mxu0 %v310
      %371 = vmatprep.subr.bf16.mxu0 0
      %372 = vmatpush1.bf16.msra.mxu0 %v365
      %373 = vmatprep.subr.bf16.mxu0 0
      %374 = vmatpush1.bf16.msra.mxu0 0
      %375 = vmatprep.subr.bf16.mxu0 0
      %376 = vmatpush1.bf16.msra.mxu0 0
      %377 = vmatprep.subr.bf16.mxu0 0
      %378 = vmatpush1.bf16.msra.mxu0 0
      %379 = vmatprep.subr.bf16.mxu0 0
      %380 = vmatpush1.bf16.msra.mxu0 0
      %381 = vmatprep.subr.bf16.mxu0 0
      %382 = vmatpush1.bf16.msra.mxu0 0
      %383 = vmatprep.subr.bf16.mxu0 0
      %384 = vmatpush1.bf16.msra.mxu0 0
      %385 = vmatprep.subr.bf16.mxu0 0
      %386 = vmatpush1.bf16.msra.mxu0 0
      %387 = vmatprep.subr.bf16.mxu0 0
      %388 = vmatpush1.bf16.msra.mxu0 0
      %389 = vmatprep.subr.bf16.mxu0 0
      %390 = vmatpush1.bf16.msra.mxu0 0
      %391 = vmatprep.subr.bf16.mxu0 0
      %392 = vmatpush1.bf16.msra.mxu0 0
      %393 = vmatprep.subr.bf16.mxu0 0
      %394 = vmatpush1.bf16.msra.mxu0 0
      %395 = vmatprep.subr.bf16.mxu0 0
      %396 = vmatpush1.bf16.msra.mxu0 0
      %397 = vmatprep.subr.bf16.mxu0 0
      %398 = vmatpush1.bf16.msra.mxu0 0
      %399 = vmatprep.mubr.bf16.mxu0 0
      %400 = vmatmul.mubr.bf16.gmra.mrb[0].mxu0 %v316
      %v401 = vpop.f32.mrb[0].mxu0
      %v402 = vadd.f32 %v217, %v401
      %v403 = vpop.f32.mrb[0].mxu0
      %v404 = vpop.f32.mrb[0].mxu0
      %v405 = vadd.f32 %v217, %v404
      %v406 = vpop.f32.mrb[0].mxu0
      %407 = vmatprep.mubr.bf16.mxu0 0
      %408 = vmatmul.mubr.bf16.gmra.mrb[0].mxu0 %v319
      %v409 = vpop.f32.mrb[0].mxu0
      %v410 = vadd.f32 %v217, %v409
      %v411 = vpop.f32.mrb[0].mxu0
      %v412 = vpop.f32.mrb[0].mxu0
      %v413 = vadd.f32 %v217, %v412
      %v414 = vpop.f32.mrb[0].mxu0
      %415 = vmatprep.mubr.bf16.mxu0 0
      %416 = vmatmul.mubr.bf16.gmra.mrb[0].mxu0 %v322
      %v417 = vpop.f32.mrb[0].mxu0
      %v418 = vadd.f32 %v217, %v417
      %v419 = vpop.f32.mrb[0].mxu0
      %v420 = vpop.f32.mrb[0].mxu0
      %v421 = vadd.f32 %v217, %v420
      %v422 = vpop.f32.mrb[0].mxu0
      %423 = vmatprep.mubr.bf16.mxu0 0
      %424 = vmatmul.mubr.bf16.gmra.mrb[0].mxu0 %v325
      %v425 = vpop.f32.mrb[0].mxu0
      %v426 = vadd.f32 %v217, %v425
      %v427 = vpop.f32.mrb[0].mxu0
      %v428 = vpop.f32.mrb[0].mxu0
      %v429 = vadd.f32 %v217, %v428
      %v430 = vpop.f32.mrb[0].mxu0
      %431 = vmatprep.mubr.bf16.mxu0 0
      %432 = vmatmul.mubr.bf16.gmra.mrb[0].mxu0 %v328
      %v433 = vpop.f32.mrb[0].mxu0
      %v434 = vadd.f32 %v217, %v433
      %v435 = vpop.f32.mrb[0].mxu0
      %v436 = vpop.f32.mrb[0].mxu0
      %v437 = vadd.f32 %v217, %v436
      %v438 = vpop.f32.mrb[0].mxu0
      %439 = vmatprep.mubr.bf16.mxu0 0
      %440 = vmatmul.mubr.bf16.gmra.mrb[0].mxu0 %v331
      %v441 = vpop.f32.mrb[0].mxu0
      %v442 = vadd.f32 %v217, %v441
      %v443 = vpop.f32.mrb[0].mxu0
      %v444 = vpop.f32.mrb[0].mxu0
      %v445 = vadd.f32 %v217, %v444
      %v446 = vpop.f32.mrb[0].mxu0
      %447 = vmatprep.mubr.bf16.mxu0 0
      %448 = vmatmul.mubr.bf16.gmra.mrb[0].mxu0 %v334
      %v449 = vpop.f32.mrb[0].mxu0
      %v450 = vadd.f32 %v217, %v449
      %v451 = vpop.f32.mrb[0].mxu0
      %v452 = vpop.f32.mrb[0].mxu0
      %v453 = vadd.f32 %v217, %v452
      %v454 = vpop.f32.mrb[0].mxu0
      %455 = vmatprep.mubr.bf16.mxu0 0
      %456 = vmatmul.mubr.bf16.gmra.mrb[0].mxu0 %v337
      %v457 = vpop.f32.mrb[0].mxu0
      %v458 = vadd.f32 %v217, %v457
      %v459 = vpop.f32.mrb[0].mxu0
      %v460 = vpop.f32.mrb[0].mxu0
      %v461 = vadd.f32 %v217, %v460
      %v462 = vpop.f32.mrb[0].mxu0
      %463 = vmatprep.mubr.bf16.mxu0 0
      %464 = vmatmul.mubr.bf16.gmra.mrb[0].mxu0 %v340
      %v465 = vpop.f32.mrb[0].mxu0
      %v466 = vadd.f32 %v217, %v465
      %v467 = vpop.f32.mrb[0].mxu0
      %v468 = vpop.f32.mrb[0].mxu0
      %v469 = vadd.f32 %v217, %v468
      %v470 = vpop.f32.mrb[0].mxu0
      %471 = vmatprep.mubr.bf16.mxu0 0
      %472 = vmatmul.mubr.bf16.gmra.mrb[0].mxu0 %v343
      %v473 = vpop.f32.mrb[0].mxu0
      %v474 = vadd.f32 %v217, %v473
      %v475 = vpop.f32.mrb[0].mxu0
      %v476 = vpop.f32.mrb[0].mxu0
      %v477 = vadd.f32 %v217, %v476
      %v478 = vpop.f32.mrb[0].mxu0
      %479 = vmatprep.mubr.bf16.mxu0 0
      %480 = vmatmul.mubr.bf16.gmra.mrb[0].mxu0 %v346
      %v481 = vpop.f32.mrb[0].mxu0
      %v482 = vadd.f32 %v217, %v481
      %v483 = vpop.f32.mrb[0].mxu0
      %v484 = vpop.f32.mrb[0].mxu0
      %v485 = vadd.f32 %v217, %v484
      %v486 = vpop.f32.mrb[0].mxu0
      %487 = vmatprep.mubr.bf16.mxu0 0
      %488 = vmatmul.mubr.bf16.gmra.mrb[0].mxu0 %v349
      %v489 = vpop.f32.mrb[0].mxu0
      %v490 = vadd.f32 %v217, %v489
      %v491 = vpop.f32.mrb[0].mxu0
      %v492 = vpop.f32.mrb[0].mxu0
      %v493 = vadd.f32 %v217, %v492
      %v494 = vpop.f32.mrb[0].mxu0
      %495 = vmatprep.mubr.bf16.mxu0 0
      %496 = vmatmul.mubr.bf16.gmra.mrb[0].mxu0 %v352
      %v497 = vpop.f32.mrb[0].mxu0
      %v498 = vadd.f32 %v217, %v497
      %v499 = vpop.f32.mrb[0].mxu0
      %v500 = vpop.f32.mrb[0].mxu0
      %v501 = vadd.f32 %v217, %v500
      %v502 = vpop.f32.mrb[0].mxu0
      %503 = vmatprep.mubr.bf16.mxu0 0
      %504 = vmatmul.mubr.bf16.gmra.mrb[0].mxu0 %v355
      %v505 = vpop.f32.mrb[0].mxu0
      %v506 = vadd.f32 %v217, %v505
      %v507 = vpop.f32.mrb[0].mxu0
      %v508 = vpop.f32.mrb[0].mxu0
      %v509 = vadd.f32 %v217, %v508
      %v510 = vpop.f32.mrb[0].mxu0
      %511 = vmatprep.mubr.bf16.mxu0 0
      %512 = vmatmul.mubr.bf16.gmra.mrb[0].mxu0 %v358
      %v513 = vpop.f32.mrb[0].mxu0
      %v514 = vadd.f32 %v217, %v513
      %v515 = vpop.f32.mrb[0].mxu0
      %v516 = vpop.f32.mrb[0].mxu0
      %v517 = vadd.f32 %v217, %v516
      %v518 = vpop.f32.mrb[0].mxu0
      %519 = vmatprep.mubr.bf16.mxu0 0
      %520 = vmatmul.mubr.bf16.gmra.mrb[0].mxu0 %v361
      %v521 = vpop.f32.mrb[0].mxu0
      %v522 = vadd.f32 %v217, %v521
      %v523 = vpop.f32.mrb[0].mxu0
      %v524 = vpop.f32.mrb[0].mxu0
      %v525 = vadd.f32 %v217, %v524
      %v526 = vpop.f32.mrb[0].mxu0
      %527 = vdwg.mxu0
      %v528 = vxor.u32 %v402, 2147483648
      %v529 = vxor.u32 %v405, 2147483648
      %v530 = vxor.u32 %v410, 2147483648
      %v531 = vxor.u32 %v413, 2147483648
      %v532 = vxor.u32 %v418, 2147483648
      %v533 = vxor.u32 %v421, 2147483648
      %v534 = vxor.u32 %v426, 2147483648
      %v535 = vxor.u32 %v429, 2147483648
      %v536 = vxor.u32 %v434, 2147483648
      %v537 = vxor.u32 %v437, 2147483648
      %v538 = vxor.u32 %v442, 2147483648
      %v539 = vxor.u32 %v445, 2147483648
      %v540 = vxor.u32 %v450, 2147483648
      %v541 = vxor.u32 %v453, 2147483648
      %v542 = vxor.u32 %v458, 2147483648
      %v543 = vxor.u32 %v461, 2147483648
      %v544 = vxor.u32 %v466, 2147483648
      %v545 = vxor.u32 %v469, 2147483648
      %v546 = vxor.u32 %v474, 2147483648
      %v547 = vxor.u32 %v477, 2147483648
      %v548 = vxor.u32 %v482, 2147483648
      %v549 = vxor.u32 %v485, 2147483648
      %v550 = vxor.u32 %v490, 2147483648
      %v551 = vxor.u32 %v493, 2147483648
      %v552 = vxor.u32 %v498, 2147483648
      %v553 = vxor.u32 %v501, 2147483648
      %v554 = vxor.u32 %v506, 2147483648
      %v555 = vxor.u32 %v509, 2147483648
      %v556 = vxor.u32 %v514, 2147483648
      %v557 = vxor.u32 %v517, 2147483648
      %v558 = vxor.u32 %v522, 2147483648
      %v559 = vxor.u32 %v525, 2147483648
      %v560 = vmul.f32 %v528, 1.442695
      %v561 = vpow.pop %v560
      %v562 = vmul.f32 %v529, 1.442695
      %v563 = vpow.pop %v562
      %v564 = vmul.f32 %v530, 1.442695
      %v565 = vpow.pop %v564
      %v566 = vmul.f32 %v531, 1.442695
      %v567 = vpow.pop %v566
      %v568 = vmul.f32 %v532, 1.442695
      %v569 = vpow.pop %v568
      %v570 = vmul.f32 %v533, 1.442695
      %v571 = vpow.pop %v570
      %v572 = vmul.f32 %v534, 1.442695
      %v573 = vpow.pop %v572
      %v574 = vmul.f32 %v535, 1.442695
      %v575 = vpow.pop %v574
      %v576 = vmul.f32 %v536, 1.442695
      %v577 = vpow.pop %v576
      %v578 = vmul.f32 %v537, 1.442695
      %v579 = vpow.pop %v578
      %v580 = vmul.f32 %v538, 1.442695
      %v581 = vpow.pop %v580
      %v582 = vmul.f32 %v539, 1.442695
      %v583 = vpow.pop %v582
      %v584 = vmul.f32 %v540, 1.442695
      %v585 = vpow.pop %v584
      %v586 = vmul.f32 %v541, 1.442695
      %v587 = vpow.pop %v586
      %v588 = vmul.f32 %v542, 1.442695
      %v589 = vpow.pop %v588
      %v590 = vmul.f32 %v543, 1.442695
      %v591 = vpow.pop %v590
      %v592 = vmul.f32 %v544, 1.442695
      %v593 = vpow.pop %v592
      %v594 = vmul.f32 %v545, 1.442695
      %v595 = vpow.pop %v594
      %v596 = vmul.f32 %v546, 1.442695
      %v597 = vpow.pop %v596
      %v598 = vmul.f32 %v547, 1.442695
      %v599 = vpow.pop %v598
      %v600 = vmul.f32 %v548, 1.442695
      %v601 = vpow.pop %v600
      %v602 = vmul.f32 %v549, 1.442695
      %v603 = vpow.pop %v602
      %v604 = vmul.f32 %v550, 1.442695
      %v605 = vpow.pop %v604
      %v606 = vmul.f32 %v551, 1.442695
      %v607 = vpow.pop %v606
      %v608 = vmul.f32 %v552, 1.442695
      %v609 = vpow.pop %v608
      %v610 = vmul.f32 %v553, 1.442695
      %v611 = vpow.pop %v610
      %v612 = vmul.f32 %v554, 1.442695
      %v613 = vpow.pop %v612
      %v614 = vmul.f32 %v555, 1.442695
      %v615 = vpow.pop %v614
      %v616 = vmul.f32 %v556, 1.442695
      %v617 = vpow.pop %v616
      %v618 = vmul.f32 %v557, 1.442695
      %v619 = vpow.pop %v618
      %v620 = vmul.f32 %v558, 1.442695
      %v621 = vpow.pop %v620
      %v622 = vmul.f32 %v559, 1.442695
      %v623 = vpow.pop %v622
      %v624 = vadd.f32 %v561, 1.0
      %v625 = vadd.f32 %v563, 1.0
      %v626 = vadd.f32 %v565, 1.0
      %v627 = vadd.f32 %v567, 1.0
      %v628 = vadd.f32 %v569, 1.0
      %v629 = vadd.f32 %v571, 1.0
      %v630 = vadd.f32 %v573, 1.0
      %v631 = vadd.f32 %v575, 1.0
      %v632 = vadd.f32 %v577, 1.0
      %v633 = vadd.f32 %v579, 1.0
      %v634 = vadd.f32 %v581, 1.0
      %v635 = vadd.f32 %v583, 1.0
      %v636 = vadd.f32 %v585, 1.0
      %v637 = vadd.f32 %v587, 1.0
      %v638 = vadd.f32 %v589, 1.0
      %v639 = vadd.f32 %v591, 1.0
      %v640 = vadd.f32 %v593, 1.0
      %v641 = vadd.f32 %v595, 1.0
      %v642 = vadd.f32 %v597, 1.0
      %v643 = vadd.f32 %v599, 1.0
      %v644 = vadd.f32 %v601, 1.0
      %v645 = vadd.f32 %v603, 1.0
      %v646 = vadd.f32 %v605, 1.0
      %v647 = vadd.f32 %v607, 1.0
      %v648 = vadd.f32 %v609, 1.0
      %v649 = vadd.f32 %v611, 1.0
      %v650 = vadd.f32 %v613, 1.0
      %v651 = vadd.f32 %v615, 1.0
      %v652 = vadd.f32 %v617, 1.0
      %v653 = vadd.f32 %v619, 1.0
      %v654 = vadd.f32 %v621, 1.0
      %v655 = vadd.f32 %v623, 1.0
      %v656 = vrcp.pop %v624
      %v657 = vmul.f32 1.0, %v656
      %v658 = vrcp.pop %v625
      %v659 = vmul.f32 1.0, %v658
      %v660 = vrcp.pop %v626
      %v661 = vmul.f32 1.0, %v660
      %v662 = vrcp.pop %v627
      %v663 = vmul.f32 1.0, %v662
      %v664 = vrcp.pop %v628
      %v665 = vmul.f32 1.0, %v664
      %v666 = vrcp.pop %v629
      %v667 = vmul.f32 1.0, %v666
      %v668 = vrcp.pop %v630
      %v669 = vmul.f32 1.0, %v668
      %v670 = vrcp.pop %v631
      %v671 = vmul.f32 1.0, %v670
      %v672 = vrcp.pop %v632
      %v673 = vmul.f32 1.0, %v672
      %v674 = vrcp.pop %v633
      %v675 = vmul.f32 1.0, %v674
      %v676 = vrcp.pop %v634
      %v677 = vmul.f32 1.0, %v676
      %v678 = vrcp.pop %v635
      %v679 = vmul.f32 1.0, %v678
      %v680 = vrcp.pop %v636
      %v681 = vmul.f32 1.0, %v680
      %v682 = vrcp.pop %v637
      %v683 = vmul.f32 1.0, %v682
      %v684 = vrcp.pop %v638
      %v685 = vmul.f32 1.0, %v684
      %v686 = vrcp.pop %v639
      %v687 = vmul.f32 1.0, %v686
      %v688 = vrcp.pop %v640
      %v689 = vmul.f32 1.0, %v688
      %v690 = vrcp.pop %v641
      %v691 = vmul.f32 1.0, %v690
      %v692 = vrcp.pop %v642
      %v693 = vmul.f32 1.0, %v692
      %v694 = vrcp.pop %v643
      %v695 = vmul.f32 1.0, %v694
      %v696 = vrcp.pop %v644
      %v697 = vmul.f32 1.0, %v696
      %v698 = vrcp.pop %v645
      %v699 = vmul.f32 1.0, %v698
      %v700 = vrcp.pop %v646
      %v701 = vmul.f32 1.0, %v700
      %v702 = vrcp.pop %v647
      %v703 = vmul.f32 1.0, %v702
      %v704 = vrcp.pop %v648
      %v705 = vmul.f32 1.0, %v704
      %v706 = vrcp.pop %v649
      %v707 = vmul.f32 1.0, %v706
      %v708 = vrcp.pop %v650
      %v709 = vmul.f32 1.0, %v708
      %v710 = vrcp.pop %v651
      %v711 = vmul.f32 1.0, %v710
      %v712 = vrcp.pop %v652
      %v713 = vmul.f32 1.0, %v712
      %v714 = vrcp.pop %v653
      %v715 = vmul.f32 1.0, %v714
      %v716 = vrcp.pop %v654
      %v717 = vmul.f32 1.0, %v716
      %v718 = vrcp.pop %v655
      %v719 = vmul.f32 1.0, %v718
      %v720 = vmul.f32 %v402, %v657
      %v721 = vmul.f32 %v405, %v659
      %v722 = vmul.f32 %v410, %v661
      %v723 = vmul.f32 %v413, %v663
      %v724 = vmul.f32 %v418, %v665
      %v725 = vmul.f32 %v421, %v667
      %v726 = vmul.f32 %v426, %v669
      %v727 = vmul.f32 %v429, %v671
      %v728 = vmul.f32 %v434, %v673
      %v729 = vmul.f32 %v437, %v675
      %v730 = vmul.f32 %v442, %v677
      %v731 = vmul.f32 %v445, %v679
      %v732 = vmul.f32 %v450, %v681
      %v733 = vmul.f32 %v453, %v683
      %v734 = vmul.f32 %v458, %v685
      %v735 = vmul.f32 %v461, %v687
      %v736 = vmul.f32 %v466, %v689
      %v737 = vmul.f32 %v469, %v691
      %v738 = vmul.f32 %v474, %v693
      %v739 = vmul.f32 %v477, %v695
      %v740 = vmul.f32 %v482, %v697
      %v741 = vmul.f32 %v485, %v699
      %v742 = vmul.f32 %v490, %v701
      %v743 = vmul.f32 %v493, %v703
      %v744 = vmul.f32 %v498, %v705
      %v745 = vmul.f32 %v501, %v707
      %v746 = vmul.f32 %v506, %v709
      %v747 = vmul.f32 %v509, %v711
      %v748 = vmul.f32 %v514, %v713
      %v749 = vmul.f32 %v517, %v715
      %v750 = vmul.f32 %v522, %v717
      %v751 = vmul.f32 %v525, %v719
      %v752 = vpack.c.bf16 %v721, %v720
      %v753 = vpack.c.bf16 %v723, %v722
      %v754 = vpack.c.bf16 %v725, %v724
      %v755 = vpack.c.bf16 %v727, %v726
      %v756 = vpack.c.bf16 %v729, %v728
      %v757 = vpack.c.bf16 %v731, %v730
      %v758 = vpack.c.bf16 %v733, %v732
      %v759 = vpack.c.bf16 %v735, %v734
      %v760 = vpack.c.bf16 %v737, %v736
      %v761 = vpack.c.bf16 %v739, %v738
      %v762 = vpack.c.bf16 %v741, %v740
      %v763 = vpack.c.bf16 %v743, %v742
      %v764 = vpack.c.bf16 %v745, %v744
      %v765 = vpack.c.bf16 %v747, %v746
      %v766 = vpack.c.bf16 %v749, %v748
      %v767 = vpack.c.bf16 %v751, %v750
      %v784 = vunpack.c.l.b16 %v752
      %v785 = vunpack.c.h.b16 %v752
      %v786 = vunpack.c.l.b16 %v753
      %v787 = vunpack.c.h.b16 %v753
      %v788 = vunpack.c.l.b16 %v754
      %v789 = vunpack.c.h.b16 %v754
      %v790 = vunpack.c.l.b16 %v755
      %v791 = vunpack.c.h.b16 %v755
      %v792 = vunpack.c.l.b16 %v756
      %v793 = vunpack.c.h.b16 %v756
      %v794 = vunpack.c.l.b16 %v757
      %v795 = vunpack.c.h.b16 %v757
      %v796 = vunpack.c.l.b16 %v758
      %v797 = vunpack.c.h.b16 %v758
      %v798 = vunpack.c.l.b16 %v759
      %v799 = vunpack.c.h.b16 %v759
      %v800 = vunpack.c.l.b16 %v760
      %v801 = vunpack.c.h.b16 %v760
      %v802 = vunpack.c.l.b16 %v761
      %v803 = vunpack.c.h.b16 %v761
      %v804 = vunpack.c.l.b16 %v762
      %v805 = vunpack.c.h.b16 %v762
      %v806 = vunpack.c.l.b16 %v763
      %v807 = vunpack.c.h.b16 %v763
      %v808 = vunpack.c.l.b16 %v764
      %v809 = vunpack.c.h.b16 %v764
      %v810 = vunpack.c.l.b16 %v765
      %v811 = vunpack.c.h.b16 %v765
      %v812 = vunpack.c.l.b16 %v766
      %v813 = vunpack.c.h.b16 %v766
      %v814 = vunpack.c.l.b16 %v767
      %v815 = vunpack.c.h.b16 %v767
      %v816 = vpack.c.b16 %v784, %v784
      %v817 = vpack.c.b16 %v785, %v785
      %v818 = vpack.c.b16 %v786, %v786
      %v819 = vpack.c.b16 %v787, %v787
      %v820 = vpack.c.b16 %v788, %v788
      %v821 = vpack.c.b16 %v789, %v789
      %v822 = vpack.c.b16 %v790, %v790
      %v823 = vpack.c.b16 %v791, %v791
      %v824 = vpack.c.b16 %v792, %v792
      %v825 = vpack.c.b16 %v793, %v793
      %v826 = vpack.c.b16 %v794, %v794
      %v827 = vpack.c.b16 %v795, %v795
      %v828 = vpack.c.b16 %v796, %v796
      %v829 = vpack.c.b16 %v797, %v797
      %v830 = vpack.c.b16 %v798, %v798
      %v831 = vpack.c.b16 %v799, %v799
      %v832 = vpack.c.b16 %v800, %v800
      %v833 = vpack.c.b16 %v801, %v801
      %v834 = vpack.c.b16 %v802, %v802
      %v835 = vpack.c.b16 %v803, %v803
      %v836 = vpack.c.b16 %v804, %v804
      %v837 = vpack.c.b16 %v805, %v805
      %v838 = vpack.c.b16 %v806, %v806
      %v839 = vpack.c.b16 %v807, %v807
      %v840 = vpack.c.b16 %v808, %v808
      %v841 = vpack.c.b16 %v809, %v809
      %v842 = vpack.c.b16 %v810, %v810
      %v843 = vpack.c.b16 %v811, %v811
      %v844 = vpack.c.b16 %v812, %v812
      %v845 = vpack.c.b16 %v813, %v813
      %v846 = vpack.c.b16 %v814, %v814
      %v847 = vpack.c.b16 %v815, %v815
      %vm880 = vcmask 125952
      %881 = vst.msk [vmem:[%s172] sm:$0xf] %vm880, %v816
      %882 = vst.msk [vmem:[%s172 + $0x4] sm:$0xf] %vm880, %v817
      %883 = vst.msk [vmem:[%s172 + $0x8] sm:$0xf] %vm880, %v818
      %884 = vst.msk [vmem:[%s172 + $0xc] sm:$0xf] %vm880, %v819
      %885 = vst.msk [vmem:[%s172 + $0x10] sm:$0xf] %vm880, %v820
      %886 = vst.msk [vmem:[%s172 + $0x14] sm:$0xf] %vm880, %v821
      %887 = vst.msk [vmem:[%s172 + $0x18] sm:$0xf] %vm880, %v822
      %888 = vst.msk [vmem:[%s172 + $0x1c] sm:$0xf] %vm880, %v823
      %889 = vst.msk [vmem:[%s172 + $0x20] sm:$0xf] %vm880, %v824
      %890 = vst.msk [vmem:[%s172 + $0x24] sm:$0xf] %vm880, %v825
      %891 = vst.msk [vmem:[%s172 + $0x28] sm:$0xf] %vm880, %v826
      %892 = vst.msk [vmem:[%s172 + $0x2c] sm:$0xf] %vm880, %v827
      %893 = vst.msk [vmem:[%s172 + $0x30] sm:$0xf] %vm880, %v828
      %894 = vst.msk [vmem:[%s172 + $0x34] sm:$0xf] %vm880, %v829
      %895 = vst.msk [vmem:[%s172 + $0x38] sm:$0xf] %vm880, %v830
      %896 = vst.msk [vmem:[%s172 + $0x3c] sm:$0xf] %vm880, %v831
      %897 = vst.msk [vmem:[%s172 + $0x40] sm:$0xf] %vm880, %v832
      %898 = vst.msk [vmem:[%s172 + $0x44] sm:$0xf] %vm880, %v833
      %899 = vst.msk [vmem:[%s172 + $0x48] sm:$0xf] %vm880, %v834
      %900 = vst.msk [vmem:[%s172 + $0x4c] sm:$0xf] %vm880, %v835
      %901 = vst.msk [vmem:[%s172 + $0x50] sm:$0xf] %vm880, %v836
      %902 = vst.msk [vmem:[%s172 + $0x54] sm:$0xf] %vm880, %v837
      %903 = vst.msk [vmem:[%s172 + $0x58] sm:$0xf] %vm880, %v838
      %904 = vst.msk [vmem:[%s172 + $0x5c] sm:$0xf] %vm880, %v839
      %905 = vst.msk [vmem:[%s172 + $0x60] sm:$0xf] %vm880, %v840
      %906 = vst.msk [vmem:[%s172 + $0x64] sm:$0xf] %vm880, %v841
      %907 = vst.msk [vmem:[%s172 + $0x68] sm:$0xf] %vm880, %v842
      %908 = vst.msk [vmem:[%s172 + $0x6c] sm:$0xf] %vm880, %v843
      %909 = vst.msk [vmem:[%s172 + $0x70] sm:$0xf] %vm880, %v844
      %910 = vst.msk [vmem:[%s172 + $0x74] sm:$0xf] %vm880, %v845
      %911 = vst.msk [vmem:[%s172 + $0x78] sm:$0xf] %vm880, %v846
      %912 = vst.msk [vmem:[%s172 + $0x7c] sm:$0xf] %vm880, %v847
      %s913 = smul.u32 32, %s14
      %p914 = scmp.lt.s32.totalorder %s913, 255
      %s915 = scalar_select %p914, %s913, 255
      %s916 = smul.addr %s915, 4
      %s917 = scalar_lea.vmem %s3, %s916
      // Predicated region
      $region33: #{_lambda_.6} parent=31 // pred_check
        %p918 = pneg %p100
      $region34: #{_lambda_.6} parent=31 // pred_check_branch
        %920 = sbr.rel (%p918) target = $region36
      $region35: #{_lambda_.6} parent=31 // pred_region
        %s921 = smul.u32 32, %s14
      $region36: #{_lambda_.6} parent=31 // pred_fallthru
        _
    $region32: #{_lambda_.6} parent=5 // pred_fallthru
      _
    %p922 = scmp.le.s32.totalorder 2, %s9
    // Predicated region
    $region37: #{_lambda_.6} parent=5 // pred_check
      %p923 = pneg %p922
    $region38: #{_lambda_.6} parent=5 // pred_check_branch
      %925 = sbr.rel (%p923) target = $region40
    $region39: #{_lambda_.6} parent=5 // pred_region
      %s926 = ssub.s32 %s9, 2
      // Predicated region
      $region41: #{_lambda_.6} parent=39 // pred_check
        %p927 = pneg %p106
      $region42: #{_lambda_.6} parent=39 // pred_check_branch
        %929 = sbr.rel (%p927) target = $region44
      $region43: #{_lambda_.6} parent=39 // pred_region
        %s930 = smul.u32 32, %s15
        %p931 = scmp.lt.s32.totalorder %s930, 255
        %s932 = scalar_select %p931, %s930, 255
        %s933 = smul.addr %s932, 4
        %s934 = scalar_lea.vmem %s3, %s933
      $region44: #{_lambda_.6} parent=39 // pred_fallthru
        _
    $region40: #{_lambda_.6} parent=5 // pred_fallthru
      _
  $region6: #{_lambda_.6} parent=0 // loop_footer
    %s13 = sadd.s32 1, %s9
  $region7: #{_lambda_.6} parent=0 // loop_footer_branch
    %8 = sbr.rel target = $region3
  $region8: #{_lambda_.6} parent=0 // loop_exit
    _

// kernel: _lambda_.7
$region0: #{_lambda_.7}
  #allocation0 [shape = 'u32[]', space=smem, size = 0x4, offset = 0x4, fixed_abs, tag = 'smem constant byte address 0x4 - core index']
  #allocation1 [shape = 'u32[144,128]{1,0:T(1,128)}', space=vmem, size = 0x12000, scoped, tag = 'internal scratch']
  %s0 = inlined_call_operand.vmem [shape: bf16[512,144], index: 0, kind: input, shape index: {}]
  %s1 = inlined_call_operand.vmem [shape: bf16[144,32], index: 1, kind: input, shape index: {}]
  %s2 = inlined_call_operand.vmem [shape: f32[1,32], index: 2, kind: input, shape index: {}]
  %s3 = inlined_call_operand.vmem [shape: bf16[512,32], index: 3, kind: output, shape index: {}]
  %s4 = sld [smem:[#allocation0]]
  $region45: #{_lambda_.7} parent=0
    _
  %s6 = ssub.s32 1, %s4
  %s7 = scalar_select 0, %s6, %s4
  loop: start=0, step=1, limit=4
  $region2: #{_lambda_.7} parent=0 // loop_pre_header
    _
  $region3: #{_lambda_.7} parent=0 // loop_header
    %s9 = sphi 0, %s13
    %p10 = scmp.ge.s32.totalorder %s9, 4
    %s19 = sphi 0, %s21
    %s22 = sphi 0, %s19
    %s23 = sphi 0, %s22
    %s39 = sphi 0, %s23
    %s43 = sphi 0, %s43
    %s45 = sphi 0, %s43
    %s46 = sphi 0, %s45
    %s60 = sphi 0, %s46
    %s64 = sphi 0, %s64
    %s66 = sphi 0, %s64
    %s67 = sphi 0, %s66
    %s81 = sphi 0, %s67
    %s87 = sphi 0, %s89
    %s90 = sphi 0, %s87
    %s91 = sphi 0, %s90
    %s107 = sphi 0, %s91
  $region4: #{_lambda_.7} parent=0 // loop_header_branch
    %12 = sbr.rel (%p10) target = $region8
  $region5: #{_lambda_.7} parent=0 // loop_body
    %s14 = ssub.s32 %s9, 1
    %s15 = ssub.s32 %s9, 2
    %s16 = sadd.s32 %s9, 1
    %s17 = ssub.s32 %s9, %s16
    %p18 = scmp.eq.s32.totalorder %s17, 0
    %s20 = sadd.s32 %s19, 1
    %s21 = scalar_select %p18, %s19, %s20
    %p24 = pneg %p18
    %p25 = scmp.eq.s32.totalorder %s9, 1
    %p26 = por %p24, %p25
    %p27 = scmp.ne.s32.totalorder %s19, %s22
    %p28 = scmp.eq.s32.totalorder %s9, 0
    %p29 = por %p27, %p28
    %p30 = scmp.ne.s32.totalorder %s19, %s22
    %p31 = scmp.eq.s32.totalorder %s14, 1
    %p32 = por %p30, %p31
    %p33 = scmp.ne.s32.totalorder %s22, %s23
    %p34 = scmp.eq.s32.totalorder %s14, 0
    %p35 = por %p33, %p34
    %p36 = scmp.ne.s32.totalorder %s22, %s23
    %p37 = scmp.eq.s32.totalorder %s15, 1
    %p38 = por %p36, %p37
    %p40 = scmp.ne.s32.totalorder %s23, %s39
    %p41 = scmp.eq.s32.totalorder %s15, 0
    %p42 = por %p40, %p41
    %s44 = sadd.s32 %s43, 1
    %p47 = scmp.eq.s32.totalorder %s9, 1
    %p48 = scmp.ne.s32.totalorder %s43, %s45
    %p49 = scmp.eq.s32.totalorder %s9, 0
    %p50 = por %p48, %p49
    %p51 = scmp.ne.s32.totalorder %s43, %s45
    %p52 = scmp.eq.s32.totalorder %s14, 1
    %p53 = por %p51, %p52
    %p54 = scmp.ne.s32.totalorder %s45, %s46
    %p55 = scmp.eq.s32.totalorder %s14, 0
    %p56 = por %p54, %p55
    %p57 = scmp.ne.s32.totalorder %s45, %s46
    %p58 = scmp.eq.s32.totalorder %s15, 1
    %p59 = por %p57, %p58
    %p61 = scmp.ne.s32.totalorder %s46, %s60
    %p62 = scmp.eq.s32.totalorder %s15, 0
    %p63 = por %p61, %p62
    %s65 = sadd.s32 %s64, 1
    %p68 = scmp.eq.s32.totalorder %s9, 1
    %p69 = scmp.ne.s32.totalorder %s64, %s66
    %p70 = scmp.eq.s32.totalorder %s9, 0
    %p71 = por %p69, %p70
    %p72 = scmp.ne.s32.totalorder %s64, %s66
    %p73 = scmp.eq.s32.totalorder %s14, 1
    %p74 = por %p72, %p73
    %p75 = scmp.ne.s32.totalorder %s66, %s67
    %p76 = scmp.eq.s32.totalorder %s14, 0
    %p77 = por %p75, %p76
    %p78 = scmp.ne.s32.totalorder %s66, %s67
    %p79 = scmp.eq.s32.totalorder %s15, 1
    %p80 = por %p78, %p79
    %p82 = scmp.ne.s32.totalorder %s67, %s81
    %p83 = scmp.eq.s32.totalorder %s15, 0
    %p84 = por %p82, %p83
    %s85 = ssub.s32 %s9, %s16
    %p86 = scmp.eq.s32.totalorder %s85, 0
    %s88 = sadd.s32 %s87, 1
    %s89 = scalar_select %p86, %s87, %s88
    %p92 = pneg %p86
    %p93 = scmp.eq.s32.totalorder %s9, 1
    %p94 = por %p92, %p93
    %p95 = scmp.ne.s32.totalorder %s87, %s90
    %p96 = scmp.eq.s32.totalorder %s9, 0
    %p97 = por %p95, %p96
    %p98 = scmp.ne.s32.totalorder %s87, %s90
    %p99 = scmp.eq.s32.totalorder %s14, 1
    %p100 = por %p98, %p99
    %p101 = scmp.ne.s32.totalorder %s90, %s91
    %p102 = scmp.eq.s32.totalorder %s14, 0
    %p103 = por %p101, %p102
    %p104 = scmp.ne.s32.totalorder %s90, %s91
    %p105 = scmp.eq.s32.totalorder %s15, 1
    %p106 = por %p104, %p105
    %p108 = scmp.ne.s32.totalorder %s91, %s107
    %p109 = scmp.eq.s32.totalorder %s15, 0
    %p110 = por %p108, %p109
    %p111 = scmp.le.s32.totalorder 1, %s9
    %p112 = scmp.lt.s32.totalorder %s9, 3
    %p113 = pnand %p111, %p112
    %p114 = pneg %p113
    // Predicated region
    $region9: #{_lambda_.7} parent=5 // pred_check
      _
    $region10: #{_lambda_.7} parent=5 // pred_check_branch
      %116 = sbr.rel (%p113) target = $region12
    $region11: #{_lambda_.7} parent=5 // pred_region
      %s117 = ssub.s32 %s9, 1
      // Predicated region
      $region13: #{_lambda_.7} parent=11 // pred_check
        %p118 = pneg %p56
      $region14: #{_lambda_.7} parent=11 // pred_check_branch
        %120 = sbr.rel (%p118) target = $region16
      $region15: #{_lambda_.7} parent=11 // pred_region
        _
      $region16: #{_lambda_.7} parent=11 // pred_fallthru
        _
      // Predicated region
      $region17: #{_lambda_.7} parent=11 // pred_check
        %p121 = pneg %p77
      $region18: #{_lambda_.7} parent=11 // pred_check_branch
        %123 = sbr.rel (%p121) target = $region20
      $region19: #{_lambda_.7} parent=11 // pred_region
        _
      $region20: #{_lambda_.7} parent=11 // pred_fallthru
        _
    $region12: #{_lambda_.7} parent=5 // pred_fallthru
      _
    %p124 = scmp.lt.s32.totalorder %s9, 2
    // Predicated region
    $region21: #{_lambda_.7} parent=5 // pred_check
      %p125 = pneg %p124
    $region22: #{_lambda_.7} parent=5 // pred_check_branch
      %127 = sbr.rel (%p125) target = $region24
    $region23: #{_lambda_.7} parent=5 // pred_region
      // Predicated region
      $region25: #{_lambda_.7} parent=23 // pred_check
        %p128 = pneg %p29
      $region26: #{_lambda_.7} parent=23 // pred_check_branch
        %130 = sbr.rel (%p128) target = $region28
      $region27: #{_lambda_.7} parent=23 // pred_region
        %s131 = smul.u32 32, %s9
        %p132 = scmp.lt.s32.totalorder %s131, 63
        %s133 = scalar_select %p132, %s131, 63
        %s134 = smul.addr %s133, 2
        %s135 = smul.addr %s134, 4
        %s136 = scalar_lea.vmem %s0, %s135
        %s137 = smul.u32 32, %s9
      $region28: #{_lambda_.7} parent=23 // pred_fallthru
        _
    $region24: #{_lambda_.7} parent=5 // pred_fallthru
      _
    %p138 = scmp.le.s32.totalorder 1, %s9
    %p139 = scmp.lt.s32.totalorder %s9, 3
    %p140 = pnand %p138, %p139
    %p141 = pneg %p140
    // Predicated region
    $region29: #{_lambda_.7} parent=5 // pred_check
      _
    $region30: #{_lambda_.7} parent=5 // pred_check_branch
      %143 = sbr.rel (%p140) target = $region32
    $region31: #{_lambda_.7} parent=5 // pred_region
      %s144 = ssub.s32 %s9, 1
      %s145 = smul.u32 32, %s14
      %p146 = scmp.lt.s32.totalorder %s145, 63
      %s147 = scalar_select %p146, %s145, 63
      %s148 = smul.addr %s147, 2
      %s149 = smul.addr %s148, 4
      %s150 = scalar_lea.vmem %s0, %s149
      %p151 = pneg %p35
      %p152 = pneg %p32
      %p153 = pneg %p56
      %p154 = pneg %p53
      %p155 = pneg %p77
      %p156 = pneg %p74
      %p157 = pneg %p103
      %p158 = pneg %p100
      %s159 = smul.u32 32, %s14
      %p160 = scmp.lt.s32.totalorder %s159, 63
      %s161 = scalar_select %p160, %s159, 63
      %s162 = smul.addr %s161, 4
      %s163 = scalar_lea.vmem %s3, %s162
      %s164 = smul.u32 32, %s14
      %p165 = scmp.lt.s32.totalorder %s164, 63
      %s166 = scalar_select %p165, %s164, 63
      %s167 = smul.addr %s166, 2
      %s168 = smul.addr %s167, 4
      %s169 = scalar_lea.vmem %s0, %s168
      %s170 = smul.u32 32, %s14
      %s171 = smul.u32 32, %s14
      %p172 = scmp.lt.s32.totalorder %s171, 63
      %s173 = scalar_select %p172, %s171, 63
      %s174 = smul.addr %s173, 4
      %s175 = scalar_lea.vmem %s3, %s174
      %s176 = smul.u32 32, %s14
      %v178 = vld [vmem:[%s169] sm:$0xff]
      %v179 = vld [vmem:[%s169 + $0x8] sm:$0xff]
      %v180 = vld [vmem:[%s169 + $0x10] sm:$0xff]
      %v181 = vld [vmem:[%s169 + $0x18] sm:$0xff]
      %v182 = vld [vmem:[%s169 + $0x20] sm:$0xff]
      %v183 = vld [vmem:[%s169 + $0x28] sm:$0xff]
      %v184 = vld [vmem:[%s169 + $0x30] sm:$0xff]
      %v185 = vld [vmem:[%s169 + $0x38] sm:$0xff]
      %v186 = vld [vmem:[%s169 + $0x40] sm:$0xff]
      %v187 = vld [vmem:[%s169 + $0x48] sm:$0xff]
      %v188 = vld [vmem:[%s169 + $0x50] sm:$0xff]
      %v189 = vld [vmem:[%s169 + $0x58] sm:$0xff]
      %v190 = vld [vmem:[%s169 + $0x60] sm:$0xff]
      %v191 = vld [vmem:[%s169 + $0x68] sm:$0xff]
      %v192 = vld [vmem:[%s169 + $0x70] sm:$0xff]
      %v193 = vld [vmem:[%s169 + $0x78] sm:$0xff]
      %v194 = vld [vmem:[%s169 + $0x80] sm:$0xff]
      %v195 = vld [vmem:[%s169 + $0x88] sm:$0xff]
      %v196 = vld [vmem:[%s169 + $0x90] sm:$0xff]
      %v197 = vld [vmem:[%s169 + $0x98] sm:$0xff]
      %v198 = vld [vmem:[%s169 + $0xa0] sm:$0xff]
      %v199 = vld [vmem:[%s169 + $0xa8] sm:$0xff]
      %v200 = vld [vmem:[%s169 + $0xb0] sm:$0xff]
      %v201 = vld [vmem:[%s169 + $0xb8] sm:$0xff]
      %v202 = vld [vmem:[%s169 + $0xc0] sm:$0xff]
      %v203 = vld [vmem:[%s169 + $0xc8] sm:$0xff]
      %v204 = vld [vmem:[%s169 + $0xd0] sm:$0xff]
      %v205 = vld [vmem:[%s169 + $0xd8] sm:$0xff]
      %v206 = vld [vmem:[%s169 + $0xe0] sm:$0xff]
      %v207 = vld [vmem:[%s169 + $0xe8] sm:$0xff]
      %v208 = vld [vmem:[%s169 + $0xf0] sm:$0xff]
      %v209 = vld [vmem:[%s169 + $0xf8] sm:$0xff]
      %v210 = vld [vmem:[%s1] sm:$0xf]
      %v211 = vld [vmem:[%s1 + $0x4] sm:$0xf]
      %v212 = vld [vmem:[%s1 + $0x8] sm:$0xf]
      %v213 = vld [vmem:[%s1 + $0xc] sm:$0xf]
      %v214 = vld [vmem:[%s1 + $0x10] sm:$0xf]
      %v215 = vld [vmem:[%s1 + $0x14] sm:$0xf]
      %v216 = vld [vmem:[%s1 + $0x18] sm:$0xf]
      %v217 = vld [vmem:[%s1 + $0x1c] sm:$0xf]
      %v218 = vld [vmem:[%s1 + $0x20] sm:$0xf]
      %v219 = vld [vmem:[%s1 + $0x24] sm:$0xf]
      %v220 = vld [vmem:[%s1 + $0x28] sm:$0xf]
      %v221 = vld [vmem:[%s1 + $0x2c] sm:$0xf]
      %v222 = vld [vmem:[%s1 + $0x30] sm:$0xf]
      %v223 = vld [vmem:[%s1 + $0x34] sm:$0xf]
      %v224 = vld [vmem:[%s1 + $0x38] sm:$0xf]
      %v225 = vld [vmem:[%s1 + $0x3c] sm:$0xf]
      %v226 = vld [vmem:[%s1 + $0x40] sm:$0xf]
      %v227 = vld [vmem:[%s1 + $0x44] sm:$0xf]
      %v228 = vld [vmem:[%s2] sm:$0x1]
      %v230 = vlaneseq
      %v231 = vshrl.u32 %v230, 7
      %v232 = vsub.s32 0, %v231
      %v233 = vrot.slane %v228, %v232
      %v267 = vunpack.c.l.b16 %v178
      %v268 = vunpack.c.h.b16 %v178
      %v269 = vunpack.c.l.b16 %v179
      %v270 = vunpack.c.h.b16 %v179
      %v271 = vunpack.c.l.b16 %v180
      %v272 = vunpack.c.h.b16 %v180
      %v273 = vunpack.c.l.b16 %v181
      %v274 = vunpack.c.h.b16 %v181
      %v275 = vunpack.c.l.b16 %v182
      %v276 = vunpack.c.h.b16 %v182
      %v277 = vunpack.c.l.b16 %v183
      %v278 = vunpack.c.h.b16 %v183
      %v279 = vunpack.c.l.b16 %v184
      %v280 = vunpack.c.h.b16 %v184
      %v281 = vunpack.c.l.b16 %v185
      %v282 = vunpack.c.h.b16 %v185
      %v283 = vunpack.c.l.b16 %v186
      %v284 = vunpack.c.h.b16 %v186
      %v285 = vunpack.c.l.b16 %v187
      %v286 = vunpack.c.h.b16 %v187
      %v287 = vunpack.c.l.b16 %v188
      %v288 = vunpack.c.h.b16 %v188
      %v289 = vunpack.c.l.b16 %v189
      %v290 = vunpack.c.h.b16 %v189
      %v291 = vunpack.c.l.b16 %v190
      %v292 = vunpack.c.h.b16 %v190
      %v293 = vunpack.c.l.b16 %v191
      %v294 = vunpack.c.h.b16 %v191
      %v295 = vunpack.c.l.b16 %v192
      %v296 = vunpack.c.h.b16 %v192
      %v297 = vunpack.c.l.b16 %v193
      %v298 = vunpack.c.h.b16 %v193
      %v299 = vunpack.c.l.b16 %v194
      %v300 = vunpack.c.h.b16 %v194
      %v301 = vunpack.c.l.b16 %v195
      %v302 = vunpack.c.h.b16 %v195
      %v303 = vunpack.c.l.b16 %v196
      %v304 = vunpack.c.h.b16 %v196
      %v305 = vunpack.c.l.b16 %v197
      %v306 = vunpack.c.h.b16 %v197
      %v307 = vunpack.c.l.b16 %v198
      %v308 = vunpack.c.h.b16 %v198
      %v309 = vunpack.c.l.b16 %v199
      %v310 = vunpack.c.h.b16 %v199
      %v311 = vunpack.c.l.b16 %v200
      %v312 = vunpack.c.h.b16 %v200
      %v313 = vunpack.c.l.b16 %v201
      %v314 = vunpack.c.h.b16 %v201
      %v315 = vunpack.c.l.b16 %v202
      %v316 = vunpack.c.h.b16 %v202
      %v317 = vunpack.c.l.b16 %v203
      %v318 = vunpack.c.h.b16 %v203
      %v319 = vunpack.c.l.b16 %v204
      %v320 = vunpack.c.h.b16 %v204
      %v321 = vunpack.c.l.b16 %v205
      %v322 = vunpack.c.h.b16 %v205
      %v323 = vunpack.c.l.b16 %v206
      %v324 = vunpack.c.h.b16 %v206
      %v325 = vunpack.c.l.b16 %v207
      %v326 = vunpack.c.h.b16 %v207
      %v327 = vunpack.c.l.b16 %v208
      %v328 = vunpack.c.h.b16 %v208
      %v329 = vunpack.c.l.b16 %v209
      %v330 = vunpack.c.h.b16 %v209
      %v331 = vpack.c.b16 %v269, %v267
      %v332 = vpack.c.b16 %v270, %v268
      %v333 = vpack.c.b16 %v273, %v271
      %v334 = vpack.c.b16 %v274, %v272
      %v335 = vpack.c.b16 %v277, %v275
      %v336 = vpack.c.b16 %v278, %v276
      %v337 = vpack.c.b16 %v281, %v279
      %v338 = vpack.c.b16 %v282, %v280
      %v339 = vpack.c.b16 %v285, %v283
      %v340 = vpack.c.b16 %v286, %v284
      %v341 = vpack.c.b16 %v289, %v287
      %v342 = vpack.c.b16 %v290, %v288
      %v343 = vpack.c.b16 %v293, %v291
      %v344 = vpack.c.b16 %v294, %v292
      %v345 = vpack.c.b16 %v297, %v295
      %v346 = vpack.c.b16 %v298, %v296
      %v347 = vpack.c.b16 %v301, %v299
      %v348 = vpack.c.b16 %v302, %v300
      %v349 = vpack.c.b16 %v305, %v303
      %v350 = vpack.c.b16 %v306, %v304
      %v351 = vpack.c.b16 %v309, %v307
      %v352 = vpack.c.b16 %v310, %v308
      %v353 = vpack.c.b16 %v313, %v311
      %v354 = vpack.c.b16 %v314, %v312
      %v355 = vpack.c.b16 %v317, %v315
      %v356 = vpack.c.b16 %v318, %v316
      %v357 = vpack.c.b16 %v321, %v319
      %v358 = vpack.c.b16 %v322, %v320
      %v359 = vpack.c.b16 %v325, %v323
      %v360 = vpack.c.b16 %v326, %v324
      %v361 = vpack.c.b16 %v329, %v327
      %v362 = vpack.c.b16 %v330, %v328
      %v397 = vunpack.c.l.b16 %v210
      %v398 = vunpack.c.l.b16 %v211
      %v399 = vunpack.c.l.b16 %v212
      %v400 = vunpack.c.l.b16 %v213
      %v401 = vunpack.c.l.b16 %v214
      %v402 = vunpack.c.l.b16 %v215
      %v403 = vunpack.c.l.b16 %v216
      %v404 = vunpack.c.l.b16 %v217
      %v405 = vunpack.c.l.b16 %v218
      %v406 = vunpack.c.l.b16 %v219
      %v407 = vunpack.c.l.b16 %v220
      %v408 = vunpack.c.l.b16 %v221
      %v409 = vunpack.c.l.b16 %v222
      %v410 = vunpack.c.l.b16 %v223
      %v411 = vunpack.c.l.b16 %v224
      %v412 = vunpack.c.l.b16 %v225
      %v413 = vunpack.c.l.b16 %v226
      %v414 = vunpack.c.l.b16 %v227
      %v415 = vpack.c.b16 %v398, %v397
      %v416 = vpack.c.b16 %v400, %v399
      %v417 = vpack.c.b16 %v402, %v401
      %v418 = vpack.c.b16 %v404, %v403
      %v419 = vpack.c.b16 %v406, %v405
      %v420 = vpack.c.b16 %v408, %v407
      %v421 = vpack.c.b16 %v410, %v409
      %v422 = vpack.c.b16 %v412, %v411
      %v423 = vpack.c.b16 %v414, %v413
      %vm433 = vcmask 130048
      %v435 = vsel %vm433, %v332, 0
      %v438 = vsel %vm433, %v334, 0
      %v441 = vsel %vm433, %v336, 0
      %v444 = vsel %vm433, %v338, 0
      %v447 = vsel %vm433, %v340, 0
      %v450 = vsel %vm433, %v342, 0
      %v453 = vsel %vm433, %v344, 0
      %v456 = vsel %vm433, %v346, 0
      %v459 = vsel %vm433, %v348, 0
      %v462 = vsel %vm433, %v350, 0
      %v465 = vsel %vm433, %v352, 0
      %v468 = vsel %vm433, %v354, 0
      %v471 = vsel %vm433, %v356, 0
      %v474 = vsel %vm433, %v358, 0
      %v477 = vsel %vm433, %v360, 0
      %v480 = vsel %vm433, %v362, 0
      %482 = vmatprep.subr.bf16.mxu0 0
      %483 = vmatpush1.bf16.msra.mxu0 %v415
      %484 = vmatprep.subr.bf16.mxu0 0
      %485 = vmatpush1.bf16.msra.mxu0 %v416
      %486 = vmatprep.subr.bf16.mxu0 0
      %487 = vmatpush1.bf16.msra.mxu0 %v417
      %488 = vmatprep.subr.bf16.mxu0 0
      %489 = vmatpush1.bf16.msra.mxu0 %v418
      %490 = vmatprep.subr.bf16.mxu0 0
      %491 = vmatpush1.bf16.msra.mxu0 %v419
      %492 = vmatprep.subr.bf16.mxu0 0
      %493 = vmatpush1.bf16.msra.mxu0 %v420
      %494 = vmatprep.subr.bf16.mxu0 0
      %495 = vmatpush1.bf16.msra.mxu0 %v421
      %496 = vmatprep.subr.bf16.mxu0 0
      %497 = vmatpush1.bf16.msra.mxu0 %v422
      %498 = vmatprep.subr.bf16.mxu0 0
      %499 = vmatpush1.bf16.msra.mxu0 %v423
      %500 = vmatprep.subr.bf16.mxu0 0
      %501 = vmatpush1.bf16.msra.mxu0 0
      %502 = vmatprep.subr.bf16.mxu0 0
      %503 = vmatpush1.bf16.msra.mxu0 0
      %504 = vmatprep.subr.bf16.mxu0 0
      %505 = vmatpush1.bf16.msra.mxu0 0
      %506 = vmatprep.subr.bf16.mxu0 0
      %507 = vmatpush1.bf16.msra.mxu0 0
      %508 = vmatprep.subr.bf16.mxu0 0
      %509 = vmatpush1.bf16.msra.mxu0 0
      %510 = vmatprep.subr.bf16.mxu0 0
      %511 = vmatpush1.bf16.msra.mxu0 0
      %512 = vmatprep.subr.bf16.mxu0 0
      %513 = vmatpush1.bf16.msra.mxu0 0
      %514 = vmatprep.mubr.bf16.mxu0 %v435
      %515 = vmatmul.mubr.bf16.gmra.mrb[0].mxu0 %v331
      %v516 = vpop.f32.mrb[0].mxu0
      %v517 = vadd.f32 %v233, %v516
      %v518 = vpop.f32.mrb[0].mxu0
      %v519 = vpop.f32.mrb[0].mxu0
      %v520 = vadd.f32 %v233, %v519
      %v521 = vpop.f32.mrb[0].mxu0
      %522 = vmatprep.mubr.bf16.mxu0 %v438
      %523 = vmatmul.mubr.bf16.gmra.mrb[0].mxu0 %v333
      %v524 = vpop.f32.mrb[0].mxu0
      %v525 = vadd.f32 %v233, %v524
      %v526 = vpop.f32.mrb[0].mxu0
      %v527 = vpop.f32.mrb[0].mxu0
      %v528 = vadd.f32 %v233, %v527
      %v529 = vpop.f32.mrb[0].mxu0
      %530 = vmatprep.mubr.bf16.mxu0 %v441
      %531 = vmatmul.mubr.bf16.gmra.mrb[0].mxu0 %v335
      %v532 = vpop.f32.mrb[0].mxu0
      %v533 = vadd.f32 %v233, %v532
      %v534 = vpop.f32.mrb[0].mxu0
      %v535 = vpop.f32.mrb[0].mxu0
      %v536 = vadd.f32 %v233, %v535
      %v537 = vpop.f32.mrb[0].mxu0
      %538 = vmatprep.mubr.bf16.mxu0 %v444
      %539 = vmatmul.mubr.bf16.gmra.mrb[0].mxu0 %v337
      %v540 = vpop.f32.mrb[0].mxu0
      %v541 = vadd.f32 %v233, %v540
      %v542 = vpop.f32.mrb[0].mxu0
      %v543 = vpop.f32.mrb[0].mxu0
      %v544 = vadd.f32 %v233, %v543
      %v545 = vpop.f32.mrb[0].mxu0
      %546 = vmatprep.mubr.bf16.mxu0 %v447
      %547 = vmatmul.mubr.bf16.gmra.mrb[0].mxu0 %v339
      %v548 = vpop.f32.mrb[0].mxu0
      %v549 = vadd.f32 %v233, %v548
      %v550 = vpop.f32.mrb[0].mxu0
      %v551 = vpop.f32.mrb[0].mxu0
      %v552 = vadd.f32 %v233, %v551
      %v553 = vpop.f32.mrb[0].mxu0
      %554 = vmatprep.mubr.bf16.mxu0 %v450
      %555 = vmatmul.mubr.bf16.gmra.mrb[0].mxu0 %v341
      %v556 = vpop.f32.mrb[0].mxu0
      %v557 = vadd.f32 %v233, %v556
      %v558 = vpop.f32.mrb[0].mxu0
      %v559 = vpop.f32.mrb[0].mxu0
      %v560 = vadd.f32 %v233, %v559
      %v561 = vpop.f32.mrb[0].mxu0
      %562 = vmatprep.mubr.bf16.mxu0 %v453
      %563 = vmatmul.mubr.bf16.gmra.mrb[0].mxu0 %v343
      %v564 = vpop.f32.mrb[0].mxu0
      %v565 = vadd.f32 %v233, %v564
      %v566 = vpop.f32.mrb[0].mxu0
      %v567 = vpop.f32.mrb[0].mxu0
      %v568 = vadd.f32 %v233, %v567
      %v569 = vpop.f32.mrb[0].mxu0
      %570 = vmatprep.mubr.bf16.mxu0 %v456
      %571 = vmatmul.mubr.bf16.gmra.mrb[0].mxu0 %v345
      %v572 = vpop.f32.mrb[0].mxu0
      %v573 = vadd.f32 %v233, %v572
      %v574 = vpop.f32.mrb[0].mxu0
      %v575 = vpop.f32.mrb[0].mxu0
      %v576 = vadd.f32 %v233, %v575
      %v577 = vpop.f32.mrb[0].mxu0
      %578 = vmatprep.mubr.bf16.mxu0 %v459
      %579 = vmatmul.mubr.bf16.gmra.mrb[0].mxu0 %v347
      %v580 = vpop.f32.mrb[0].mxu0
      %v581 = vadd.f32 %v233, %v580
      %v582 = vpop.f32.mrb[0].mxu0
      %v583 = vpop.f32.mrb[0].mxu0
      %v584 = vadd.f32 %v233, %v583
      %v585 = vpop.f32.mrb[0].mxu0
      %586 = vmatprep.mubr.bf16.mxu0 %v462
      %587 = vmatmul.mubr.bf16.gmra.mrb[0].mxu0 %v349
      %v588 = vpop.f32.mrb[0].mxu0
      %v589 = vadd.f32 %v233, %v588
      %v590 = vpop.f32.mrb[0].mxu0
      %v591 = vpop.f32.mrb[0].mxu0
      %v592 = vadd.f32 %v233, %v591
      %v593 = vpop.f32.mrb[0].mxu0
      %594 = vmatprep.mubr.bf16.mxu0 %v465
      %595 = vmatmul.mubr.bf16.gmra.mrb[0].mxu0 %v351
      %v596 = vpop.f32.mrb[0].mxu0
      %v597 = vadd.f32 %v233, %v596
      %v598 = vpop.f32.mrb[0].mxu0
      %v599 = vpop.f32.mrb[0].mxu0
      %v600 = vadd.f32 %v233, %v599
      %v601 = vpop.f32.mrb[0].mxu0
      %602 = vmatprep.mubr.bf16.mxu0 %v468
      %603 = vmatmul.mubr.bf16.gmra.mrb[0].mxu0 %v353
      %v604 = vpop.f32.mrb[0].mxu0
      %v605 = vadd.f32 %v233, %v604
      %v606 = vpop.f32.mrb[0].mxu0
      %v607 = vpop.f32.mrb[0].mxu0
      %v608 = vadd.f32 %v233, %v607
      %v609 = vpop.f32.mrb[0].mxu0
      %610 = vmatprep.mubr.bf16.mxu0 %v471
      %611 = vmatmul.mubr.bf16.gmra.mrb[0].mxu0 %v355
      %v612 = vpop.f32.mrb[0].mxu0
      %v613 = vadd.f32 %v233, %v612
      %v614 = vpop.f32.mrb[0].mxu0
      %v615 = vpop.f32.mrb[0].mxu0
      %v616 = vadd.f32 %v233, %v615
      %v617 = vpop.f32.mrb[0].mxu0
      %618 = vmatprep.mubr.bf16.mxu0 %v474
      %619 = vmatmul.mubr.bf16.gmra.mrb[0].mxu0 %v357
      %v620 = vpop.f32.mrb[0].mxu0
      %v621 = vadd.f32 %v233, %v620
      %v622 = vpop.f32.mrb[0].mxu0
      %v623 = vpop.f32.mrb[0].mxu0
      %v624 = vadd.f32 %v233, %v623
      %v625 = vpop.f32.mrb[0].mxu0
      %626 = vmatprep.mubr.bf16.mxu0 %v477
      %627 = vmatmul.mubr.bf16.gmra.mrb[0].mxu0 %v359
      %v628 = vpop.f32.mrb[0].mxu0
      %v629 = vadd.f32 %v233, %v628
      %v630 = vpop.f32.mrb[0].mxu0
      %v631 = vpop.f32.mrb[0].mxu0
      %v632 = vadd.f32 %v233, %v631
      %v633 = vpop.f32.mrb[0].mxu0
      %634 = vmatprep.mubr.bf16.mxu0 %v480
      %635 = vmatmul.mubr.bf16.gmra.mrb[0].mxu0 %v361
      %v636 = vpop.f32.mrb[0].mxu0
      %v637 = vadd.f32 %v233, %v636
      %v638 = vpop.f32.mrb[0].mxu0
      %v639 = vpop.f32.mrb[0].mxu0
      %v640 = vadd.f32 %v233, %v639
      %v641 = vpop.f32.mrb[0].mxu0
      %642 = vdwg.mxu0
      %v643 = vxor.u32 %v517, 2147483648
      %v644 = vxor.u32 %v520, 2147483648
      %v645 = vxor.u32 %v525, 2147483648
      %v646 = vxor.u32 %v528, 2147483648
      %v647 = vxor.u32 %v533, 2147483648
      %v648 = vxor.u32 %v536, 2147483648
      %v649 = vxor.u32 %v541, 2147483648
      %v650 = vxor.u32 %v544, 2147483648
      %v651 = vxor.u32 %v549, 2147483648
      %v652 = vxor.u32 %v552, 2147483648
      %v653 = vxor.u32 %v557, 2147483648
      %v654 = vxor.u32 %v560, 2147483648
      %v655 = vxor.u32 %v565, 2147483648
      %v656 = vxor.u32 %v568, 2147483648
      %v657 = vxor.u32 %v573, 2147483648
      %v658 = vxor.u32 %v576, 2147483648
      %v659 = vxor.u32 %v581, 2147483648
      %v660 = vxor.u32 %v584, 2147483648
      %v661 = vxor.u32 %v589, 2147483648
      %v662 = vxor.u32 %v592, 2147483648
      %v663 = vxor.u32 %v597, 2147483648
      %v664 = vxor.u32 %v600, 2147483648
      %v665 = vxor.u32 %v605, 2147483648
      %v666 = vxor.u32 %v608, 2147483648
      %v667 = vxor.u32 %v613, 2147483648
      %v668 = vxor.u32 %v616, 2147483648
      %v669 = vxor.u32 %v621, 2147483648
      %v670 = vxor.u32 %v624, 2147483648
      %v671 = vxor.u32 %v629, 2147483648
      %v672 = vxor.u32 %v632, 2147483648
      %v673 = vxor.u32 %v637, 2147483648
      %v674 = vxor.u32 %v640, 2147483648
      %v675 = vmul.f32 %v643, 1.442695
      %v676 = vpow.pop %v675
      %v677 = vmul.f32 %v644, 1.442695
      %v678 = vpow.pop %v677
      %v679 = vmul.f32 %v645, 1.442695
      %v680 = vpow.pop %v679
      %v681 = vmul.f32 %v646, 1.442695
      %v682 = vpow.pop %v681
      %v683 = vmul.f32 %v647, 1.442695
      %v684 = vpow.pop %v683
      %v685 = vmul.f32 %v648, 1.442695
      %v686 = vpow.pop %v685
      %v687 = vmul.f32 %v649, 1.442695
      %v688 = vpow.pop %v687
      %v689 = vmul.f32 %v650, 1.442695
      %v690 = vpow.pop %v689
      %v691 = vmul.f32 %v651, 1.442695
      %v692 = vpow.pop %v691
      %v693 = vmul.f32 %v652, 1.442695
      %v694 = vpow.pop %v693
      %v695 = vmul.f32 %v653, 1.442695
      %v696 = vpow.pop %v695
      %v697 = vmul.f32 %v654, 1.442695
      %v698 = vpow.pop %v697
      %v699 = vmul.f32 %v655, 1.442695
      %v700 = vpow.pop %v699
      %v701 = vmul.f32 %v656, 1.442695
      %v702 = vpow.pop %v701
      %v703 = vmul.f32 %v657, 1.442695
      %v704 = vpow.pop %v703
      %v705 = vmul.f32 %v658, 1.442695
      %v706 = vpow.pop %v705
      %v707 = vmul.f32 %v659, 1.442695
      %v708 = vpow.pop %v707
      %v709 = vmul.f32 %v660, 1.442695
      %v710 = vpow.pop %v709
      %v711 = vmul.f32 %v661, 1.442695
      %v712 = vpow.pop %v711
      %v713 = vmul.f32 %v662, 1.442695
      %v714 = vpow.pop %v713
      %v715 = vmul.f32 %v663, 1.442695
      %v716 = vpow.pop %v715
      %v717 = vmul.f32 %v664, 1.442695
      %v718 = vpow.pop %v717
      %v719 = vmul.f32 %v665, 1.442695
      %v720 = vpow.pop %v719
      %v721 = vmul.f32 %v666, 1.442695
      %v722 = vpow.pop %v721
      %v723 = vmul.f32 %v667, 1.442695
      %v724 = vpow.pop %v723
      %v725 = vmul.f32 %v668, 1.442695
      %v726 = vpow.pop %v725
      %v727 = vmul.f32 %v669, 1.442695
      %v728 = vpow.pop %v727
      %v729 = vmul.f32 %v670, 1.442695
      %v730 = vpow.pop %v729
      %v731 = vmul.f32 %v671, 1.442695
      %v732 = vpow.pop %v731
      %v733 = vmul.f32 %v672, 1.442695
      %v734 = vpow.pop %v733
      %v735 = vmul.f32 %v673, 1.442695
      %v736 = vpow.pop %v735
      %v737 = vmul.f32 %v674, 1.442695
      %v738 = vpow.pop %v737
      %v739 = vadd.f32 %v676, 1.0
      %v740 = vadd.f32 %v678, 1.0
      %v741 = vadd.f32 %v680, 1.0
      %v742 = vadd.f32 %v682, 1.0
      %v743 = vadd.f32 %v684, 1.0
      %v744 = vadd.f32 %v686, 1.0
      %v745 = vadd.f32 %v688, 1.0
      %v746 = vadd.f32 %v690, 1.0
      %v747 = vadd.f32 %v692, 1.0
      %v748 = vadd.f32 %v694, 1.0
      %v749 = vadd.f32 %v696, 1.0
      %v750 = vadd.f32 %v698, 1.0
      %v751 = vadd.f32 %v700, 1.0
      %v752 = vadd.f32 %v702, 1.0
      %v753 = vadd.f32 %v704, 1.0
      %v754 = vadd.f32 %v706, 1.0
      %v755 = vadd.f32 %v708, 1.0
      %v756 = vadd.f32 %v710, 1.0
      %v757 = vadd.f32 %v712, 1.0
      %v758 = vadd.f32 %v714, 1.0
      %v759 = vadd.f32 %v716, 1.0
      %v760 = vadd.f32 %v718, 1.0
      %v761 = vadd.f32 %v720, 1.0
      %v762 = vadd.f32 %v722, 1.0
      %v763 = vadd.f32 %v724, 1.0
      %v764 = vadd.f32 %v726, 1.0
      %v765 = vadd.f32 %v728, 1.0
      %v766 = vadd.f32 %v730, 1.0
      %v767 = vadd.f32 %v732, 1.0
      %v768 = vadd.f32 %v734, 1.0
      %v769 = vadd.f32 %v736, 1.0
      %v770 = vadd.f32 %v738, 1.0
      %v771 = vrcp.pop %v739
      %v772 = vmul.f32 1.0, %v771
      %v773 = vrcp.pop %v740
      %v774 = vmul.f32 1.0, %v773
      %v775 = vrcp.pop %v741
      %v776 = vmul.f32 1.0, %v775
      %v777 = vrcp.pop %v742
      %v778 = vmul.f32 1.0, %v777
      %v779 = vrcp.pop %v743
      %v780 = vmul.f32 1.0, %v779
      %v781 = vrcp.pop %v744
      %v782 = vmul.f32 1.0, %v781
      %v783 = vrcp.pop %v745
      %v784 = vmul.f32 1.0, %v783
      %v785 = vrcp.pop %v746
      %v786 = vmul.f32 1.0, %v785
      %v787 = vrcp.pop %v747
      %v788 = vmul.f32 1.0, %v787
      %v789 = vrcp.pop %v748
      %v790 = vmul.f32 1.0, %v789
      %v791 = vrcp.pop %v749
      %v792 = vmul.f32 1.0, %v791
      %v793 = vrcp.pop %v750
      %v794 = vmul.f32 1.0, %v793
      %v795 = vrcp.pop %v751
      %v796 = vmul.f32 1.0, %v795
      %v797 = vrcp.pop %v752
      %v798 = vmul.f32 1.0, %v797
      %v799 = vrcp.pop %v753
      %v800 = vmul.f32 1.0, %v799
      %v801 = vrcp.pop %v754
      %v802 = vmul.f32 1.0, %v801
      %v803 = vrcp.pop %v755
      %v804 = vmul.f32 1.0, %v803
      %v805 = vrcp.pop %v756
      %v806 = vmul.f32 1.0, %v805
      %v807 = vrcp.pop %v757
      %v808 = vmul.f32 1.0, %v807
      %v809 = vrcp.pop %v758
      %v810 = vmul.f32 1.0, %v809
      %v811 = vrcp.pop %v759
      %v812 = vmul.f32 1.0, %v811
      %v813 = vrcp.pop %v760
      %v814 = vmul.f32 1.0, %v813
      %v815 = vrcp.pop %v761
      %v816 = vmul.f32 1.0, %v815
      %v817 = vrcp.pop %v762
      %v818 = vmul.f32 1.0, %v817
      %v819 = vrcp.pop %v763
      %v820 = vmul.f32 1.0, %v819
      %v821 = vrcp.pop %v764
      %v822 = vmul.f32 1.0, %v821
      %v823 = vrcp.pop %v765
      %v824 = vmul.f32 1.0, %v823
      %v825 = vrcp.pop %v766
      %v826 = vmul.f32 1.0, %v825
      %v827 = vrcp.pop %v767
      %v828 = vmul.f32 1.0, %v827
      %v829 = vrcp.pop %v768
      %v830 = vmul.f32 1.0, %v829
      %v831 = vrcp.pop %v769
      %v832 = vmul.f32 1.0, %v831
      %v833 = vrcp.pop %v770
      %v834 = vmul.f32 1.0, %v833
      %v835 = vmul.f32 %v517, %v772
      %v836 = vmul.f32 %v520, %v774
      %v837 = vmul.f32 %v525, %v776
      %v838 = vmul.f32 %v528, %v778
      %v839 = vmul.f32 %v533, %v780
      %v840 = vmul.f32 %v536, %v782
      %v841 = vmul.f32 %v541, %v784
      %v842 = vmul.f32 %v544, %v786
      %v843 = vmul.f32 %v549, %v788
      %v844 = vmul.f32 %v552, %v790
      %v845 = vmul.f32 %v557, %v792
      %v846 = vmul.f32 %v560, %v794
      %v847 = vmul.f32 %v565, %v796
      %v848 = vmul.f32 %v568, %v798
      %v849 = vmul.f32 %v573, %v800
      %v850 = vmul.f32 %v576, %v802
      %v851 = vmul.f32 %v581, %v804
      %v852 = vmul.f32 %v584, %v806
      %v853 = vmul.f32 %v589, %v808
      %v854 = vmul.f32 %v592, %v810
      %v855 = vmul.f32 %v597, %v812
      %v856 = vmul.f32 %v600, %v814
      %v857 = vmul.f32 %v605, %v816
      %v858 = vmul.f32 %v608, %v818
      %v859 = vmul.f32 %v613, %v820
      %v860 = vmul.f32 %v616, %v822
      %v861 = vmul.f32 %v621, %v824
      %v862 = vmul.f32 %v624, %v826
      %v863 = vmul.f32 %v629, %v828
      %v864 = vmul.f32 %v632, %v830
      %v865 = vmul.f32 %v637, %v832
      %v866 = vmul.f32 %v640, %v834
      %v867 = vpack.c.bf16 %v836, %v835
      %v868 = vpack.c.bf16 %v838, %v837
      %v869 = vpack.c.bf16 %v840, %v839
      %v870 = vpack.c.bf16 %v842, %v841
      %v871 = vpack.c.bf16 %v844, %v843
      %v872 = vpack.c.bf16 %v846, %v845
      %v873 = vpack.c.bf16 %v848, %v847
      %v874 = vpack.c.bf16 %v850, %v849
      %v875 = vpack.c.bf16 %v852, %v851
      %v876 = vpack.c.bf16 %v854, %v853
      %v877 = vpack.c.bf16 %v856, %v855
      %v878 = vpack.c.bf16 %v858, %v857
      %v879 = vpack.c.bf16 %v860, %v859
      %v880 = vpack.c.bf16 %v862, %v861
      %v881 = vpack.c.bf16 %v864, %v863
      %v882 = vpack.c.bf16 %v866, %v865
      %v899 = vunpack.c.l.b16 %v867
      %v900 = vunpack.c.h.b16 %v867
      %v901 = vunpack.c.l.b16 %v868
      %v902 = vunpack.c.h.b16 %v868
      %v903 = vunpack.c.l.b16 %v869
      %v904 = vunpack.c.h.b16 %v869
      %v905 = vunpack.c.l.b16 %v870
      %v906 = vunpack.c.h.b16 %v870
      %v907 = vunpack.c.l.b16 %v871
      %v908 = vunpack.c.h.b16 %v871
      %v909 = vunpack.c.l.b16 %v872
      %v910 = vunpack.c.h.b16 %v872
      %v911 = vunpack.c.l.b16 %v873
      %v912 = vunpack.c.h.b16 %v873
      %v913 = vunpack.c.l.b16 %v874
      %v914 = vunpack.c.h.b16 %v874
      %v915 = vunpack.c.l.b16 %v875
      %v916 = vunpack.c.h.b16 %v875
      %v917 = vunpack.c.l.b16 %v876
      %v918 = vunpack.c.h.b16 %v876
      %v919 = vunpack.c.l.b16 %v877
      %v920 = vunpack.c.h.b16 %v877
      %v921 = vunpack.c.l.b16 %v878
      %v922 = vunpack.c.h.b16 %v878
      %v923 = vunpack.c.l.b16 %v879
      %v924 = vunpack.c.h.b16 %v879
      %v925 = vunpack.c.l.b16 %v880
      %v926 = vunpack.c.h.b16 %v880
      %v927 = vunpack.c.l.b16 %v881
      %v928 = vunpack.c.h.b16 %v881
      %v929 = vunpack.c.l.b16 %v882
      %v930 = vunpack.c.h.b16 %v882
      %v931 = vpack.c.b16 %v899, %v899
      %v932 = vpack.c.b16 %v900, %v900
      %v933 = vpack.c.b16 %v901, %v901
      %v934 = vpack.c.b16 %v902, %v902
      %v935 = vpack.c.b16 %v903, %v903
      %v936 = vpack.c.b16 %v904, %v904
      %v937 = vpack.c.b16 %v905, %v905
      %v938 = vpack.c.b16 %v906, %v906
      %v939 = vpack.c.b16 %v907, %v907
      %v940 = vpack.c.b16 %v908, %v908
      %v941 = vpack.c.b16 %v909, %v909
      %v942 = vpack.c.b16 %v910, %v910
      %v943 = vpack.c.b16 %v911, %v911
      %v944 = vpack.c.b16 %v912, %v912
      %v945 = vpack.c.b16 %v913, %v913
      %v946 = vpack.c.b16 %v914, %v914
      %v947 = vpack.c.b16 %v915, %v915
      %v948 = vpack.c.b16 %v916, %v916
      %v949 = vpack.c.b16 %v917, %v917
      %v950 = vpack.c.b16 %v918, %v918
      %v951 = vpack.c.b16 %v919, %v919
      %v952 = vpack.c.b16 %v920, %v920
      %v953 = vpack.c.b16 %v921, %v921
      %v954 = vpack.c.b16 %v922, %v922
      %v955 = vpack.c.b16 %v923, %v923
      %v956 = vpack.c.b16 %v924, %v924
      %v957 = vpack.c.b16 %v925, %v925
      %v958 = vpack.c.b16 %v926, %v926
      %v959 = vpack.c.b16 %v927, %v927
      %v960 = vpack.c.b16 %v928, %v928
      %v961 = vpack.c.b16 %v929, %v929
      %v962 = vpack.c.b16 %v930, %v930
      %vm995 = vcmask 257024
      %996 = vst.msk [vmem:[%s175] sm:$0xf] %vm995, %v931
      %997 = vst.msk [vmem:[%s175 + $0x4] sm:$0xf] %vm995, %v932
      %998 = vst.msk [vmem:[%s175 + $0x8] sm:$0xf] %vm995, %v933
      %999 = vst.msk [vmem:[%s175 + $0xc] sm:$0xf] %vm995, %v934
      %1000 = vst.msk [vmem:[%s175 + $0x10] sm:$0xf] %vm995, %v935
      %1001 = vst.msk [vmem:[%s175 + $0x14] sm:$0xf] %vm995, %v936
      %1002 = vst.msk [vmem:[%s175 + $0x18] sm:$0xf] %vm995, %v937
      %1003 = vst.msk [vmem:[%s175 + $0x1c] sm:$0xf] %vm995, %v938
      %1004 = vst.msk [vmem:[%s175 + $0x20] sm:$0xf] %vm995, %v939
      %1005 = vst.msk [vmem:[%s175 + $0x24] sm:$0xf] %vm995, %v940
      %1006 = vst.msk [vmem:[%s175 + $0x28] sm:$0xf] %vm995, %v941
      %1007 = vst.msk [vmem:[%s175 + $0x2c] sm:$0xf] %vm995, %v942
      %1008 = vst.msk [vmem:[%s175 + $0x30] sm:$0xf] %vm995, %v943
      %1009 = vst.msk [vmem:[%s175 + $0x34] sm:$0xf] %vm995, %v944
      %1010 = vst.msk [vmem:[%s175 + $0x38] sm:$0xf] %vm995, %v945
      %1011 = vst.msk [vmem:[%s175 + $0x3c] sm:$0xf] %vm995, %v946
      %1012 = vst.msk [vmem:[%s175 + $0x40] sm:$0xf] %vm995, %v947
      %1013 = vst.msk [vmem:[%s175 + $0x44] sm:$0xf] %vm995, %v948
      %1014 = vst.msk [vmem:[%s175 + $0x48] sm:$0xf] %vm995, %v949
      %1015 = vst.msk [vmem:[%s175 + $0x4c] sm:$0xf] %vm995, %v950
      %1016 = vst.msk [vmem:[%s175 + $0x50] sm:$0xf] %vm995, %v951
      %1017 = vst.msk [vmem:[%s175 + $0x54] sm:$0xf] %vm995, %v952
      %1018 = vst.msk [vmem:[%s175 + $0x58] sm:$0xf] %vm995, %v953
      %1019 = vst.msk [vmem:[%s175 + $0x5c] sm:$0xf] %vm995, %v954
      %1020 = vst.msk [vmem:[%s175 + $0x60] sm:$0xf] %vm995, %v955
      %1021 = vst.msk [vmem:[%s175 + $0x64] sm:$0xf] %vm995, %v956
      %1022 = vst.msk [vmem:[%s175 + $0x68] sm:$0xf] %vm995, %v957
      %1023 = vst.msk [vmem:[%s175 + $0x6c] sm:$0xf] %vm995, %v958
      %1024 = vst.msk [vmem:[%s175 + $0x70] sm:$0xf] %vm995, %v959
      %1025 = vst.msk [vmem:[%s175 + $0x74] sm:$0xf] %vm995, %v960
      %1026 = vst.msk [vmem:[%s175 + $0x78] sm:$0xf] %vm995, %v961
      %1027 = vst.msk [vmem:[%s175 + $0x7c] sm:$0xf] %vm995, %v962
      %s1028 = smul.u32 32, %s14
      %p1029 = scmp.lt.s32.totalorder %s1028, 63
      %s1030 = scalar_select %p1029, %s1028, 63
      %s1031 = smul.addr %s1030, 4
      %s1032 = scalar_lea.vmem %s3, %s1031
      // Predicated region
      $region33: #{_lambda_.7} parent=31 // pred_check
        %p1033 = pneg %p100
      $region34: #{_lambda_.7} parent=31 // pred_check_branch
        %1035 = sbr.rel (%p1033) target = $region36
      $region35: #{_lambda_.7} parent=31 // pred_region
        %s1036 = smul.u32 32, %s14
      $region36: #{_lambda_.7} parent=31 // pred_fallthru
        _
    $region32: #{_lambda_.7} parent=5 // pred_fallthru
      _
    %p1037 = scmp.le.s32.totalorder 2, %s9
    // Predicated region
    $region37: #{_lambda_.7} parent=5 // pred_check
      %p1038 = pneg %p1037
    $region38: #{_lambda_.7} parent=5 // pred_check_branch
      %1040 = sbr.rel (%p1038) target = $region40
    $region39: #{_lambda_.7} parent=5 // pred_region
      %s1041 = ssub.s32 %s9, 2
      // Predicated region
      $region41: #{_lambda_.7} parent=39 // pred_check
        %p1042 = pneg %p106
      $region42: #{_lambda_.7} parent=39 // pred_check_branch
        %1044 = sbr.rel (%p1042) target = $region44
      $region43: #{_lambda_.7} parent=39 // pred_region
        %s1045 = smul.u32 32, %s15
        %p1046 = scmp.lt.s32.totalorder %s1045, 63
        %s1047 = scalar_select %p1046, %s1045, 63
        %s1048 = smul.addr %s1047, 4
        %s1049 = scalar_lea.vmem %s3, %s1048
      $region44: #{_lambda_.7} parent=39 // pred_fallthru
        _
    $region40: #{_lambda_.7} parent=5 // pred_fallthru
      _
  $region6: #{_lambda_.7} parent=0 // loop_footer
    %s13 = sadd.s32 1, %s9
  $region7: #{_lambda_.7} parent=0 // loop_footer_branch
    %8 = sbr.rel target = $region3
  $region8: #{_lambda_.7} parent=0 // loop_exit
    _

// kernel: _lambda_.8
$region0: #{_lambda_.8}
  #allocation0 [shape = 'u32[]', space=smem, size = 0x4, offset = 0x4, fixed_abs, tag = 'smem constant byte address 0x4 - core index']
  #allocation1 [shape = 'u32[144,128]{1,0:T(1,128)}', space=vmem, size = 0x12000, scoped, tag = 'internal scratch']
  %s0 = inlined_call_operand.vmem [shape: bf16[128,288], index: 0, kind: input, shape index: {}]
  %s1 = inlined_call_operand.vmem [shape: bf16[288,64], index: 1, kind: input, shape index: {}]
  %s2 = inlined_call_operand.vmem [shape: f32[1,64], index: 2, kind: input, shape index: {}]
  %s3 = inlined_call_operand.vmem [shape: bf16[128,64], index: 3, kind: output, shape index: {}]
  %s4 = sld [smem:[#allocation0]]
  $region22: #{_lambda_.8} parent=0
    _
  %s6 = ssub.s32 1, %s4
  %s7 = scalar_select 0, %s6, %s4
  // Predicated region
  $region2: #{_lambda_.8} parent=0 // pred_check
    _
  $region3: #{_lambda_.8} parent=0 // pred_check_branch
    %9 = sbr.rel (0) target = $region5
  $region4: #{_lambda_.8} parent=0 // pred_region
    _
  $region5: #{_lambda_.8} parent=0 // pred_fallthru
    _
  // Predicated region
  $region6: #{_lambda_.8} parent=0 // pred_check
    _
  $region7: #{_lambda_.8} parent=0 // pred_check_branch
    %11 = sbr.rel (0) target = $region9
  $region8: #{_lambda_.8} parent=0 // pred_region
    _
  $region9: #{_lambda_.8} parent=0 // pred_fallthru
    _
  // Predicated region
  $region10: #{_lambda_.8} parent=0 // pred_check
    _
  $region11: #{_lambda_.8} parent=0 // pred_check_branch
    %13 = sbr.rel (0) target = $region13
  $region12: #{_lambda_.8} parent=0 // pred_region
    _
  $region13: #{_lambda_.8} parent=0 // pred_fallthru
    _
  %v15 = vld [vmem:[%s0] sm:$0xff]
  %v16 = vld [vmem:[%s0 + $0x8] sm:$0xf]
  %v17 = vld [vmem:[%s0 + $0xc] sm:$0xff]
  %v18 = vld [vmem:[%s0 + $0x14] sm:$0xf]
  %v19 = vld [vmem:[%s0 + $0x18] sm:$0xff]
  %v20 = vld [vmem:[%s0 + $0x20] sm:$0xf]
  %v21 = vld [vmem:[%s0 + $0x24] sm:$0xff]
  %v22 = vld [vmem:[%s0 + $0x2c] sm:$0xf]
  %v23 = vld [vmem:[%s0 + $0x30] sm:$0xff]
  %v24 = vld [vmem:[%s0 + $0x38] sm:$0xf]
  %v25 = vld [vmem:[%s0 + $0x3c] sm:$0xff]
  %v26 = vld [vmem:[%s0 + $0x44] sm:$0xf]
  %v27 = vld [vmem:[%s0 + $0x48] sm:$0xff]
  %v28 = vld [vmem:[%s0 + $0x50] sm:$0xf]
  %v29 = vld [vmem:[%s0 + $0x54] sm:$0xff]
  %v30 = vld [vmem:[%s0 + $0x5c] sm:$0xf]
  %v31 = vld [vmem:[%s0 + $0x60] sm:$0xff]
  %v32 = vld [vmem:[%s0 + $0x68] sm:$0xf]
  %v33 = vld [vmem:[%s0 + $0x6c] sm:$0xff]
  %v34 = vld [vmem:[%s0 + $0x74] sm:$0xf]
  %v35 = vld [vmem:[%s0 + $0x78] sm:$0xff]
  %v36 = vld [vmem:[%s0 + $0x80] sm:$0xf]
  %v37 = vld [vmem:[%s0 + $0x84] sm:$0xff]
  %v38 = vld [vmem:[%s0 + $0x8c] sm:$0xf]
  %v39 = vld [vmem:[%s0 + $0x90] sm:$0xff]
  %v40 = vld [vmem:[%s0 + $0x98] sm:$0xf]
  %v41 = vld [vmem:[%s0 + $0x9c] sm:$0xff]
  %v42 = vld [vmem:[%s0 + $0xa4] sm:$0xf]
  %v43 = vld [vmem:[%s0 + $0xa8] sm:$0xff]
  %v44 = vld [vmem:[%s0 + $0xb0] sm:$0xf]
  %v45 = vld [vmem:[%s0 + $0xb4] sm:$0xff]
  %v46 = vld [vmem:[%s0 + $0xbc] sm:$0xf]
  %v47 = vld [vmem:[%s1] sm:$0xf]
  %v48 = vld [vmem:[%s1 + $0x4] sm:$0xf]
  %v49 = vld [vmem:[%s1 + $0x8] sm:$0xf]
  %v50 = vld [vmem:[%s1 + $0xc] sm:$0xf]
  %v51 = vld [vmem:[%s1 + $0x10] sm:$0xf]
  %v52 = vld [vmem:[%s1 + $0x14] sm:$0xf]
  %v53 = vld [vmem:[%s1 + $0x18] sm:$0xf]
  %v54 = vld [vmem:[%s1 + $0x1c] sm:$0xf]
  %v55 = vld [vmem:[%s1 + $0x20] sm:$0xf]
  %v56 = vld [vmem:[%s1 + $0x24] sm:$0xf]
  %v57 = vld [vmem:[%s1 + $0x28] sm:$0xf]
  %v58 = vld [vmem:[%s1 + $0x2c] sm:$0xf]
  %v59 = vld [vmem:[%s1 + $0x30] sm:$0xf]
  %v60 = vld [vmem:[%s1 + $0x34] sm:$0xf]
  %v61 = vld [vmem:[%s1 + $0x38] sm:$0xf]
  %v62 = vld [vmem:[%s1 + $0x3c] sm:$0xf]
  %v63 = vld [vmem:[%s1 + $0x40] sm:$0xf]
  %v64 = vld [vmem:[%s1 + $0x44] sm:$0xf]
  %v65 = vld [vmem:[%s1 + $0x48] sm:$0xf]
  %v66 = vld [vmem:[%s1 + $0x4c] sm:$0xf]
  %v67 = vld [vmem:[%s1 + $0x50] sm:$0xf]
  %v68 = vld [vmem:[%s1 + $0x54] sm:$0xf]
  %v69 = vld [vmem:[%s1 + $0x58] sm:$0xf]
  %v70 = vld [vmem:[%s1 + $0x5c] sm:$0xf]
  %v71 = vld [vmem:[%s1 + $0x60] sm:$0xf]
  %v72 = vld [vmem:[%s1 + $0x64] sm:$0xf]
  %v73 = vld [vmem:[%s1 + $0x68] sm:$0xf]
  %v74 = vld [vmem:[%s1 + $0x6c] sm:$0xf]
  %v75 = vld [vmem:[%s1 + $0x70] sm:$0xf]
  %v76 = vld [vmem:[%s1 + $0x74] sm:$0xf]
  %v77 = vld [vmem:[%s1 + $0x78] sm:$0xf]
  %v78 = vld [vmem:[%s1 + $0x7c] sm:$0xf]
  %v79 = vld [vmem:[%s1 + $0x80] sm:$0xf]
  %v80 = vld [vmem:[%s1 + $0x84] sm:$0xf]
  %v81 = vld [vmem:[%s1 + $0x88] sm:$0xf]
  %v82 = vld [vmem:[%s1 + $0x8c] sm:$0xf]
  %v83 = vld [vmem:[%s2] sm:$0x1]
  %v85 = vlaneseq
  %v86 = vshrl.u32 %v85, 7
  %v87 = vsub.s32 0, %v86
  %v88 = vrot.slane %v83, %v87
  %v122 = vunpack.c.l.b16 %v15
  %v123 = vunpack.c.h.b16 %v15
  %v124 = vunpack.c.l.b16 %v16
  %v125 = vunpack.c.l.b16 %v17
  %v126 = vunpack.c.h.b16 %v17
  %v127 = vunpack.c.l.b16 %v18
  %v128 = vunpack.c.l.b16 %v19
  %v129 = vunpack.c.h.b16 %v19
  %v130 = vunpack.c.l.b16 %v20
  %v131 = vunpack.c.l.b16 %v21
  %v132 = vunpack.c.h.b16 %v21
  %v133 = vunpack.c.l.b16 %v22
  %v134 = vunpack.c.l.b16 %v23
  %v135 = vunpack.c.h.b16 %v23
  %v136 = vunpack.c.l.b16 %v24
  %v137 = vunpack.c.l.b16 %v25
  %v138 = vunpack.c.h.b16 %v25
  %v139 = vunpack.c.l.b16 %v26
  %v140 = vunpack.c.l.b16 %v27
  %v141 = vunpack.c.h.b16 %v27
  %v142 = vunpack.c.l.b16 %v28
  %v143 = vunpack.c.l.b16 %v29
  %v144 = vunpack.c.h.b16 %v29
  %v145 = vunpack.c.l.b16 %v30
  %v146 = vunpack.c.l.b16 %v31
  %v147 = vunpack.c.h.b16 %v31
  %v148 = vunpack.c.l.b16 %v32
  %v149 = vunpack.c.l.b16 %v33
  %v150 = vunpack.c.h.b16 %v33
  %v151 = vunpack.c.l.b16 %v34
  %v152 = vunpack.c.l.b16 %v35
  %v153 = vunpack.c.h.b16 %v35
  %v154 = vunpack.c.l.b16 %v36
  %v155 = vunpack.c.l.b16 %v37
  %v156 = vunpack.c.h.b16 %v37
  %v157 = vunpack.c.l.b16 %v38
  %v158 = vunpack.c.l.b16 %v39
  %v159 = vunpack.c.h.b16 %v39
  %v160 = vunpack.c.l.b16 %v40
  %v161 = vunpack.c.l.b16 %v41
  %v162 = vunpack.c.h.b16 %v41
  %v163 = vunpack.c.l.b16 %v42
  %v164 = vunpack.c.l.b16 %v43
  %v165 = vunpack.c.h.b16 %v43
  %v166 = vunpack.c.l.b16 %v44
  %v167 = vunpack.c.l.b16 %v45
  %v168 = vunpack.c.h.b16 %v45
  %v169 = vunpack.c.l.b16 %v46
  %v170 = vpack.c.b16 %v125, %v122
  %v171 = vpack.c.b16 %v126, %v123
  %v172 = vpack.c.b16 %v127, %v124
  %v173 = vpack.c.b16 %v131, %v128
  %v174 = vpack.c.b16 %v132, %v129
  %v175 = vpack.c.b16 %v133, %v130
  %v176 = vpack.c.b16 %v137, %v134
  %v177 = vpack.c.b16 %v138, %v135
  %v178 = vpack.c.b16 %v139, %v136
  %v179 = vpack.c.b16 %v143, %v140
  %v180 = vpack.c.b16 %v144, %v141
  %v181 = vpack.c.b16 %v145, %v142
  %v182 = vpack.c.b16 %v149, %v146
  %v183 = vpack.c.b16 %v150, %v147
  %v184 = vpack.c.b16 %v151, %v148
  %v185 = vpack.c.b16 %v155, %v152
  %v186 = vpack.c.b16 %v156, %v153
  %v187 = vpack.c.b16 %v157, %v154
  %v188 = vpack.c.b16 %v161, %v158
  %v189 = vpack.c.b16 %v162, %v159
  %v190 = vpack.c.b16 %v163, %v160
  %v191 = vpack.c.b16 %v167, %v164
  %v192 = vpack.c.b16 %v168, %v165
  %v193 = vpack.c.b16 %v169, %v166
  %v246 = vunpack.c.l.b16 %v47
  %v247 = vunpack.c.l.b16 %v48
  %v248 = vunpack.c.l.b16 %v49
  %v249 = vunpack.c.l.b16 %v50
  %v250 = vunpack.c.l.b16 %v51
  %v251 = vunpack.c.l.b16 %v52
  %v252 = vunpack.c.l.b16 %v53
  %v253 = vunpack.c.l.b16 %v54
  %v254 = vunpack.c.l.b16 %v55
  %v255 = vunpack.c.l.b16 %v56
  %v256 = vunpack.c.l.b16 %v57
  %v257 = vunpack.c.l.b16 %v58
  %v258 = vunpack.c.l.b16 %v59
  %v259 = vunpack.c.l.b16 %v60
  %v260 = vunpack.c.l.b16 %v61
  %v261 = vunpack.c.l.b16 %v62
  %v262 = vunpack.c.l.b16 %v63
  %v263 = vunpack.c.l.b16 %v64
  %v264 = vunpack.c.l.b16 %v65
  %v265 = vunpack.c.l.b16 %v66
  %v266 = vunpack.c.l.b16 %v67
  %v267 = vunpack.c.l.b16 %v68
  %v268 = vunpack.c.l.b16 %v69
  %v269 = vunpack.c.l.b16 %v70
  %v270 = vunpack.c.l.b16 %v71
  %v271 = vunpack.c.l.b16 %v72
  %v272 = vunpack.c.l.b16 %v73
  %v273 = vunpack.c.l.b16 %v74
  %v274 = vunpack.c.l.b16 %v75
  %v275 = vunpack.c.l.b16 %v76
  %v276 = vunpack.c.l.b16 %v77
  %v277 = vunpack.c.l.b16 %v78
  %v278 = vunpack.c.l.b16 %v79
  %v279 = vunpack.c.l.b16 %v80
  %v280 = vunpack.c.l.b16 %v81
  %v281 = vunpack.c.l.b16 %v82
  %v282 = vpack.c.b16 %v247, %v246
  %v283 = vpack.c.b16 %v249, %v248
  %v284 = vpack.c.b16 %v251, %v250
  %v285 = vpack.c.b16 %v253, %v252
  %v286 = vpack.c.b16 %v255, %v254
  %v287 = vpack.c.b16 %v257, %v256
  %v288 = vpack.c.b16 %v259, %v258
  %v289 = vpack.c.b16 %v261, %v260
  %v290 = vpack.c.b16 %v263, %v262
  %v291 = vpack.c.b16 %v265, %v264
  %v292 = vpack.c.b16 %v267, %v266
  %v293 = vpack.c.b16 %v269, %v268
  %v294 = vpack.c.b16 %v271, %v270
  %v295 = vpack.c.b16 %v273, %v272
  %v296 = vpack.c.b16 %v275, %v274
  %v297 = vpack.c.b16 %v277, %v276
  %v298 = vpack.c.b16 %v279, %v278
  %v299 = vpack.c.b16 %v281, %v280
  %vm318 = vcmask 261120
  %v320 = vsel %vm318, %v172, 0
  %v323 = vsel %vm318, %v175, 0
  %v326 = vsel %vm318, %v178, 0
  %v329 = vsel %vm318, %v181, 0
  %v332 = vsel %vm318, %v184, 0
  %v335 = vsel %vm318, %v187, 0
  %v338 = vsel %vm318, %v190, 0
  %v341 = vsel %vm318, %v193, 0
  %343 = vmatprep.subr.bf16.mxu0 0
  %344 = vmatpush1.bf16.msra.mxu0 %v282
  %345 = vmatprep.subr.bf16.mxu0 0
  %346 = vmatpush1.bf16.msra.mxu0 %v283
  %347 = vmatprep.subr.bf16.mxu0 0
  %348 = vmatpush1.bf16.msra.mxu0 %v284
  %349 = vmatprep.subr.bf16.mxu0 0
  %350 = vmatpush1.bf16.msra.mxu0 %v285
  %351 = vmatprep.subr.bf16.mxu0 0
  %352 = vmatpush1.bf16.msra.mxu0 %v286
  %353 = vmatprep.subr.bf16.mxu0 0
  %354 = vmatpush1.bf16.msra.mxu0 %v287
  %355 = vmatprep.subr.bf16.mxu0 0
  %356 = vmatpush1.bf16.msra.mxu0 %v288
  %357 = vmatprep.subr.bf16.mxu0 0
  %358 = vmatpush1.bf16.msra.mxu0 %v289
  %359 = vmatprep.subr.bf16.mxu0 0
  %360 = vmatpush1.bf16.msra.mxu0 %v290
  %361 = vmatprep.subr.bf16.mxu0 0
  %362 = vmatpush1.bf16.msra.mxu0 %v291
  %363 = vmatprep.subr.bf16.mxu0 0
  %364 = vmatpush1.bf16.msra.mxu0 %v292
  %365 = vmatprep.subr.bf16.mxu0 0
  %366 = vmatpush1.bf16.msra.mxu0 %v293
  %367 = vmatprep.subr.bf16.mxu0 0
  %368 = vmatpush1.bf16.msra.mxu0 %v294
  %369 = vmatprep.subr.bf16.mxu0 0
  %370 = vmatpush1.bf16.msra.mxu0 %v295
  %371 = vmatprep.subr.bf16.mxu0 0
  %372 = vmatpush1.bf16.msra.mxu0 %v296
  %373 = vmatprep.subr.bf16.mxu0 0
  %374 = vmatpush1.bf16.msra.mxu0 %v297
  %375 = vmatprep.mubr.bf16.mxu0 %v171
  %376 = vmatmul.mubr.bf16.gmra.mrb[0].mxu0 %v170
  %v377 = vpop.f32.mrb[0].mxu0
  %v378 = vadd.f32 %v88, %v377
  %v379 = vpop.f32.mrb[0].mxu0
  %v380 = vpop.f32.mrb[0].mxu0
  %v381 = vadd.f32 %v88, %v380
  %v382 = vpop.f32.mrb[0].mxu0
  %383 = vmatprep.mubr.bf16.mxu0 %v174
  %384 = vmatmul.mubr.bf16.gmra.mrb[0].mxu0 %v173
  %v385 = vpop.f32.mrb[0].mxu0
  %v386 = vadd.f32 %v88, %v385
  %v387 = vpop.f32.mrb[0].mxu0
  %v388 = vpop.f32.mrb[0].mxu0
  %v389 = vadd.f32 %v88, %v388
  %v390 = vpop.f32.mrb[0].mxu0
  %391 = vmatprep.mubr.bf16.mxu0 %v177
  %392 = vmatmul.mubr.bf16.gmra.mrb[0].mxu0 %v176
  %v393 = vpop.f32.mrb[0].mxu0
  %v394 = vadd.f32 %v88, %v393
  %v395 = vpop.f32.mrb[0].mxu0
  %v396 = vpop.f32.mrb[0].mxu0
  %v397 = vadd.f32 %v88, %v396
  %v398 = vpop.f32.mrb[0].mxu0
  %399 = vmatprep.mubr.bf16.mxu0 %v180
  %400 = vmatmul.mubr.bf16.gmra.mrb[0].mxu0 %v179
  %v401 = vpop.f32.mrb[0].mxu0
  %v402 = vadd.f32 %v88, %v401
  %v403 = vpop.f32.mrb[0].mxu0
  %v404 = vpop.f32.mrb[0].mxu0
  %v405 = vadd.f32 %v88, %v404
  %v406 = vpop.f32.mrb[0].mxu0
  %407 = vmatprep.mubr.bf16.mxu0 %v183
  %408 = vmatmul.mubr.bf16.gmra.mrb[0].mxu0 %v182
  %v409 = vpop.f32.mrb[0].mxu0
  %v410 = vadd.f32 %v88, %v409
  %v411 = vpop.f32.mrb[0].mxu0
  %v412 = vpop.f32.mrb[0].mxu0
  %v413 = vadd.f32 %v88, %v412
  %v414 = vpop.f32.mrb[0].mxu0
  %415 = vmatprep.mubr.bf16.mxu0 %v186
  %416 = vmatmul.mubr.bf16.gmra.mrb[0].mxu0 %v185
  %v417 = vpop.f32.mrb[0].mxu0
  %v418 = vadd.f32 %v88, %v417
  %v419 = vpop.f32.mrb[0].mxu0
  %v420 = vpop.f32.mrb[0].mxu0
  %v421 = vadd.f32 %v88, %v420
  %v422 = vpop.f32.mrb[0].mxu0
  %423 = vmatprep.mubr.bf16.mxu0 %v189
  %424 = vmatmul.mubr.bf16.gmra.mrb[0].mxu0 %v188
  %v425 = vpop.f32.mrb[0].mxu0
  %v426 = vadd.f32 %v88, %v425
  %v427 = vpop.f32.mrb[0].mxu0
  %v428 = vpop.f32.mrb[0].mxu0
  %v429 = vadd.f32 %v88, %v428
  %v430 = vpop.f32.mrb[0].mxu0
  %431 = vmatprep.mubr.bf16.mxu0 %v192
  %432 = vmatmul.mubr.bf16.gmra.mrb[0].mxu0 %v191
  %v433 = vpop.f32.mrb[0].mxu0
  %v434 = vadd.f32 %v88, %v433
  %v435 = vpop.f32.mrb[0].mxu0
  %v436 = vpop.f32.mrb[0].mxu0
  %v437 = vadd.f32 %v88, %v436
  %v438 = vpop.f32.mrb[0].mxu0
  %439 = vdwg.mxu0
  %440 = vmatprep.subr.bf16.mxu0 0
  %441 = vmatpush1.bf16.msra.mxu0 %v298
  %442 = vmatprep.subr.bf16.mxu0 0
  %443 = vmatpush1.bf16.msra.mxu0 %v299
  %444 = vmatprep.subr.bf16.mxu0 0
  %445 = vmatpush1.bf16.msra.mxu0 0
  %446 = vmatprep.subr.bf16.mxu0 0
  %447 = vmatpush1.bf16.msra.mxu0 0
  %448 = vmatprep.subr.bf16.mxu0 0
  %449 = vmatpush1.bf16.msra.mxu0 0
  %450 = vmatprep.subr.bf16.mxu0 0
  %451 = vmatpush1.bf16.msra.mxu0 0
  %452 = vmatprep.subr.bf16.mxu0 0
  %453 = vmatpush1.bf16.msra.mxu0 0
  %454 = vmatprep.subr.bf16.mxu0 0
  %455 = vmatpush1.bf16.msra.mxu0 0
  %456 = vmatprep.subr.bf16.mxu0 0
  %457 = vmatpush1.bf16.msra.mxu0 0
  %458 = vmatprep.subr.bf16.mxu0 0
  %459 = vmatpush1.bf16.msra.mxu0 0
  %460 = vmatprep.subr.bf16.mxu0 0
  %461 = vmatpush1.bf16.msra.mxu0 0
  %462 = vmatprep.subr.bf16.mxu0 0
  %463 = vmatpush1.bf16.msra.mxu0 0
  %464 = vmatprep.subr.bf16.mxu0 0
  %465 = vmatpush1.bf16.msra.mxu0 0
  %466 = vmatprep.subr.bf16.mxu0 0
  %467 = vmatpush1.bf16.msra.mxu0 0
  %468 = vmatprep.subr.bf16.mxu0 0
  %469 = vmatpush1.bf16.msra.mxu0 0
  %470 = vmatprep.subr.bf16.mxu0 0
  %471 = vmatpush1.bf16.msra.mxu0 0
  %472 = vmatprep.mubr.bf16.mxu0 0
  %473 = vmatmul.mubr.bf16.gmra.mrb[0].mxu0 %v320
  %v474 = vpop.f32.mrb[0].mxu0
  %v475 = vadd.f32 %v378, %v474
  %v476 = vpop.f32.mrb[0].mxu0
  %v477 = vpop.f32.mrb[0].mxu0
  %v478 = vadd.f32 %v381, %v477
  %v479 = vpop.f32.mrb[0].mxu0
  %480 = vmatprep.mubr.bf16.mxu0 0
  %481 = vmatmul.mubr.bf16.gmra.mrb[0].mxu0 %v323
  %v482 = vpop.f32.mrb[0].mxu0
  %v483 = vadd.f32 %v386, %v482
  %v484 = vpop.f32.mrb[0].mxu0
  %v485 = vpop.f32.mrb[0].mxu0
  %v486 = vadd.f32 %v389, %v485
  %v487 = vpop.f32.mrb[0].mxu0
  %488 = vmatprep.mubr.bf16.mxu0 0
  %489 = vmatmul.mubr.bf16.gmra.mrb[0].mxu0 %v326
  %v490 = vpop.f32.mrb[0].mxu0
  %v491 = vadd.f32 %v394, %v490
  %v492 = vpop.f32.mrb[0].mxu0
  %v493 = vpop.f32.mrb[0].mxu0
  %v494 = vadd.f32 %v397, %v493
  %v495 = vpop.f32.mrb[0].mxu0
  %496 = vmatprep.mubr.bf16.mxu0 0
  %497 = vmatmul.mubr.bf16.gmra.mrb[0].mxu0 %v329
  %v498 = vpop.f32.mrb[0].mxu0
  %v499 = vadd.f32 %v402, %v498
  %v500 = vpop.f32.mrb[0].mxu0
  %v501 = vpop.f32.mrb[0].mxu0
  %v502 = vadd.f32 %v405, %v501
  %v503 = vpop.f32.mrb[0].mxu0
  %504 = vmatprep.mubr.bf16.mxu0 0
  %505 = vmatmul.mubr.bf16.gmra.mrb[0].mxu0 %v332
  %v506 = vpop.f32.mrb[0].mxu0
  %v507 = vadd.f32 %v410, %v506
  %v508 = vpop.f32.mrb[0].mxu0
  %v509 = vpop.f32.mrb[0].mxu0
  %v510 = vadd.f32 %v413, %v509
  %v511 = vpop.f32.mrb[0].mxu0
  %512 = vmatprep.mubr.bf16.mxu0 0
  %513 = vmatmul.mubr.bf16.gmra.mrb[0].mxu0 %v335
  %v514 = vpop.f32.mrb[0].mxu0
  %v515 = vadd.f32 %v418, %v514
  %v516 = vpop.f32.mrb[0].mxu0
  %v517 = vpop.f32.mrb[0].mxu0
  %v518 = vadd.f32 %v421, %v517
  %v519 = vpop.f32.mrb[0].mxu0
  %520 = vmatprep.mubr.bf16.mxu0 0
  %521 = vmatmul.mubr.bf16.gmra.mrb[0].mxu0 %v338
  %v522 = vpop.f32.mrb[0].mxu0
  %v523 = vadd.f32 %v426, %v522
  %v524 = vpop.f32.mrb[0].mxu0
  %v525 = vpop.f32.mrb[0].mxu0
  %v526 = vadd.f32 %v429, %v525
  %v527 = vpop.f32.mrb[0].mxu0
  %528 = vmatprep.mubr.bf16.mxu0 0
  %529 = vmatmul.mubr.bf16.gmra.mrb[0].mxu0 %v341
  %v530 = vpop.f32.mrb[0].mxu0
  %v531 = vadd.f32 %v434, %v530
  %v532 = vpop.f32.mrb[0].mxu0
  %v533 = vpop.f32.mrb[0].mxu0
  %v534 = vadd.f32 %v437, %v533
  %v535 = vpop.f32.mrb[0].mxu0
  %536 = vdwg.mxu0
  %v537 = vxor.u32 %v475, 2147483648
  %v538 = vxor.u32 %v478, 2147483648
  %v539 = vxor.u32 %v483, 2147483648
  %v540 = vxor.u32 %v486, 2147483648
  %v541 = vxor.u32 %v491, 2147483648
  %v542 = vxor.u32 %v494, 2147483648
  %v543 = vxor.u32 %v499, 2147483648
  %v544 = vxor.u32 %v502, 2147483648
  %v545 = vxor.u32 %v507, 2147483648
  %v546 = vxor.u32 %v510, 2147483648
  %v547 = vxor.u32 %v515, 2147483648
  %v548 = vxor.u32 %v518, 2147483648
  %v549 = vxor.u32 %v523, 2147483648
  %v550 = vxor.u32 %v526, 2147483648
  %v551 = vxor.u32 %v531, 2147483648
  %v552 = vxor.u32 %v534, 2147483648
  %v553 = vmul.f32 %v537, 1.442695
  %v554 = vpow.pop %v553
  %v555 = vmul.f32 %v538, 1.442695
  %v556 = vpow.pop %v555
  %v557 = vmul.f32 %v539, 1.442695
  %v558 = vpow.pop %v557
  %v559 = vmul.f32 %v540, 1.442695
  %v560 = vpow.pop %v559
  %v561 = vmul.f32 %v541, 1.442695
  %v562 = vpow.pop %v561
  %v563 = vmul.f32 %v542, 1.442695
  %v564 = vpow.pop %v563
  %v565 = vmul.f32 %v543, 1.442695
  %v566 = vpow.pop %v565
  %v567 = vmul.f32 %v544, 1.442695
  %v568 = vpow.pop %v567
  %v569 = vmul.f32 %v545, 1.442695
  %v570 = vpow.pop %v569
  %v571 = vmul.f32 %v546, 1.442695
  %v572 = vpow.pop %v571
  %v573 = vmul.f32 %v547, 1.442695
  %v574 = vpow.pop %v573
  %v575 = vmul.f32 %v548, 1.442695
  %v576 = vpow.pop %v575
  %v577 = vmul.f32 %v549, 1.442695
  %v578 = vpow.pop %v577
  %v579 = vmul.f32 %v550, 1.442695
  %v580 = vpow.pop %v579
  %v581 = vmul.f32 %v551, 1.442695
  %v582 = vpow.pop %v581
  %v583 = vmul.f32 %v552, 1.442695
  %v584 = vpow.pop %v583
  %v585 = vadd.f32 %v554, 1.0
  %v586 = vadd.f32 %v556, 1.0
  %v587 = vadd.f32 %v558, 1.0
  %v588 = vadd.f32 %v560, 1.0
  %v589 = vadd.f32 %v562, 1.0
  %v590 = vadd.f32 %v564, 1.0
  %v591 = vadd.f32 %v566, 1.0
  %v592 = vadd.f32 %v568, 1.0
  %v593 = vadd.f32 %v570, 1.0
  %v594 = vadd.f32 %v572, 1.0
  %v595 = vadd.f32 %v574, 1.0
  %v596 = vadd.f32 %v576, 1.0
  %v597 = vadd.f32 %v578, 1.0
  %v598 = vadd.f32 %v580, 1.0
  %v599 = vadd.f32 %v582, 1.0
  %v600 = vadd.f32 %v584, 1.0
  %v601 = vrcp.pop %v585
  %v602 = vmul.f32 1.0, %v601
  %v603 = vrcp.pop %v586
  %v604 = vmul.f32 1.0, %v603
  %v605 = vrcp.pop %v587
  %v606 = vmul.f32 1.0, %v605
  %v607 = vrcp.pop %v588
  %v608 = vmul.f32 1.0, %v607
  %v609 = vrcp.pop %v589
  %v610 = vmul.f32 1.0, %v609
  %v611 = vrcp.pop %v590
  %v612 = vmul.f32 1.0, %v611
  %v613 = vrcp.pop %v591
  %v614 = vmul.f32 1.0, %v613
  %v615 = vrcp.pop %v592
  %v616 = vmul.f32 1.0, %v615
  %v617 = vrcp.pop %v593
  %v618 = vmul.f32 1.0, %v617
  %v619 = vrcp.pop %v594
  %v620 = vmul.f32 1.0, %v619
  %v621 = vrcp.pop %v595
  %v622 = vmul.f32 1.0, %v621
  %v623 = vrcp.pop %v596
  %v624 = vmul.f32 1.0, %v623
  %v625 = vrcp.pop %v597
  %v626 = vmul.f32 1.0, %v625
  %v627 = vrcp.pop %v598
  %v628 = vmul.f32 1.0, %v627
  %v629 = vrcp.pop %v599
  %v630 = vmul.f32 1.0, %v629
  %v631 = vrcp.pop %v600
  %v632 = vmul.f32 1.0, %v631
  %v633 = vmul.f32 %v475, %v602
  %v634 = vmul.f32 %v478, %v604
  %v635 = vmul.f32 %v483, %v606
  %v636 = vmul.f32 %v486, %v608
  %v637 = vmul.f32 %v491, %v610
  %v638 = vmul.f32 %v494, %v612
  %v639 = vmul.f32 %v499, %v614
  %v640 = vmul.f32 %v502, %v616
  %v641 = vmul.f32 %v507, %v618
  %v642 = vmul.f32 %v510, %v620
  %v643 = vmul.f32 %v515, %v622
  %v644 = vmul.f32 %v518, %v624
  %v645 = vmul.f32 %v523, %v626
  %v646 = vmul.f32 %v526, %v628
  %v647 = vmul.f32 %v531, %v630
  %v648 = vmul.f32 %v534, %v632
  %v649 = vpack.c.bf16 %v634, %v633
  %v650 = vpack.c.bf16 %v636, %v635
  %v651 = vpack.c.bf16 %v638, %v637
  %v652 = vpack.c.bf16 %v640, %v639
  %v653 = vpack.c.bf16 %v642, %v641
  %v654 = vpack.c.bf16 %v644, %v643
  %v655 = vpack.c.bf16 %v646, %v645
  %v656 = vpack.c.bf16 %v648, %v647
  %v665 = vunpack.c.l.b16 %v649
  %v666 = vunpack.c.h.b16 %v649
  %v667 = vunpack.c.l.b16 %v650
  %v668 = vunpack.c.h.b16 %v650
  %v669 = vunpack.c.l.b16 %v651
  %v670 = vunpack.c.h.b16 %v651
  %v671 = vunpack.c.l.b16 %v652
  %v672 = vunpack.c.h.b16 %v652
  %v673 = vunpack.c.l.b16 %v653
  %v674 = vunpack.c.h.b16 %v653
  %v675 = vunpack.c.l.b16 %v654
  %v676 = vunpack.c.h.b16 %v654
  %v677 = vunpack.c.l.b16 %v655
  %v678 = vunpack.c.h.b16 %v655
  %v679 = vunpack.c.l.b16 %v656
  %v680 = vunpack.c.h.b16 %v656
  %v681 = vpack.c.b16 %v665, %v665
  %v682 = vpack.c.b16 %v666, %v666
  %v683 = vpack.c.b16 %v667, %v667
  %v684 = vpack.c.b16 %v668, %v668
  %v685 = vpack.c.b16 %v669, %v669
  %v686 = vpack.c.b16 %v670, %v670
  %v687 = vpack.c.b16 %v671, %v671
  %v688 = vpack.c.b16 %v672, %v672
  %v689 = vpack.c.b16 %v673, %v673
  %v690 = vpack.c.b16 %v674, %v674
  %v691 = vpack.c.b16 %v675, %v675
  %v692 = vpack.c.b16 %v676, %v676
  %v693 = vpack.c.b16 %v677, %v677
  %v694 = vpack.c.b16 %v678, %v678
  %v695 = vpack.c.b16 %v679, %v679
  %v696 = vpack.c.b16 %v680, %v680
  %vm713 = vcmask 519168
  %714 = vst.msk [vmem:[%s3] sm:$0xf] %vm713, %v681
  %715 = vst.msk [vmem:[%s3 + $0x4] sm:$0xf] %vm713, %v682
  %716 = vst.msk [vmem:[%s3 + $0x8] sm:$0xf] %vm713, %v683
  %717 = vst.msk [vmem:[%s3 + $0xc] sm:$0xf] %vm713, %v684
  %718 = vst.msk [vmem:[%s3 + $0x10] sm:$0xf] %vm713, %v685
  %719 = vst.msk [vmem:[%s3 + $0x14] sm:$0xf] %vm713, %v686
  %720 = vst.msk [vmem:[%s3 + $0x18] sm:$0xf] %vm713, %v687
  %721 = vst.msk [vmem:[%s3 + $0x1c] sm:$0xf] %vm713, %v688
  %722 = vst.msk [vmem:[%s3 + $0x20] sm:$0xf] %vm713, %v689
  %723 = vst.msk [vmem:[%s3 + $0x24] sm:$0xf] %vm713, %v690
  %724 = vst.msk [vmem:[%s3 + $0x28] sm:$0xf] %vm713, %v691
  %725 = vst.msk [vmem:[%s3 + $0x2c] sm:$0xf] %vm713, %v692
  %726 = vst.msk [vmem:[%s3 + $0x30] sm:$0xf] %vm713, %v693
  %727 = vst.msk [vmem:[%s3 + $0x34] sm:$0xf] %vm713, %v694
  %728 = vst.msk [vmem:[%s3 + $0x38] sm:$0xf] %vm713, %v695
  %729 = vst.msk [vmem:[%s3 + $0x3c] sm:$0xf] %vm713, %v696
  // Predicated region
  $region14: #{_lambda_.8} parent=0 // pred_check
    _
  $region15: #{_lambda_.8} parent=0 // pred_check_branch
    %731 = sbr.rel (0) target = $region17
  $region16: #{_lambda_.8} parent=0 // pred_region
    _
  $region17: #{_lambda_.8} parent=0 // pred_fallthru
    _
  // Predicated region
  $region18: #{_lambda_.8} parent=0 // pred_check
    _
  $region19: #{_lambda_.8} parent=0 // pred_check_branch
    %733 = sbr.rel (0) target = $region21
  $region20: #{_lambda_.8} parent=0 // pred_region
    _
  $region21: #{_lambda_.8} parent=0 // pred_fallthru
    _

// kernel: _lambda_.11
$region0: #{_lambda_.11}
  #allocation0 [shape = 'u32[]', space=smem, size = 0x4, offset = 0x4, fixed_abs, tag = 'smem constant byte address 0x4 - core index']
  #allocation1 [shape = 'u32[144,128]{1,0:T(1,128)}', space=vmem, size = 0x12000, scoped, tag = 'internal scratch']
  %s0 = inlined_call_operand.vmem [shape: bf16[2,64,64], index: 0, kind: input, shape index: {}]
  %s1 = inlined_call_operand.vmem [shape: bf16[64,24], index: 1, kind: input, shape index: {}]
  %s2 = inlined_call_operand.vmem [shape: f32[8,24], index: 2, kind: input, shape index: {}]
  %s3 = inlined_call_operand.hbm [shape: f32[2,3,64,8], index: 3, kind: output, shape index: {0}]
  %s4 = inlined_call_operand.vmem [shape: f32[2,3,64,8], index: 4, kind: output, shape index: {1}]
  %5 = xla_tuple %s3, %s4
  %s6 = sld [smem:[#allocation0]]
  $region53: #{_lambda_.11} parent=0
    _
  %s8 = ssub.s32 1, %s6
  %s9 = scalar_select 0, %s8, %s6
  $region1: #{_lambda_.11} parent=0
    #allocation2 [shape = 'u8[196608]{0}', space=vmem, size = 0x30000, scoped, tag = 'output window, operand 0']
    #allocation3 [shape = 's32[2]{0}', space=sflag, size = 0x8, scoped, tag = 'scoped memory for _lambda_.11']
    %10 = vsyncpa [#allocation3], 0
    %s11 = scalar_lea.sflag [#allocation3], 1
    %12 = vsyncpa %s11, 0
    loop: start=0, step=1, limit=4
    $region2: #{_lambda_.11} parent=1 // loop_pre_header
      _
    $region3: #{_lambda_.11} parent=1 // loop_header
      %s14 = sphi 0, %s18
      %p15 = scmp.ge.s32.totalorder %s14, 4
      %s21 = sphi 0, %s33
      %s22 = sphi 0, %s29
      %s23 = sphi 0, %s21
      %s24 = sphi 0, %s22
      %s25 = sphi 0, %s23
      %s26 = sphi 0, %s24
      %s38 = sphi 0, %s40
      %s41 = sphi 0, %s38
      %s42 = sphi 0, %s41
      %s58 = sphi 0, %s42
      %s62 = sphi 0, %s62
      %s64 = sphi 0, %s62
      %s65 = sphi 0, %s64
      %s79 = sphi 0, %s65
      %s83 = sphi 0, %s83
      %s85 = sphi 0, %s83
      %s86 = sphi 0, %s85
      %s100 = sphi 0, %s86
      %s108 = sphi 0, %s110
      %s111 = sphi 0, %s108
      %s112 = sphi 0, %s111
      %s128 = sphi 0, %s112
      %s136 = sphi 0, %s138
      %s139 = sphi 0, %s136
      %s140 = sphi 0, %s139
      %s156 = sphi 0, %s140
    $region4: #{_lambda_.11} parent=1 // loop_header_branch
      %17 = sbr.rel (%p15) target = $region8
    $region5: #{_lambda_.11} parent=1 // loop_body
      %s19 = ssub.s32 %s14, 1
      %s20 = ssub.s32 %s14, 2
      %s27 = sadd.s32 1, %s22
      %p28 = scmp.ge.s32.totalorder %s27, 1
      %s29 = scalar_select %p28, 0, %s27
      %s30 = sadd.s32 1, %s21
      %s31 = scalar_select %p28, %s30, %s21
      %p32 = scmp.ge.s32.totalorder %s31, 2
      %s33 = scalar_select %p32, 0, %s31
      %s34 = ssub.s32 %s21, %s33
      %s35 = ssub.s32 %s22, %s29
      %s36 = sor.u32 %s34, %s35
      %p37 = scmp.eq.s32.totalorder %s36, 0
      %s39 = sadd.s32 %s38, 1
      %s40 = scalar_select %p37, %s38, %s39
      %p43 = pneg %p37
      %p44 = scmp.eq.s32.totalorder %s14, 1
      %p45 = por %p43, %p44
      %p46 = scmp.ne.s32.totalorder %s38, %s41
      %p47 = scmp.eq.s32.totalorder %s14, 0
      %p48 = por %p46, %p47
      %p49 = scmp.ne.s32.totalorder %s38, %s41
      %p50 = scmp.eq.s32.totalorder %s19, 1
      %p51 = por %p49, %p50
      %p52 = scmp.ne.s32.totalorder %s41, %s42
      %p53 = scmp.eq.s32.totalorder %s19, 0
      %p54 = por %p52, %p53
      %p55 = scmp.ne.s32.totalorder %s41, %s42
      %p56 = scmp.eq.s32.totalorder %s20, 1
      %p57 = por %p55, %p56
      %p59 = scmp.ne.s32.totalorder %s42, %s58
      %p60 = scmp.eq.s32.totalorder %s20, 0
      %p61 = por %p59, %p60
      %s63 = sadd.s32 %s62, 1
      %p66 = scmp.eq.s32.totalorder %s14, 1
      %p67 = scmp.ne.s32.totalorder %s62, %s64
      %p68 = scmp.eq.s32.totalorder %s14, 0
      %p69 = por %p67, %p68
      %p70 = scmp.ne.s32.totalorder %s62, %s64
      %p71 = scmp.eq.s32.totalorder %s19, 1
      %p72 = por %p70, %p71
      %p73 = scmp.ne.s32.totalorder %s64, %s65
      %p74 = scmp.eq.s32.totalorder %s19, 0
      %p75 = por %p73, %p74
      %p76 = scmp.ne.s32.totalorder %s64, %s65
      %p77 = scmp.eq.s32.totalorder %s20, 1
      %p78 = por %p76, %p77
      %p80 = scmp.ne.s32.totalorder %s65, %s79
      %p81 = scmp.eq.s32.totalorder %s20, 0
      %p82 = por %p80, %p81
      %s84 = sadd.s32 %s83, 1
      %p87 = scmp.eq.s32.totalorder %s14, 1
      %p88 = scmp.ne.s32.totalorder %s83, %s85
      %p89 = scmp.eq.s32.totalorder %s14, 0
      %p90 = por %p88, %p89
      %p91 = scmp.ne.s32.totalorder %s83, %s85
      %p92 = scmp.eq.s32.totalorder %s19, 1
      %p93 = por %p91, %p92
      %p94 = scmp.ne.s32.totalorder %s85, %s86
      %p95 = scmp.eq.s32.totalorder %s19, 0
      %p96 = por %p94, %p95
      %p97 = scmp.ne.s32.totalorder %s85, %s86
      %p98 = scmp.eq.s32.totalorder %s20, 1
      %p99 = por %p97, %p98
      %p101 = scmp.ne.s32.totalorder %s86, %s100
      %p102 = scmp.eq.s32.totalorder %s20, 0
      %p103 = por %p101, %p102
      %s104 = ssub.s32 %s21, %s33
      %s105 = ssub.s32 %s22, %s29
      %s106 = sor.u32 %s104, %s105
      %p107 = scmp.eq.s32.totalorder %s106, 0
      %s109 = sadd.s32 %s108, 1
      %s110 = scalar_select %p107, %s108, %s109
      %p113 = pneg %p107
      %p114 = scmp.eq.s32.totalorder %s14, 1
      %p115 = por %p113, %p114
      %p116 = scmp.ne.s32.totalorder %s108, %s111
      %p117 = scmp.eq.s32.totalorder %s14, 0
      %p118 = por %p116, %p117
      %p119 = scmp.ne.s32.totalorder %s108, %s111
      %p120 = scmp.eq.s32.totalorder %s19, 1
      %p121 = por %p119, %p120
      %p122 = scmp.ne.s32.totalorder %s111, %s112
      %p123 = scmp.eq.s32.totalorder %s19, 0
      %p124 = por %p122, %p123
      %p125 = scmp.ne.s32.totalorder %s111, %s112
      %p126 = scmp.eq.s32.totalorder %s20, 1
      %p127 = por %p125, %p126
      %p129 = scmp.ne.s32.totalorder %s112, %s128
      %p130 = scmp.eq.s32.totalorder %s20, 0
      %p131 = por %p129, %p130
      %s132 = ssub.s32 %s21, %s33
      %s133 = ssub.s32 %s22, %s29
      %s134 = sor.u32 %s132, %s133
      %p135 = scmp.eq.s32.totalorder %s134, 0
      %s137 = sadd.s32 %s136, 1
      %s138 = scalar_select %p135, %s136, %s137
      %p141 = pneg %p135
      %p142 = scmp.eq.s32.totalorder %s14, 1
      %p143 = por %p141, %p142
      %p144 = scmp.ne.s32.totalorder %s136, %s139
      %p145 = scmp.eq.s32.totalorder %s14, 0
      %p146 = por %p144, %p145
      %p147 = scmp.ne.s32.totalorder %s136, %s139
      %p148 = scmp.eq.s32.totalorder %s19, 1
      %p149 = por %p147, %p148
      %p150 = scmp.ne.s32.totalorder %s139, %s140
      %p151 = scmp.eq.s32.totalorder %s19, 0
      %p152 = por %p150, %p151
      %p153 = scmp.ne.s32.totalorder %s139, %s140
      %p154 = scmp.eq.s32.totalorder %s20, 1
      %p155 = por %p153, %p154
      %p157 = scmp.ne.s32.totalorder %s140, %s156
      %p158 = scmp.eq.s32.totalorder %s20, 0
      %p159 = por %p157, %p158
      %p160 = scmp.le.s32.totalorder 1, %s14
      %p161 = scmp.lt.s32.totalorder %s14, 3
      %p162 = pnand %p160, %p161
      %p163 = pneg %p162
      // Predicated region
      $region9: #{_lambda_.11} parent=5 // pred_check
        _
      $region10: #{_lambda_.11} parent=5 // pred_check_branch
        %165 = sbr.rel (%p162) target = $region12
      $region11: #{_lambda_.11} parent=5 // pred_region
        %s166 = ssub.s32 %s14, 1
        // Predicated region
        $region13: #{_lambda_.11} parent=11 // pred_check
          %p167 = pneg %p75
        $region14: #{_lambda_.11} parent=11 // pred_check_branch
          %169 = sbr.rel (%p167) target = $region16
        $region15: #{_lambda_.11} parent=11 // pred_region
          _
        $region16: #{_lambda_.11} parent=11 // pred_fallthru
          _
        // Predicated region
        $region17: #{_lambda_.11} parent=11 // pred_check
          %p170 = pneg %p96
        $region18: #{_lambda_.11} parent=11 // pred_check_branch
          %172 = sbr.rel (%p170) target = $region20
        $region19: #{_lambda_.11} parent=11 // pred_region
          _
        $region20: #{_lambda_.11} parent=11 // pred_fallthru
          _
      $region12: #{_lambda_.11} parent=5 // pred_fallthru
        _
      %p173 = scmp.lt.s32.totalorder %s14, 2
      // Predicated region
      $region21: #{_lambda_.11} parent=5 // pred_check
        %p174 = pneg %p173
      $region22: #{_lambda_.11} parent=5 // pred_check_branch
        %176 = sbr.rel (%p174) target = $region24
      $region23: #{_lambda_.11} parent=5 // pred_region
        // Predicated region
        $region25: #{_lambda_.11} parent=23 // pred_check
          %p177 = pneg %p48
        $region26: #{_lambda_.11} parent=23 // pred_check_branch
          %179 = sbr.rel (%p177) target = $region28
        $region27: #{_lambda_.11} parent=23 // pred_region
          %s180 = smul.u32 8, %s22
          %p181 = scmp.lt.s32.totalorder %s21, 1
          %s182 = scalar_select %p181, %s21, 1
          %p183 = scmp.lt.s32.totalorder %s180, 7
          %s184 = scalar_select %p183, %s180, 7
          %s185 = smul.addr %s182, 8
          %s186 = sadd.s32 %s184, %s185
          %s187 = smul.addr %s186, 4
          %s188 = scalar_lea.vmem %s0, %s187
          %s189 = smul.u32 8, %s22
        $region28: #{_lambda_.11} parent=23 // pred_fallthru
          _
      $region24: #{_lambda_.11} parent=5 // pred_fallthru
        _
      %p190 = scmp.le.s32.totalorder 1, %s14
      %p191 = scmp.lt.s32.totalorder %s14, 3
      %p192 = pnand %p190, %p191
      %p193 = pneg %p192
      // Predicated region
      $region29: #{_lambda_.11} parent=5 // pred_check
        _
      $region30: #{_lambda_.11} parent=5 // pred_check_branch
        %195 = sbr.rel (%p192) target = $region32
      $region31: #{_lambda_.11} parent=5 // pred_region
        %s196 = ssub.s32 %s14, 1
        %s197 = smul.u32 8, %s24
        %p198 = scmp.lt.s32.totalorder %s23, 1
        %s199 = scalar_select %p198, %s23, 1
        %p200 = scmp.lt.s32.totalorder %s197, 7
        %s201 = scalar_select %p200, %s197, 7
        %s202 = smul.addr %s199, 8
        %s203 = sadd.s32 %s201, %s202
        %s204 = smul.addr %s203, 4
        %s205 = scalar_lea.vmem %s0, %s204
        %p206 = pneg %p54
        %p207 = pneg %p51
        %p208 = pneg %p75
        %p209 = pneg %p72
        %p210 = pneg %p96
        %p211 = pneg %p93
        %p212 = pneg %p124
        %p213 = pneg %p121
        %s214 = sand.u32 %s111, 1
        %s215 = scalar_lea.sflag [#allocation3], %s214
        %s216 = sand.u32 %s111, 1
        %s217 = smul.addr %s216, 192
        %s218 = scalar_lea.vmem [#allocation2], %s217
        %p219 = pneg %p152
        %p220 = pneg %p149
        %s221 = smul.u32 8, %s24
        %p222 = scmp.lt.s32.totalorder %s23, 1
        %s223 = scalar_select %p222, %s23, 1
        %p224 = scmp.lt.s32.totalorder %s221, 7
        %s225 = scalar_select %p224, %s221, 7
        %s226 = smul.addr %s223, 24
        %s227 = sadd.s32 %s225, %s226
        %s228 = smul.addr %s227, 8
        %s229 = scalar_lea.vmem %s4, %s228
        %s230 = smul.u32 8, %s24
        %p231 = scmp.lt.s32.totalorder %s23, 1
        %s232 = scalar_select %p231, %s23, 1
        %p233 = scmp.lt.s32.totalorder %s230, 7
        %s234 = scalar_select %p233, %s230, 7
        %s235 = smul.addr %s232, 8
        %s236 = sadd.s32 %s234, %s235
        %s237 = smul.addr %s236, 4
        %s238 = scalar_lea.vmem %s0, %s237
        %s239 = smul.u32 8, %s24
        %s240 = smul.u32 8, %s24
        %s241 = smul.u32 8, %s24
        %p242 = scmp.lt.s32.totalorder %s23, 1
        %s243 = scalar_select %p242, %s23, 1
        %p244 = scmp.lt.s32.totalorder %s241, 7
        %s245 = scalar_select %p244, %s241, 7
        %s246 = smul.addr %s243, 24
        %s247 = sadd.s32 %s245, %s246
        %s248 = smul.addr %s247, 8
        %s249 = scalar_lea.vmem %s4, %s248
        %s250 = smul.u32 8, %s24
        %v252 = vld [vmem:[%s238] sm:$0xf]
        %v253 = vld [vmem:[%s238 + $0x4] sm:$0xf]
        %v254 = vld [vmem:[%s238 + $0x8] sm:$0xf]
        %v255 = vld [vmem:[%s238 + $0xc] sm:$0xf]
        %v256 = vld [vmem:[%s238 + $0x10] sm:$0xf]
        %v257 = vld [vmem:[%s238 + $0x14] sm:$0xf]
        %v258 = vld [vmem:[%s238 + $0x18] sm:$0xf]
        %v259 = vld [vmem:[%s238 + $0x1c] sm:$0xf]
        %v260 = vld [vmem:[%s1] sm:$0xf]
        %v261 = vld [vmem:[%s1 + $0x4] sm:$0xf]
        %v262 = vld [vmem:[%s1 + $0x8] sm:$0xf]
        %v263 = vld [vmem:[%s1 + $0xc] sm:$0xf]
        %v264 = vld [vmem:[%s1 + $0x10] sm:$0xf]
        %v265 = vld [vmem:[%s1 + $0x14] sm:$0xf]
        %v266 = vld [vmem:[%s1 + $0x18] sm:$0xf]
        %v267 = vld [vmem:[%s1 + $0x1c] sm:$0xf]
        %v268 = vld [vmem:[%s2] sm:$0x1]
        %v269 = vlaneseq
        %v270 = vshrl.u32 %v269, 7
        %v271 = vsub.s32 0, %v270
        %v272 = vrot.slane %v268, %v271
        %v281 = vunpack.c.l.b16 %v252
        %v282 = vunpack.c.l.b16 %v253
        %v283 = vunpack.c.l.b16 %v254
        %v284 = vunpack.c.l.b16 %v255
        %v285 = vunpack.c.l.b16 %v256
        %v286 = vunpack.c.l.b16 %v257
        %v287 = vunpack.c.l.b16 %v258
        %v288 = vunpack.c.l.b16 %v259
        %v289 = vpack.c.b16 %v282, %v281
        %v290 = vpack.c.b16 %v284, %v283
        %v291 = vpack.c.b16 %v286, %v285
        %v292 = vpack.c.b16 %v288, %v287
        %v301 = vunpack.c.l.b16 %v260
        %v302 = vunpack.c.l.b16 %v261
        %v303 = vunpack.c.l.b16 %v262
        %v304 = vunpack.c.l.b16 %v263
        %v305 = vunpack.c.l.b16 %v264
        %v306 = vunpack.c.l.b16 %v265
        %v307 = vunpack.c.l.b16 %v266
        %v308 = vunpack.c.l.b16 %v267
        %v309 = vpack.c.b16 %v302, %v301
        %v310 = vpack.c.b16 %v304, %v303
        %v311 = vpack.c.b16 %v306, %v305
        %v312 = vpack.c.b16 %v308, %v307
        %vm317 = vcmask 523264
        %v319 = vsel %vm317, %v289, 0
        %v322 = vsel %vm317, %v290, 0
        %v325 = vsel %vm317, %v291, 0
        %v328 = vsel %vm317, %v292, 0
        %330 = vmatprep.subr.bf16.mxu0 0
        %331 = vmatpush1.bf16.msra.mxu0 %v309
        %332 = vmatprep.subr.bf16.mxu0 0
        %333 = vmatpush1.bf16.msra.mxu0 %v310
        %334 = vmatprep.subr.bf16.mxu0 0
        %335 = vmatpush1.bf16.msra.mxu0 %v311
        %336 = vmatprep.subr.bf16.mxu0 0
        %337 = vmatpush1.bf16.msra.mxu0 %v312
        %338 = vmatprep.subr.bf16.mxu0 0
        %339 = vmatpush1.bf16.msra.mxu0 0
        %340 = vmatprep.subr.bf16.mxu0 0
        %341 = vmatpush1.bf16.msra.mxu0 0
        %342 = vmatprep.subr.bf16.mxu0 0
        %343 = vmatpush1.bf16.msra.mxu0 0
        %344 = vmatprep.subr.bf16.mxu0 0
        %345 = vmatpush1.bf16.msra.mxu0 0
        %346 = vmatprep.subr.bf16.mxu0 0
        %347 = vmatpush1.bf16.msra.mxu0 0
        %348 = vmatprep.subr.bf16.mxu0 0
        %349 = vmatpush1.bf16.msra.mxu0 0
        %350 = vmatprep.subr.bf16.mxu0 0
        %351 = vmatpush1.bf16.msra.mxu0 0
        %352 = vmatprep.subr.bf16.mxu0 0
        %353 = vmatpush1.bf16.msra.mxu0 0
        %354 = vmatprep.subr.bf16.mxu0 0
        %355 = vmatpush1.bf16.msra.mxu0 0
        %356 = vmatprep.subr.bf16.mxu0 0
        %357 = vmatpush1.bf16.msra.mxu0 0
        %358 = vmatprep.subr.bf16.mxu0 0
        %359 = vmatpush1.bf16.msra.mxu0 0
        %360 = vmatprep.subr.bf16.mxu0 0
        %361 = vmatpush1.bf16.msra.mxu0 0
        %362 = vmatprep.mubr.bf16.mxu0 0
        %363 = vmatmul.mubr.bf16.gmra.mrb[0].mxu0 %v319
        %v364 = vpop.f32.mrb[0].mxu0
        %v365 = vadd.f32 %v272, %v364
        %v366 = vpop.f32.mrb[0].mxu0
        %v367 = vpop.f32.mrb[0].mxu0
        %v368 = vadd.f32 %v272, %v367
        %v369 = vpop.f32.mrb[0].mxu0
        %370 = vmatprep.mubr.bf16.mxu0 0
        %371 = vmatmul.mubr.bf16.gmra.mrb[0].mxu0 %v322
        %v372 = vpop.f32.mrb[0].mxu0
        %v373 = vadd.f32 %v272, %v372
        %v374 = vpop.f32.mrb[0].mxu0
        %v375 = vpop.f32.mrb[0].mxu0
        %v376 = vadd.f32 %v272, %v375
        %v377 = vpop.f32.mrb[0].mxu0
        %378 = vmatprep.mubr.bf16.mxu0 0
        %379 = vmatmul.mubr.bf16.gmra.mrb[0].mxu0 %v325
        %v380 = vpop.f32.mrb[0].mxu0
        %v381 = vadd.f32 %v272, %v380
        %v382 = vpop.f32.mrb[0].mxu0
        %v383 = vpop.f32.mrb[0].mxu0
        %v384 = vadd.f32 %v272, %v383
        %v385 = vpop.f32.mrb[0].mxu0
        %386 = vmatprep.mubr.bf16.mxu0 0
        %387 = vmatmul.mubr.bf16.gmra.mrb[0].mxu0 %v328
        %v388 = vpop.f32.mrb[0].mxu0
        %v389 = vadd.f32 %v272, %v388
        %v390 = vpop.f32.mrb[0].mxu0
        %v391 = vpop.f32.mrb[0].mxu0
        %v392 = vadd.f32 %v272, %v391
        %v393 = vpop.f32.mrb[0].mxu0
        %394 = vdwg.mxu0
        %v395 = vxor.u32 %v365, 2147483648
        %v396 = vxor.u32 %v368, 2147483648
        %v397 = vxor.u32 %v373, 2147483648
        %v398 = vxor.u32 %v376, 2147483648
        %v399 = vxor.u32 %v381, 2147483648
        %v400 = vxor.u32 %v384, 2147483648
        %v401 = vxor.u32 %v389, 2147483648
        %v402 = vxor.u32 %v392, 2147483648
        %v403 = vmul.f32 %v395, 1.442695
        %v404 = vpow.pop %v403
        %v405 = vmul.f32 %v396, 1.442695
        %v406 = vpow.pop %v405
        %v407 = vmul.f32 %v397, 1.442695
        %v408 = vpow.pop %v407
        %v409 = vmul.f32 %v398, 1.442695
        %v410 = vpow.pop %v409
        %v411 = vmul.f32 %v399, 1.442695
        %v412 = vpow.pop %v411
        %v413 = vmul.f32 %v400, 1.442695
        %v414 = vpow.pop %v413
        %v415 = vmul.f32 %v401, 1.442695
        %v416 = vpow.pop %v415
        %v417 = vmul.f32 %v402, 1.442695
        %v418 = vpow.pop %v417
        %v419 = vadd.f32 %v404, 1.0
        %v420 = vadd.f32 %v406, 1.0
        %v421 = vadd.f32 %v408, 1.0
        %v422 = vadd.f32 %v410, 1.0
        %v423 = vadd.f32 %v412, 1.0
        %v424 = vadd.f32 %v414, 1.0
        %v425 = vadd.f32 %v416, 1.0
        %v426 = vadd.f32 %v418, 1.0
        %v427 = vrcp.pop %v419
        %v428 = vmul.f32 1.0, %v427
        %v429 = vrcp.pop %v420
        %v430 = vmul.f32 1.0, %v429
        %v431 = vrcp.pop %v421
        %v432 = vmul.f32 1.0, %v431
        %v433 = vrcp.pop %v422
        %v434 = vmul.f32 1.0, %v433
        %v435 = vrcp.pop %v423
        %v436 = vmul.f32 1.0, %v435
        %v437 = vrcp.pop %v424
        %v438 = vmul.f32 1.0, %v437
        %v439 = vrcp.pop %v425
        %v440 = vmul.f32 1.0, %v439
        %v441 = vrcp.pop %v426
        %v442 = vmul.f32 1.0, %v441
        %s443 = smul.u32 %s24, 64
        %v444 = vlaneseq
        %v445 = vshrl.u32 %v444, 7
        %v446 = vadd.s32 %v445, 8
        %v447 = vadd.s32 %v445, 16
        %v448 = vadd.s32 %v445, 24
        %v449 = vadd.s32 %v445, 32
        %v450 = vadd.s32 %v445, 40
        %v451 = vadd.s32 %v445, 48
        %v452 = vadd.s32 %v445, 56
        %v453 = vstv %s443
        %v454 = vadd.s32 %v453, %v445
        %v455 = vadd.s32 %v453, %v446
        %v456 = vadd.s32 %v453, %v447
        %v457 = vadd.s32 %v453, %v448
        %v458 = vadd.s32 %v453, %v449
        %v459 = vadd.s32 %v453, %v450
        %v460 = vadd.s32 %v453, %v451
        %v461 = vadd.s32 %v453, %v452
        %v462 = vand.u32 %v454, 7
        %v463 = vand.u32 %v455, 7
        %v464 = vand.u32 %v456, 7
        %v465 = vand.u32 %v457, 7
        %v466 = vand.u32 %v458, 7
        %v467 = vand.u32 %v459, 7
        %v468 = vand.u32 %v460, 7
        %v469 = vand.u32 %v461, 7
        %v470 = vcvt.s32.f32 %v462
        %v471 = vcvt.s32.f32 %v463
        %v472 = vcvt.s32.f32 %v464
        %v473 = vcvt.s32.f32 %v465
        %v474 = vcvt.s32.f32 %v466
        %v475 = vcvt.s32.f32 %v467
        %v476 = vcvt.s32.f32 %v468
        %v477 = vcvt.s32.f32 %v469
        %v478 = vshra.s32 %v454, 3
        %v479 = vshra.s32 %v455, 3
        %v480 = vshra.s32 %v456, 3
        %v481 = vshra.s32 %v457, 3
        %v482 = vshra.s32 %v458, 3
        %v483 = vshra.s32 %v459, 3
        %v484 = vshra.s32 %v460, 3
        %v485 = vshra.s32 %v461, 3
        %v486 = vcvt.s32.f32 %v478
        %v487 = vcvt.s32.f32 %v479
        %v488 = vcvt.s32.f32 %v480
        %v489 = vcvt.s32.f32 %v481
        %v490 = vcvt.s32.f32 %v482
        %v491 = vcvt.s32.f32 %v483
        %v492 = vcvt.s32.f32 %v484
        %v493 = vcvt.s32.f32 %v485
        %v494 = vld [vmem:[%s2 + $0x1] sm:$0x1]
        %v495 = vld [vmem:[%s2 + $0x2] sm:$0x1]
        %v496 = vld [vmem:[%s2 + $0x3] sm:$0x1]
        %v497 = vld [vmem:[%s2 + $0x4] sm:$0x1]
        %v498 = vadd.f32 %v494, %v495
        %v499 = vlaneseq
        %v500 = vshrl.u32 %v499, 7
        %v501 = vsub.s32 0, %v500
        %v502 = vrot.slane %v494, %v501
        %v503 = vmul.f32 %v502, %v470
        %v504 = vmul.f32 %v502, %v471
        %v505 = vmul.f32 %v502, %v472
        %v506 = vmul.f32 %v502, %v473
        %v507 = vmul.f32 %v502, %v474
        %v508 = vmul.f32 %v502, %v475
        %v509 = vmul.f32 %v502, %v476
        %v510 = vmul.f32 %v502, %v477
        %v511 = vlaneseq
        %v512 = vshrl.u32 %v511, 7
        %v513 = vsub.s32 0, %v512
        %v514 = vrot.slane %v495, %v513
        %v515 = vmul.f32 %v514, %v486
        %v516 = vmul.f32 %v514, %v487
        %v517 = vmul.f32 %v514, %v488
        %v518 = vmul.f32 %v514, %v489
        %v519 = vmul.f32 %v514, %v490
        %v520 = vmul.f32 %v514, %v491
        %v521 = vmul.f32 %v514, %v492
        %v522 = vmul.f32 %v514, %v493
        %v523 = vadd.f32 %v503, %v515
        %v524 = vadd.f32 %v504, %v516
        %v525 = vadd.f32 %v505, %v517
        %v526 = vadd.f32 %v506, %v518
        %v527 = vadd.f32 %v507, %v519
        %v528 = vadd.f32 %v508, %v520
        %v529 = vadd.f32 %v509, %v521
        %v530 = vadd.f32 %v510, %v522
        %v531 = vmul.f32 %v428, 2.0
        %v532 = vmul.f32 %v430, 2.0
        %v533 = vmul.f32 %v432, 2.0
        %v534 = vmul.f32 %v434, 2.0
        %v535 = vmul.f32 %v436, 2.0
        %v536 = vmul.f32 %v438, 2.0
        %v537 = vmul.f32 %v440, 2.0
        %v538 = vmul.f32 %v442, 2.0
        %v539 = vsub.f32 %v531, 0.5
        %v540 = vsub.f32 %v532, 0.5
        %v541 = vsub.f32 %v533, 0.5
        %v542 = vsub.f32 %v534, 0.5
        %v543 = vsub.f32 %v535, 0.5
        %v544 = vsub.f32 %v536, 0.5
        %v545 = vsub.f32 %v537, 0.5
        %v546 = vsub.f32 %v538, 0.5
        %v547 = vadd.f32 %v539, %v523
        %v548 = vadd.f32 %v540, %v524
        %v549 = vadd.f32 %v541, %v525
        %v550 = vadd.f32 %v542, %v526
        %v551 = vadd.f32 %v543, %v527
        %v552 = vadd.f32 %v544, %v528
        %v553 = vadd.f32 %v545, %v529
        %v554 = vadd.f32 %v546, %v530
        %v555 = vmul.f32 %v547, 8.0
        %v556 = vmul.f32 %v548, 8.0
        %v557 = vmul.f32 %v549, 8.0
        %v558 = vmul.f32 %v550, 8.0
        %v559 = vmul.f32 %v551, 8.0
        %v560 = vmul.f32 %v552, 8.0
        %v561 = vmul.f32 %v553, 8.0
        %v562 = vmul.f32 %v554, 8.0
        %v563 = vmul.f32 %v531, %v531
        %v564 = vmul.f32 %v532, %v532
        %v565 = vmul.f32 %v533, %v533
        %v566 = vmul.f32 %v534, %v534
        %v567 = vmul.f32 %v535, %v535
        %v568 = vmul.f32 %v536, %v536
        %v569 = vmul.f32 %v537, %v537
        %v570 = vmul.f32 %v538, %v538
        %v571 = vlaneseq
        %v572 = vshrl.u32 %v571, 7
        %v573 = vsub.s32 0, %v572
        %v574 = vrot.slane %v497, %v573
        %v575 = vmul.f32 %v563, %v574
        %v576 = vmul.f32 %v564, %v574
        %v577 = vmul.f32 %v565, %v574
        %v578 = vmul.f32 %v566, %v574
        %v579 = vmul.f32 %v567, %v574
        %v580 = vmul.f32 %v568, %v574
        %v581 = vmul.f32 %v569, %v574
        %v582 = vmul.f32 %v570, %v574
        %v583 = vlaneseq
        %v584 = vshrl.u32 %v583, 7
        %v585 = vsub.s32 0, %v584
        %v586 = vrot.slane %v498, %v585
        %v587 = vmul.f32 %v586, %v555
        %v588 = vmul.f32 %v586, %v556
        %v589 = vmul.f32 %v586, %v557
        %v590 = vmul.f32 %v586, %v558
        %v591 = vmul.f32 %v586, %v559
        %v592 = vmul.f32 %v586, %v560
        %v593 = vmul.f32 %v586, %v561
        %v594 = vmul.f32 %v586, %v562
        %v595 = vlaneseq
        %v596 = vshrl.u32 %v595, 7
        %v597 = vsub.s32 0, %v596
        %v598 = vrot.slane %v496, %v597
        %v599 = vmul.f32 %v598, %v575
        %v600 = vmul.f32 %v598, %v576
        %v601 = vmul.f32 %v598, %v577
        %v602 = vmul.f32 %v598, %v578
        %v603 = vmul.f32 %v598, %v579
        %v604 = vmul.f32 %v598, %v580
        %v605 = vmul.f32 %v598, %v581
        %v606 = vmul.f32 %v598, %v582
        %v607 = vadd.f32 %v587, %v599
        %v608 = vadd.f32 %v588, %v600
        %v609 = vadd.f32 %v589, %v601
        %v610 = vadd.f32 %v590, %v602
        %v611 = vadd.f32 %v591, %v603
        %v612 = vadd.f32 %v592, %v604
        %v613 = vadd.f32 %v593, %v605
        %v614 = vadd.f32 %v594, %v606
        %v615 = vsub.f32 1.0, %v498
        %v616 = vsub.f32 %v615, %v496
        %v617 = vlaneseq
        %v618 = vshrl.u32 %v617, 7
        %v619 = vsub.s32 0, %v618
        %v620 = vrot.slane %v616, %v619
        %v621 = vmul.f32 %v620, %v428
        %v622 = vmul.f32 %v620, %v430
        %v623 = vmul.f32 %v620, %v432
        %v624 = vmul.f32 %v620, %v434
        %v625 = vmul.f32 %v620, %v436
        %v626 = vmul.f32 %v620, %v438
        %v627 = vmul.f32 %v620, %v440
        %v628 = vmul.f32 %v620, %v442
        %v629 = vadd.f32 %v607, %v621
        %v630 = vadd.f32 %v608, %v622
        %v631 = vadd.f32 %v609, %v623
        %v632 = vadd.f32 %v610, %v624
        %v633 = vadd.f32 %v611, %v625
        %v634 = vadd.f32 %v612, %v626
        %v635 = vadd.f32 %v613, %v627
        %v636 = vadd.f32 %v614, %v628
        %vm637 = vcmask 64512
        %638 = vst.msk [vmem:[%s218] sm:$0xff] %vm637, %v365
        %639 = vst.msk [vmem:[%s218 + $0x8] sm:$0xff] %vm637, %v368
        %640 = vst.msk [vmem:[%s218 + $0x10] sm:$0xff] %vm637, %v373
        %641 = vst.msk [vmem:[%s218 + $0x18] sm:$0xff] %vm637, %v376
        %642 = vst.msk [vmem:[%s218 + $0x20] sm:$0xff] %vm637, %v381
        %643 = vst.msk [vmem:[%s218 + $0x28] sm:$0xff] %vm637, %v384
        %644 = vst.msk [vmem:[%s218 + $0x30] sm:$0xff] %vm637, %v389
        %645 = vst.msk [vmem:[%s218 + $0x38] sm:$0xff] %vm637, %v392
        %646 = vst.msk [vmem:[%s249] sm:$0xff] %vm637, %v629
        %647 = vst.msk [vmem:[%s249 + $0x8] sm:$0xff] %vm637, %v630
        %648 = vst.msk [vmem:[%s249 + $0x10] sm:$0xff] %vm637, %v631
        %649 = vst.msk [vmem:[%s249 + $0x18] sm:$0xff] %vm637, %v632
        %650 = vst.msk [vmem:[%s249 + $0x20] sm:$0xff] %vm637, %v633
        %651 = vst.msk [vmem:[%s249 + $0x28] sm:$0xff] %vm637, %v634
        %652 = vst.msk [vmem:[%s249 + $0x30] sm:$0xff] %vm637, %v635
        %653 = vst.msk [vmem:[%s249 + $0x38] sm:$0xff] %vm637, %v636
        %662 = vrot.lane.b32.xlu0 %v365, 120
        %v663 = vpop.permute.xlu0 %662
        %664 = vrot.lane.b32.xlu0 %v368, 120
        %v665 = vpop.permute.xlu0 %664
        %666 = vrot.lane.b32.xlu0 %v373, 120
        %v667 = vpop.permute.xlu0 %666
        %668 = vrot.lane.b32.xlu0 %v376, 120
        %v669 = vpop.permute.xlu0 %668
        %670 = vrot.lane.b32.xlu0 %v381, 120
        %v671 = vpop.permute.xlu0 %670
        %672 = vrot.lane.b32.xlu0 %v384, 120
        %v673 = vpop.permute.xlu0 %672
        %674 = vrot.lane.b32.xlu0 %v389, 120
        %v675 = vpop.permute.xlu0 %674
        %676 = vrot.lane.b32.xlu0 %v392, 120
        %v677 = vpop.permute.xlu0 %676
        %s686 = scalar_lea.vmem %s218, 64 [#allocation2]
        %687 = vst.msk [vmem:[%s686] sm:$0xff] %vm637, %v663
        %688 = vst.msk [vmem:[%s686 + $0x8] sm:$0xff] %vm637, %v665
        %689 = vst.msk [vmem:[%s686 + $0x10] sm:$0xff] %vm637, %v667
        %690 = vst.msk [vmem:[%s686 + $0x18] sm:$0xff] %vm637, %v669
        %691 = vst.msk [vmem:[%s686 + $0x20] sm:$0xff] %vm637, %v671
        %692 = vst.msk [vmem:[%s686 + $0x28] sm:$0xff] %vm637, %v673
        %693 = vst.msk [vmem:[%s686 + $0x30] sm:$0xff] %vm637, %v675
        %694 = vst.msk [vmem:[%s686 + $0x38] sm:$0xff] %vm637, %v677
        %703 = vrot.lane.b32.xlu0 %v629, 120
        %v704 = vpop.permute.xlu0 %703
        %705 = vrot.lane.b32.xlu0 %v630, 120
        %v706 = vpop.permute.xlu0 %705
        %707 = vrot.lane.b32.xlu0 %v631, 120
        %v708 = vpop.permute.xlu0 %707
        %709 = vrot.lane.b32.xlu0 %v632, 120
        %v710 = vpop.permute.xlu0 %709
        %711 = vrot.lane.b32.xlu0 %v633, 120
        %v712 = vpop.permute.xlu0 %711
        %713 = vrot.lane.b32.xlu0 %v634, 120
        %v714 = vpop.permute.xlu0 %713
        %715 = vrot.lane.b32.xlu0 %v635, 120
        %v716 = vpop.permute.xlu0 %715
        %717 = vrot.lane.b32.xlu0 %v636, 120
        %v718 = vpop.permute.xlu0 %717
        %s727 = scalar_lea.vmem %s249, 64
        %728 = vst.msk [vmem:[%s727] sm:$0xff] %vm637, %v704
        %729 = vst.msk [vmem:[%s727 + $0x8] sm:$0xff] %vm637, %v706
        %730 = vst.msk [vmem:[%s727 + $0x10] sm:$0xff] %vm637, %v708
        %731 = vst.msk [vmem:[%s727 + $0x18] sm:$0xff] %vm637, %v710
        %732 = vst.msk [vmem:[%s727 + $0x20] sm:$0xff] %vm637, %v712
        %733 = vst.msk [vmem:[%s727 + $0x28] sm:$0xff] %vm637, %v714
        %734 = vst.msk [vmem:[%s727 + $0x30] sm:$0xff] %vm637, %v716
        %735 = vst.msk [vmem:[%s727 + $0x38] sm:$0xff] %vm637, %v718
        %736 = vrot.lane.b32.xlu0 %v365, 112
        %v737 = vpop.permute.xlu0 %736
        %738 = vrot.lane.b32.xlu0 %v368, 112
        %v739 = vpop.permute.xlu0 %738
        %740 = vrot.lane.b32.xlu0 %v373, 112
        %v741 = vpop.permute.xlu0 %740
        %742 = vrot.lane.b32.xlu0 %v376, 112
        %v743 = vpop.permute.xlu0 %742
        %744 = vrot.lane.b32.xlu0 %v381, 112
        %v745 = vpop.permute.xlu0 %744
        %746 = vrot.lane.b32.xlu0 %v384, 112
        %v747 = vpop.permute.xlu0 %746
        %748 = vrot.lane.b32.xlu0 %v389, 112
        %v749 = vpop.permute.xlu0 %748
        %750 = vrot.lane.b32.xlu0 %v392, 112
        %v751 = vpop.permute.xlu0 %750
        %s760 = scalar_lea.vmem %s218, 128 [#allocation2]
        %761 = vst.msk [vmem:[%s760] sm:$0xff] %vm637, %v737
        %762 = vst.msk [vmem:[%s760 + $0x8] sm:$0xff] %vm637, %v739
        %763 = vst.msk [vmem:[%s760 + $0x10] sm:$0xff] %vm637, %v741
        %764 = vst.msk [vmem:[%s760 + $0x18] sm:$0xff] %vm637, %v743
        %765 = vst.msk [vmem:[%s760 + $0x20] sm:$0xff] %vm637, %v745
        %766 = vst.msk [vmem:[%s760 + $0x28] sm:$0xff] %vm637, %v747
        %767 = vst.msk [vmem:[%s760 + $0x30] sm:$0xff] %vm637, %v749
        %768 = vst.msk [vmem:[%s760 + $0x38] sm:$0xff] %vm637, %v751
        %769 = vrot.lane.b32.xlu0 %v629, 112
        %v770 = vpop.permute.xlu0 %769
        %771 = vrot.lane.b32.xlu0 %v630, 112
        %v772 = vpop.permute.xlu0 %771
        %773 = vrot.lane.b32.xlu0 %v631, 112
        %v774 = vpop.permute.xlu0 %773
        %775 = vrot.lane.b32.xlu0 %v632, 112
        %v776 = vpop.permute.xlu0 %775
        %777 = vrot.lane.b32.xlu0 %v633, 112
        %v778 = vpop.permute.xlu0 %777
        %779 = vrot.lane.b32.xlu0 %v634, 112
        %v780 = vpop.permute.xlu0 %779
        %781 = vrot.lane.b32.xlu0 %v635, 112
        %v782 = vpop.permute.xlu0 %781
        %783 = vrot.lane.b32.xlu0 %v636, 112
        %v784 = vpop.permute.xlu0 %783
        %s793 = scalar_lea.vmem %s249, 128
        %794 = vst.msk [vmem:[%s793] sm:$0xff] %vm637, %v770
        %795 = vst.msk [vmem:[%s793 + $0x8] sm:$0xff] %vm637, %v772
        %796 = vst.msk [vmem:[%s793 + $0x10] sm:$0xff] %vm637, %v774
        %797 = vst.msk [vmem:[%s793 + $0x18] sm:$0xff] %vm637, %v776
        %798 = vst.msk [vmem:[%s793 + $0x20] sm:$0xff] %vm637, %v778
        %799 = vst.msk [vmem:[%s793 + $0x28] sm:$0xff] %vm637, %v780
        %800 = vst.msk [vmem:[%s793 + $0x30] sm:$0xff] %vm637, %v782
        %801 = vst.msk [vmem:[%s793 + $0x38] sm:$0xff] %vm637, %v784
        %s802 = sand.u32 %s111, 1
        %s803 = scalar_lea.sflag [#allocation3], %s802
        %s804 = sand.u32 %s111, 1
        %s805 = smul.addr %s804, 192
        %s806 = scalar_lea.vmem [#allocation2], %s805
        %s807 = smul.u32 8, %s24
        %p808 = scmp.lt.s32.totalorder %s23, 1
        %s809 = scalar_select %p808, %s23, 1
        %p810 = scmp.lt.s32.totalorder %s807, 7
        %s811 = scalar_select %p810, %s807, 7
        %s812 = smul.addr %s809, 24
        %s813 = sadd.s32 %s811, %s812
        %s814 = smul.addr %s813, 8
        %s815 = scalar_lea.vmem %s4, %s814
        // Predicated region
        $region33: #{_lambda_.11} parent=31 // pred_check
          %p816 = pneg %p121
        $region34: #{_lambda_.11} parent=31 // pred_check_branch
          %818 = sbr.rel (%p816) target = $region36
        $region35: #{_lambda_.11} parent=31 // pred_region
          %s819 = smul.u32 8, %s24
          %s821 = ssub.s32 3072, 3072
          %822 = vsyncadd %s803, %s821
          %s823 = smul.addr %s23, 24
          %s824 = sadd.s32 %s819, %s823
          %s825 = smul.addr %s824, 128
          %s826 = scalar_lea.hbm %s3, %s825
          %s827 = sshll.u32 %s806, 4
          %s828 = int_to_ptr.vmem [resolvable:$true] %s827
          %833 = dma.vmem_to_hbm [thread:$0]  %s828, 3072, %s826, %s803, 128, 128, 8
        $region36: #{_lambda_.11} parent=31 // pred_fallthru
          _
        // Predicated region
        $region37: #{_lambda_.11} parent=31 // pred_check
          %p834 = pneg %p149
        $region38: #{_lambda_.11} parent=31 // pred_check_branch
          %836 = sbr.rel (%p834) target = $region40
        $region39: #{_lambda_.11} parent=31 // pred_region
          %s837 = smul.u32 8, %s24
        $region40: #{_lambda_.11} parent=31 // pred_fallthru
          _
      $region32: #{_lambda_.11} parent=5 // pred_fallthru
        _
      %p838 = scmp.le.s32.totalorder 2, %s14
      // Predicated region
      $region41: #{_lambda_.11} parent=5 // pred_check
        %p839 = pneg %p838
      $region42: #{_lambda_.11} parent=5 // pred_check_branch
        %841 = sbr.rel (%p839) target = $region44
      $region43: #{_lambda_.11} parent=5 // pred_region
        %s842 = ssub.s32 %s14, 2
        // Predicated region
        $region45: #{_lambda_.11} parent=43 // pred_check
          %p843 = pneg %p127
        $region46: #{_lambda_.11} parent=43 // pred_check_branch
          %845 = sbr.rel (%p843) target = $region48
        $region47: #{_lambda_.11} parent=43 // pred_region
          %s846 = sand.u32 %s112, 1
          %s847 = scalar_lea.sflag [#allocation3], %s846
          %s848 = sand.u32 %s112, 1
          %s849 = smul.addr %s848, 192
          %s850 = scalar_lea.vmem [#allocation2], %s849
          %851 = dma.done %s847, 3072
        $region48: #{_lambda_.11} parent=43 // pred_fallthru
          _
        // Predicated region
        $region49: #{_lambda_.11} parent=43 // pred_check
          %p852 = pneg %p155
        $region50: #{_lambda_.11} parent=43 // pred_check_branch
          %854 = sbr.rel (%p852) target = $region52
        $region51: #{_lambda_.11} parent=43 // pred_region
          %s855 = smul.u32 8, %s26
          %p856 = scmp.lt.s32.totalorder %s25, 1
          %s857 = scalar_select %p856, %s25, 1
          %p858 = scmp.lt.s32.totalorder %s855, 7
          %s859 = scalar_select %p858, %s855, 7
          %s860 = smul.addr %s857, 24
          %s861 = sadd.s32 %s859, %s860
          %s862 = smul.addr %s861, 8
          %s863 = scalar_lea.vmem %s4, %s862
        $region52: #{_lambda_.11} parent=43 // pred_fallthru
          _
      $region44: #{_lambda_.11} parent=5 // pred_fallthru
        _
    $region6: #{_lambda_.11} parent=1 // loop_footer
      %s18 = sadd.s32 1, %s14
    $region7: #{_lambda_.11} parent=1 // loop_footer_branch
      %13 = sbr.rel target = $region3
    $region8: #{_lambda_.11} parent=1 // loop_exit
      _
    %864 = vsyncpa [#allocation3], 1
    %s865 = scalar_lea.sflag [#allocation3], 1
    %866 = vsyncpa %s865, 1

// kernel: _lambda_.10
$region0: #{_lambda_.10}
  #allocation0 [shape = 'u32[]', space=smem, size = 0x4, offset = 0x4, fixed_abs, tag = 'smem constant byte address 0x4 - core index']
  #allocation1 [shape = 'u32[144,128]{1,0:T(1,128)}', space=vmem, size = 0x12000, scoped, tag = 'internal scratch']
  %s0 = inlined_call_operand.vmem [shape: bf16[2,256,32], index: 0, kind: input, shape index: {}]
  %s1 = inlined_call_operand.vmem [shape: bf16[32,24], index: 1, kind: input, shape index: {}]
  %s2 = inlined_call_operand.vmem [shape: f32[8,24], index: 2, kind: input, shape index: {}]
  %s3 = inlined_call_operand.vmem [shape: f32[2,3,256,8], index: 3, kind: output, shape index: {0}]
  %s4 = inlined_call_operand.vmem [shape: f32[2,3,256,8], index: 4, kind: output, shape index: {1}]
  %5 = xla_tuple %s3, %s4
  %s6 = sld [smem:[#allocation0]]
  $region53: #{_lambda_.10} parent=0
    _
  %s8 = ssub.s32 1, %s6
  %s9 = scalar_select 0, %s8, %s6
  loop: start=0, step=1, limit=4
  $region2: #{_lambda_.10} parent=0 // loop_pre_header
    _
  $region3: #{_lambda_.10} parent=0 // loop_header
    %s11 = sphi 0, %s15
    %p12 = scmp.ge.s32.totalorder %s11, 4
    %s18 = sphi 0, %s30
    %s19 = sphi 0, %s26
    %s20 = sphi 0, %s18
    %s21 = sphi 0, %s19
    %s22 = sphi 0, %s20
    %s23 = sphi 0, %s21
    %s35 = sphi 0, %s37
    %s38 = sphi 0, %s35
    %s39 = sphi 0, %s38
    %s55 = sphi 0, %s39
    %s59 = sphi 0, %s59
    %s61 = sphi 0, %s59
    %s62 = sphi 0, %s61
    %s76 = sphi 0, %s62
    %s80 = sphi 0, %s80
    %s82 = sphi 0, %s80
    %s83 = sphi 0, %s82
    %s97 = sphi 0, %s83
    %s105 = sphi 0, %s107
    %s108 = sphi 0, %s105
    %s109 = sphi 0, %s108
    %s125 = sphi 0, %s109
    %s133 = sphi 0, %s135
    %s136 = sphi 0, %s133
    %s137 = sphi 0, %s136
    %s153 = sphi 0, %s137
  $region4: #{_lambda_.10} parent=0 // loop_header_branch
    %14 = sbr.rel (%p12) target = $region8
  $region5: #{_lambda_.10} parent=0 // loop_body
    %s16 = ssub.s32 %s11, 1
    %s17 = ssub.s32 %s11, 2
    %s24 = sadd.s32 1, %s19
    %p25 = scmp.ge.s32.totalorder %s24, 1
    %s26 = scalar_select %p25, 0, %s24
    %s27 = sadd.s32 1, %s18
    %s28 = scalar_select %p25, %s27, %s18
    %p29 = scmp.ge.s32.totalorder %s28, 2
    %s30 = scalar_select %p29, 0, %s28
    %s31 = ssub.s32 %s18, %s30
    %s32 = ssub.s32 %s19, %s26
    %s33 = sor.u32 %s31, %s32
    %p34 = scmp.eq.s32.totalorder %s33, 0
    %s36 = sadd.s32 %s35, 1
    %s37 = scalar_select %p34, %s35, %s36
    %p40 = pneg %p34
    %p41 = scmp.eq.s32.totalorder %s11, 1
    %p42 = por %p40, %p41
    %p43 = scmp.ne.s32.totalorder %s35, %s38
    %p44 = scmp.eq.s32.totalorder %s11, 0
    %p45 = por %p43, %p44
    %p46 = scmp.ne.s32.totalorder %s35, %s38
    %p47 = scmp.eq.s32.totalorder %s16, 1
    %p48 = por %p46, %p47
    %p49 = scmp.ne.s32.totalorder %s38, %s39
    %p50 = scmp.eq.s32.totalorder %s16, 0
    %p51 = por %p49, %p50
    %p52 = scmp.ne.s32.totalorder %s38, %s39
    %p53 = scmp.eq.s32.totalorder %s17, 1
    %p54 = por %p52, %p53
    %p56 = scmp.ne.s32.totalorder %s39, %s55
    %p57 = scmp.eq.s32.totalorder %s17, 0
    %p58 = por %p56, %p57
    %s60 = sadd.s32 %s59, 1
    %p63 = scmp.eq.s32.totalorder %s11, 1
    %p64 = scmp.ne.s32.totalorder %s59, %s61
    %p65 = scmp.eq.s32.totalorder %s11, 0
    %p66 = por %p64, %p65
    %p67 = scmp.ne.s32.totalorder %s59, %s61
    %p68 = scmp.eq.s32.totalorder %s16, 1
    %p69 = por %p67, %p68
    %p70 = scmp.ne.s32.totalorder %s61, %s62
    %p71 = scmp.eq.s32.totalorder %s16, 0
    %p72 = por %p70, %p71
    %p73 = scmp.ne.s32.totalorder %s61, %s62
    %p74 = scmp.eq.s32.totalorder %s17, 1
    %p75 = por %p73, %p74
    %p77 = scmp.ne.s32.totalorder %s62, %s76
    %p78 = scmp.eq.s32.totalorder %s17, 0
    %p79 = por %p77, %p78
    %s81 = sadd.s32 %s80, 1
    %p84 = scmp.eq.s32.totalorder %s11, 1
    %p85 = scmp.ne.s32.totalorder %s80, %s82
    %p86 = scmp.eq.s32.totalorder %s11, 0
    %p87 = por %p85, %p86
    %p88 = scmp.ne.s32.totalorder %s80, %s82
    %p89 = scmp.eq.s32.totalorder %s16, 1
    %p90 = por %p88, %p89
    %p91 = scmp.ne.s32.totalorder %s82, %s83
    %p92 = scmp.eq.s32.totalorder %s16, 0
    %p93 = por %p91, %p92
    %p94 = scmp.ne.s32.totalorder %s82, %s83
    %p95 = scmp.eq.s32.totalorder %s17, 1
    %p96 = por %p94, %p95
    %p98 = scmp.ne.s32.totalorder %s83, %s97
    %p99 = scmp.eq.s32.totalorder %s17, 0
    %p100 = por %p98, %p99
    %s101 = ssub.s32 %s18, %s30
    %s102 = ssub.s32 %s19, %s26
    %s103 = sor.u32 %s101, %s102
    %p104 = scmp.eq.s32.totalorder %s103, 0
    %s106 = sadd.s32 %s105, 1
    %s107 = scalar_select %p104, %s105, %s106
    %p110 = pneg %p104
    %p111 = scmp.eq.s32.totalorder %s11, 1
    %p112 = por %p110, %p111
    %p113 = scmp.ne.s32.totalorder %s105, %s108
    %p114 = scmp.eq.s32.totalorder %s11, 0
    %p115 = por %p113, %p114
    %p116 = scmp.ne.s32.totalorder %s105, %s108
    %p117 = scmp.eq.s32.totalorder %s16, 1
    %p118 = por %p116, %p117
    %p119 = scmp.ne.s32.totalorder %s108, %s109
    %p120 = scmp.eq.s32.totalorder %s16, 0
    %p121 = por %p119, %p120
    %p122 = scmp.ne.s32.totalorder %s108, %s109
    %p123 = scmp.eq.s32.totalorder %s17, 1
    %p124 = por %p122, %p123
    %p126 = scmp.ne.s32.totalorder %s109, %s125
    %p127 = scmp.eq.s32.totalorder %s17, 0
    %p128 = por %p126, %p127
    %s129 = ssub.s32 %s18, %s30
    %s130 = ssub.s32 %s19, %s26
    %s131 = sor.u32 %s129, %s130
    %p132 = scmp.eq.s32.totalorder %s131, 0
    %s134 = sadd.s32 %s133, 1
    %s135 = scalar_select %p132, %s133, %s134
    %p138 = pneg %p132
    %p139 = scmp.eq.s32.totalorder %s11, 1
    %p140 = por %p138, %p139
    %p141 = scmp.ne.s32.totalorder %s133, %s136
    %p142 = scmp.eq.s32.totalorder %s11, 0
    %p143 = por %p141, %p142
    %p144 = scmp.ne.s32.totalorder %s133, %s136
    %p145 = scmp.eq.s32.totalorder %s16, 1
    %p146 = por %p144, %p145
    %p147 = scmp.ne.s32.totalorder %s136, %s137
    %p148 = scmp.eq.s32.totalorder %s16, 0
    %p149 = por %p147, %p148
    %p150 = scmp.ne.s32.totalorder %s136, %s137
    %p151 = scmp.eq.s32.totalorder %s17, 1
    %p152 = por %p150, %p151
    %p154 = scmp.ne.s32.totalorder %s137, %s153
    %p155 = scmp.eq.s32.totalorder %s17, 0
    %p156 = por %p154, %p155
    %p157 = scmp.le.s32.totalorder 1, %s11
    %p158 = scmp.lt.s32.totalorder %s11, 3
    %p159 = pnand %p157, %p158
    %p160 = pneg %p159
    // Predicated region
    $region9: #{_lambda_.10} parent=5 // pred_check
      _
    $region10: #{_lambda_.10} parent=5 // pred_check_branch
      %162 = sbr.rel (%p159) target = $region12
    $region11: #{_lambda_.10} parent=5 // pred_region
      %s163 = ssub.s32 %s11, 1
      // Predicated region
      $region13: #{_lambda_.10} parent=11 // pred_check
        %p164 = pneg %p72
      $region14: #{_lambda_.10} parent=11 // pred_check_branch
        %166 = sbr.rel (%p164) target = $region16
      $region15: #{_lambda_.10} parent=11 // pred_region
        _
      $region16: #{_lambda_.10} parent=11 // pred_fallthru
        _
      // Predicated region
      $region17: #{_lambda_.10} parent=11 // pred_check
        %p167 = pneg %p93
      $region18: #{_lambda_.10} parent=11 // pred_check_branch
        %169 = sbr.rel (%p167) target = $region20
      $region19: #{_lambda_.10} parent=11 // pred_region
        _
      $region20: #{_lambda_.10} parent=11 // pred_fallthru
        _
    $region12: #{_lambda_.10} parent=5 // pred_fallthru
      _
    %p170 = scmp.lt.s32.totalorder %s11, 2
    // Predicated region
    $region21: #{_lambda_.10} parent=5 // pred_check
      %p171 = pneg %p170
    $region22: #{_lambda_.10} parent=5 // pred_check_branch
      %173 = sbr.rel (%p171) target = $region24
    $region23: #{_lambda_.10} parent=5 // pred_region
      // Predicated region
      $region25: #{_lambda_.10} parent=23 // pred_check
        %p174 = pneg %p45
      $region26: #{_lambda_.10} parent=23 // pred_check_branch
        %176 = sbr.rel (%p174) target = $region28
      $region27: #{_lambda_.10} parent=23 // pred_region
        %s177 = smul.u32 32, %s19
        %p178 = scmp.lt.s32.totalorder %s18, 1
        %s179 = scalar_select %p178, %s18, 1
        %p180 = scmp.lt.s32.totalorder %s177, 31
        %s181 = scalar_select %p180, %s177, 31
        %s182 = smul.addr %s179, 32
        %s183 = sadd.s32 %s181, %s182
        %s184 = smul.addr %s183, 4
        %s185 = scalar_lea.vmem %s0, %s184
        %s186 = smul.u32 32, %s19
      $region28: #{_lambda_.10} parent=23 // pred_fallthru
        _
    $region24: #{_lambda_.10} parent=5 // pred_fallthru
      _
    %p187 = scmp.le.s32.totalorder 1, %s11
    %p188 = scmp.lt.s32.totalorder %s11, 3
    %p189 = pnand %p187, %p188
    %p190 = pneg %p189
    // Predicated region
    $region29: #{_lambda_.10} parent=5 // pred_check
      _
    $region30: #{_lambda_.10} parent=5 // pred_check_branch
      %192 = sbr.rel (%p189) target = $region32
    $region31: #{_lambda_.10} parent=5 // pred_region
      %s193 = ssub.s32 %s11, 1
      %s194 = smul.u32 32, %s21
      %p195 = scmp.lt.s32.totalorder %s20, 1
      %s196 = scalar_select %p195, %s20, 1
      %p197 = scmp.lt.s32.totalorder %s194, 31
      %s198 = scalar_select %p197, %s194, 31
      %s199 = smul.addr %s196, 32
      %s200 = sadd.s32 %s198, %s199
      %s201 = smul.addr %s200, 4
      %s202 = scalar_lea.vmem %s0, %s201
      %p203 = pneg %p51
      %p204 = pneg %p48
      %p205 = pneg %p72
      %p206 = pneg %p69
      %p207 = pneg %p93
      %p208 = pneg %p90
      %p209 = pneg %p121
      %p210 = pneg %p118
      %s211 = smul.u32 32, %s21
      %p212 = scmp.lt.s32.totalorder %s20, 1
      %s213 = scalar_select %p212, %s20, 1
      %p214 = scmp.lt.s32.totalorder %s211, 31
      %s215 = scalar_select %p214, %s211, 31
      %s216 = smul.addr %s213, 96
      %s217 = sadd.s32 %s215, %s216
      %s218 = smul.addr %s217, 8
      %s219 = scalar_lea.vmem %s3, %s218
      %p220 = pneg %p149
      %p221 = pneg %p146
      %s222 = smul.u32 32, %s21
      %p223 = scmp.lt.s32.totalorder %s20, 1
      %s224 = scalar_select %p223, %s20, 1
      %p225 = scmp.lt.s32.totalorder %s222, 31
      %s226 = scalar_select %p225, %s222, 31
      %s227 = smul.addr %s224, 96
      %s228 = sadd.s32 %s226, %s227
      %s229 = smul.addr %s228, 8
      %s230 = scalar_lea.vmem %s4, %s229
      %s231 = smul.u32 32, %s21
      %p232 = scmp.lt.s32.totalorder %s20, 1
      %s233 = scalar_select %p232, %s20, 1
      %p234 = scmp.lt.s32.totalorder %s231, 31
      %s235 = scalar_select %p234, %s231, 31
      %s236 = smul.addr %s233, 32
      %s237 = sadd.s32 %s235, %s236
      %s238 = smul.addr %s237, 4
      %s239 = scalar_lea.vmem %s0, %s238
      %s240 = smul.u32 32, %s21
      %s241 = smul.u32 32, %s21
      %p242 = scmp.lt.s32.totalorder %s20, 1
      %s243 = scalar_select %p242, %s20, 1
      %p244 = scmp.lt.s32.totalorder %s241, 31
      %s245 = scalar_select %p244, %s241, 31
      %s246 = smul.addr %s243, 96
      %s247 = sadd.s32 %s245, %s246
      %s248 = smul.addr %s247, 8
      %s249 = scalar_lea.vmem %s3, %s248
      %s250 = smul.u32 32, %s21
      %s251 = smul.u32 32, %s21
      %p252 = scmp.lt.s32.totalorder %s20, 1
      %s253 = scalar_select %p252, %s20, 1
      %p254 = scmp.lt.s32.totalorder %s251, 31
      %s255 = scalar_select %p254, %s251, 31
      %s256 = smul.addr %s253, 96
      %s257 = sadd.s32 %s255, %s256
      %s258 = smul.addr %s257, 8
      %s259 = scalar_lea.vmem %s4, %s258
      %s260 = smul.u32 32, %s21
      %v262 = vld [vmem:[%s239] sm:$0xf]
      %v263 = vld [vmem:[%s239 + $0x4] sm:$0xf]
      %v264 = vld [vmem:[%s239 + $0x8] sm:$0xf]
      %v265 = vld [vmem:[%s239 + $0xc] sm:$0xf]
      %v266 = vld [vmem:[%s239 + $0x10] sm:$0xf]
      %v267 = vld [vmem:[%s239 + $0x14] sm:$0xf]
      %v268 = vld [vmem:[%s239 + $0x18] sm:$0xf]
      %v269 = vld [vmem:[%s239 + $0x1c] sm:$0xf]
      %v270 = vld [vmem:[%s239 + $0x20] sm:$0xf]
      %v271 = vld [vmem:[%s239 + $0x24] sm:$0xf]
      %v272 = vld [vmem:[%s239 + $0x28] sm:$0xf]
      %v273 = vld [vmem:[%s239 + $0x2c] sm:$0xf]
      %v274 = vld [vmem:[%s239 + $0x30] sm:$0xf]
      %v275 = vld [vmem:[%s239 + $0x34] sm:$0xf]
      %v276 = vld [vmem:[%s239 + $0x38] sm:$0xf]
      %v277 = vld [vmem:[%s239 + $0x3c] sm:$0xf]
      %v278 = vld [vmem:[%s239 + $0x40] sm:$0xf]
      %v279 = vld [vmem:[%s239 + $0x44] sm:$0xf]
      %v280 = vld [vmem:[%s239 + $0x48] sm:$0xf]
      %v281 = vld [vmem:[%s239 + $0x4c] sm:$0xf]
      %v282 = vld [vmem:[%s239 + $0x50] sm:$0xf]
      %v283 = vld [vmem:[%s239 + $0x54] sm:$0xf]
      %v284 = vld [vmem:[%s239 + $0x58] sm:$0xf]
      %v285 = vld [vmem:[%s239 + $0x5c] sm:$0xf]
      %v286 = vld [vmem:[%s239 + $0x60] sm:$0xf]
      %v287 = vld [vmem:[%s239 + $0x64] sm:$0xf]
      %v288 = vld [vmem:[%s239 + $0x68] sm:$0xf]
      %v289 = vld [vmem:[%s239 + $0x6c] sm:$0xf]
      %v290 = vld [vmem:[%s239 + $0x70] sm:$0xf]
      %v291 = vld [vmem:[%s239 + $0x74] sm:$0xf]
      %v292 = vld [vmem:[%s239 + $0x78] sm:$0xf]
      %v293 = vld [vmem:[%s239 + $0x7c] sm:$0xf]
      %v294 = vld [vmem:[%s1] sm:$0xf]
      %v295 = vld [vmem:[%s1 + $0x4] sm:$0xf]
      %v296 = vld [vmem:[%s1 + $0x8] sm:$0xf]
      %v297 = vld [vmem:[%s1 + $0xc] sm:$0xf]
      %v298 = vld [vmem:[%s2] sm:$0x1]
      %v299 = vlaneseq
      %v300 = vshrl.u32 %v299, 7
      %v301 = vsub.s32 0, %v300
      %v302 = vrot.slane %v298, %v301
      %v335 = vunpack.c.l.b16 %v262
      %v336 = vunpack.c.l.b16 %v263
      %v337 = vunpack.c.l.b16 %v264
      %v338 = vunpack.c.l.b16 %v265
      %v339 = vunpack.c.l.b16 %v266
      %v340 = vunpack.c.l.b16 %v267
      %v341 = vunpack.c.l.b16 %v268
      %v342 = vunpack.c.l.b16 %v269
      %v343 = vunpack.c.l.b16 %v270
      %v344 = vunpack.c.l.b16 %v271
      %v345 = vunpack.c.l.b16 %v272
      %v346 = vunpack.c.l.b16 %v273
      %v347 = vunpack.c.l.b16 %v274
      %v348 = vunpack.c.l.b16 %v275
      %v349 = vunpack.c.l.b16 %v276
      %v350 = vunpack.c.l.b16 %v277
      %v351 = vunpack.c.l.b16 %v278
      %v352 = vunpack.c.l.b16 %v279
      %v353 = vunpack.c.l.b16 %v280
      %v354 = vunpack.c.l.b16 %v281
      %v355 = vunpack.c.l.b16 %v282
      %v356 = vunpack.c.l.b16 %v283
      %v357 = vunpack.c.l.b16 %v284
      %v358 = vunpack.c.l.b16 %v285
      %v359 = vunpack.c.l.b16 %v286
      %v360 = vunpack.c.l.b16 %v287
      %v361 = vunpack.c.l.b16 %v288
      %v362 = vunpack.c.l.b16 %v289
      %v363 = vunpack.c.l.b16 %v290
      %v364 = vunpack.c.l.b16 %v291
      %v365 = vunpack.c.l.b16 %v292
      %v366 = vunpack.c.l.b16 %v293
      %v367 = vpack.c.b16 %v336, %v335
      %v368 = vpack.c.b16 %v338, %v337
      %v369 = vpack.c.b16 %v340, %v339
      %v370 = vpack.c.b16 %v342, %v341
      %v371 = vpack.c.b16 %v344, %v343
      %v372 = vpack.c.b16 %v346, %v345
      %v373 = vpack.c.b16 %v348, %v347
      %v374 = vpack.c.b16 %v350, %v349
      %v375 = vpack.c.b16 %v352, %v351
      %v376 = vpack.c.b16 %v354, %v353
      %v377 = vpack.c.b16 %v356, %v355
      %v378 = vpack.c.b16 %v358, %v357
      %v379 = vpack.c.b16 %v360, %v359
      %v380 = vpack.c.b16 %v362, %v361
      %v381 = vpack.c.b16 %v364, %v363
      %v382 = vpack.c.b16 %v366, %v365
      %v387 = vunpack.c.l.b16 %v294
      %v388 = vunpack.c.l.b16 %v295
      %v389 = vunpack.c.l.b16 %v296
      %v390 = vunpack.c.l.b16 %v297
      %v391 = vpack.c.b16 %v388, %v387
      %v392 = vpack.c.b16 %v390, %v389
      %vm395 = vcmask 261120
      %v397 = vsel %vm395, %v367, 0
      %v400 = vsel %vm395, %v368, 0
      %v403 = vsel %vm395, %v369, 0
      %v406 = vsel %vm395, %v370, 0
      %v409 = vsel %vm395, %v371, 0
      %v412 = vsel %vm395, %v372, 0
      %v415 = vsel %vm395, %v373, 0
      %v418 = vsel %vm395, %v374, 0
      %v421 = vsel %vm395, %v375, 0
      %v424 = vsel %vm395, %v376, 0
      %v427 = vsel %vm395, %v377, 0
      %v430 = vsel %vm395, %v378, 0
      %v433 = vsel %vm395, %v379, 0
      %v436 = vsel %vm395, %v380, 0
      %v439 = vsel %vm395, %v381, 0
      %v442 = vsel %vm395, %v382, 0
      %444 = vmatprep.subr.bf16.mxu0 0
      %445 = vmatpush1.bf16.msra.mxu0 %v391
      %446 = vmatprep.subr.bf16.mxu0 0
      %447 = vmatpush1.bf16.msra.mxu0 %v392
      %448 = vmatprep.subr.bf16.mxu0 0
      %449 = vmatpush1.bf16.msra.mxu0 0
      %450 = vmatprep.subr.bf16.mxu0 0
      %451 = vmatpush1.bf16.msra.mxu0 0
      %452 = vmatprep.subr.bf16.mxu0 0
      %453 = vmatpush1.bf16.msra.mxu0 0
      %454 = vmatprep.subr.bf16.mxu0 0
      %455 = vmatpush1.bf16.msra.mxu0 0
      %456 = vmatprep.subr.bf16.mxu0 0
      %457 = vmatpush1.bf16.msra.mxu0 0
      %458 = vmatprep.subr.bf16.mxu0 0
      %459 = vmatpush1.bf16.msra.mxu0 0
      %460 = vmatprep.subr.bf16.mxu0 0
      %461 = vmatpush1.bf16.msra.mxu0 0
      %462 = vmatprep.subr.bf16.mxu0 0
      %463 = vmatpush1.bf16.msra.mxu0 0
      %464 = vmatprep.subr.bf16.mxu0 0
      %465 = vmatpush1.bf16.msra.mxu0 0
      %466 = vmatprep.subr.bf16.mxu0 0
      %467 = vmatpush1.bf16.msra.mxu0 0
      %468 = vmatprep.subr.bf16.mxu0 0
      %469 = vmatpush1.bf16.msra.mxu0 0
      %470 = vmatprep.subr.bf16.mxu0 0
      %471 = vmatpush1.bf16.msra.mxu0 0
      %472 = vmatprep.subr.bf16.mxu0 0
      %473 = vmatpush1.bf16.msra.mxu0 0
      %474 = vmatprep.subr.bf16.mxu0 0
      %475 = vmatpush1.bf16.msra.mxu0 0
      %476 = vmatprep.mubr.bf16.mxu0 0
      %477 = vmatmul.mubr.bf16.gmra.mrb[0].mxu0 %v397
      %v478 = vpop.f32.mrb[0].mxu0
      %v479 = vadd.f32 %v302, %v478
      %v480 = vpop.f32.mrb[0].mxu0
      %v481 = vpop.f32.mrb[0].mxu0
      %v482 = vadd.f32 %v302, %v481
      %v483 = vpop.f32.mrb[0].mxu0
      %484 = vmatprep.mubr.bf16.mxu0 0
      %485 = vmatmul.mubr.bf16.gmra.mrb[0].mxu0 %v400
      %v486 = vpop.f32.mrb[0].mxu0
      %v487 = vadd.f32 %v302, %v486
      %v488 = vpop.f32.mrb[0].mxu0
      %v489 = vpop.f32.mrb[0].mxu0
      %v490 = vadd.f32 %v302, %v489
      %v491 = vpop.f32.mrb[0].mxu0
      %492 = vmatprep.mubr.bf16.mxu0 0
      %493 = vmatmul.mubr.bf16.gmra.mrb[0].mxu0 %v403
      %v494 = vpop.f32.mrb[0].mxu0
      %v495 = vadd.f32 %v302, %v494
      %v496 = vpop.f32.mrb[0].mxu0
      %v497 = vpop.f32.mrb[0].mxu0
      %v498 = vadd.f32 %v302, %v497
      %v499 = vpop.f32.mrb[0].mxu0
      %500 = vmatprep.mubr.bf16.mxu0 0
      %501 = vmatmul.mubr.bf16.gmra.mrb[0].mxu0 %v406
      %v502 = vpop.f32.mrb[0].mxu0
      %v503 = vadd.f32 %v302, %v502
      %v504 = vpop.f32.mrb[0].mxu0
      %v505 = vpop.f32.mrb[0].mxu0
      %v506 = vadd.f32 %v302, %v505
      %v507 = vpop.f32.mrb[0].mxu0
      %508 = vmatprep.mubr.bf16.mxu0 0
      %509 = vmatmul.mubr.bf16.gmra.mrb[0].mxu0 %v409
      %v510 = vpop.f32.mrb[0].mxu0
      %v511 = vadd.f32 %v302, %v510
      %v512 = vpop.f32.mrb[0].mxu0
      %v513 = vpop.f32.mrb[0].mxu0
      %v514 = vadd.f32 %v302, %v513
      %v515 = vpop.f32.mrb[0].mxu0
      %516 = vmatprep.mubr.bf16.mxu0 0
      %517 = vmatmul.mubr.bf16.gmra.mrb[0].mxu0 %v412
      %v518 = vpop.f32.mrb[0].mxu0
      %v519 = vadd.f32 %v302, %v518
      %v520 = vpop.f32.mrb[0].mxu0
      %v521 = vpop.f32.mrb[0].mxu0
      %v522 = vadd.f32 %v302, %v521
      %v523 = vpop.f32.mrb[0].mxu0
      %524 = vmatprep.mubr.bf16.mxu0 0
      %525 = vmatmul.mubr.bf16.gmra.mrb[0].mxu0 %v415
      %v526 = vpop.f32.mrb[0].mxu0
      %v527 = vadd.f32 %v302, %v526
      %v528 = vpop.f32.mrb[0].mxu0
      %v529 = vpop.f32.mrb[0].mxu0
      %v530 = vadd.f32 %v302, %v529
      %v531 = vpop.f32.mrb[0].mxu0
      %532 = vmatprep.mubr.bf16.mxu0 0
      %533 = vmatmul.mubr.bf16.gmra.mrb[0].mxu0 %v418
      %v534 = vpop.f32.mrb[0].mxu0
      %v535 = vadd.f32 %v302, %v534
      %v536 = vpop.f32.mrb[0].mxu0
      %v537 = vpop.f32.mrb[0].mxu0
      %v538 = vadd.f32 %v302, %v537
      %v539 = vpop.f32.mrb[0].mxu0
      %540 = vmatprep.mubr.bf16.mxu0 0
      %541 = vmatmul.mubr.bf16.gmra.mrb[0].mxu0 %v421
      %v542 = vpop.f32.mrb[0].mxu0
      %v543 = vadd.f32 %v302, %v542
      %v544 = vpop.f32.mrb[0].mxu0
      %v545 = vpop.f32.mrb[0].mxu0
      %v546 = vadd.f32 %v302, %v545
      %v547 = vpop.f32.mrb[0].mxu0
      %548 = vmatprep.mubr.bf16.mxu0 0
      %549 = vmatmul.mubr.bf16.gmra.mrb[0].mxu0 %v424
      %v550 = vpop.f32.mrb[0].mxu0
      %v551 = vadd.f32 %v302, %v550
      %v552 = vpop.f32.mrb[0].mxu0
      %v553 = vpop.f32.mrb[0].mxu0
      %v554 = vadd.f32 %v302, %v553
      %v555 = vpop.f32.mrb[0].mxu0
      %556 = vmatprep.mubr.bf16.mxu0 0
      %557 = vmatmul.mubr.bf16.gmra.mrb[0].mxu0 %v427
      %v558 = vpop.f32.mrb[0].mxu0
      %v559 = vadd.f32 %v302, %v558
      %v560 = vpop.f32.mrb[0].mxu0
      %v561 = vpop.f32.mrb[0].mxu0
      %v562 = vadd.f32 %v302, %v561
      %v563 = vpop.f32.mrb[0].mxu0
      %564 = vmatprep.mubr.bf16.mxu0 0
      %565 = vmatmul.mubr.bf16.gmra.mrb[0].mxu0 %v430
      %v566 = vpop.f32.mrb[0].mxu0
      %v567 = vadd.f32 %v302, %v566
      %v568 = vpop.f32.mrb[0].mxu0
      %v569 = vpop.f32.mrb[0].mxu0
      %v570 = vadd.f32 %v302, %v569
      %v571 = vpop.f32.mrb[0].mxu0
      %572 = vmatprep.mubr.bf16.mxu0 0
      %573 = vmatmul.mubr.bf16.gmra.mrb[0].mxu0 %v433
      %v574 = vpop.f32.mrb[0].mxu0
      %v575 = vadd.f32 %v302, %v574
      %v576 = vpop.f32.mrb[0].mxu0
      %v577 = vpop.f32.mrb[0].mxu0
      %v578 = vadd.f32 %v302, %v577
      %v579 = vpop.f32.mrb[0].mxu0
      %580 = vmatprep.mubr.bf16.mxu0 0
      %581 = vmatmul.mubr.bf16.gmra.mrb[0].mxu0 %v436
      %v582 = vpop.f32.mrb[0].mxu0
      %v583 = vadd.f32 %v302, %v582
      %v584 = vpop.f32.mrb[0].mxu0
      %v585 = vpop.f32.mrb[0].mxu0
      %v586 = vadd.f32 %v302, %v585
      %v587 = vpop.f32.mrb[0].mxu0
      %588 = vmatprep.mubr.bf16.mxu0 0
      %589 = vmatmul.mubr.bf16.gmra.mrb[0].mxu0 %v439
      %v590 = vpop.f32.mrb[0].mxu0
      %v591 = vadd.f32 %v302, %v590
      %v592 = vpop.f32.mrb[0].mxu0
      %v593 = vpop.f32.mrb[0].mxu0
      %v594 = vadd.f32 %v302, %v593
      %v595 = vpop.f32.mrb[0].mxu0
      %596 = vmatprep.mubr.bf16.mxu0 0
      %597 = vmatmul.mubr.bf16.gmra.mrb[0].mxu0 %v442
      %v598 = vpop.f32.mrb[0].mxu0
      %v599 = vadd.f32 %v302, %v598
      %v600 = vpop.f32.mrb[0].mxu0
      %v601 = vpop.f32.mrb[0].mxu0
      %v602 = vadd.f32 %v302, %v601
      %v603 = vpop.f32.mrb[0].mxu0
      %604 = vdwg.mxu0
      %v605 = vxor.u32 %v479, 2147483648
      %v606 = vxor.u32 %v482, 2147483648
      %v607 = vxor.u32 %v487, 2147483648
      %v608 = vxor.u32 %v490, 2147483648
      %v609 = vxor.u32 %v495, 2147483648
      %v610 = vxor.u32 %v498, 2147483648
      %v611 = vxor.u32 %v503, 2147483648
      %v612 = vxor.u32 %v506, 2147483648
      %v613 = vxor.u32 %v511, 2147483648
      %v614 = vxor.u32 %v514, 2147483648
      %v615 = vxor.u32 %v519, 2147483648
      %v616 = vxor.u32 %v522, 2147483648
      %v617 = vxor.u32 %v527, 2147483648
      %v618 = vxor.u32 %v530, 2147483648
      %v619 = vxor.u32 %v535, 2147483648
      %v620 = vxor.u32 %v538, 2147483648
      %v621 = vxor.u32 %v543, 2147483648
      %v622 = vxor.u32 %v546, 2147483648
      %v623 = vxor.u32 %v551, 2147483648
      %v624 = vxor.u32 %v554, 2147483648
      %v625 = vxor.u32 %v559, 2147483648
      %v626 = vxor.u32 %v562, 2147483648
      %v627 = vxor.u32 %v567, 2147483648
      %v628 = vxor.u32 %v570, 2147483648
      %v629 = vxor.u32 %v575, 2147483648
      %v630 = vxor.u32 %v578, 2147483648
      %v631 = vxor.u32 %v583, 2147483648
      %v632 = vxor.u32 %v586, 2147483648
      %v633 = vxor.u32 %v591, 2147483648
      %v634 = vxor.u32 %v594, 2147483648
      %v635 = vxor.u32 %v599, 2147483648
      %v636 = vxor.u32 %v602, 2147483648
      %v637 = vmul.f32 %v605, 1.442695
      %v638 = vpow.pop %v637
      %v639 = vmul.f32 %v606, 1.442695
      %v640 = vpow.pop %v639
      %v641 = vmul.f32 %v607, 1.442695
      %v642 = vpow.pop %v641
      %v643 = vmul.f32 %v608, 1.442695
      %v644 = vpow.pop %v643
      %v645 = vmul.f32 %v609, 1.442695
      %v646 = vpow.pop %v645
      %v647 = vmul.f32 %v610, 1.442695
      %v648 = vpow.pop %v647
      %v649 = vmul.f32 %v611, 1.442695
      %v650 = vpow.pop %v649
      %v651 = vmul.f32 %v612, 1.442695
      %v652 = vpow.pop %v651
      %v653 = vmul.f32 %v613, 1.442695
      %v654 = vpow.pop %v653
      %v655 = vmul.f32 %v614, 1.442695
      %v656 = vpow.pop %v655
      %v657 = vmul.f32 %v615, 1.442695
      %v658 = vpow.pop %v657
      %v659 = vmul.f32 %v616, 1.442695
      %v660 = vpow.pop %v659
      %v661 = vmul.f32 %v617, 1.442695
      %v662 = vpow.pop %v661
      %v663 = vmul.f32 %v618, 1.442695
      %v664 = vpow.pop %v663
      %v665 = vmul.f32 %v619, 1.442695
      %v666 = vpow.pop %v665
      %v667 = vmul.f32 %v620, 1.442695
      %v668 = vpow.pop %v667
      %v669 = vmul.f32 %v621, 1.442695
      %v670 = vpow.pop %v669
      %v671 = vmul.f32 %v622, 1.442695
      %v672 = vpow.pop %v671
      %v673 = vmul.f32 %v623, 1.442695
      %v674 = vpow.pop %v673
      %v675 = vmul.f32 %v624, 1.442695
      %v676 = vpow.pop %v675
      %v677 = vmul.f32 %v625, 1.442695
      %v678 = vpow.pop %v677
      %v679 = vmul.f32 %v626, 1.442695
      %v680 = vpow.pop %v679
      %v681 = vmul.f32 %v627, 1.442695
      %v682 = vpow.pop %v681
      %v683 = vmul.f32 %v628, 1.442695
      %v684 = vpow.pop %v683
      %v685 = vmul.f32 %v629, 1.442695
      %v686 = vpow.pop %v685
      %v687 = vmul.f32 %v630, 1.442695
      %v688 = vpow.pop %v687
      %v689 = vmul.f32 %v631, 1.442695
      %v690 = vpow.pop %v689
      %v691 = vmul.f32 %v632, 1.442695
      %v692 = vpow.pop %v691
      %v693 = vmul.f32 %v633, 1.442695
      %v694 = vpow.pop %v693
      %v695 = vmul.f32 %v634, 1.442695
      %v696 = vpow.pop %v695
      %v697 = vmul.f32 %v635, 1.442695
      %v698 = vpow.pop %v697
      %v699 = vmul.f32 %v636, 1.442695
      %v700 = vpow.pop %v699
      %v701 = vadd.f32 %v638, 1.0
      %v702 = vadd.f32 %v640, 1.0
      %v703 = vadd.f32 %v642, 1.0
      %v704 = vadd.f32 %v644, 1.0
      %v705 = vadd.f32 %v646, 1.0
      %v706 = vadd.f32 %v648, 1.0
      %v707 = vadd.f32 %v650, 1.0
      %v708 = vadd.f32 %v652, 1.0
      %v709 = vadd.f32 %v654, 1.0
      %v710 = vadd.f32 %v656, 1.0
      %v711 = vadd.f32 %v658, 1.0
      %v712 = vadd.f32 %v660, 1.0
      %v713 = vadd.f32 %v662, 1.0
      %v714 = vadd.f32 %v664, 1.0
      %v715 = vadd.f32 %v666, 1.0
      %v716 = vadd.f32 %v668, 1.0
      %v717 = vadd.f32 %v670, 1.0
      %v718 = vadd.f32 %v672, 1.0
      %v719 = vadd.f32 %v674, 1.0
      %v720 = vadd.f32 %v676, 1.0
      %v721 = vadd.f32 %v678, 1.0
      %v722 = vadd.f32 %v680, 1.0
      %v723 = vadd.f32 %v682, 1.0
      %v724 = vadd.f32 %v684, 1.0
      %v725 = vadd.f32 %v686, 1.0
      %v726 = vadd.f32 %v688, 1.0
      %v727 = vadd.f32 %v690, 1.0
      %v728 = vadd.f32 %v692, 1.0
      %v729 = vadd.f32 %v694, 1.0
      %v730 = vadd.f32 %v696, 1.0
      %v731 = vadd.f32 %v698, 1.0
      %v732 = vadd.f32 %v700, 1.0
      %v733 = vrcp.pop %v701
      %v734 = vmul.f32 1.0, %v733
      %v735 = vrcp.pop %v702
      %v736 = vmul.f32 1.0, %v735
      %v737 = vrcp.pop %v703
      %v738 = vmul.f32 1.0, %v737
      %v739 = vrcp.pop %v704
      %v740 = vmul.f32 1.0, %v739
      %v741 = vrcp.pop %v705
      %v742 = vmul.f32 1.0, %v741
      %v743 = vrcp.pop %v706
      %v744 = vmul.f32 1.0, %v743
      %v745 = vrcp.pop %v707
      %v746 = vmul.f32 1.0, %v745
      %v747 = vrcp.pop %v708
      %v748 = vmul.f32 1.0, %v747
      %v749 = vrcp.pop %v709
      %v750 = vmul.f32 1.0, %v749
      %v751 = vrcp.pop %v710
      %v752 = vmul.f32 1.0, %v751
      %v753 = vrcp.pop %v711
      %v754 = vmul.f32 1.0, %v753
      %v755 = vrcp.pop %v712
      %v756 = vmul.f32 1.0, %v755
      %v757 = vrcp.pop %v713
      %v758 = vmul.f32 1.0, %v757
      %v759 = vrcp.pop %v714
      %v760 = vmul.f32 1.0, %v759
      %v761 = vrcp.pop %v715
      %v762 = vmul.f32 1.0, %v761
      %v763 = vrcp.pop %v716
      %v764 = vmul.f32 1.0, %v763
      %v765 = vrcp.pop %v717
      %v766 = vmul.f32 1.0, %v765
      %v767 = vrcp.pop %v718
      %v768 = vmul.f32 1.0, %v767
      %v769 = vrcp.pop %v719
      %v770 = vmul.f32 1.0, %v769
      %v771 = vrcp.pop %v720
      %v772 = vmul.f32 1.0, %v771
      %v773 = vrcp.pop %v721
      %v774 = vmul.f32 1.0, %v773
      %v775 = vrcp.pop %v722
      %v776 = vmul.f32 1.0, %v775
      %v777 = vrcp.pop %v723
      %v778 = vmul.f32 1.0, %v777
      %v779 = vrcp.pop %v724
      %v780 = vmul.f32 1.0, %v779
      %v781 = vrcp.pop %v725
      %v782 = vmul.f32 1.0, %v781
      %v783 = vrcp.pop %v726
      %v784 = vmul.f32 1.0, %v783
      %v785 = vrcp.pop %v727
      %v786 = vmul.f32 1.0, %v785
      %v787 = vrcp.pop %v728
      %v788 = vmul.f32 1.0, %v787
      %v789 = vrcp.pop %v729
      %v790 = vmul.f32 1.0, %v789
      %v791 = vrcp.pop %v730
      %v792 = vmul.f32 1.0, %v791
      %v793 = vrcp.pop %v731
      %v794 = vmul.f32 1.0, %v793
      %v795 = vrcp.pop %v732
      %v796 = vmul.f32 1.0, %v795
      %s797 = smul.u32 %s21, 256
      %v798 = vlaneseq
      %v799 = vshrl.u32 %v798, 7
      %v800 = vadd.s32 %v799, 8
      %v801 = vadd.s32 %v799, 16
      %v802 = vadd.s32 %v799, 24
      %v803 = vadd.s32 %v799, 32
      %v804 = vadd.s32 %v799, 40
      %v805 = vadd.s32 %v799, 48
      %v806 = vadd.s32 %v799, 56
      %v807 = vadd.s32 %v799, 64
      %v808 = vadd.s32 %v799, 72
      %v809 = vadd.s32 %v799, 80
      %v810 = vadd.s32 %v799, 88
      %v811 = vadd.s32 %v799, 96
      %v812 = vadd.s32 %v799, 104
      %v813 = vadd.s32 %v799, 112
      %v814 = vadd.s32 %v799, 120
      %v815 = vadd.s32 %v799, 128
      %v816 = vadd.s32 %v799, 136
      %v817 = vadd.s32 %v799, 144
      %v818 = vadd.s32 %v799, 152
      %v819 = vadd.s32 %v799, 160
      %v820 = vadd.s32 %v799, 168
      %v821 = vadd.s32 %v799, 176
      %v822 = vadd.s32 %v799, 184
      %v823 = vadd.s32 %v799, 192
      %v824 = vadd.s32 %v799, 200
      %v825 = vadd.s32 %v799, 208
      %v826 = vadd.s32 %v799, 216
      %v827 = vadd.s32 %v799, 224
      %v828 = vadd.s32 %v799, 232
      %v829 = vadd.s32 %v799, 240
      %v830 = vadd.s32 %v799, 248
      %v831 = vstv %s797
      %v832 = vadd.s32 %v831, %v799
      %v833 = vadd.s32 %v831, %v800
      %v834 = vadd.s32 %v831, %v801
      %v835 = vadd.s32 %v831, %v802
      %v836 = vadd.s32 %v831, %v803
      %v837 = vadd.s32 %v831, %v804
      %v838 = vadd.s32 %v831, %v805
      %v839 = vadd.s32 %v831, %v806
      %v840 = vadd.s32 %v831, %v807
      %v841 = vadd.s32 %v831, %v808
      %v842 = vadd.s32 %v831, %v809
      %v843 = vadd.s32 %v831, %v810
      %v844 = vadd.s32 %v831, %v811
      %v845 = vadd.s32 %v831, %v812
      %v846 = vadd.s32 %v831, %v813
      %v847 = vadd.s32 %v831, %v814
      %v848 = vadd.s32 %v831, %v815
      %v849 = vadd.s32 %v831, %v816
      %v850 = vadd.s32 %v831, %v817
      %v851 = vadd.s32 %v831, %v818
      %v852 = vadd.s32 %v831, %v819
      %v853 = vadd.s32 %v831, %v820
      %v854 = vadd.s32 %v831, %v821
      %v855 = vadd.s32 %v831, %v822
      %v856 = vadd.s32 %v831, %v823
      %v857 = vadd.s32 %v831, %v824
      %v858 = vadd.s32 %v831, %v825
      %v859 = vadd.s32 %v831, %v826
      %v860 = vadd.s32 %v831, %v827
      %v861 = vadd.s32 %v831, %v828
      %v862 = vadd.s32 %v831, %v829
      %v863 = vadd.s32 %v831, %v830
      %v864 = vand.u32 %v832, 15
      %v865 = vand.u32 %v833, 15
      %v866 = vand.u32 %v834, 15
      %v867 = vand.u32 %v835, 15
      %v868 = vand.u32 %v836, 15
      %v869 = vand.u32 %v837, 15
      %v870 = vand.u32 %v838, 15
      %v871 = vand.u32 %v839, 15
      %v872 = vand.u32 %v840, 15
      %v873 = vand.u32 %v841, 15
      %v874 = vand.u32 %v842, 15
      %v875 = vand.u32 %v843, 15
      %v876 = vand.u32 %v844, 15
      %v877 = vand.u32 %v845, 15
      %v878 = vand.u32 %v846, 15
      %v879 = vand.u32 %v847, 15
      %v880 = vand.u32 %v848, 15
      %v881 = vand.u32 %v849, 15
      %v882 = vand.u32 %v850, 15
      %v883 = vand.u32 %v851, 15
      %v884 = vand.u32 %v852, 15
      %v885 = vand.u32 %v853, 15
      %v886 = vand.u32 %v854, 15
      %v887 = vand.u32 %v855, 15
      %v888 = vand.u32 %v856, 15
      %v889 = vand.u32 %v857, 15
      %v890 = vand.u32 %v858, 15
      %v891 = vand.u32 %v859, 15
      %v892 = vand.u32 %v860, 15
      %v893 = vand.u32 %v861, 15
      %v894 = vand.u32 %v862, 15
      %v895 = vand.u32 %v863, 15
      %v896 = vcvt.s32.f32 %v864
      %v897 = vcvt.s32.f32 %v865
      %v898 = vcvt.s32.f32 %v866
      %v899 = vcvt.s32.f32 %v867
      %v900 = vcvt.s32.f32 %v868
      %v901 = vcvt.s32.f32 %v869
      %v902 = vcvt.s32.f32 %v870
      %v903 = vcvt.s32.f32 %v871
      %v904 = vcvt.s32.f32 %v872
      %v905 = vcvt.s32.f32 %v873
      %v906 = vcvt.s32.f32 %v874
      %v907 = vcvt.s32.f32 %v875
      %v908 = vcvt.s32.f32 %v876
      %v909 = vcvt.s32.f32 %v877
      %v910 = vcvt.s32.f32 %v878
      %v911 = vcvt.s32.f32 %v879
      %v912 = vcvt.s32.f32 %v880
      %v913 = vcvt.s32.f32 %v881
      %v914 = vcvt.s32.f32 %v882
      %v915 = vcvt.s32.f32 %v883
      %v916 = vcvt.s32.f32 %v884
      %v917 = vcvt.s32.f32 %v885
      %v918 = vcvt.s32.f32 %v886
      %v919 = vcvt.s32.f32 %v887
      %v920 = vcvt.s32.f32 %v888
      %v921 = vcvt.s32.f32 %v889
      %v922 = vcvt.s32.f32 %v890
      %v923 = vcvt.s32.f32 %v891
      %v924 = vcvt.s32.f32 %v892
      %v925 = vcvt.s32.f32 %v893
      %v926 = vcvt.s32.f32 %v894
      %v927 = vcvt.s32.f32 %v895
      %v928 = vshra.s32 %v832, 4
      %v929 = vshra.s32 %v833, 4
      %v930 = vshra.s32 %v834, 4
      %v931 = vshra.s32 %v835, 4
      %v932 = vshra.s32 %v836, 4
      %v933 = vshra.s32 %v837, 4
      %v934 = vshra.s32 %v838, 4
      %v935 = vshra.s32 %v839, 4
      %v936 = vshra.s32 %v840, 4
      %v937 = vshra.s32 %v841, 4
      %v938 = vshra.s32 %v842, 4
      %v939 = vshra.s32 %v843, 4
      %v940 = vshra.s32 %v844, 4
      %v941 = vshra.s32 %v845, 4
      %v942 = vshra.s32 %v846, 4
      %v943 = vshra.s32 %v847, 4
      %v944 = vshra.s32 %v848, 4
      %v945 = vshra.s32 %v849, 4
      %v946 = vshra.s32 %v850, 4
      %v947 = vshra.s32 %v851, 4
      %v948 = vshra.s32 %v852, 4
      %v949 = vshra.s32 %v853, 4
      %v950 = vshra.s32 %v854, 4
      %v951 = vshra.s32 %v855, 4
      %v952 = vshra.s32 %v856, 4
      %v953 = vshra.s32 %v857, 4
      %v954 = vshra.s32 %v858, 4
      %v955 = vshra.s32 %v859, 4
      %v956 = vshra.s32 %v860, 4
      %v957 = vshra.s32 %v861, 4
      %v958 = vshra.s32 %v862, 4
      %v959 = vshra.s32 %v863, 4
      %v960 = vcvt.s32.f32 %v928
      %v961 = vcvt.s32.f32 %v929
      %v962 = vcvt.s32.f32 %v930
      %v963 = vcvt.s32.f32 %v931
      %v964 = vcvt.s32.f32 %v932
      %v965 = vcvt.s32.f32 %v933
      %v966 = vcvt.s32.f32 %v934
      %v967 = vcvt.s32.f32 %v935
      %v968 = vcvt.s32.f32 %v936
      %v969 = vcvt.s32.f32 %v937
      %v970 = vcvt.s32.f32 %v938
      %v971 = vcvt.s32.f32 %v939
      %v972 = vcvt.s32.f32 %v940
      %v973 = vcvt.s32.f32 %v941
      %v974 = vcvt.s32.f32 %v942
      %v975 = vcvt.s32.f32 %v943
      %v976 = vcvt.s32.f32 %v944
      %v977 = vcvt.s32.f32 %v945
      %v978 = vcvt.s32.f32 %v946
      %v979 = vcvt.s32.f32 %v947
      %v980 = vcvt.s32.f32 %v948
      %v981 = vcvt.s32.f32 %v949
      %v982 = vcvt.s32.f32 %v950
      %v983 = vcvt.s32.f32 %v951
      %v984 = vcvt.s32.f32 %v952
      %v985 = vcvt.s32.f32 %v953
      %v986 = vcvt.s32.f32 %v954
      %v987 = vcvt.s32.f32 %v955
      %v988 = vcvt.s32.f32 %v956
      %v989 = vcvt.s32.f32 %v957
      %v990 = vcvt.s32.f32 %v958
      %v991 = vcvt.s32.f32 %v959
      %v992 = vld [vmem:[%s2 + $0x1] sm:$0x1]
      %v993 = vld [vmem:[%s2 + $0x2] sm:$0x1]
      %v994 = vld [vmem:[%s2 + $0x3] sm:$0x1]
      %v995 = vld [vmem:[%s2 + $0x4] sm:$0x1]
      %v996 = vadd.f32 %v992, %v993
      %v997 = vlaneseq
      %v998 = vshrl.u32 %v997, 7
      %v999 = vsub.s32 0, %v998
      %v1000 = vrot.slane %v992, %v999
      %v1001 = vmul.f32 %v1000, %v896
      %v1002 = vmul.f32 %v1000, %v897
      %v1003 = vmul.f32 %v1000, %v898
      %v1004 = vmul.f32 %v1000, %v899
      %v1005 = vmul.f32 %v1000, %v900
      %v1006 = vmul.f32 %v1000, %v901
      %v1007 = vmul.f32 %v1000, %v902
      %v1008 = vmul.f32 %v1000, %v903
      %v1009 = vmul.f32 %v1000, %v904
      %v1010 = vmul.f32 %v1000, %v905
      %v1011 = vmul.f32 %v1000, %v906
      %v1012 = vmul.f32 %v1000, %v907
      %v1013 = vmul.f32 %v1000, %v908
      %v1014 = vmul.f32 %v1000, %v909
      %v1015 = vmul.f32 %v1000, %v910
      %v1016 = vmul.f32 %v1000, %v911
      %v1017 = vmul.f32 %v1000, %v912
      %v1018 = vmul.f32 %v1000, %v913
      %v1019 = vmul.f32 %v1000, %v914
      %v1020 = vmul.f32 %v1000, %v915
      %v1021 = vmul.f32 %v1000, %v916
      %v1022 = vmul.f32 %v1000, %v917
      %v1023 = vmul.f32 %v1000, %v918
      %v1024 = vmul.f32 %v1000, %v919
      %v1025 = vmul.f32 %v1000, %v920
      %v1026 = vmul.f32 %v1000, %v921
      %v1027 = vmul.f32 %v1000, %v922
      %v1028 = vmul.f32 %v1000, %v923
      %v1029 = vmul.f32 %v1000, %v924
      %v1030 = vmul.f32 %v1000, %v925
      %v1031 = vmul.f32 %v1000, %v926
      %v1032 = vmul.f32 %v1000, %v927
      %v1033 = vlaneseq
      %v1034 = vshrl.u32 %v1033, 7
      %v1035 = vsub.s32 0, %v1034
      %v1036 = vrot.slane %v993, %v1035
      %v1037 = vmul.f32 %v1036, %v960
      %v1038 = vmul.f32 %v1036, %v961
      %v1039 = vmul.f32 %v1036, %v962
      %v1040 = vmul.f32 %v1036, %v963
      %v1041 = vmul.f32 %v1036, %v964
      %v1042 = vmul.f32 %v1036, %v965
      %v1043 = vmul.f32 %v1036, %v966
      %v1044 = vmul.f32 %v1036, %v967
      %v1045 = vmul.f32 %v1036, %v968
      %v1046 = vmul.f32 %v1036, %v969
      %v1047 = vmul.f32 %v1036, %v970
      %v1048 = vmul.f32 %v1036, %v971
      %v1049 = vmul.f32 %v1036, %v972
      %v1050 = vmul.f32 %v1036, %v973
      %v1051 = vmul.f32 %v1036, %v974
      %v1052 = vmul.f32 %v1036, %v975
      %v1053 = vmul.f32 %v1036, %v976
      %v1054 = vmul.f32 %v1036, %v977
      %v1055 = vmul.f32 %v1036, %v978
      %v1056 = vmul.f32 %v1036, %v979
      %v1057 = vmul.f32 %v1036, %v980
      %v1058 = vmul.f32 %v1036, %v981
      %v1059 = vmul.f32 %v1036, %v982
      %v1060 = vmul.f32 %v1036, %v983
      %v1061 = vmul.f32 %v1036, %v984
      %v1062 = vmul.f32 %v1036, %v985
      %v1063 = vmul.f32 %v1036, %v986
      %v1064 = vmul.f32 %v1036, %v987
      %v1065 = vmul.f32 %v1036, %v988
      %v1066 = vmul.f32 %v1036, %v989
      %v1067 = vmul.f32 %v1036, %v990
      %v1068 = vmul.f32 %v1036, %v991
      %v1069 = vadd.f32 %v1001, %v1037
      %v1070 = vadd.f32 %v1002, %v1038
      %v1071 = vadd.f32 %v1003, %v1039
      %v1072 = vadd.f32 %v1004, %v1040
      %v1073 = vadd.f32 %v1005, %v1041
      %v1074 = vadd.f32 %v1006, %v1042
      %v1075 = vadd.f32 %v1007, %v1043
      %v1076 = vadd.f32 %v1008, %v1044
      %v1077 = vadd.f32 %v1009, %v1045
      %v1078 = vadd.f32 %v1010, %v1046
      %v1079 = vadd.f32 %v1011, %v1047
      %v1080 = vadd.f32 %v1012, %v1048
      %v1081 = vadd.f32 %v1013, %v1049
      %v1082 = vadd.f32 %v1014, %v1050
      %v1083 = vadd.f32 %v1015, %v1051
      %v1084 = vadd.f32 %v1016, %v1052
      %v1085 = vadd.f32 %v1017, %v1053
      %v1086 = vadd.f32 %v1018, %v1054
      %v1087 = vadd.f32 %v1019, %v1055
      %v1088 = vadd.f32 %v1020, %v1056
      %v1089 = vadd.f32 %v1021, %v1057
      %v1090 = vadd.f32 %v1022, %v1058
      %v1091 = vadd.f32 %v1023, %v1059
      %v1092 = vadd.f32 %v1024, %v1060
      %v1093 = vadd.f32 %v1025, %v1061
      %v1094 = vadd.f32 %v1026, %v1062
      %v1095 = vadd.f32 %v1027, %v1063
      %v1096 = vadd.f32 %v1028, %v1064
      %v1097 = vadd.f32 %v1029, %v1065
      %v1098 = vadd.f32 %v1030, %v1066
      %v1099 = vadd.f32 %v1031, %v1067
      %v1100 = vadd.f32 %v1032, %v1068
      %v1101 = vmul.f32 %v734, 2.0
      %v1102 = vmul.f32 %v736, 2.0
      %v1103 = vmul.f32 %v738, 2.0
      %v1104 = vmul.f32 %v740, 2.0
      %v1105 = vmul.f32 %v742, 2.0
      %v1106 = vmul.f32 %v744, 2.0
      %v1107 = vmul.f32 %v746, 2.0
      %v1108 = vmul.f32 %v748, 2.0
      %v1109 = vmul.f32 %v750, 2.0
      %v1110 = vmul.f32 %v752, 2.0
      %v1111 = vmul.f32 %v754, 2.0
      %v1112 = vmul.f32 %v756, 2.0
      %v1113 = vmul.f32 %v758, 2.0
      %v1114 = vmul.f32 %v760, 2.0
      %v1115 = vmul.f32 %v762, 2.0
      %v1116 = vmul.f32 %v764, 2.0
      %v1117 = vmul.f32 %v766, 2.0
      %v1118 = vmul.f32 %v768, 2.0
      %v1119 = vmul.f32 %v770, 2.0
      %v1120 = vmul.f32 %v772, 2.0
      %v1121 = vmul.f32 %v774, 2.0
      %v1122 = vmul.f32 %v776, 2.0
      %v1123 = vmul.f32 %v778, 2.0
      %v1124 = vmul.f32 %v780, 2.0
      %v1125 = vmul.f32 %v782, 2.0
      %v1126 = vmul.f32 %v784, 2.0
      %v1127 = vmul.f32 %v786, 2.0
      %v1128 = vmul.f32 %v788, 2.0
      %v1129 = vmul.f32 %v790, 2.0
      %v1130 = vmul.f32 %v792, 2.0
      %v1131 = vmul.f32 %v794, 2.0
      %v1132 = vmul.f32 %v796, 2.0
      %v1133 = vsub.f32 %v1101, 0.5
      %v1134 = vsub.f32 %v1102, 0.5
      %v1135 = vsub.f32 %v1103, 0.5
      %v1136 = vsub.f32 %v1104, 0.5
      %v1137 = vsub.f32 %v1105, 0.5
      %v1138 = vsub.f32 %v1106, 0.5
      %v1139 = vsub.f32 %v1107, 0.5
      %v1140 = vsub.f32 %v1108, 0.5
      %v1141 = vsub.f32 %v1109, 0.5
      %v1142 = vsub.f32 %v1110, 0.5
      %v1143 = vsub.f32 %v1111, 0.5
      %v1144 = vsub.f32 %v1112, 0.5
      %v1145 = vsub.f32 %v1113, 0.5
      %v1146 = vsub.f32 %v1114, 0.5
      %v1147 = vsub.f32 %v1115, 0.5
      %v1148 = vsub.f32 %v1116, 0.5
      %v1149 = vsub.f32 %v1117, 0.5
      %v1150 = vsub.f32 %v1118, 0.5
      %v1151 = vsub.f32 %v1119, 0.5
      %v1152 = vsub.f32 %v1120, 0.5
      %v1153 = vsub.f32 %v1121, 0.5
      %v1154 = vsub.f32 %v1122, 0.5
      %v1155 = vsub.f32 %v1123, 0.5
      %v1156 = vsub.f32 %v1124, 0.5
      %v1157 = vsub.f32 %v1125, 0.5
      %v1158 = vsub.f32 %v1126, 0.5
      %v1159 = vsub.f32 %v1127, 0.5
      %v1160 = vsub.f32 %v1128, 0.5
      %v1161 = vsub.f32 %v1129, 0.5
      %v1162 = vsub.f32 %v1130, 0.5
      %v1163 = vsub.f32 %v1131, 0.5
      %v1164 = vsub.f32 %v1132, 0.5
      %v1165 = vadd.f32 %v1133, %v1069
      %v1166 = vadd.f32 %v1134, %v1070
      %v1167 = vadd.f32 %v1135, %v1071
      %v1168 = vadd.f32 %v1136, %v1072
      %v1169 = vadd.f32 %v1137, %v1073
      %v1170 = vadd.f32 %v1138, %v1074
      %v1171 = vadd.f32 %v1139, %v1075
      %v1172 = vadd.f32 %v1140, %v1076
      %v1173 = vadd.f32 %v1141, %v1077
      %v1174 = vadd.f32 %v1142, %v1078
      %v1175 = vadd.f32 %v1143, %v1079
      %v1176 = vadd.f32 %v1144, %v1080
      %v1177 = vadd.f32 %v1145, %v1081
      %v1178 = vadd.f32 %v1146, %v1082
      %v1179 = vadd.f32 %v1147, %v1083
      %v1180 = vadd.f32 %v1148, %v1084
      %v1181 = vadd.f32 %v1149, %v1085
      %v1182 = vadd.f32 %v1150, %v1086
      %v1183 = vadd.f32 %v1151, %v1087
      %v1184 = vadd.f32 %v1152, %v1088
      %v1185 = vadd.f32 %v1153, %v1089
      %v1186 = vadd.f32 %v1154, %v1090
      %v1187 = vadd.f32 %v1155, %v1091
      %v1188 = vadd.f32 %v1156, %v1092
      %v1189 = vadd.f32 %v1157, %v1093
      %v1190 = vadd.f32 %v1158, %v1094
      %v1191 = vadd.f32 %v1159, %v1095
      %v1192 = vadd.f32 %v1160, %v1096
      %v1193 = vadd.f32 %v1161, %v1097
      %v1194 = vadd.f32 %v1162, %v1098
      %v1195 = vadd.f32 %v1163, %v1099
      %v1196 = vadd.f32 %v1164, %v1100
      %v1197 = vmul.f32 %v1165, 4.0
      %v1198 = vmul.f32 %v1166, 4.0
      %v1199 = vmul.f32 %v1167, 4.0
      %v1200 = vmul.f32 %v1168, 4.0
      %v1201 = vmul.f32 %v1169, 4.0
      %v1202 = vmul.f32 %v1170, 4.0
      %v1203 = vmul.f32 %v1171, 4.0
      %v1204 = vmul.f32 %v1172, 4.0
      %v1205 = vmul.f32 %v1173, 4.0
      %v1206 = vmul.f32 %v1174, 4.0
      %v1207 = vmul.f32 %v1175, 4.0
      %v1208 = vmul.f32 %v1176, 4.0
      %v1209 = vmul.f32 %v1177, 4.0
      %v1210 = vmul.f32 %v1178, 4.0
      %v1211 = vmul.f32 %v1179, 4.0
      %v1212 = vmul.f32 %v1180, 4.0
      %v1213 = vmul.f32 %v1181, 4.0
      %v1214 = vmul.f32 %v1182, 4.0
      %v1215 = vmul.f32 %v1183, 4.0
      %v1216 = vmul.f32 %v1184, 4.0
      %v1217 = vmul.f32 %v1185, 4.0
      %v1218 = vmul.f32 %v1186, 4.0
      %v1219 = vmul.f32 %v1187, 4.0
      %v1220 = vmul.f32 %v1188, 4.0
      %v1221 = vmul.f32 %v1189, 4.0
      %v1222 = vmul.f32 %v1190, 4.0
      %v1223 = vmul.f32 %v1191, 4.0
      %v1224 = vmul.f32 %v1192, 4.0
      %v1225 = vmul.f32 %v1193, 4.0
      %v1226 = vmul.f32 %v1194, 4.0
      %v1227 = vmul.f32 %v1195, 4.0
      %v1228 = vmul.f32 %v1196, 4.0
      %v1229 = vmul.f32 %v1101, %v1101
      %v1230 = vmul.f32 %v1102, %v1102
      %v1231 = vmul.f32 %v1103, %v1103
      %v1232 = vmul.f32 %v1104, %v1104
      %v1233 = vmul.f32 %v1105, %v1105
      %v1234 = vmul.f32 %v1106, %v1106
      %v1235 = vmul.f32 %v1107, %v1107
      %v1236 = vmul.f32 %v1108, %v1108
      %v1237 = vmul.f32 %v1109, %v1109
      %v1238 = vmul.f32 %v1110, %v1110
      %v1239 = vmul.f32 %v1111, %v1111
      %v1240 = vmul.f32 %v1112, %v1112
      %v1241 = vmul.f32 %v1113, %v1113
      %v1242 = vmul.f32 %v1114, %v1114
      %v1243 = vmul.f32 %v1115, %v1115
      %v1244 = vmul.f32 %v1116, %v1116
      %v1245 = vmul.f32 %v1117, %v1117
      %v1246 = vmul.f32 %v1118, %v1118
      %v1247 = vmul.f32 %v1119, %v1119
      %v1248 = vmul.f32 %v1120, %v1120
      %v1249 = vmul.f32 %v1121, %v1121
      %v1250 = vmul.f32 %v1122, %v1122
      %v1251 = vmul.f32 %v1123, %v1123
      %v1252 = vmul.f32 %v1124, %v1124
      %v1253 = vmul.f32 %v1125, %v1125
      %v1254 = vmul.f32 %v1126, %v1126
      %v1255 = vmul.f32 %v1127, %v1127
      %v1256 = vmul.f32 %v1128, %v1128
      %v1257 = vmul.f32 %v1129, %v1129
      %v1258 = vmul.f32 %v1130, %v1130
      %v1259 = vmul.f32 %v1131, %v1131
      %v1260 = vmul.f32 %v1132, %v1132
      %v1261 = vlaneseq
      %v1262 = vshrl.u32 %v1261, 7
      %v1263 = vsub.s32 0, %v1262
      %v1264 = vrot.slane %v995, %v1263
      %v1265 = vmul.f32 %v1229, %v1264
      %v1266 = vmul.f32 %v1230, %v1264
      %v1267 = vmul.f32 %v1231, %v1264
      %v1268 = vmul.f32 %v1232, %v1264
      %v1269 = vmul.f32 %v1233, %v1264
      %v1270 = vmul.f32 %v1234, %v1264
      %v1271 = vmul.f32 %v1235, %v1264
      %v1272 = vmul.f32 %v1236, %v1264
      %v1273 = vmul.f32 %v1237, %v1264
      %v1274 = vmul.f32 %v1238, %v1264
      %v1275 = vmul.f32 %v1239, %v1264
      %v1276 = vmul.f32 %v1240, %v1264
      %v1277 = vmul.f32 %v1241, %v1264
      %v1278 = vmul.f32 %v1242, %v1264
      %v1279 = vmul.f32 %v1243, %v1264
      %v1280 = vmul.f32 %v1244, %v1264
      %v1281 = vmul.f32 %v1245, %v1264
      %v1282 = vmul.f32 %v1246, %v1264
      %v1283 = vmul.f32 %v1247, %v1264
      %v1284 = vmul.f32 %v1248, %v1264
      %v1285 = vmul.f32 %v1249, %v1264
      %v1286 = vmul.f32 %v1250, %v1264
      %v1287 = vmul.f32 %v1251, %v1264
      %v1288 = vmul.f32 %v1252, %v1264
      %v1289 = vmul.f32 %v1253, %v1264
      %v1290 = vmul.f32 %v1254, %v1264
      %v1291 = vmul.f32 %v1255, %v1264
      %v1292 = vmul.f32 %v1256, %v1264
      %v1293 = vmul.f32 %v1257, %v1264
      %v1294 = vmul.f32 %v1258, %v1264
      %v1295 = vmul.f32 %v1259, %v1264
      %v1296 = vmul.f32 %v1260, %v1264
      %v1297 = vlaneseq
      %v1298 = vshrl.u32 %v1297, 7
      %v1299 = vsub.s32 0, %v1298
      %v1300 = vrot.slane %v996, %v1299
      %v1301 = vmul.f32 %v1300, %v1197
      %v1302 = vmul.f32 %v1300, %v1198
      %v1303 = vmul.f32 %v1300, %v1199
      %v1304 = vmul.f32 %v1300, %v1200
      %v1305 = vmul.f32 %v1300, %v1201
      %v1306 = vmul.f32 %v1300, %v1202
      %v1307 = vmul.f32 %v1300, %v1203
      %v1308 = vmul.f32 %v1300, %v1204
      %v1309 = vmul.f32 %v1300, %v1205
      %v1310 = vmul.f32 %v1300, %v1206
      %v1311 = vmul.f32 %v1300, %v1207
      %v1312 = vmul.f32 %v1300, %v1208
      %v1313 = vmul.f32 %v1300, %v1209
      %v1314 = vmul.f32 %v1300, %v1210
      %v1315 = vmul.f32 %v1300, %v1211
      %v1316 = vmul.f32 %v1300, %v1212
      %v1317 = vmul.f32 %v1300, %v1213
      %v1318 = vmul.f32 %v1300, %v1214
      %v1319 = vmul.f32 %v1300, %v1215
      %v1320 = vmul.f32 %v1300, %v1216
      %v1321 = vmul.f32 %v1300, %v1217
      %v1322 = vmul.f32 %v1300, %v1218
      %v1323 = vmul.f32 %v1300, %v1219
      %v1324 = vmul.f32 %v1300, %v1220
      %v1325 = vmul.f32 %v1300, %v1221
      %v1326 = vmul.f32 %v1300, %v1222
      %v1327 = vmul.f32 %v1300, %v1223
      %v1328 = vmul.f32 %v1300, %v1224
      %v1329 = vmul.f32 %v1300, %v1225
      %v1330 = vmul.f32 %v1300, %v1226
      %v1331 = vmul.f32 %v1300, %v1227
      %v1332 = vmul.f32 %v1300, %v1228
      %v1333 = vlaneseq
      %v1334 = vshrl.u32 %v1333, 7
      %v1335 = vsub.s32 0, %v1334
      %v1336 = vrot.slane %v994, %v1335
      %v1337 = vmul.f32 %v1336, %v1265
      %v1338 = vmul.f32 %v1336, %v1266
      %v1339 = vmul.f32 %v1336, %v1267
      %v1340 = vmul.f32 %v1336, %v1268
      %v1341 = vmul.f32 %v1336, %v1269
      %v1342 = vmul.f32 %v1336, %v1270
      %v1343 = vmul.f32 %v1336, %v1271
      %v1344 = vmul.f32 %v1336, %v1272
      %v1345 = vmul.f32 %v1336, %v1273
      %v1346 = vmul.f32 %v1336, %v1274
      %v1347 = vmul.f32 %v1336, %v1275
      %v1348 = vmul.f32 %v1336, %v1276
      %v1349 = vmul.f32 %v1336, %v1277
      %v1350 = vmul.f32 %v1336, %v1278
      %v1351 = vmul.f32 %v1336, %v1279
      %v1352 = vmul.f32 %v1336, %v1280
      %v1353 = vmul.f32 %v1336, %v1281
      %v1354 = vmul.f32 %v1336, %v1282
      %v1355 = vmul.f32 %v1336, %v1283
      %v1356 = vmul.f32 %v1336, %v1284
      %v1357 = vmul.f32 %v1336, %v1285
      %v1358 = vmul.f32 %v1336, %v1286
      %v1359 = vmul.f32 %v1336, %v1287
      %v1360 = vmul.f32 %v1336, %v1288
      %v1361 = vmul.f32 %v1336, %v1289
      %v1362 = vmul.f32 %v1336, %v1290
      %v1363 = vmul.f32 %v1336, %v1291
      %v1364 = vmul.f32 %v1336, %v1292
      %v1365 = vmul.f32 %v1336, %v1293
      %v1366 = vmul.f32 %v1336, %v1294
      %v1367 = vmul.f32 %v1336, %v1295
      %v1368 = vmul.f32 %v1336, %v1296
      %v1369 = vadd.f32 %v1301, %v1337
      %v1370 = vadd.f32 %v1302, %v1338
      %v1371 = vadd.f32 %v1303, %v1339
      %v1372 = vadd.f32 %v1304, %v1340
      %v1373 = vadd.f32 %v1305, %v1341
      %v1374 = vadd.f32 %v1306, %v1342
      %v1375 = vadd.f32 %v1307, %v1343
      %v1376 = vadd.f32 %v1308, %v1344
      %v1377 = vadd.f32 %v1309, %v1345
      %v1378 = vadd.f32 %v1310, %v1346
      %v1379 = vadd.f32 %v1311, %v1347
      %v1380 = vadd.f32 %v1312, %v1348
      %v1381 = vadd.f32 %v1313, %v1349
      %v1382 = vadd.f32 %v1314, %v1350
      %v1383 = vadd.f32 %v1315, %v1351
      %v1384 = vadd.f32 %v1316, %v1352
      %v1385 = vadd.f32 %v1317, %v1353
      %v1386 = vadd.f32 %v1318, %v1354
      %v1387 = vadd.f32 %v1319, %v1355
      %v1388 = vadd.f32 %v1320, %v1356
      %v1389 = vadd.f32 %v1321, %v1357
      %v1390 = vadd.f32 %v1322, %v1358
      %v1391 = vadd.f32 %v1323, %v1359
      %v1392 = vadd.f32 %v1324, %v1360
      %v1393 = vadd.f32 %v1325, %v1361
      %v1394 = vadd.f32 %v1326, %v1362
      %v1395 = vadd.f32 %v1327, %v1363
      %v1396 = vadd.f32 %v1328, %v1364
      %v1397 = vadd.f32 %v1329, %v1365
      %v1398 = vadd.f32 %v1330, %v1366
      %v1399 = vadd.f32 %v1331, %v1367
      %v1400 = vadd.f32 %v1332, %v1368
      %v1401 = vsub.f32 1.0, %v996
      %v1402 = vsub.f32 %v1401, %v994
      %v1403 = vlaneseq
      %v1404 = vshrl.u32 %v1403, 7
      %v1405 = vsub.s32 0, %v1404
      %v1406 = vrot.slane %v1402, %v1405
      %v1407 = vmul.f32 %v1406, %v734
      %v1408 = vmul.f32 %v1406, %v736
      %v1409 = vmul.f32 %v1406, %v738
      %v1410 = vmul.f32 %v1406, %v740
      %v1411 = vmul.f32 %v1406, %v742
      %v1412 = vmul.f32 %v1406, %v744
      %v1413 = vmul.f32 %v1406, %v746
      %v1414 = vmul.f32 %v1406, %v748
      %v1415 = vmul.f32 %v1406, %v750
      %v1416 = vmul.f32 %v1406, %v752
      %v1417 = vmul.f32 %v1406, %v754
      %v1418 = vmul.f32 %v1406, %v756
      %v1419 = vmul.f32 %v1406, %v758
      %v1420 = vmul.f32 %v1406, %v760
      %v1421 = vmul.f32 %v1406, %v762
      %v1422 = vmul.f32 %v1406, %v764
      %v1423 = vmul.f32 %v1406, %v766
      %v1424 = vmul.f32 %v1406, %v768
      %v1425 = vmul.f32 %v1406, %v770
      %v1426 = vmul.f32 %v1406, %v772
      %v1427 = vmul.f32 %v1406, %v774
      %v1428 = vmul.f32 %v1406, %v776
      %v1429 = vmul.f32 %v1406, %v778
      %v1430 = vmul.f32 %v1406, %v780
      %v1431 = vmul.f32 %v1406, %v782
      %v1432 = vmul.f32 %v1406, %v784
      %v1433 = vmul.f32 %v1406, %v786
      %v1434 = vmul.f32 %v1406, %v788
      %v1435 = vmul.f32 %v1406, %v790
      %v1436 = vmul.f32 %v1406, %v792
      %v1437 = vmul.f32 %v1406, %v794
      %v1438 = vmul.f32 %v1406, %v796
      %v1439 = vadd.f32 %v1369, %v1407
      %v1440 = vadd.f32 %v1370, %v1408
      %v1441 = vadd.f32 %v1371, %v1409
      %v1442 = vadd.f32 %v1372, %v1410
      %v1443 = vadd.f32 %v1373, %v1411
      %v1444 = vadd.f32 %v1374, %v1412
      %v1445 = vadd.f32 %v1375, %v1413
      %v1446 = vadd.f32 %v1376, %v1414
      %v1447 = vadd.f32 %v1377, %v1415
      %v1448 = vadd.f32 %v1378, %v1416
      %v1449 = vadd.f32 %v1379, %v1417
      %v1450 = vadd.f32 %v1380, %v1418
      %v1451 = vadd.f32 %v1381, %v1419
      %v1452 = vadd.f32 %v1382, %v1420
      %v1453 = vadd.f32 %v1383, %v1421
      %v1454 = vadd.f32 %v1384, %v1422
      %v1455 = vadd.f32 %v1385, %v1423
      %v1456 = vadd.f32 %v1386, %v1424
      %v1457 = vadd.f32 %v1387, %v1425
      %v1458 = vadd.f32 %v1388, %v1426
      %v1459 = vadd.f32 %v1389, %v1427
      %v1460 = vadd.f32 %v1390, %v1428
      %v1461 = vadd.f32 %v1391, %v1429
      %v1462 = vadd.f32 %v1392, %v1430
      %v1463 = vadd.f32 %v1393, %v1431
      %v1464 = vadd.f32 %v1394, %v1432
      %v1465 = vadd.f32 %v1395, %v1433
      %v1466 = vadd.f32 %v1396, %v1434
      %v1467 = vadd.f32 %v1397, %v1435
      %v1468 = vadd.f32 %v1398, %v1436
      %v1469 = vadd.f32 %v1399, %v1437
      %v1470 = vadd.f32 %v1400, %v1438
      %vm1471 = vcmask 64512
      %1472 = vst.msk [vmem:[%s249] sm:$0xff] %vm1471, %v479
      %1473 = vst.msk [vmem:[%s249 + $0x8] sm:$0xff] %vm1471, %v482
      %1474 = vst.msk [vmem:[%s249 + $0x10] sm:$0xff] %vm1471, %v487
      %1475 = vst.msk [vmem:[%s249 + $0x18] sm:$0xff] %vm1471, %v490
      %1476 = vst.msk [vmem:[%s249 + $0x20] sm:$0xff] %vm1471, %v495
      %1477 = vst.msk [vmem:[%s249 + $0x28] sm:$0xff] %vm1471, %v498
      %1478 = vst.msk [vmem:[%s249 + $0x30] sm:$0xff] %vm1471, %v503
      %1479 = vst.msk [vmem:[%s249 + $0x38] sm:$0xff] %vm1471, %v506
      %1480 = vst.msk [vmem:[%s249 + $0x40] sm:$0xff] %vm1471, %v511
      %1481 = vst.msk [vmem:[%s249 + $0x48] sm:$0xff] %vm1471, %v514
      %1482 = vst.msk [vmem:[%s249 + $0x50] sm:$0xff] %vm1471, %v519
      %1483 = vst.msk [vmem:[%s249 + $0x58] sm:$0xff] %vm1471, %v522
      %1484 = vst.msk [vmem:[%s249 + $0x60] sm:$0xff] %vm1471, %v527
      %1485 = vst.msk [vmem:[%s249 + $0x68] sm:$0xff] %vm1471, %v530
      %1486 = vst.msk [vmem:[%s249 + $0x70] sm:$0xff] %vm1471, %v535
      %1487 = vst.msk [vmem:[%s249 + $0x78] sm:$0xff] %vm1471, %v538
      %1488 = vst.msk [vmem:[%s249 + $0x80] sm:$0xff] %vm1471, %v543
      %1489 = vst.msk [vmem:[%s249 + $0x88] sm:$0xff] %vm1471, %v546
      %1490 = vst.msk [vmem:[%s249 + $0x90] sm:$0xff] %vm1471, %v551
      %1491 = vst.msk [vmem:[%s249 + $0x98] sm:$0xff] %vm1471, %v554
      %1492 = vst.msk [vmem:[%s249 + $0xa0] sm:$0xff] %vm1471, %v559
      %1493 = vst.msk [vmem:[%s249 + $0xa8] sm:$0xff] %vm1471, %v562
      %1494 = vst.msk [vmem:[%s249 + $0xb0] sm:$0xff] %vm1471, %v567
      %1495 = vst.msk [vmem:[%s249 + $0xb8] sm:$0xff] %vm1471, %v570
      %1496 = vst.msk [vmem:[%s249 + $0xc0] sm:$0xff] %vm1471, %v575
      %1497 = vst.msk [vmem:[%s249 + $0xc8] sm:$0xff] %vm1471, %v578
      %1498 = vst.msk [vmem:[%s249 + $0xd0] sm:$0xff] %vm1471, %v583
      %1499 = vst.msk [vmem:[%s249 + $0xd8] sm:$0xff] %vm1471, %v586
      %1500 = vst.msk [vmem:[%s249 + $0xe0] sm:$0xff] %vm1471, %v591
      %1501 = vst.msk [vmem:[%s249 + $0xe8] sm:$0xff] %vm1471, %v594
      %1502 = vst.msk [vmem:[%s249 + $0xf0] sm:$0xff] %vm1471, %v599
      %1503 = vst.msk [vmem:[%s249 + $0xf8] sm:$0xff] %vm1471, %v602
      %1504 = vst.msk [vmem:[%s259] sm:$0xff] %vm1471, %v1439
      %1505 = vst.msk [vmem:[%s259 + $0x8] sm:$0xff] %vm1471, %v1440
      %1506 = vst.msk [vmem:[%s259 + $0x10] sm:$0xff] %vm1471, %v1441
      %1507 = vst.msk [vmem:[%s259 + $0x18] sm:$0xff] %vm1471, %v1442
      %1508 = vst.msk [vmem:[%s259 + $0x20] sm:$0xff] %vm1471, %v1443
      %1509 = vst.msk [vmem:[%s259 + $0x28] sm:$0xff] %vm1471, %v1444
      %1510 = vst.msk [vmem:[%s259 + $0x30] sm:$0xff] %vm1471, %v1445
      %1511 = vst.msk [vmem:[%s259 + $0x38] sm:$0xff] %vm1471, %v1446
      %1512 = vst.msk [vmem:[%s259 + $0x40] sm:$0xff] %vm1471, %v1447
      %1513 = vst.msk [vmem:[%s259 + $0x48] sm:$0xff] %vm1471, %v1448
      %1514 = vst.msk [vmem:[%s259 + $0x50] sm:$0xff] %vm1471, %v1449
      %1515 = vst.msk [vmem:[%s259 + $0x58] sm:$0xff] %vm1471, %v1450
      %1516 = vst.msk [vmem:[%s259 + $0x60] sm:$0xff] %vm1471, %v1451
      %1517 = vst.msk [vmem:[%s259 + $0x68] sm:$0xff] %vm1471, %v1452
      %1518 = vst.msk [vmem:[%s259 + $0x70] sm:$0xff] %vm1471, %v1453
      %1519 = vst.msk [vmem:[%s259 + $0x78] sm:$0xff] %vm1471, %v1454
      %1520 = vst.msk [vmem:[%s259 + $0x80] sm:$0xff] %vm1471, %v1455
      %1521 = vst.msk [vmem:[%s259 + $0x88] sm:$0xff] %vm1471, %v1456
      %1522 = vst.msk [vmem:[%s259 + $0x90] sm:$0xff] %vm1471, %v1457
      %1523 = vst.msk [vmem:[%s259 + $0x98] sm:$0xff] %vm1471, %v1458
      %1524 = vst.msk [vmem:[%s259 + $0xa0] sm:$0xff] %vm1471, %v1459
      %1525 = vst.msk [vmem:[%s259 + $0xa8] sm:$0xff] %vm1471, %v1460
      %1526 = vst.msk [vmem:[%s259 + $0xb0] sm:$0xff] %vm1471, %v1461
      %1527 = vst.msk [vmem:[%s259 + $0xb8] sm:$0xff] %vm1471, %v1462
      %1528 = vst.msk [vmem:[%s259 + $0xc0] sm:$0xff] %vm1471, %v1463
      %1529 = vst.msk [vmem:[%s259 + $0xc8] sm:$0xff] %vm1471, %v1464
      %1530 = vst.msk [vmem:[%s259 + $0xd0] sm:$0xff] %vm1471, %v1465
      %1531 = vst.msk [vmem:[%s259 + $0xd8] sm:$0xff] %vm1471, %v1466
      %1532 = vst.msk [vmem:[%s259 + $0xe0] sm:$0xff] %vm1471, %v1467
      %1533 = vst.msk [vmem:[%s259 + $0xe8] sm:$0xff] %vm1471, %v1468
      %1534 = vst.msk [vmem:[%s259 + $0xf0] sm:$0xff] %vm1471, %v1469
      %1535 = vst.msk [vmem:[%s259 + $0xf8] sm:$0xff] %vm1471, %v1470
      %1568 = vrot.lane.b32.xlu0 %v479, 120
      %v1569 = vpop.permute.xlu0 %1568
      %1570 = vrot.lane.b32.xlu0 %v482, 120
      %v1571 = vpop.permute.xlu0 %1570
      %1572 = vrot.lane.b32.xlu0 %v487, 120
      %v1573 = vpop.permute.xlu0 %1572
      %1574 = vrot.lane.b32.xlu0 %v490, 120
      %v1575 = vpop.permute.xlu0 %1574
      %1576 = vrot.lane.b32.xlu0 %v495, 120
      %v1577 = vpop.permute.xlu0 %1576
      %1578 = vrot.lane.b32.xlu0 %v498, 120
      %v1579 = vpop.permute.xlu0 %1578
      %1580 = vrot.lane.b32.xlu0 %v503, 120
      %v1581 = vpop.permute.xlu0 %1580
      %1582 = vrot.lane.b32.xlu0 %v506, 120
      %v1583 = vpop.permute.xlu0 %1582
      %1584 = vrot.lane.b32.xlu0 %v511, 120
      %v1585 = vpop.permute.xlu0 %1584
      %1586 = vrot.lane.b32.xlu0 %v514, 120
      %v1587 = vpop.permute.xlu0 %1586
      %1588 = vrot.lane.b32.xlu0 %v519, 120
      %v1589 = vpop.permute.xlu0 %1588
      %1590 = vrot.lane.b32.xlu0 %v522, 120
      %v1591 = vpop.permute.xlu0 %1590
      %1592 = vrot.lane.b32.xlu0 %v527, 120
      %v1593 = vpop.permute.xlu0 %1592
      %1594 = vrot.lane.b32.xlu0 %v530, 120
      %v1595 = vpop.permute.xlu0 %1594
      %1596 = vrot.lane.b32.xlu0 %v535, 120
      %v1597 = vpop.permute.xlu0 %1596
      %1598 = vrot.lane.b32.xlu0 %v538, 120
      %v1599 = vpop.permute.xlu0 %1598
      %1600 = vrot.lane.b32.xlu0 %v543, 120
      %v1601 = vpop.permute.xlu0 %1600
      %1602 = vrot.lane.b32.xlu0 %v546, 120
      %v1603 = vpop.permute.xlu0 %1602
      %1604 = vrot.lane.b32.xlu0 %v551, 120
      %v1605 = vpop.permute.xlu0 %1604
      %1606 = vrot.lane.b32.xlu0 %v554, 120
      %v1607 = vpop.permute.xlu0 %1606
      %1608 = vrot.lane.b32.xlu0 %v559, 120
      %v1609 = vpop.permute.xlu0 %1608
      %1610 = vrot.lane.b32.xlu0 %v562, 120
      %v1611 = vpop.permute.xlu0 %1610
      %1612 = vrot.lane.b32.xlu0 %v567, 120
      %v1613 = vpop.permute.xlu0 %1612
      %1614 = vrot.lane.b32.xlu0 %v570, 120
      %v1615 = vpop.permute.xlu0 %1614
      %1616 = vrot.lane.b32.xlu0 %v575, 120
      %v1617 = vpop.permute.xlu0 %1616
      %1618 = vrot.lane.b32.xlu0 %v578, 120
      %v1619 = vpop.permute.xlu0 %1618
      %1620 = vrot.lane.b32.xlu0 %v583, 120
      %v1621 = vpop.permute.xlu0 %1620
      %1622 = vrot.lane.b32.xlu0 %v586, 120
      %v1623 = vpop.permute.xlu0 %1622
      %1624 = vrot.lane.b32.xlu0 %v591, 120
      %v1625 = vpop.permute.xlu0 %1624
      %1626 = vrot.lane.b32.xlu0 %v594, 120
      %v1627 = vpop.permute.xlu0 %1626
      %1628 = vrot.lane.b32.xlu0 %v599, 120
      %v1629 = vpop.permute.xlu0 %1628
      %1630 = vrot.lane.b32.xlu0 %v602, 120
      %v1631 = vpop.permute.xlu0 %1630
      %s1664 = scalar_lea.vmem %s249, 256
      %1665 = vst.msk [vmem:[%s1664] sm:$0xff] %vm1471, %v1569
      %1666 = vst.msk [vmem:[%s1664 + $0x8] sm:$0xff] %vm1471, %v1571
      %1667 = vst.msk [vmem:[%s1664 + $0x10] sm:$0xff] %vm1471, %v1573
      %1668 = vst.msk [vmem:[%s1664 + $0x18] sm:$0xff] %vm1471, %v1575
      %1669 = vst.msk [vmem:[%s1664 + $0x20] sm:$0xff] %vm1471, %v1577
      %1670 = vst.msk [vmem:[%s1664 + $0x28] sm:$0xff] %vm1471, %v1579
      %1671 = vst.msk [vmem:[%s1664 + $0x30] sm:$0xff] %vm1471, %v1581
      %1672 = vst.msk [vmem:[%s1664 + $0x38] sm:$0xff] %vm1471, %v1583
      %1673 = vst.msk [vmem:[%s1664 + $0x40] sm:$0xff] %vm1471, %v1585
      %1674 = vst.msk [vmem:[%s1664 + $0x48] sm:$0xff] %vm1471, %v1587
      %1675 = vst.msk [vmem:[%s1664 + $0x50] sm:$0xff] %vm1471, %v1589
      %1676 = vst.msk [vmem:[%s1664 + $0x58] sm:$0xff] %vm1471, %v1591
      %1677 = vst.msk [vmem:[%s1664 + $0x60] sm:$0xff] %vm1471, %v1593
      %1678 = vst.msk [vmem:[%s1664 + $0x68] sm:$0xff] %vm1471, %v1595
      %1679 = vst.msk [vmem:[%s1664 + $0x70] sm:$0xff] %vm1471, %v1597
      %1680 = vst.msk [vmem:[%s1664 + $0x78] sm:$0xff] %vm1471, %v1599
      %1681 = vst.msk [vmem:[%s1664 + $0x80] sm:$0xff] %vm1471, %v1601
      %1682 = vst.msk [vmem:[%s1664 + $0x88] sm:$0xff] %vm1471, %v1603
      %1683 = vst.msk [vmem:[%s1664 + $0x90] sm:$0xff] %vm1471, %v1605
      %1684 = vst.msk [vmem:[%s1664 + $0x98] sm:$0xff] %vm1471, %v1607
      %1685 = vst.msk [vmem:[%s1664 + $0xa0] sm:$0xff] %vm1471, %v1609
      %1686 = vst.msk [vmem:[%s1664 + $0xa8] sm:$0xff] %vm1471, %v1611
      %1687 = vst.msk [vmem:[%s1664 + $0xb0] sm:$0xff] %vm1471, %v1613
      %1688 = vst.msk [vmem:[%s1664 + $0xb8] sm:$0xff] %vm1471, %v1615
      %1689 = vst.msk [vmem:[%s1664 + $0xc0] sm:$0xff] %vm1471, %v1617
      %1690 = vst.msk [vmem:[%s1664 + $0xc8] sm:$0xff] %vm1471, %v1619
      %1691 = vst.msk [vmem:[%s1664 + $0xd0] sm:$0xff] %vm1471, %v1621
      %1692 = vst.msk [vmem:[%s1664 + $0xd8] sm:$0xff] %vm1471, %v1623
      %1693 = vst.msk [vmem:[%s1664 + $0xe0] sm:$0xff] %vm1471, %v1625
      %1694 = vst.msk [vmem:[%s1664 + $0xe8] sm:$0xff] %vm1471, %v1627
      %1695 = vst.msk [vmem:[%s1664 + $0xf0] sm:$0xff] %vm1471, %v1629
      %1696 = vst.msk [vmem:[%s1664 + $0xf8] sm:$0xff] %vm1471, %v1631
      %1729 = vrot.lane.b32.xlu0 %v1439, 120
      %v1730 = vpop.permute.xlu0 %1729
      %1731 = vrot.lane.b32.xlu0 %v1440, 120
      %v1732 = vpop.permute.xlu0 %1731
      %1733 = vrot.lane.b32.xlu0 %v1441, 120
      %v1734 = vpop.permute.xlu0 %1733
      %1735 = vrot.lane.b32.xlu0 %v1442, 120
      %v1736 = vpop.permute.xlu0 %1735
      %1737 = vrot.lane.b32.xlu0 %v1443, 120
      %v1738 = vpop.permute.xlu0 %1737
      %1739 = vrot.lane.b32.xlu0 %v1444, 120
      %v1740 = vpop.permute.xlu0 %1739
      %1741 = vrot.lane.b32.xlu0 %v1445, 120
      %v1742 = vpop.permute.xlu0 %1741
      %1743 = vrot.lane.b32.xlu0 %v1446, 120
      %v1744 = vpop.permute.xlu0 %1743
      %1745 = vrot.lane.b32.xlu0 %v1447, 120
      %v1746 = vpop.permute.xlu0 %1745
      %1747 = vrot.lane.b32.xlu0 %v1448, 120
      %v1748 = vpop.permute.xlu0 %1747
      %1749 = vrot.lane.b32.xlu0 %v1449, 120
      %v1750 = vpop.permute.xlu0 %1749
      %1751 = vrot.lane.b32.xlu0 %v1450, 120
      %v1752 = vpop.permute.xlu0 %1751
      %1753 = vrot.lane.b32.xlu0 %v1451, 120
      %v1754 = vpop.permute.xlu0 %1753
      %1755 = vrot.lane.b32.xlu0 %v1452, 120
      %v1756 = vpop.permute.xlu0 %1755
      %1757 = vrot.lane.b32.xlu0 %v1453, 120
      %v1758 = vpop.permute.xlu0 %1757
      %1759 = vrot.lane.b32.xlu0 %v1454, 120
      %v1760 = vpop.permute.xlu0 %1759
      %1761 = vrot.lane.b32.xlu0 %v1455, 120
      %v1762 = vpop.permute.xlu0 %1761
      %1763 = vrot.lane.b32.xlu0 %v1456, 120
      %v1764 = vpop.permute.xlu0 %1763
      %1765 = vrot.lane.b32.xlu0 %v1457, 120
      %v1766 = vpop.permute.xlu0 %1765
      %1767 = vrot.lane.b32.xlu0 %v1458, 120
      %v1768 = vpop.permute.xlu0 %1767
      %1769 = vrot.lane.b32.xlu0 %v1459, 120
      %v1770 = vpop.permute.xlu0 %1769
      %1771 = vrot.lane.b32.xlu0 %v1460, 120
      %v1772 = vpop.permute.xlu0 %1771
      %1773 = vrot.lane.b32.xlu0 %v1461, 120
      %v1774 = vpop.permute.xlu0 %1773
      %1775 = vrot.lane.b32.xlu0 %v1462, 120
      %v1776 = vpop.permute.xlu0 %1775
      %1777 = vrot.lane.b32.xlu0 %v1463, 120
      %v1778 = vpop.permute.xlu0 %1777
      %1779 = vrot.lane.b32.xlu0 %v1464, 120
      %v1780 = vpop.permute.xlu0 %1779
      %1781 = vrot.lane.b32.xlu0 %v1465, 120
      %v1782 = vpop.permute.xlu0 %1781
      %1783 = vrot.lane.b32.xlu0 %v1466, 120
      %v1784 = vpop.permute.xlu0 %1783
      %1785 = vrot.lane.b32.xlu0 %v1467, 120
      %v1786 = vpop.permute.xlu0 %1785
      %1787 = vrot.lane.b32.xlu0 %v1468, 120
      %v1788 = vpop.permute.xlu0 %1787
      %1789 = vrot.lane.b32.xlu0 %v1469, 120
      %v1790 = vpop.permute.xlu0 %1789
      %1791 = vrot.lane.b32.xlu0 %v1470, 120
      %v1792 = vpop.permute.xlu0 %1791
      %s1825 = scalar_lea.vmem %s259, 256
      %1826 = vst.msk [vmem:[%s1825] sm:$0xff] %vm1471, %v1730
      %1827 = vst.msk [vmem:[%s1825 + $0x8] sm:$0xff] %vm1471, %v1732
      %1828 = vst.msk [vmem:[%s1825 + $0x10] sm:$0xff] %vm1471, %v1734
      %1829 = vst.msk [vmem:[%s1825 + $0x18] sm:$0xff] %vm1471, %v1736
      %1830 = vst.msk [vmem:[%s1825 + $0x20] sm:$0xff] %vm1471, %v1738
      %1831 = vst.msk [vmem:[%s1825 + $0x28] sm:$0xff] %vm1471, %v1740
      %1832 = vst.msk [vmem:[%s1825 + $0x30] sm:$0xff] %vm1471, %v1742
      %1833 = vst.msk [vmem:[%s1825 + $0x38] sm:$0xff] %vm1471, %v1744
      %1834 = vst.msk [vmem:[%s1825 + $0x40] sm:$0xff] %vm1471, %v1746
      %1835 = vst.msk [vmem:[%s1825 + $0x48] sm:$0xff] %vm1471, %v1748
      %1836 = vst.msk [vmem:[%s1825 + $0x50] sm:$0xff] %vm1471, %v1750
      %1837 = vst.msk [vmem:[%s1825 + $0x58] sm:$0xff] %vm1471, %v1752
      %1838 = vst.msk [vmem:[%s1825 + $0x60] sm:$0xff] %vm1471, %v1754
      %1839 = vst.msk [vmem:[%s1825 + $0x68] sm:$0xff] %vm1471, %v1756
      %1840 = vst.msk [vmem:[%s1825 + $0x70] sm:$0xff] %vm1471, %v1758
      %1841 = vst.msk [vmem:[%s1825 + $0x78] sm:$0xff] %vm1471, %v1760
      %1842 = vst.msk [vmem:[%s1825 + $0x80] sm:$0xff] %vm1471, %v1762
      %1843 = vst.msk [vmem:[%s1825 + $0x88] sm:$0xff] %vm1471, %v1764
      %1844 = vst.msk [vmem:[%s1825 + $0x90] sm:$0xff] %vm1471, %v1766
      %1845 = vst.msk [vmem:[%s1825 + $0x98] sm:$0xff] %vm1471, %v1768
      %1846 = vst.msk [vmem:[%s1825 + $0xa0] sm:$0xff] %vm1471, %v1770
      %1847 = vst.msk [vmem:[%s1825 + $0xa8] sm:$0xff] %vm1471, %v1772
      %1848 = vst.msk [vmem:[%s1825 + $0xb0] sm:$0xff] %vm1471, %v1774
      %1849 = vst.msk [vmem:[%s1825 + $0xb8] sm:$0xff] %vm1471, %v1776
      %1850 = vst.msk [vmem:[%s1825 + $0xc0] sm:$0xff] %vm1471, %v1778
      %1851 = vst.msk [vmem:[%s1825 + $0xc8] sm:$0xff] %vm1471, %v1780
      %1852 = vst.msk [vmem:[%s1825 + $0xd0] sm:$0xff] %vm1471, %v1782
      %1853 = vst.msk [vmem:[%s1825 + $0xd8] sm:$0xff] %vm1471, %v1784
      %1854 = vst.msk [vmem:[%s1825 + $0xe0] sm:$0xff] %vm1471, %v1786
      %1855 = vst.msk [vmem:[%s1825 + $0xe8] sm:$0xff] %vm1471, %v1788
      %1856 = vst.msk [vmem:[%s1825 + $0xf0] sm:$0xff] %vm1471, %v1790
      %1857 = vst.msk [vmem:[%s1825 + $0xf8] sm:$0xff] %vm1471, %v1792
      %1858 = vrot.lane.b32.xlu0 %v479, 112
      %v1859 = vpop.permute.xlu0 %1858
      %1860 = vrot.lane.b32.xlu0 %v482, 112
      %v1861 = vpop.permute.xlu0 %1860
      %1862 = vrot.lane.b32.xlu0 %v487, 112
      %v1863 = vpop.permute.xlu0 %1862
      %1864 = vrot.lane.b32.xlu0 %v490, 112
      %v1865 = vpop.permute.xlu0 %1864
      %1866 = vrot.lane.b32.xlu0 %v495, 112
      %v1867 = vpop.permute.xlu0 %1866
      %1868 = vrot.lane.b32.xlu0 %v498, 112
      %v1869 = vpop.permute.xlu0 %1868
      %1870 = vrot.lane.b32.xlu0 %v503, 112
      %v1871 = vpop.permute.xlu0 %1870
      %1872 = vrot.lane.b32.xlu0 %v506, 112
      %v1873 = vpop.permute.xlu0 %1872
      %1874 = vrot.lane.b32.xlu0 %v511, 112
      %v1875 = vpop.permute.xlu0 %1874
      %1876 = vrot.lane.b32.xlu0 %v514, 112
      %v1877 = vpop.permute.xlu0 %1876
      %1878 = vrot.lane.b32.xlu0 %v519, 112
      %v1879 = vpop.permute.xlu0 %1878
      %1880 = vrot.lane.b32.xlu0 %v522, 112
      %v1881 = vpop.permute.xlu0 %1880
      %1882 = vrot.lane.b32.xlu0 %v527, 112
      %v1883 = vpop.permute.xlu0 %1882
      %1884 = vrot.lane.b32.xlu0 %v530, 112
      %v1885 = vpop.permute.xlu0 %1884
      %1886 = vrot.lane.b32.xlu0 %v535, 112
      %v1887 = vpop.permute.xlu0 %1886
      %1888 = vrot.lane.b32.xlu0 %v538, 112
      %v1889 = vpop.permute.xlu0 %1888
      %1890 = vrot.lane.b32.xlu0 %v543, 112
      %v1891 = vpop.permute.xlu0 %1890
      %1892 = vrot.lane.b32.xlu0 %v546, 112
      %v1893 = vpop.permute.xlu0 %1892
      %1894 = vrot.lane.b32.xlu0 %v551, 112
      %v1895 = vpop.permute.xlu0 %1894
      %1896 = vrot.lane.b32.xlu0 %v554, 112
      %v1897 = vpop.permute.xlu0 %1896
      %1898 = vrot.lane.b32.xlu0 %v559, 112
      %v1899 = vpop.permute.xlu0 %1898
      %1900 = vrot.lane.b32.xlu0 %v562, 112
      %v1901 = vpop.permute.xlu0 %1900
      %1902 = vrot.lane.b32.xlu0 %v567, 112
      %v1903 = vpop.permute.xlu0 %1902
      %1904 = vrot.lane.b32.xlu0 %v570, 112
      %v1905 = vpop.permute.xlu0 %1904
      %1906 = vrot.lane.b32.xlu0 %v575, 112
      %v1907 = vpop.permute.xlu0 %1906
      %1908 = vrot.lane.b32.xlu0 %v578, 112
      %v1909 = vpop.permute.xlu0 %1908
      %1910 = vrot.lane.b32.xlu0 %v583, 112
      %v1911 = vpop.permute.xlu0 %1910
      %1912 = vrot.lane.b32.xlu0 %v586, 112
      %v1913 = vpop.permute.xlu0 %1912
      %1914 = vrot.lane.b32.xlu0 %v591, 112
      %v1915 = vpop.permute.xlu0 %1914
      %1916 = vrot.lane.b32.xlu0 %v594, 112
      %v1917 = vpop.permute.xlu0 %1916
      %1918 = vrot.lane.b32.xlu0 %v599, 112
      %v1919 = vpop.permute.xlu0 %1918
      %1920 = vrot.lane.b32.xlu0 %v602, 112
      %v1921 = vpop.permute.xlu0 %1920
      %s1954 = scalar_lea.vmem %s249, 512
      %1955 = vst.msk [vmem:[%s1954] sm:$0xff] %vm1471, %v1859
      %1956 = vst.msk [vmem:[%s1954 + $0x8] sm:$0xff] %vm1471, %v1861
      %1957 = vst.msk [vmem:[%s1954 + $0x10] sm:$0xff] %vm1471, %v1863
      %1958 = vst.msk [vmem:[%s1954 + $0x18] sm:$0xff] %vm1471, %v1865
      %1959 = vst.msk [vmem:[%s1954 + $0x20] sm:$0xff] %vm1471, %v1867
      %1960 = vst.msk [vmem:[%s1954 + $0x28] sm:$0xff] %vm1471, %v1869
      %1961 = vst.msk [vmem:[%s1954 + $0x30] sm:$0xff] %vm1471, %v1871
      %1962 = vst.msk [vmem:[%s1954 + $0x38] sm:$0xff] %vm1471, %v1873
      %1963 = vst.msk [vmem:[%s1954 + $0x40] sm:$0xff] %vm1471, %v1875
      %1964 = vst.msk [vmem:[%s1954 + $0x48] sm:$0xff] %vm1471, %v1877
      %1965 = vst.msk [vmem:[%s1954 + $0x50] sm:$0xff] %vm1471, %v1879
      %1966 = vst.msk [vmem:[%s1954 + $0x58] sm:$0xff] %vm1471, %v1881
      %1967 = vst.msk [vmem:[%s1954 + $0x60] sm:$0xff] %vm1471, %v1883
      %1968 = vst.msk [vmem:[%s1954 + $0x68] sm:$0xff] %vm1471, %v1885
      %1969 = vst.msk [vmem:[%s1954 + $0x70] sm:$0xff] %vm1471, %v1887
      %1970 = vst.msk [vmem:[%s1954 + $0x78] sm:$0xff] %vm1471, %v1889
      %1971 = vst.msk [vmem:[%s1954 + $0x80] sm:$0xff] %vm1471, %v1891
      %1972 = vst.msk [vmem:[%s1954 + $0x88] sm:$0xff] %vm1471, %v1893
      %1973 = vst.msk [vmem:[%s1954 + $0x90] sm:$0xff] %vm1471, %v1895
      %1974 = vst.msk [vmem:[%s1954 + $0x98] sm:$0xff] %vm1471, %v1897
      %1975 = vst.msk [vmem:[%s1954 + $0xa0] sm:$0xff] %vm1471, %v1899
      %1976 = vst.msk [vmem:[%s1954 + $0xa8] sm:$0xff] %vm1471, %v1901
      %1977 = vst.msk [vmem:[%s1954 + $0xb0] sm:$0xff] %vm1471, %v1903
      %1978 = vst.msk [vmem:[%s1954 + $0xb8] sm:$0xff] %vm1471, %v1905
      %1979 = vst.msk [vmem:[%s1954 + $0xc0] sm:$0xff] %vm1471, %v1907
      %1980 = vst.msk [vmem:[%s1954 + $0xc8] sm:$0xff] %vm1471, %v1909
      %1981 = vst.msk [vmem:[%s1954 + $0xd0] sm:$0xff] %vm1471, %v1911
      %1982 = vst.msk [vmem:[%s1954 + $0xd8] sm:$0xff] %vm1471, %v1913
      %1983 = vst.msk [vmem:[%s1954 + $0xe0] sm:$0xff] %vm1471, %v1915
      %1984 = vst.msk [vmem:[%s1954 + $0xe8] sm:$0xff] %vm1471, %v1917
      %1985 = vst.msk [vmem:[%s1954 + $0xf0] sm:$0xff] %vm1471, %v1919
      %1986 = vst.msk [vmem:[%s1954 + $0xf8] sm:$0xff] %vm1471, %v1921
      %1987 = vrot.lane.b32.xlu0 %v1439, 112
      %v1988 = vpop.permute.xlu0 %1987
      %1989 = vrot.lane.b32.xlu0 %v1440, 112
      %v1990 = vpop.permute.xlu0 %1989
      %1991 = vrot.lane.b32.xlu0 %v1441, 112
      %v1992 = vpop.permute.xlu0 %1991
      %1993 = vrot.lane.b32.xlu0 %v1442, 112
      %v1994 = vpop.permute.xlu0 %1993
      %1995 = vrot.lane.b32.xlu0 %v1443, 112
      %v1996 = vpop.permute.xlu0 %1995
      %1997 = vrot.lane.b32.xlu0 %v1444, 112
      %v1998 = vpop.permute.xlu0 %1997
      %1999 = vrot.lane.b32.xlu0 %v1445, 112
      %v2000 = vpop.permute.xlu0 %1999
      %2001 = vrot.lane.b32.xlu0 %v1446, 112
      %v2002 = vpop.permute.xlu0 %2001
      %2003 = vrot.lane.b32.xlu0 %v1447, 112
      %v2004 = vpop.permute.xlu0 %2003
      %2005 = vrot.lane.b32.xlu0 %v1448, 112
      %v2006 = vpop.permute.xlu0 %2005
      %2007 = vrot.lane.b32.xlu0 %v1449, 112
      %v2008 = vpop.permute.xlu0 %2007
      %2009 = vrot.lane.b32.xlu0 %v1450, 112
      %v2010 = vpop.permute.xlu0 %2009
      %2011 = vrot.lane.b32.xlu0 %v1451, 112
      %v2012 = vpop.permute.xlu0 %2011
      %2013 = vrot.lane.b32.xlu0 %v1452, 112
      %v2014 = vpop.permute.xlu0 %2013
      %2015 = vrot.lane.b32.xlu0 %v1453, 112
      %v2016 = vpop.permute.xlu0 %2015
      %2017 = vrot.lane.b32.xlu0 %v1454, 112
      %v2018 = vpop.permute.xlu0 %2017
      %2019 = vrot.lane.b32.xlu0 %v1455, 112
      %v2020 = vpop.permute.xlu0 %2019
      %2021 = vrot.lane.b32.xlu0 %v1456, 112
      %v2022 = vpop.permute.xlu0 %2021
      %2023 = vrot.lane.b32.xlu0 %v1457, 112
      %v2024 = vpop.permute.xlu0 %2023
      %2025 = vrot.lane.b32.xlu0 %v1458, 112
      %v2026 = vpop.permute.xlu0 %2025
      %2027 = vrot.lane.b32.xlu0 %v1459, 112
      %v2028 = vpop.permute.xlu0 %2027
      %2029 = vrot.lane.b32.xlu0 %v1460, 112
      %v2030 = vpop.permute.xlu0 %2029
      %2031 = vrot.lane.b32.xlu0 %v1461, 112
      %v2032 = vpop.permute.xlu0 %2031
      %2033 = vrot.lane.b32.xlu0 %v1462, 112
      %v2034 = vpop.permute.xlu0 %2033
      %2035 = vrot.lane.b32.xlu0 %v1463, 112
      %v2036 = vpop.permute.xlu0 %2035
      %2037 = vrot.lane.b32.xlu0 %v1464, 112
      %v2038 = vpop.permute.xlu0 %2037
      %2039 = vrot.lane.b32.xlu0 %v1465, 112
      %v2040 = vpop.permute.xlu0 %2039
      %2041 = vrot.lane.b32.xlu0 %v1466, 112
      %v2042 = vpop.permute.xlu0 %2041
      %2043 = vrot.lane.b32.xlu0 %v1467, 112
      %v2044 = vpop.permute.xlu0 %2043
      %2045 = vrot.lane.b32.xlu0 %v1468, 112
      %v2046 = vpop.permute.xlu0 %2045
      %2047 = vrot.lane.b32.xlu0 %v1469, 112
      %v2048 = vpop.permute.xlu0 %2047
      %2049 = vrot.lane.b32.xlu0 %v1470, 112
      %v2050 = vpop.permute.xlu0 %2049
      %s2083 = scalar_lea.vmem %s259, 512
      %2084 = vst.msk [vmem:[%s2083] sm:$0xff] %vm1471, %v1988
      %2085 = vst.msk [vmem:[%s2083 + $0x8] sm:$0xff] %vm1471, %v1990
      %2086 = vst.msk [vmem:[%s2083 + $0x10] sm:$0xff] %vm1471, %v1992
      %2087 = vst.msk [vmem:[%s2083 + $0x18] sm:$0xff] %vm1471, %v1994
      %2088 = vst.msk [vmem:[%s2083 + $0x20] sm:$0xff] %vm1471, %v1996
      %2089 = vst.msk [vmem:[%s2083 + $0x28] sm:$0xff] %vm1471, %v1998
      %2090 = vst.msk [vmem:[%s2083 + $0x30] sm:$0xff] %vm1471, %v2000
      %2091 = vst.msk [vmem:[%s2083 + $0x38] sm:$0xff] %vm1471, %v2002
      %2092 = vst.msk [vmem:[%s2083 + $0x40] sm:$0xff] %vm1471, %v2004
      %2093 = vst.msk [vmem:[%s2083 + $0x48] sm:$0xff] %vm1471, %v2006
      %2094 = vst.msk [vmem:[%s2083 + $0x50] sm:$0xff] %vm1471, %v2008
      %2095 = vst.msk [vmem:[%s2083 + $0x58] sm:$0xff] %vm1471, %v2010
      %2096 = vst.msk [vmem:[%s2083 + $0x60] sm:$0xff] %vm1471, %v2012
      %2097 = vst.msk [vmem:[%s2083 + $0x68] sm:$0xff] %vm1471, %v2014
      %2098 = vst.msk [vmem:[%s2083 + $0x70] sm:$0xff] %vm1471, %v2016
      %2099 = vst.msk [vmem:[%s2083 + $0x78] sm:$0xff] %vm1471, %v2018
      %2100 = vst.msk [vmem:[%s2083 + $0x80] sm:$0xff] %vm1471, %v2020
      %2101 = vst.msk [vmem:[%s2083 + $0x88] sm:$0xff] %vm1471, %v2022
      %2102 = vst.msk [vmem:[%s2083 + $0x90] sm:$0xff] %vm1471, %v2024
      %2103 = vst.msk [vmem:[%s2083 + $0x98] sm:$0xff] %vm1471, %v2026
      %2104 = vst.msk [vmem:[%s2083 + $0xa0] sm:$0xff] %vm1471, %v2028
      %2105 = vst.msk [vmem:[%s2083 + $0xa8] sm:$0xff] %vm1471, %v2030
      %2106 = vst.msk [vmem:[%s2083 + $0xb0] sm:$0xff] %vm1471, %v2032
      %2107 = vst.msk [vmem:[%s2083 + $0xb8] sm:$0xff] %vm1471, %v2034
      %2108 = vst.msk [vmem:[%s2083 + $0xc0] sm:$0xff] %vm1471, %v2036
      %2109 = vst.msk [vmem:[%s2083 + $0xc8] sm:$0xff] %vm1471, %v2038
      %2110 = vst.msk [vmem:[%s2083 + $0xd0] sm:$0xff] %vm1471, %v2040
      %2111 = vst.msk [vmem:[%s2083 + $0xd8] sm:$0xff] %vm1471, %v2042
      %2112 = vst.msk [vmem:[%s2083 + $0xe0] sm:$0xff] %vm1471, %v2044
      %2113 = vst.msk [vmem:[%s2083 + $0xe8] sm:$0xff] %vm1471, %v2046
      %2114 = vst.msk [vmem:[%s2083 + $0xf0] sm:$0xff] %vm1471, %v2048
      %2115 = vst.msk [vmem:[%s2083 + $0xf8] sm:$0xff] %vm1471, %v2050
      %s2116 = smul.u32 32, %s21
      %p2117 = scmp.lt.s32.totalorder %s20, 1
      %s2118 = scalar_select %p2117, %s20, 1
      %p2119 = scmp.lt.s32.totalorder %s2116, 31
      %s2120 = scalar_select %p2119, %s2116, 31
      %s2121 = smul.addr %s2118, 96
      %s2122 = sadd.s32 %s2120, %s2121
      %s2123 = smul.addr %s2122, 8
      %s2124 = scalar_lea.vmem %s3, %s2123
      %s2125 = smul.u32 32, %s21
      %p2126 = scmp.lt.s32.totalorder %s20, 1
      %s2127 = scalar_select %p2126, %s20, 1
      %p2128 = scmp.lt.s32.totalorder %s2125, 31
      %s2129 = scalar_select %p2128, %s2125, 31
      %s2130 = smul.addr %s2127, 96
      %s2131 = sadd.s32 %s2129, %s2130
      %s2132 = smul.addr %s2131, 8
      %s2133 = scalar_lea.vmem %s4, %s2132
      // Predicated region
      $region33: #{_lambda_.10} parent=31 // pred_check
        %p2134 = pneg %p118
      $region34: #{_lambda_.10} parent=31 // pred_check_branch
        %2136 = sbr.rel (%p2134) target = $region36
      $region35: #{_lambda_.10} parent=31 // pred_region
        %s2137 = smul.u32 32, %s21
      $region36: #{_lambda_.10} parent=31 // pred_fallthru
        _
      // Predicated region
      $region37: #{_lambda_.10} parent=31 // pred_check
        %p2138 = pneg %p146
      $region38: #{_lambda_.10} parent=31 // pred_check_branch
        %2140 = sbr.rel (%p2138) target = $region40
      $region39: #{_lambda_.10} parent=31 // pred_region
        %s2141 = smul.u32 32, %s21
      $region40: #{_lambda_.10} parent=31 // pred_fallthru
        _
    $region32: #{_lambda_.10} parent=5 // pred_fallthru
      _
    %p2142 = scmp.le.s32.totalorder 2, %s11
    // Predicated region
    $region41: #{_lambda_.10} parent=5 // pred_check
      %p2143 = pneg %p2142
    $region42: #{_lambda_.10} parent=5 // pred_check_branch
      %2145 = sbr.rel (%p2143) target = $region44
    $region43: #{_lambda_.10} parent=5 // pred_region
      %s2146 = ssub.s32 %s11, 2
      // Predicated region
      $region45: #{_lambda_.10} parent=43 // pred_check
        %p2147 = pneg %p124
      $region46: #{_lambda_.10} parent=43 // pred_check_branch
        %2149 = sbr.rel (%p2147) target = $region48
      $region47: #{_lambda_.10} parent=43 // pred_region
        %s2150 = smul.u32 32, %s23
        %p2151 = scmp.lt.s32.totalorder %s22, 1
        %s2152 = scalar_select %p2151, %s22, 1
        %p2153 = scmp.lt.s32.totalorder %s2150, 31
        %s2154 = scalar_select %p2153, %s2150, 31
        %s2155 = smul.addr %s2152, 96
        %s2156 = sadd.s32 %s2154, %s2155
        %s2157 = smul.addr %s2156, 8
        %s2158 = scalar_lea.vmem %s3, %s2157
      $region48: #{_lambda_.10} parent=43 // pred_fallthru
        _
      // Predicated region
      $region49: #{_lambda_.10} parent=43 // pred_check
        %p2159 = pneg %p152
      $region50: #{_lambda_.10} parent=43 // pred_check_branch
        %2161 = sbr.rel (%p2159) target = $region52
      $region51: #{_lambda_.10} parent=43 // pred_region
        %s2162 = smul.u32 32, %s23
        %p2163 = scmp.lt.s32.totalorder %s22, 1
        %s2164 = scalar_select %p2163, %s22, 1
        %p2165 = scmp.lt.s32.totalorder %s2162, 31
        %s2166 = scalar_select %p2165, %s2162, 31
        %s2167 = smul.addr %s2164, 96
        %s2168 = sadd.s32 %s2166, %s2167
        %s2169 = smul.addr %s2168, 8
        %s2170 = scalar_lea.vmem %s4, %s2169
      $region52: #{_lambda_.10} parent=43 // pred_fallthru
        _
    $region44: #{_lambda_.10} parent=5 // pred_fallthru
      _
  $region6: #{_lambda_.10} parent=0 // loop_footer
    %s15 = sadd.s32 1, %s11
  $region7: #{_lambda_.10} parent=0 // loop_footer_branch
    %10 = sbr.rel target = $region3
  $region8: #{_lambda_.10} parent=0 // loop_exit
    _

// kernel: _lambda_.9
$region0: #{_lambda_.9}
  #allocation0 [shape = 'u32[]', space=smem, size = 0x4, offset = 0x4, fixed_abs, tag = 'smem constant byte address 0x4 - core index']
  #allocation1 [shape = 'u32[144,128]{1,0:T(1,128)}', space=vmem, size = 0x12000, scoped, tag = 'internal scratch']
  %s0 = inlined_call_operand.vmem [shape: bf16[2,1024,16], index: 0, kind: input, shape index: {}]
  %s1 = inlined_call_operand.vmem [shape: bf16[16,24], index: 1, kind: input, shape index: {}]
  %s2 = inlined_call_operand.vmem [shape: f32[8,24], index: 2, kind: input, shape index: {}]
  %s3 = inlined_call_operand.vmem [shape: f32[2,3,1024,8], index: 3, kind: output, shape index: {0}]
  %s4 = inlined_call_operand.vmem [shape: f32[2,3,1024,8], index: 4, kind: output, shape index: {1}]
  %5 = xla_tuple %s3, %s4
  %s6 = sld [smem:[#allocation0]]
  $region121: #{_lambda_.9} parent=0
    _
  %s8 = ssub.s32 1, %s6
  %s9 = scalar_select 0, %s8, %s6
  $region1: #{_lambda_.9} parent=0
    #allocation2 [shape = 'u8[786432]{0}', space=vmem, size = 0xc0000, scoped, tag = 'output window, operand 0']
    #allocation3 [shape = 'u8[786432]{0}', space=vmem, size = 0xc0000, scoped, tag = 'output window, operand 1']
    loop: start=0, step=1, limit=10
    $region2: #{_lambda_.9} parent=1 // loop_pre_header
      _
    $region3: #{_lambda_.9} parent=1 // loop_header
      %s11 = sphi 0, %s15
      %p12 = scmp.ge.s32.totalorder %s11, 10
      %s18 = sphi 0, %s30
      %s19 = sphi 0, %s26
      %s20 = sphi 0, %s18
      %s21 = sphi 0, %s19
      %s22 = sphi 0, %s20
      %s23 = sphi 0, %s21
      %s35 = sphi 0, %s37
      %s38 = sphi 0, %s35
      %s39 = sphi 0, %s38
      %s55 = sphi 0, %s39
      %s59 = sphi 0, %s59
      %s61 = sphi 0, %s59
      %s62 = sphi 0, %s61
      %s76 = sphi 0, %s62
      %s80 = sphi 0, %s80
      %s82 = sphi 0, %s80
      %s83 = sphi 0, %s82
      %s97 = sphi 0, %s83
      %s105 = sphi 0, %s107
      %s108 = sphi 0, %s105
      %s109 = sphi 0, %s108
      %s125 = sphi 0, %s109
      %s133 = sphi 0, %s135
      %s136 = sphi 0, %s133
      %s137 = sphi 0, %s136
      %s153 = sphi 0, %s137
    $region4: #{_lambda_.9} parent=1 // loop_header_branch
      %14 = sbr.rel (%p12) target = $region8
    $region5: #{_lambda_.9} parent=1 // loop_body
      %s16 = ssub.s32 %s11, 1
      %s17 = ssub.s32 %s11, 2
      %s24 = sadd.s32 1, %s19
      %p25 = scmp.ge.s32.totalorder %s24, 4
      %s26 = scalar_select %p25, 0, %s24
      %s27 = sadd.s32 1, %s18
      %s28 = scalar_select %p25, %s27, %s18
      %p29 = scmp.ge.s32.totalorder %s28, 2
      %s30 = scalar_select %p29, 0, %s28
      %s31 = ssub.s32 %s18, %s30
      %s32 = ssub.s32 %s19, %s26
      %s33 = sor.u32 %s31, %s32
      %p34 = scmp.eq.s32.totalorder %s33, 0
      %s36 = sadd.s32 %s35, 1
      %s37 = scalar_select %p34, %s35, %s36
      %p40 = pneg %p34
      %p41 = scmp.eq.s32.totalorder %s11, 7
      %p42 = por %p40, %p41
      %p43 = scmp.ne.s32.totalorder %s35, %s38
      %p44 = scmp.eq.s32.totalorder %s11, 0
      %p45 = por %p43, %p44
      %p46 = scmp.ne.s32.totalorder %s35, %s38
      %p47 = scmp.eq.s32.totalorder %s16, 7
      %p48 = por %p46, %p47
      %p49 = scmp.ne.s32.totalorder %s38, %s39
      %p50 = scmp.eq.s32.totalorder %s16, 0
      %p51 = por %p49, %p50
      %p52 = scmp.ne.s32.totalorder %s38, %s39
      %p53 = scmp.eq.s32.totalorder %s17, 7
      %p54 = por %p52, %p53
      %p56 = scmp.ne.s32.totalorder %s39, %s55
      %p57 = scmp.eq.s32.totalorder %s17, 0
      %p58 = por %p56, %p57
      %s60 = sadd.s32 %s59, 1
      %p63 = scmp.eq.s32.totalorder %s11, 7
      %p64 = scmp.ne.s32.totalorder %s59, %s61
      %p65 = scmp.eq.s32.totalorder %s11, 0
      %p66 = por %p64, %p65
      %p67 = scmp.ne.s32.totalorder %s59, %s61
      %p68 = scmp.eq.s32.totalorder %s16, 7
      %p69 = por %p67, %p68
      %p70 = scmp.ne.s32.totalorder %s61, %s62
      %p71 = scmp.eq.s32.totalorder %s16, 0
      %p72 = por %p70, %p71
      %p73 = scmp.ne.s32.totalorder %s61, %s62
      %p74 = scmp.eq.s32.totalorder %s17, 7
      %p75 = por %p73, %p74
      %p77 = scmp.ne.s32.totalorder %s62, %s76
      %p78 = scmp.eq.s32.totalorder %s17, 0
      %p79 = por %p77, %p78
      %s81 = sadd.s32 %s80, 1
      %p84 = scmp.eq.s32.totalorder %s11, 7
      %p85 = scmp.ne.s32.totalorder %s80, %s82
      %p86 = scmp.eq.s32.totalorder %s11, 0
      %p87 = por %p85, %p86
      %p88 = scmp.ne.s32.totalorder %s80, %s82
      %p89 = scmp.eq.s32.totalorder %s16, 7
      %p90 = por %p88, %p89
      %p91 = scmp.ne.s32.totalorder %s82, %s83
      %p92 = scmp.eq.s32.totalorder %s16, 0
      %p93 = por %p91, %p92
      %p94 = scmp.ne.s32.totalorder %s82, %s83
      %p95 = scmp.eq.s32.totalorder %s17, 7
      %p96 = por %p94, %p95
      %p98 = scmp.ne.s32.totalorder %s83, %s97
      %p99 = scmp.eq.s32.totalorder %s17, 0
      %p100 = por %p98, %p99
      %s101 = ssub.s32 %s18, %s30
      %s102 = ssub.s32 %s19, %s26
      %s103 = sor.u32 %s101, %s102
      %p104 = scmp.eq.s32.totalorder %s103, 0
      %s106 = sadd.s32 %s105, 1
      %s107 = scalar_select %p104, %s105, %s106
      %p110 = pneg %p104
      %p111 = scmp.eq.s32.totalorder %s11, 7
      %p112 = por %p110, %p111
      %p113 = scmp.ne.s32.totalorder %s105, %s108
      %p114 = scmp.eq.s32.totalorder %s11, 0
      %p115 = por %p113, %p114
      %p116 = scmp.ne.s32.totalorder %s105, %s108
      %p117 = scmp.eq.s32.totalorder %s16, 7
      %p118 = por %p116, %p117
      %p119 = scmp.ne.s32.totalorder %s108, %s109
      %p120 = scmp.eq.s32.totalorder %s16, 0
      %p121 = por %p119, %p120
      %p122 = scmp.ne.s32.totalorder %s108, %s109
      %p123 = scmp.eq.s32.totalorder %s17, 7
      %p124 = por %p122, %p123
      %p126 = scmp.ne.s32.totalorder %s109, %s125
      %p127 = scmp.eq.s32.totalorder %s17, 0
      %p128 = por %p126, %p127
      %s129 = ssub.s32 %s18, %s30
      %s130 = ssub.s32 %s19, %s26
      %s131 = sor.u32 %s129, %s130
      %p132 = scmp.eq.s32.totalorder %s131, 0
      %s134 = sadd.s32 %s133, 1
      %s135 = scalar_select %p132, %s133, %s134
      %p138 = pneg %p132
      %p139 = scmp.eq.s32.totalorder %s11, 7
      %p140 = por %p138, %p139
      %p141 = scmp.ne.s32.totalorder %s133, %s136
      %p142 = scmp.eq.s32.totalorder %s11, 0
      %p143 = por %p141, %p142
      %p144 = scmp.ne.s32.totalorder %s133, %s136
      %p145 = scmp.eq.s32.totalorder %s16, 7
      %p146 = por %p144, %p145
      %p147 = scmp.ne.s32.totalorder %s136, %s137
      %p148 = scmp.eq.s32.totalorder %s16, 0
      %p149 = por %p147, %p148
      %p150 = scmp.ne.s32.totalorder %s136, %s137
      %p151 = scmp.eq.s32.totalorder %s17, 7
      %p152 = por %p150, %p151
      %p154 = scmp.ne.s32.totalorder %s137, %s153
      %p155 = scmp.eq.s32.totalorder %s17, 0
      %p156 = por %p154, %p155
      %p157 = scmp.le.s32.totalorder 1, %s11
      %p158 = scmp.lt.s32.totalorder %s11, 9
      %p159 = pnand %p157, %p158
      %p160 = pneg %p159
      // Predicated region
      $region9: #{_lambda_.9} parent=5 // pred_check
        _
      $region10: #{_lambda_.9} parent=5 // pred_check_branch
        %162 = sbr.rel (%p159) target = $region12
      $region11: #{_lambda_.9} parent=5 // pred_region
        %s163 = ssub.s32 %s11, 1
        // Predicated region
        $region13: #{_lambda_.9} parent=11 // pred_check
          %p164 = pneg %p72
        $region14: #{_lambda_.9} parent=11 // pred_check_branch
          %166 = sbr.rel (%p164) target = $region16
        $region15: #{_lambda_.9} parent=11 // pred_region
          _
        $region16: #{_lambda_.9} parent=11 // pred_fallthru
          _
        // Predicated region
        $region17: #{_lambda_.9} parent=11 // pred_check
          %p167 = pneg %p93
        $region18: #{_lambda_.9} parent=11 // pred_check_branch
          %169 = sbr.rel (%p167) target = $region20
        $region19: #{_lambda_.9} parent=11 // pred_region
          _
        $region20: #{_lambda_.9} parent=11 // pred_fallthru
          _
      $region12: #{_lambda_.9} parent=5 // pred_fallthru
        _
      %p170 = scmp.lt.s32.totalorder %s11, 8
      // Predicated region
      $region21: #{_lambda_.9} parent=5 // pred_check
        %p171 = pneg %p170
      $region22: #{_lambda_.9} parent=5 // pred_check_branch
        %173 = sbr.rel (%p171) target = $region24
      $region23: #{_lambda_.9} parent=5 // pred_region
        // Predicated region
        $region25: #{_lambda_.9} parent=23 // pred_check
          %p174 = pneg %p45
        $region26: #{_lambda_.9} parent=23 // pred_check_branch
          %176 = sbr.rel (%p174) target = $region28
        $region27: #{_lambda_.9} parent=23 // pred_region
          %s177 = smul.u32 32, %s19
          %p178 = scmp.lt.s32.totalorder %s18, 1
          %s179 = scalar_select %p178, %s18, 1
          %p180 = scmp.lt.s32.totalorder %s177, 127
          %s181 = scalar_select %p180, %s177, 127
          %s182 = smul.addr %s179, 128
          %s183 = sadd.s32 %s181, %s182
          %s184 = smul.addr %s183, 4
          %s185 = scalar_lea.vmem %s0, %s184
          %s186 = smul.u32 32, %s19
        $region28: #{_lambda_.9} parent=23 // pred_fallthru
          _
      $region24: #{_lambda_.9} parent=5 // pred_fallthru
        _
      %p187 = scmp.le.s32.totalorder 1, %s11
      %p188 = scmp.lt.s32.totalorder %s11, 9
      %p189 = pnand %p187, %p188
      %p190 = pneg %p189
      // Predicated region
      $region29: #{_lambda_.9} parent=5 // pred_check
        _
      $region30: #{_lambda_.9} parent=5 // pred_check_branch
        %192 = sbr.rel (%p189) target = $region32
      $region31: #{_lambda_.9} parent=5 // pred_region
        %s193 = ssub.s32 %s11, 1
        %s194 = smul.u32 32, %s21
        %p195 = scmp.lt.s32.totalorder %s20, 1
        %s196 = scalar_select %p195, %s20, 1
        %p197 = scmp.lt.s32.totalorder %s194, 127
        %s198 = scalar_select %p197, %s194, 127
        %s199 = smul.addr %s196, 128
        %s200 = sadd.s32 %s198, %s199
        %s201 = smul.addr %s200, 4
        %s202 = scalar_lea.vmem %s0, %s201
        %p203 = pneg %p51
        %p204 = pneg %p48
        %p205 = pneg %p72
        %p206 = pneg %p69
        %p207 = pneg %p93
        %p208 = pneg %p90
        %p209 = pneg %p121
        %p210 = pneg %p118
        %s211 = sand.u32 %s108, 1
        %s212 = sand.u32 %s108, 1
        %s213 = smul.addr %s212, 768
        %s214 = scalar_lea.vmem [#allocation2], %s213
        %p215 = pneg %p149
        %p216 = pneg %p146
        %s217 = sand.u32 %s136, 1
        %s218 = sand.u32 %s136, 1
        %s219 = smul.addr %s218, 768
        %s220 = scalar_lea.vmem [#allocation3], %s219
        %s221 = smul.u32 32, %s21
        %p222 = scmp.lt.s32.totalorder %s20, 1
        %s223 = scalar_select %p222, %s20, 1
        %p224 = scmp.lt.s32.totalorder %s221, 127
        %s225 = scalar_select %p224, %s221, 127
        %s226 = smul.addr %s223, 128
        %s227 = sadd.s32 %s225, %s226
        %s228 = smul.addr %s227, 4
        %s229 = scalar_lea.vmem %s0, %s228
        %s230 = smul.u32 32, %s21
        %s231 = smul.u32 32, %s21
        %s232 = smul.u32 32, %s21
        %v234 = vld [vmem:[%s229] sm:$0xf]
        %v235 = vld [vmem:[%s229 + $0x4] sm:$0xf]
        %v236 = vld [vmem:[%s229 + $0x8] sm:$0xf]
        %v237 = vld [vmem:[%s229 + $0xc] sm:$0xf]
        %v238 = vld [vmem:[%s229 + $0x10] sm:$0xf]
        %v239 = vld [vmem:[%s229 + $0x14] sm:$0xf]
        %v240 = vld [vmem:[%s229 + $0x18] sm:$0xf]
        %v241 = vld [vmem:[%s229 + $0x1c] sm:$0xf]
        %v242 = vld [vmem:[%s229 + $0x20] sm:$0xf]
        %v243 = vld [vmem:[%s229 + $0x24] sm:$0xf]
        %v244 = vld [vmem:[%s229 + $0x28] sm:$0xf]
        %v245 = vld [vmem:[%s229 + $0x2c] sm:$0xf]
        %v246 = vld [vmem:[%s229 + $0x30] sm:$0xf]
        %v247 = vld [vmem:[%s229 + $0x34] sm:$0xf]
        %v248 = vld [vmem:[%s229 + $0x38] sm:$0xf]
        %v249 = vld [vmem:[%s229 + $0x3c] sm:$0xf]
        %v250 = vld [vmem:[%s229 + $0x40] sm:$0xf]
        %v251 = vld [vmem:[%s229 + $0x44] sm:$0xf]
        %v252 = vld [vmem:[%s229 + $0x48] sm:$0xf]
        %v253 = vld [vmem:[%s229 + $0x4c] sm:$0xf]
        %v254 = vld [vmem:[%s229 + $0x50] sm:$0xf]
        %v255 = vld [vmem:[%s229 + $0x54] sm:$0xf]
        %v256 = vld [vmem:[%s229 + $0x58] sm:$0xf]
        %v257 = vld [vmem:[%s229 + $0x5c] sm:$0xf]
        %v258 = vld [vmem:[%s229 + $0x60] sm:$0xf]
        %v259 = vld [vmem:[%s229 + $0x64] sm:$0xf]
        %v260 = vld [vmem:[%s229 + $0x68] sm:$0xf]
        %v261 = vld [vmem:[%s229 + $0x6c] sm:$0xf]
        %v262 = vld [vmem:[%s229 + $0x70] sm:$0xf]
        %v263 = vld [vmem:[%s229 + $0x74] sm:$0xf]
        %v264 = vld [vmem:[%s229 + $0x78] sm:$0xf]
        %v265 = vld [vmem:[%s229 + $0x7c] sm:$0xf]
        %v266 = vld [vmem:[%s1] sm:$0xf]
        %v267 = vld [vmem:[%s1 + $0x4] sm:$0xf]
        %v268 = vld [vmem:[%s2] sm:$0x1]
        %v269 = vlaneseq
        %v270 = vshrl.u32 %v269, 7
        %v271 = vsub.s32 0, %v270
        %v272 = vrot.slane %v268, %v271
        %v305 = vunpack.c.l.b16 %v234
        %v306 = vunpack.c.l.b16 %v235
        %v307 = vunpack.c.l.b16 %v236
        %v308 = vunpack.c.l.b16 %v237
        %v309 = vunpack.c.l.b16 %v238
        %v310 = vunpack.c.l.b16 %v239
        %v311 = vunpack.c.l.b16 %v240
        %v312 = vunpack.c.l.b16 %v241
        %v313 = vunpack.c.l.b16 %v242
        %v314 = vunpack.c.l.b16 %v243
        %v315 = vunpack.c.l.b16 %v244
        %v316 = vunpack.c.l.b16 %v245
        %v317 = vunpack.c.l.b16 %v246
        %v318 = vunpack.c.l.b16 %v247
        %v319 = vunpack.c.l.b16 %v248
        %v320 = vunpack.c.l.b16 %v249
        %v321 = vunpack.c.l.b16 %v250
        %v322 = vunpack.c.l.b16 %v251
        %v323 = vunpack.c.l.b16 %v252
        %v324 = vunpack.c.l.b16 %v253
        %v325 = vunpack.c.l.b16 %v254
        %v326 = vunpack.c.l.b16 %v255
        %v327 = vunpack.c.l.b16 %v256
        %v328 = vunpack.c.l.b16 %v257
        %v329 = vunpack.c.l.b16 %v258
        %v330 = vunpack.c.l.b16 %v259
        %v331 = vunpack.c.l.b16 %v260
        %v332 = vunpack.c.l.b16 %v261
        %v333 = vunpack.c.l.b16 %v262
        %v334 = vunpack.c.l.b16 %v263
        %v335 = vunpack.c.l.b16 %v264
        %v336 = vunpack.c.l.b16 %v265
        %v337 = vpack.c.b16 %v306, %v305
        %v338 = vpack.c.b16 %v308, %v307
        %v339 = vpack.c.b16 %v310, %v309
        %v340 = vpack.c.b16 %v312, %v311
        %v341 = vpack.c.b16 %v314, %v313
        %v342 = vpack.c.b16 %v316, %v315
        %v343 = vpack.c.b16 %v318, %v317
        %v344 = vpack.c.b16 %v320, %v319
        %v345 = vpack.c.b16 %v322, %v321
        %v346 = vpack.c.b16 %v324, %v323
        %v347 = vpack.c.b16 %v326, %v325
        %v348 = vpack.c.b16 %v328, %v327
        %v349 = vpack.c.b16 %v330, %v329
        %v350 = vpack.c.b16 %v332, %v331
        %v351 = vpack.c.b16 %v334, %v333
        %v352 = vpack.c.b16 %v336, %v335
        %v355 = vunpack.c.l.b16 %v266
        %v356 = vunpack.c.l.b16 %v267
        %v357 = vpack.c.b16 %v356, %v355
        %vm359 = vcmask 130048
        %v361 = vsel %vm359, %v337, 0
        %v364 = vsel %vm359, %v338, 0
        %v367 = vsel %vm359, %v339, 0
        %v370 = vsel %vm359, %v340, 0
        %v373 = vsel %vm359, %v341, 0
        %v376 = vsel %vm359, %v342, 0
        %v379 = vsel %vm359, %v343, 0
        %v382 = vsel %vm359, %v344, 0
        %v385 = vsel %vm359, %v345, 0
        %v388 = vsel %vm359, %v346, 0
        %v391 = vsel %vm359, %v347, 0
        %v394 = vsel %vm359, %v348, 0
        %v397 = vsel %vm359, %v349, 0
        %v400 = vsel %vm359, %v350, 0
        %v403 = vsel %vm359, %v351, 0
        %v406 = vsel %vm359, %v352, 0
        %408 = vmatprep.subr.bf16.mxu0 0
        %409 = vmatpush1.bf16.msra.mxu0 %v357
        %410 = vmatprep.subr.bf16.mxu0 0
        %411 = vmatpush1.bf16.msra.mxu0 0
        %412 = vmatprep.subr.bf16.mxu0 0
        %413 = vmatpush1.bf16.msra.mxu0 0
        %414 = vmatprep.subr.bf16.mxu0 0
        %415 = vmatpush1.bf16.msra.mxu0 0
        %416 = vmatprep.subr.bf16.mxu0 0
        %417 = vmatpush1.bf16.msra.mxu0 0
        %418 = vmatprep.subr.bf16.mxu0 0
        %419 = vmatpush1.bf16.msra.mxu0 0
        %420 = vmatprep.subr.bf16.mxu0 0
        %421 = vmatpush1.bf16.msra.mxu0 0
        %422 = vmatprep.subr.bf16.mxu0 0
        %423 = vmatpush1.bf16.msra.mxu0 0
        %424 = vmatprep.subr.bf16.mxu0 0
        %425 = vmatpush1.bf16.msra.mxu0 0
        %426 = vmatprep.subr.bf16.mxu0 0
        %427 = vmatpush1.bf16.msra.mxu0 0
        %428 = vmatprep.subr.bf16.mxu0 0
        %429 = vmatpush1.bf16.msra.mxu0 0
        %430 = vmatprep.subr.bf16.mxu0 0
        %431 = vmatpush1.bf16.msra.mxu0 0
        %432 = vmatprep.subr.bf16.mxu0 0
        %433 = vmatpush1.bf16.msra.mxu0 0
        %434 = vmatprep.subr.bf16.mxu0 0
        %435 = vmatpush1.bf16.msra.mxu0 0
        %436 = vmatprep.subr.bf16.mxu0 0
        %437 = vmatpush1.bf16.msra.mxu0 0
        %438 = vmatprep.subr.bf16.mxu0 0
        %439 = vmatpush1.bf16.msra.mxu0 0
        %440 = vmatprep.mubr.bf16.mxu0 0
        %441 = vmatmul.mubr.bf16.gmra.mrb[0].mxu0 %v361
        %v442 = vpop.f32.mrb[0].mxu0
        %v443 = vadd.f32 %v272, %v442
        %v444 = vpop.f32.mrb[0].mxu0
        %v445 = vpop.f32.mrb[0].mxu0
        %v446 = vadd.f32 %v272, %v445
        %v447 = vpop.f32.mrb[0].mxu0
        %448 = vmatprep.mubr.bf16.mxu0 0
        %449 = vmatmul.mubr.bf16.gmra.mrb[0].mxu0 %v364
        %v450 = vpop.f32.mrb[0].mxu0
        %v451 = vadd.f32 %v272, %v450
        %v452 = vpop.f32.mrb[0].mxu0
        %v453 = vpop.f32.mrb[0].mxu0
        %v454 = vadd.f32 %v272, %v453
        %v455 = vpop.f32.mrb[0].mxu0
        %456 = vmatprep.mubr.bf16.mxu0 0
        %457 = vmatmul.mubr.bf16.gmra.mrb[0].mxu0 %v367
        %v458 = vpop.f32.mrb[0].mxu0
        %v459 = vadd.f32 %v272, %v458
        %v460 = vpop.f32.mrb[0].mxu0
        %v461 = vpop.f32.mrb[0].mxu0
        %v462 = vadd.f32 %v272, %v461
        %v463 = vpop.f32.mrb[0].mxu0
        %464 = vmatprep.mubr.bf16.mxu0 0
        %465 = vmatmul.mubr.bf16.gmra.mrb[0].mxu0 %v370
        %v466 = vpop.f32.mrb[0].mxu0
        %v467 = vadd.f32 %v272, %v466
        %v468 = vpop.f32.mrb[0].mxu0
        %v469 = vpop.f32.mrb[0].mxu0
        %v470 = vadd.f32 %v272, %v469
        %v471 = vpop.f32.mrb[0].mxu0
        %472 = vmatprep.mubr.bf16.mxu0 0
        %473 = vmatmul.mubr.bf16.gmra.mrb[0].mxu0 %v373
        %v474 = vpop.f32.mrb[0].mxu0
        %v475 = vadd.f32 %v272, %v474
        %v476 = vpop.f32.mrb[0].mxu0
        %v477 = vpop.f32.mrb[0].mxu0
        %v478 = vadd.f32 %v272, %v477
        %v479 = vpop.f32.mrb[0].mxu0
        %480 = vmatprep.mubr.bf16.mxu0 0
        %481 = vmatmul.mubr.bf16.gmra.mrb[0].mxu0 %v376
        %v482 = vpop.f32.mrb[0].mxu0
        %v483 = vadd.f32 %v272, %v482
        %v484 = vpop.f32.mrb[0].mxu0
        %v485 = vpop.f32.mrb[0].mxu0
        %v486 = vadd.f32 %v272, %v485
        %v487 = vpop.f32.mrb[0].mxu0
        %488 = vmatprep.mubr.bf16.mxu0 0
        %489 = vmatmul.mubr.bf16.gmra.mrb[0].mxu0 %v379
        %v490 = vpop.f32.mrb[0].mxu0
        %v491 = vadd.f32 %v272, %v490
        %v492 = vpop.f32.mrb[0].mxu0
        %v493 = vpop.f32.mrb[0].mxu0
        %v494 = vadd.f32 %v272, %v493
        %v495 = vpop.f32.mrb[0].mxu0
        %496 = vmatprep.mubr.bf16.mxu0 0
        %497 = vmatmul.mubr.bf16.gmra.mrb[0].mxu0 %v382
        %v498 = vpop.f32.mrb[0].mxu0
        %v499 = vadd.f32 %v272, %v498
        %v500 = vpop.f32.mrb[0].mxu0
        %v501 = vpop.f32.mrb[0].mxu0
        %v502 = vadd.f32 %v272, %v501
        %v503 = vpop.f32.mrb[0].mxu0
        %504 = vmatprep.mubr.bf16.mxu0 0
        %505 = vmatmul.mubr.bf16.gmra.mrb[0].mxu0 %v385
        %v506 = vpop.f32.mrb[0].mxu0
        %v507 = vadd.f32 %v272, %v506
        %v508 = vpop.f32.mrb[0].mxu0
        %v509 = vpop.f32.mrb[0].mxu0
        %v510 = vadd.f32 %v272, %v509
        %v511 = vpop.f32.mrb[0].mxu0
        %512 = vmatprep.mubr.bf16.mxu0 0
        %513 = vmatmul.mubr.bf16.gmra.mrb[0].mxu0 %v388
        %v514 = vpop.f32.mrb[0].mxu0
        %v515 = vadd.f32 %v272, %v514
        %v516 = vpop.f32.mrb[0].mxu0
        %v517 = vpop.f32.mrb[0].mxu0
        %v518 = vadd.f32 %v272, %v517
        %v519 = vpop.f32.mrb[0].mxu0
        %520 = vmatprep.mubr.bf16.mxu0 0
        %521 = vmatmul.mubr.bf16.gmra.mrb[0].mxu0 %v391
        %v522 = vpop.f32.mrb[0].mxu0
        %v523 = vadd.f32 %v272, %v522
        %v524 = vpop.f32.mrb[0].mxu0
        %v525 = vpop.f32.mrb[0].mxu0
        %v526 = vadd.f32 %v272, %v525
        %v527 = vpop.f32.mrb[0].mxu0
        %528 = vmatprep.mubr.bf16.mxu0 0
        %529 = vmatmul.mubr.bf16.gmra.mrb[0].mxu0 %v394
        %v530 = vpop.f32.mrb[0].mxu0
        %v531 = vadd.f32 %v272, %v530
        %v532 = vpop.f32.mrb[0].mxu0
        %v533 = vpop.f32.mrb[0].mxu0
        %v534 = vadd.f32 %v272, %v533
        %v535 = vpop.f32.mrb[0].mxu0
        %536 = vmatprep.mubr.bf16.mxu0 0
        %537 = vmatmul.mubr.bf16.gmra.mrb[0].mxu0 %v397
        %v538 = vpop.f32.mrb[0].mxu0
        %v539 = vadd.f32 %v272, %v538
        %v540 = vpop.f32.mrb[0].mxu0
        %v541 = vpop.f32.mrb[0].mxu0
        %v542 = vadd.f32 %v272, %v541
        %v543 = vpop.f32.mrb[0].mxu0
        %544 = vmatprep.mubr.bf16.mxu0 0
        %545 = vmatmul.mubr.bf16.gmra.mrb[0].mxu0 %v400
        %v546 = vpop.f32.mrb[0].mxu0
        %v547 = vadd.f32 %v272, %v546
        %v548 = vpop.f32.mrb[0].mxu0
        %v549 = vpop.f32.mrb[0].mxu0
        %v550 = vadd.f32 %v272, %v549
        %v551 = vpop.f32.mrb[0].mxu0
        %552 = vmatprep.mubr.bf16.mxu0 0
        %553 = vmatmul.mubr.bf16.gmra.mrb[0].mxu0 %v403
        %v554 = vpop.f32.mrb[0].mxu0
        %v555 = vadd.f32 %v272, %v554
        %v556 = vpop.f32.mrb[0].mxu0
        %v557 = vpop.f32.mrb[0].mxu0
        %v558 = vadd.f32 %v272, %v557
        %v559 = vpop.f32.mrb[0].mxu0
        %560 = vmatprep.mubr.bf16.mxu0 0
        %561 = vmatmul.mubr.bf16.gmra.mrb[0].mxu0 %v406
        %v562 = vpop.f32.mrb[0].mxu0
        %v563 = vadd.f32 %v272, %v562
        %v564 = vpop.f32.mrb[0].mxu0
        %v565 = vpop.f32.mrb[0].mxu0
        %v566 = vadd.f32 %v272, %v565
        %v567 = vpop.f32.mrb[0].mxu0
        %568 = vdwg.mxu0
        %v569 = vxor.u32 %v443, 2147483648
        %v570 = vxor.u32 %v446, 2147483648
        %v571 = vxor.u32 %v451, 2147483648
        %v572 = vxor.u32 %v454, 2147483648
        %v573 = vxor.u32 %v459, 2147483648
        %v574 = vxor.u32 %v462, 2147483648
        %v575 = vxor.u32 %v467, 2147483648
        %v576 = vxor.u32 %v470, 2147483648
        %v577 = vxor.u32 %v475, 2147483648
        %v578 = vxor.u32 %v478, 2147483648
        %v579 = vxor.u32 %v483, 2147483648
        %v580 = vxor.u32 %v486, 2147483648
        %v581 = vxor.u32 %v491, 2147483648
        %v582 = vxor.u32 %v494, 2147483648
        %v583 = vxor.u32 %v499, 2147483648
        %v584 = vxor.u32 %v502, 2147483648
        %v585 = vxor.u32 %v507, 2147483648
        %v586 = vxor.u32 %v510, 2147483648
        %v587 = vxor.u32 %v515, 2147483648
        %v588 = vxor.u32 %v518, 2147483648
        %v589 = vxor.u32 %v523, 2147483648
        %v590 = vxor.u32 %v526, 2147483648
        %v591 = vxor.u32 %v531, 2147483648
        %v592 = vxor.u32 %v534, 2147483648
        %v593 = vxor.u32 %v539, 2147483648
        %v594 = vxor.u32 %v542, 2147483648
        %v595 = vxor.u32 %v547, 2147483648
        %v596 = vxor.u32 %v550, 2147483648
        %v597 = vxor.u32 %v555, 2147483648
        %v598 = vxor.u32 %v558, 2147483648
        %v599 = vxor.u32 %v563, 2147483648
        %v600 = vxor.u32 %v566, 2147483648
        %v601 = vmul.f32 %v569, 1.442695
        %v602 = vpow.pop %v601
        %v603 = vmul.f32 %v570, 1.442695
        %v604 = vpow.pop %v603
        %v605 = vmul.f32 %v571, 1.442695
        %v606 = vpow.pop %v605
        %v607 = vmul.f32 %v572, 1.442695
        %v608 = vpow.pop %v607
        %v609 = vmul.f32 %v573, 1.442695
        %v610 = vpow.pop %v609
        %v611 = vmul.f32 %v574, 1.442695
        %v612 = vpow.pop %v611
        %v613 = vmul.f32 %v575, 1.442695
        %v614 = vpow.pop %v613
        %v615 = vmul.f32 %v576, 1.442695
        %v616 = vpow.pop %v615
        %v617 = vmul.f32 %v577, 1.442695
        %v618 = vpow.pop %v617
        %v619 = vmul.f32 %v578, 1.442695
        %v620 = vpow.pop %v619
        %v621 = vmul.f32 %v579, 1.442695
        %v622 = vpow.pop %v621
        %v623 = vmul.f32 %v580, 1.442695
        %v624 = vpow.pop %v623
        %v625 = vmul.f32 %v581, 1.442695
        %v626 = vpow.pop %v625
        %v627 = vmul.f32 %v582, 1.442695
        %v628 = vpow.pop %v627
        %v629 = vmul.f32 %v583, 1.442695
        %v630 = vpow.pop %v629
        %v631 = vmul.f32 %v584, 1.442695
        %v632 = vpow.pop %v631
        %v633 = vmul.f32 %v585, 1.442695
        %v634 = vpow.pop %v633
        %v635 = vmul.f32 %v586, 1.442695
        %v636 = vpow.pop %v635
        %v637 = vmul.f32 %v587, 1.442695
        %v638 = vpow.pop %v637
        %v639 = vmul.f32 %v588, 1.442695
        %v640 = vpow.pop %v639
        %v641 = vmul.f32 %v589, 1.442695
        %v642 = vpow.pop %v641
        %v643 = vmul.f32 %v590, 1.442695
        %v644 = vpow.pop %v643
        %v645 = vmul.f32 %v591, 1.442695
        %v646 = vpow.pop %v645
        %v647 = vmul.f32 %v592, 1.442695
        %v648 = vpow.pop %v647
        %v649 = vmul.f32 %v593, 1.442695
        %v650 = vpow.pop %v649
        %v651 = vmul.f32 %v594, 1.442695
        %v652 = vpow.pop %v651
        %v653 = vmul.f32 %v595, 1.442695
        %v654 = vpow.pop %v653
        %v655 = vmul.f32 %v596, 1.442695
        %v656 = vpow.pop %v655
        %v657 = vmul.f32 %v597, 1.442695
        %v658 = vpow.pop %v657
        %v659 = vmul.f32 %v598, 1.442695
        %v660 = vpow.pop %v659
        %v661 = vmul.f32 %v599, 1.442695
        %v662 = vpow.pop %v661
        %v663 = vmul.f32 %v600, 1.442695
        %v664 = vpow.pop %v663
        %v665 = vadd.f32 %v602, 1.0
        %v666 = vadd.f32 %v604, 1.0
        %v667 = vadd.f32 %v606, 1.0
        %v668 = vadd.f32 %v608, 1.0
        %v669 = vadd.f32 %v610, 1.0
        %v670 = vadd.f32 %v612, 1.0
        %v671 = vadd.f32 %v614, 1.0
        %v672 = vadd.f32 %v616, 1.0
        %v673 = vadd.f32 %v618, 1.0
        %v674 = vadd.f32 %v620, 1.0
        %v675 = vadd.f32 %v622, 1.0
        %v676 = vadd.f32 %v624, 1.0
        %v677 = vadd.f32 %v626, 1.0
        %v678 = vadd.f32 %v628, 1.0
        %v679 = vadd.f32 %v630, 1.0
        %v680 = vadd.f32 %v632, 1.0
        %v681 = vadd.f32 %v634, 1.0
        %v682 = vadd.f32 %v636, 1.0
        %v683 = vadd.f32 %v638, 1.0
        %v684 = vadd.f32 %v640, 1.0
        %v685 = vadd.f32 %v642, 1.0
        %v686 = vadd.f32 %v644, 1.0
        %v687 = vadd.f32 %v646, 1.0
        %v688 = vadd.f32 %v648, 1.0
        %v689 = vadd.f32 %v650, 1.0
        %v690 = vadd.f32 %v652, 1.0
        %v691 = vadd.f32 %v654, 1.0
        %v692 = vadd.f32 %v656, 1.0
        %v693 = vadd.f32 %v658, 1.0
        %v694 = vadd.f32 %v660, 1.0
        %v695 = vadd.f32 %v662, 1.0
        %v696 = vadd.f32 %v664, 1.0
        %v697 = vrcp.pop %v665
        %v698 = vmul.f32 1.0, %v697
        %v699 = vrcp.pop %v666
        %v700 = vmul.f32 1.0, %v699
        %v701 = vrcp.pop %v667
        %v702 = vmul.f32 1.0, %v701
        %v703 = vrcp.pop %v668
        %v704 = vmul.f32 1.0, %v703
        %v705 = vrcp.pop %v669
        %v706 = vmul.f32 1.0, %v705
        %v707 = vrcp.pop %v670
        %v708 = vmul.f32 1.0, %v707
        %v709 = vrcp.pop %v671
        %v710 = vmul.f32 1.0, %v709
        %v711 = vrcp.pop %v672
        %v712 = vmul.f32 1.0, %v711
        %v713 = vrcp.pop %v673
        %v714 = vmul.f32 1.0, %v713
        %v715 = vrcp.pop %v674
        %v716 = vmul.f32 1.0, %v715
        %v717 = vrcp.pop %v675
        %v718 = vmul.f32 1.0, %v717
        %v719 = vrcp.pop %v676
        %v720 = vmul.f32 1.0, %v719
        %v721 = vrcp.pop %v677
        %v722 = vmul.f32 1.0, %v721
        %v723 = vrcp.pop %v678
        %v724 = vmul.f32 1.0, %v723
        %v725 = vrcp.pop %v679
        %v726 = vmul.f32 1.0, %v725
        %v727 = vrcp.pop %v680
        %v728 = vmul.f32 1.0, %v727
        %v729 = vrcp.pop %v681
        %v730 = vmul.f32 1.0, %v729
        %v731 = vrcp.pop %v682
        %v732 = vmul.f32 1.0, %v731
        %v733 = vrcp.pop %v683
        %v734 = vmul.f32 1.0, %v733
        %v735 = vrcp.pop %v684
        %v736 = vmul.f32 1.0, %v735
        %v737 = vrcp.pop %v685
        %v738 = vmul.f32 1.0, %v737
        %v739 = vrcp.pop %v686
        %v740 = vmul.f32 1.0, %v739
        %v741 = vrcp.pop %v687
        %v742 = vmul.f32 1.0, %v741
        %v743 = vrcp.pop %v688
        %v744 = vmul.f32 1.0, %v743
        %v745 = vrcp.pop %v689
        %v746 = vmul.f32 1.0, %v745
        %v747 = vrcp.pop %v690
        %v748 = vmul.f32 1.0, %v747
        %v749 = vrcp.pop %v691
        %v750 = vmul.f32 1.0, %v749
        %v751 = vrcp.pop %v692
        %v752 = vmul.f32 1.0, %v751
        %v753 = vrcp.pop %v693
        %v754 = vmul.f32 1.0, %v753
        %v755 = vrcp.pop %v694
        %v756 = vmul.f32 1.0, %v755
        %v757 = vrcp.pop %v695
        %v758 = vmul.f32 1.0, %v757
        %v759 = vrcp.pop %v696
        %v760 = vmul.f32 1.0, %v759
        %s761 = smul.u32 %s21, 256
        %v762 = vlaneseq
        %v763 = vshrl.u32 %v762, 7
        %v764 = vadd.s32 %v763, 8
        %v765 = vadd.s32 %v763, 16
        %v766 = vadd.s32 %v763, 24
        %v767 = vadd.s32 %v763, 32
        %v768 = vadd.s32 %v763, 40
        %v769 = vadd.s32 %v763, 48
        %v770 = vadd.s32 %v763, 56
        %v771 = vadd.s32 %v763, 64
        %v772 = vadd.s32 %v763, 72
        %v773 = vadd.s32 %v763, 80
        %v774 = vadd.s32 %v763, 88
        %v775 = vadd.s32 %v763, 96
        %v776 = vadd.s32 %v763, 104
        %v777 = vadd.s32 %v763, 112
        %v778 = vadd.s32 %v763, 120
        %v779 = vadd.s32 %v763, 128
        %v780 = vadd.s32 %v763, 136
        %v781 = vadd.s32 %v763, 144
        %v782 = vadd.s32 %v763, 152
        %v783 = vadd.s32 %v763, 160
        %v784 = vadd.s32 %v763, 168
        %v785 = vadd.s32 %v763, 176
        %v786 = vadd.s32 %v763, 184
        %v787 = vadd.s32 %v763, 192
        %v788 = vadd.s32 %v763, 200
        %v789 = vadd.s32 %v763, 208
        %v790 = vadd.s32 %v763, 216
        %v791 = vadd.s32 %v763, 224
        %v792 = vadd.s32 %v763, 232
        %v793 = vadd.s32 %v763, 240
        %v794 = vadd.s32 %v763, 248
        %v795 = vstv %s761
        %v796 = vadd.s32 %v795, %v763
        %v797 = vadd.s32 %v795, %v764
        %v798 = vadd.s32 %v795, %v765
        %v799 = vadd.s32 %v795, %v766
        %v800 = vadd.s32 %v795, %v767
        %v801 = vadd.s32 %v795, %v768
        %v802 = vadd.s32 %v795, %v769
        %v803 = vadd.s32 %v795, %v770
        %v804 = vadd.s32 %v795, %v771
        %v805 = vadd.s32 %v795, %v772
        %v806 = vadd.s32 %v795, %v773
        %v807 = vadd.s32 %v795, %v774
        %v808 = vadd.s32 %v795, %v775
        %v809 = vadd.s32 %v795, %v776
        %v810 = vadd.s32 %v795, %v777
        %v811 = vadd.s32 %v795, %v778
        %v812 = vadd.s32 %v795, %v779
        %v813 = vadd.s32 %v795, %v780
        %v814 = vadd.s32 %v795, %v781
        %v815 = vadd.s32 %v795, %v782
        %v816 = vadd.s32 %v795, %v783
        %v817 = vadd.s32 %v795, %v784
        %v818 = vadd.s32 %v795, %v785
        %v819 = vadd.s32 %v795, %v786
        %v820 = vadd.s32 %v795, %v787
        %v821 = vadd.s32 %v795, %v788
        %v822 = vadd.s32 %v795, %v789
        %v823 = vadd.s32 %v795, %v790
        %v824 = vadd.s32 %v795, %v791
        %v825 = vadd.s32 %v795, %v792
        %v826 = vadd.s32 %v795, %v793
        %v827 = vadd.s32 %v795, %v794
        %v828 = vand.u32 %v796, 31
        %v829 = vand.u32 %v797, 31
        %v830 = vand.u32 %v798, 31
        %v831 = vand.u32 %v799, 31
        %v832 = vand.u32 %v800, 31
        %v833 = vand.u32 %v801, 31
        %v834 = vand.u32 %v802, 31
        %v835 = vand.u32 %v803, 31
        %v836 = vand.u32 %v804, 31
        %v837 = vand.u32 %v805, 31
        %v838 = vand.u32 %v806, 31
        %v839 = vand.u32 %v807, 31
        %v840 = vand.u32 %v808, 31
        %v841 = vand.u32 %v809, 31
        %v842 = vand.u32 %v810, 31
        %v843 = vand.u32 %v811, 31
        %v844 = vand.u32 %v812, 31
        %v845 = vand.u32 %v813, 31
        %v846 = vand.u32 %v814, 31
        %v847 = vand.u32 %v815, 31
        %v848 = vand.u32 %v816, 31
        %v849 = vand.u32 %v817, 31
        %v850 = vand.u32 %v818, 31
        %v851 = vand.u32 %v819, 31
        %v852 = vand.u32 %v820, 31
        %v853 = vand.u32 %v821, 31
        %v854 = vand.u32 %v822, 31
        %v855 = vand.u32 %v823, 31
        %v856 = vand.u32 %v824, 31
        %v857 = vand.u32 %v825, 31
        %v858 = vand.u32 %v826, 31
        %v859 = vand.u32 %v827, 31
        %v860 = vcvt.s32.f32 %v828
        %v861 = vcvt.s32.f32 %v829
        %v862 = vcvt.s32.f32 %v830
        %v863 = vcvt.s32.f32 %v831
        %v864 = vcvt.s32.f32 %v832
        %v865 = vcvt.s32.f32 %v833
        %v866 = vcvt.s32.f32 %v834
        %v867 = vcvt.s32.f32 %v835
        %v868 = vcvt.s32.f32 %v836
        %v869 = vcvt.s32.f32 %v837
        %v870 = vcvt.s32.f32 %v838
        %v871 = vcvt.s32.f32 %v839
        %v872 = vcvt.s32.f32 %v840
        %v873 = vcvt.s32.f32 %v841
        %v874 = vcvt.s32.f32 %v842
        %v875 = vcvt.s32.f32 %v843
        %v876 = vcvt.s32.f32 %v844
        %v877 = vcvt.s32.f32 %v845
        %v878 = vcvt.s32.f32 %v846
        %v879 = vcvt.s32.f32 %v847
        %v880 = vcvt.s32.f32 %v848
        %v881 = vcvt.s32.f32 %v849
        %v882 = vcvt.s32.f32 %v850
        %v883 = vcvt.s32.f32 %v851
        %v884 = vcvt.s32.f32 %v852
        %v885 = vcvt.s32.f32 %v853
        %v886 = vcvt.s32.f32 %v854
        %v887 = vcvt.s32.f32 %v855
        %v888 = vcvt.s32.f32 %v856
        %v889 = vcvt.s32.f32 %v857
        %v890 = vcvt.s32.f32 %v858
        %v891 = vcvt.s32.f32 %v859
        %v892 = vshra.s32 %v796, 5
        %v893 = vshra.s32 %v797, 5
        %v894 = vshra.s32 %v798, 5
        %v895 = vshra.s32 %v799, 5
        %v896 = vshra.s32 %v800, 5
        %v897 = vshra.s32 %v801, 5
        %v898 = vshra.s32 %v802, 5
        %v899 = vshra.s32 %v803, 5
        %v900 = vshra.s32 %v804, 5
        %v901 = vshra.s32 %v805, 5
        %v902 = vshra.s32 %v806, 5
        %v903 = vshra.s32 %v807, 5
        %v904 = vshra.s32 %v808, 5
        %v905 = vshra.s32 %v809, 5
        %v906 = vshra.s32 %v810, 5
        %v907 = vshra.s32 %v811, 5
        %v908 = vshra.s32 %v812, 5
        %v909 = vshra.s32 %v813, 5
        %v910 = vshra.s32 %v814, 5
        %v911 = vshra.s32 %v815, 5
        %v912 = vshra.s32 %v816, 5
        %v913 = vshra.s32 %v817, 5
        %v914 = vshra.s32 %v818, 5
        %v915 = vshra.s32 %v819, 5
        %v916 = vshra.s32 %v820, 5
        %v917 = vshra.s32 %v821, 5
        %v918 = vshra.s32 %v822, 5
        %v919 = vshra.s32 %v823, 5
        %v920 = vshra.s32 %v824, 5
        %v921 = vshra.s32 %v825, 5
        %v922 = vshra.s32 %v826, 5
        %v923 = vshra.s32 %v827, 5
        %v924 = vcvt.s32.f32 %v892
        %v925 = vcvt.s32.f32 %v893
        %v926 = vcvt.s32.f32 %v894
        %v927 = vcvt.s32.f32 %v895
        %v928 = vcvt.s32.f32 %v896
        %v929 = vcvt.s32.f32 %v897
        %v930 = vcvt.s32.f32 %v898
        %v931 = vcvt.s32.f32 %v899
        %v932 = vcvt.s32.f32 %v900
        %v933 = vcvt.s32.f32 %v901
        %v934 = vcvt.s32.f32 %v902
        %v935 = vcvt.s32.f32 %v903
        %v936 = vcvt.s32.f32 %v904
        %v937 = vcvt.s32.f32 %v905
        %v938 = vcvt.s32.f32 %v906
        %v939 = vcvt.s32.f32 %v907
        %v940 = vcvt.s32.f32 %v908
        %v941 = vcvt.s32.f32 %v909
        %v942 = vcvt.s32.f32 %v910
        %v943 = vcvt.s32.f32 %v911
        %v944 = vcvt.s32.f32 %v912
        %v945 = vcvt.s32.f32 %v913
        %v946 = vcvt.s32.f32 %v914
        %v947 = vcvt.s32.f32 %v915
        %v948 = vcvt.s32.f32 %v916
        %v949 = vcvt.s32.f32 %v917
        %v950 = vcvt.s32.f32 %v918
        %v951 = vcvt.s32.f32 %v919
        %v952 = vcvt.s32.f32 %v920
        %v953 = vcvt.s32.f32 %v921
        %v954 = vcvt.s32.f32 %v922
        %v955 = vcvt.s32.f32 %v923
        %v956 = vld [vmem:[%s2 + $0x1] sm:$0x1]
        %v957 = vld [vmem:[%s2 + $0x2] sm:$0x1]
        %v958 = vld [vmem:[%s2 + $0x3] sm:$0x1]
        %v959 = vld [vmem:[%s2 + $0x4] sm:$0x1]
        %v960 = vadd.f32 %v956, %v957
        %v961 = vlaneseq
        %v962 = vshrl.u32 %v961, 7
        %v963 = vsub.s32 0, %v962
        %v964 = vrot.slane %v956, %v963
        %v965 = vmul.f32 %v964, %v860
        %v966 = vmul.f32 %v964, %v861
        %v967 = vmul.f32 %v964, %v862
        %v968 = vmul.f32 %v964, %v863
        %v969 = vmul.f32 %v964, %v864
        %v970 = vmul.f32 %v964, %v865
        %v971 = vmul.f32 %v964, %v866
        %v972 = vmul.f32 %v964, %v867
        %v973 = vmul.f32 %v964, %v868
        %v974 = vmul.f32 %v964, %v869
        %v975 = vmul.f32 %v964, %v870
        %v976 = vmul.f32 %v964, %v871
        %v977 = vmul.f32 %v964, %v872
        %v978 = vmul.f32 %v964, %v873
        %v979 = vmul.f32 %v964, %v874
        %v980 = vmul.f32 %v964, %v875
        %v981 = vmul.f32 %v964, %v876
        %v982 = vmul.f32 %v964, %v877
        %v983 = vmul.f32 %v964, %v878
        %v984 = vmul.f32 %v964, %v879
        %v985 = vmul.f32 %v964, %v880
        %v986 = vmul.f32 %v964, %v881
        %v987 = vmul.f32 %v964, %v882
        %v988 = vmul.f32 %v964, %v883
        %v989 = vmul.f32 %v964, %v884
        %v990 = vmul.f32 %v964, %v885
        %v991 = vmul.f32 %v964, %v886
        %v992 = vmul.f32 %v964, %v887
        %v993 = vmul.f32 %v964, %v888
        %v994 = vmul.f32 %v964, %v889
        %v995 = vmul.f32 %v964, %v890
        %v996 = vmul.f32 %v964, %v891
        %v997 = vlaneseq
        %v998 = vshrl.u32 %v997, 7
        %v999 = vsub.s32 0, %v998
        %v1000 = vrot.slane %v957, %v999
        %v1001 = vmul.f32 %v1000, %v924
        %v1002 = vmul.f32 %v1000, %v925
        %v1003 = vmul.f32 %v1000, %v926
        %v1004 = vmul.f32 %v1000, %v927
        %v1005 = vmul.f32 %v1000, %v928
        %v1006 = vmul.f32 %v1000, %v929
        %v1007 = vmul.f32 %v1000, %v930
        %v1008 = vmul.f32 %v1000, %v931
        %v1009 = vmul.f32 %v1000, %v932
        %v1010 = vmul.f32 %v1000, %v933
        %v1011 = vmul.f32 %v1000, %v934
        %v1012 = vmul.f32 %v1000, %v935
        %v1013 = vmul.f32 %v1000, %v936
        %v1014 = vmul.f32 %v1000, %v937
        %v1015 = vmul.f32 %v1000, %v938
        %v1016 = vmul.f32 %v1000, %v939
        %v1017 = vmul.f32 %v1000, %v940
        %v1018 = vmul.f32 %v1000, %v941
        %v1019 = vmul.f32 %v1000, %v942
        %v1020 = vmul.f32 %v1000, %v943
        %v1021 = vmul.f32 %v1000, %v944
        %v1022 = vmul.f32 %v1000, %v945
        %v1023 = vmul.f32 %v1000, %v946
        %v1024 = vmul.f32 %v1000, %v947
        %v1025 = vmul.f32 %v1000, %v948
        %v1026 = vmul.f32 %v1000, %v949
        %v1027 = vmul.f32 %v1000, %v950
        %v1028 = vmul.f32 %v1000, %v951
        %v1029 = vmul.f32 %v1000, %v952
        %v1030 = vmul.f32 %v1000, %v953
        %v1031 = vmul.f32 %v1000, %v954
        %v1032 = vmul.f32 %v1000, %v955
        %v1033 = vadd.f32 %v965, %v1001
        %v1034 = vadd.f32 %v966, %v1002
        %v1035 = vadd.f32 %v967, %v1003
        %v1036 = vadd.f32 %v968, %v1004
        %v1037 = vadd.f32 %v969, %v1005
        %v1038 = vadd.f32 %v970, %v1006
        %v1039 = vadd.f32 %v971, %v1007
        %v1040 = vadd.f32 %v972, %v1008
        %v1041 = vadd.f32 %v973, %v1009
        %v1042 = vadd.f32 %v974, %v1010
        %v1043 = vadd.f32 %v975, %v1011
        %v1044 = vadd.f32 %v976, %v1012
        %v1045 = vadd.f32 %v977, %v1013
        %v1046 = vadd.f32 %v978, %v1014
        %v1047 = vadd.f32 %v979, %v1015
        %v1048 = vadd.f32 %v980, %v1016
        %v1049 = vadd.f32 %v981, %v1017
        %v1050 = vadd.f32 %v982, %v1018
        %v1051 = vadd.f32 %v983, %v1019
        %v1052 = vadd.f32 %v984, %v1020
        %v1053 = vadd.f32 %v985, %v1021
        %v1054 = vadd.f32 %v986, %v1022
        %v1055 = vadd.f32 %v987, %v1023
        %v1056 = vadd.f32 %v988, %v1024
        %v1057 = vadd.f32 %v989, %v1025
        %v1058 = vadd.f32 %v990, %v1026
        %v1059 = vadd.f32 %v991, %v1027
        %v1060 = vadd.f32 %v992, %v1028
        %v1061 = vadd.f32 %v993, %v1029
        %v1062 = vadd.f32 %v994, %v1030
        %v1063 = vadd.f32 %v995, %v1031
        %v1064 = vadd.f32 %v996, %v1032
        %v1065 = vmul.f32 %v698, 2.0
        %v1066 = vmul.f32 %v700, 2.0
        %v1067 = vmul.f32 %v702, 2.0
        %v1068 = vmul.f32 %v704, 2.0
        %v1069 = vmul.f32 %v706, 2.0
        %v1070 = vmul.f32 %v708, 2.0
        %v1071 = vmul.f32 %v710, 2.0
        %v1072 = vmul.f32 %v712, 2.0
        %v1073 = vmul.f32 %v714, 2.0
        %v1074 = vmul.f32 %v716, 2.0
        %v1075 = vmul.f32 %v718, 2.0
        %v1076 = vmul.f32 %v720, 2.0
        %v1077 = vmul.f32 %v722, 2.0
        %v1078 = vmul.f32 %v724, 2.0
        %v1079 = vmul.f32 %v726, 2.0
        %v1080 = vmul.f32 %v728, 2.0
        %v1081 = vmul.f32 %v730, 2.0
        %v1082 = vmul.f32 %v732, 2.0
        %v1083 = vmul.f32 %v734, 2.0
        %v1084 = vmul.f32 %v736, 2.0
        %v1085 = vmul.f32 %v738, 2.0
        %v1086 = vmul.f32 %v740, 2.0
        %v1087 = vmul.f32 %v742, 2.0
        %v1088 = vmul.f32 %v744, 2.0
        %v1089 = vmul.f32 %v746, 2.0
        %v1090 = vmul.f32 %v748, 2.0
        %v1091 = vmul.f32 %v750, 2.0
        %v1092 = vmul.f32 %v752, 2.0
        %v1093 = vmul.f32 %v754, 2.0
        %v1094 = vmul.f32 %v756, 2.0
        %v1095 = vmul.f32 %v758, 2.0
        %v1096 = vmul.f32 %v760, 2.0
        %v1097 = vsub.f32 %v1065, 0.5
        %v1098 = vsub.f32 %v1066, 0.5
        %v1099 = vsub.f32 %v1067, 0.5
        %v1100 = vsub.f32 %v1068, 0.5
        %v1101 = vsub.f32 %v1069, 0.5
        %v1102 = vsub.f32 %v1070, 0.5
        %v1103 = vsub.f32 %v1071, 0.5
        %v1104 = vsub.f32 %v1072, 0.5
        %v1105 = vsub.f32 %v1073, 0.5
        %v1106 = vsub.f32 %v1074, 0.5
        %v1107 = vsub.f32 %v1075, 0.5
        %v1108 = vsub.f32 %v1076, 0.5
        %v1109 = vsub.f32 %v1077, 0.5
        %v1110 = vsub.f32 %v1078, 0.5
        %v1111 = vsub.f32 %v1079, 0.5
        %v1112 = vsub.f32 %v1080, 0.5
        %v1113 = vsub.f32 %v1081, 0.5
        %v1114 = vsub.f32 %v1082, 0.5
        %v1115 = vsub.f32 %v1083, 0.5
        %v1116 = vsub.f32 %v1084, 0.5
        %v1117 = vsub.f32 %v1085, 0.5
        %v1118 = vsub.f32 %v1086, 0.5
        %v1119 = vsub.f32 %v1087, 0.5
        %v1120 = vsub.f32 %v1088, 0.5
        %v1121 = vsub.f32 %v1089, 0.5
        %v1122 = vsub.f32 %v1090, 0.5
        %v1123 = vsub.f32 %v1091, 0.5
        %v1124 = vsub.f32 %v1092, 0.5
        %v1125 = vsub.f32 %v1093, 0.5
        %v1126 = vsub.f32 %v1094, 0.5
        %v1127 = vsub.f32 %v1095, 0.5
        %v1128 = vsub.f32 %v1096, 0.5
        %v1129 = vadd.f32 %v1097, %v1033
        %v1130 = vadd.f32 %v1098, %v1034
        %v1131 = vadd.f32 %v1099, %v1035
        %v1132 = vadd.f32 %v1100, %v1036
        %v1133 = vadd.f32 %v1101, %v1037
        %v1134 = vadd.f32 %v1102, %v1038
        %v1135 = vadd.f32 %v1103, %v1039
        %v1136 = vadd.f32 %v1104, %v1040
        %v1137 = vadd.f32 %v1105, %v1041
        %v1138 = vadd.f32 %v1106, %v1042
        %v1139 = vadd.f32 %v1107, %v1043
        %v1140 = vadd.f32 %v1108, %v1044
        %v1141 = vadd.f32 %v1109, %v1045
        %v1142 = vadd.f32 %v1110, %v1046
        %v1143 = vadd.f32 %v1111, %v1047
        %v1144 = vadd.f32 %v1112, %v1048
        %v1145 = vadd.f32 %v1113, %v1049
        %v1146 = vadd.f32 %v1114, %v1050
        %v1147 = vadd.f32 %v1115, %v1051
        %v1148 = vadd.f32 %v1116, %v1052
        %v1149 = vadd.f32 %v1117, %v1053
        %v1150 = vadd.f32 %v1118, %v1054
        %v1151 = vadd.f32 %v1119, %v1055
        %v1152 = vadd.f32 %v1120, %v1056
        %v1153 = vadd.f32 %v1121, %v1057
        %v1154 = vadd.f32 %v1122, %v1058
        %v1155 = vadd.f32 %v1123, %v1059
        %v1156 = vadd.f32 %v1124, %v1060
        %v1157 = vadd.f32 %v1125, %v1061
        %v1158 = vadd.f32 %v1126, %v1062
        %v1159 = vadd.f32 %v1127, %v1063
        %v1160 = vadd.f32 %v1128, %v1064
        %v1161 = vmul.f32 %v1129, 2.0
        %v1162 = vmul.f32 %v1130, 2.0
        %v1163 = vmul.f32 %v1131, 2.0
        %v1164 = vmul.f32 %v1132, 2.0
        %v1165 = vmul.f32 %v1133, 2.0
        %v1166 = vmul.f32 %v1134, 2.0
        %v1167 = vmul.f32 %v1135, 2.0
        %v1168 = vmul.f32 %v1136, 2.0
        %v1169 = vmul.f32 %v1137, 2.0
        %v1170 = vmul.f32 %v1138, 2.0
        %v1171 = vmul.f32 %v1139, 2.0
        %v1172 = vmul.f32 %v1140, 2.0
        %v1173 = vmul.f32 %v1141, 2.0
        %v1174 = vmul.f32 %v1142, 2.0
        %v1175 = vmul.f32 %v1143, 2.0
        %v1176 = vmul.f32 %v1144, 2.0
        %v1177 = vmul.f32 %v1145, 2.0
        %v1178 = vmul.f32 %v1146, 2.0
        %v1179 = vmul.f32 %v1147, 2.0
        %v1180 = vmul.f32 %v1148, 2.0
        %v1181 = vmul.f32 %v1149, 2.0
        %v1182 = vmul.f32 %v1150, 2.0
        %v1183 = vmul.f32 %v1151, 2.0
        %v1184 = vmul.f32 %v1152, 2.0
        %v1185 = vmul.f32 %v1153, 2.0
        %v1186 = vmul.f32 %v1154, 2.0
        %v1187 = vmul.f32 %v1155, 2.0
        %v1188 = vmul.f32 %v1156, 2.0
        %v1189 = vmul.f32 %v1157, 2.0
        %v1190 = vmul.f32 %v1158, 2.0
        %v1191 = vmul.f32 %v1159, 2.0
        %v1192 = vmul.f32 %v1160, 2.0
        %v1193 = vmul.f32 %v1065, %v1065
        %v1194 = vmul.f32 %v1066, %v1066
        %v1195 = vmul.f32 %v1067, %v1067
        %v1196 = vmul.f32 %v1068, %v1068
        %v1197 = vmul.f32 %v1069, %v1069
        %v1198 = vmul.f32 %v1070, %v1070
        %v1199 = vmul.f32 %v1071, %v1071
        %v1200 = vmul.f32 %v1072, %v1072
        %v1201 = vmul.f32 %v1073, %v1073
        %v1202 = vmul.f32 %v1074, %v1074
        %v1203 = vmul.f32 %v1075, %v1075
        %v1204 = vmul.f32 %v1076, %v1076
        %v1205 = vmul.f32 %v1077, %v1077
        %v1206 = vmul.f32 %v1078, %v1078
        %v1207 = vmul.f32 %v1079, %v1079
        %v1208 = vmul.f32 %v1080, %v1080
        %v1209 = vmul.f32 %v1081, %v1081
        %v1210 = vmul.f32 %v1082, %v1082
        %v1211 = vmul.f32 %v1083, %v1083
        %v1212 = vmul.f32 %v1084, %v1084
        %v1213 = vmul.f32 %v1085, %v1085
        %v1214 = vmul.f32 %v1086, %v1086
        %v1215 = vmul.f32 %v1087, %v1087
        %v1216 = vmul.f32 %v1088, %v1088
        %v1217 = vmul.f32 %v1089, %v1089
        %v1218 = vmul.f32 %v1090, %v1090
        %v1219 = vmul.f32 %v1091, %v1091
        %v1220 = vmul.f32 %v1092, %v1092
        %v1221 = vmul.f32 %v1093, %v1093
        %v1222 = vmul.f32 %v1094, %v1094
        %v1223 = vmul.f32 %v1095, %v1095
        %v1224 = vmul.f32 %v1096, %v1096
        %v1225 = vlaneseq
        %v1226 = vshrl.u32 %v1225, 7
        %v1227 = vsub.s32 0, %v1226
        %v1228 = vrot.slane %v959, %v1227
        %v1229 = vmul.f32 %v1193, %v1228
        %v1230 = vmul.f32 %v1194, %v1228
        %v1231 = vmul.f32 %v1195, %v1228
        %v1232 = vmul.f32 %v1196, %v1228
        %v1233 = vmul.f32 %v1197, %v1228
        %v1234 = vmul.f32 %v1198, %v1228
        %v1235 = vmul.f32 %v1199, %v1228
        %v1236 = vmul.f32 %v1200, %v1228
        %v1237 = vmul.f32 %v1201, %v1228
        %v1238 = vmul.f32 %v1202, %v1228
        %v1239 = vmul.f32 %v1203, %v1228
        %v1240 = vmul.f32 %v1204, %v1228
        %v1241 = vmul.f32 %v1205, %v1228
        %v1242 = vmul.f32 %v1206, %v1228
        %v1243 = vmul.f32 %v1207, %v1228
        %v1244 = vmul.f32 %v1208, %v1228
        %v1245 = vmul.f32 %v1209, %v1228
        %v1246 = vmul.f32 %v1210, %v1228
        %v1247 = vmul.f32 %v1211, %v1228
        %v1248 = vmul.f32 %v1212, %v1228
        %v1249 = vmul.f32 %v1213, %v1228
        %v1250 = vmul.f32 %v1214, %v1228
        %v1251 = vmul.f32 %v1215, %v1228
        %v1252 = vmul.f32 %v1216, %v1228
        %v1253 = vmul.f32 %v1217, %v1228
        %v1254 = vmul.f32 %v1218, %v1228
        %v1255 = vmul.f32 %v1219, %v1228
        %v1256 = vmul.f32 %v1220, %v1228
        %v1257 = vmul.f32 %v1221, %v1228
        %v1258 = vmul.f32 %v1222, %v1228
        %v1259 = vmul.f32 %v1223, %v1228
        %v1260 = vmul.f32 %v1224, %v1228
        %v1261 = vlaneseq
        %v1262 = vshrl.u32 %v1261, 7
        %v1263 = vsub.s32 0, %v1262
        %v1264 = vrot.slane %v960, %v1263
        %v1265 = vmul.f32 %v1264, %v1161
        %v1266 = vmul.f32 %v1264, %v1162
        %v1267 = vmul.f32 %v1264, %v1163
        %v1268 = vmul.f32 %v1264, %v1164
        %v1269 = vmul.f32 %v1264, %v1165
        %v1270 = vmul.f32 %v1264, %v1166
        %v1271 = vmul.f32 %v1264, %v1167
        %v1272 = vmul.f32 %v1264, %v1168
        %v1273 = vmul.f32 %v1264, %v1169
        %v1274 = vmul.f32 %v1264, %v1170
        %v1275 = vmul.f32 %v1264, %v1171
        %v1276 = vmul.f32 %v1264, %v1172
        %v1277 = vmul.f32 %v1264, %v1173
        %v1278 = vmul.f32 %v1264, %v1174
        %v1279 = vmul.f32 %v1264, %v1175
        %v1280 = vmul.f32 %v1264, %v1176
        %v1281 = vmul.f32 %v1264, %v1177
        %v1282 = vmul.f32 %v1264, %v1178
        %v1283 = vmul.f32 %v1264, %v1179
        %v1284 = vmul.f32 %v1264, %v1180
        %v1285 = vmul.f32 %v1264, %v1181
        %v1286 = vmul.f32 %v1264, %v1182
        %v1287 = vmul.f32 %v1264, %v1183
        %v1288 = vmul.f32 %v1264, %v1184
        %v1289 = vmul.f32 %v1264, %v1185
        %v1290 = vmul.f32 %v1264, %v1186
        %v1291 = vmul.f32 %v1264, %v1187
        %v1292 = vmul.f32 %v1264, %v1188
        %v1293 = vmul.f32 %v1264, %v1189
        %v1294 = vmul.f32 %v1264, %v1190
        %v1295 = vmul.f32 %v1264, %v1191
        %v1296 = vmul.f32 %v1264, %v1192
        %v1297 = vlaneseq
        %v1298 = vshrl.u32 %v1297, 7
        %v1299 = vsub.s32 0, %v1298
        %v1300 = vrot.slane %v958, %v1299
        %v1301 = vmul.f32 %v1300, %v1229
        %v1302 = vmul.f32 %v1300, %v1230
        %v1303 = vmul.f32 %v1300, %v1231
        %v1304 = vmul.f32 %v1300, %v1232
        %v1305 = vmul.f32 %v1300, %v1233
        %v1306 = vmul.f32 %v1300, %v1234
        %v1307 = vmul.f32 %v1300, %v1235
        %v1308 = vmul.f32 %v1300, %v1236
        %v1309 = vmul.f32 %v1300, %v1237
        %v1310 = vmul.f32 %v1300, %v1238
        %v1311 = vmul.f32 %v1300, %v1239
        %v1312 = vmul.f32 %v1300, %v1240
        %v1313 = vmul.f32 %v1300, %v1241
        %v1314 = vmul.f32 %v1300, %v1242
        %v1315 = vmul.f32 %v1300, %v1243
        %v1316 = vmul.f32 %v1300, %v1244
        %v1317 = vmul.f32 %v1300, %v1245
        %v1318 = vmul.f32 %v1300, %v1246
        %v1319 = vmul.f32 %v1300, %v1247
        %v1320 = vmul.f32 %v1300, %v1248
        %v1321 = vmul.f32 %v1300, %v1249
        %v1322 = vmul.f32 %v1300, %v1250
        %v1323 = vmul.f32 %v1300, %v1251
        %v1324 = vmul.f32 %v1300, %v1252
        %v1325 = vmul.f32 %v1300, %v1253
        %v1326 = vmul.f32 %v1300, %v1254
        %v1327 = vmul.f32 %v1300, %v1255
        %v1328 = vmul.f32 %v1300, %v1256
        %v1329 = vmul.f32 %v1300, %v1257
        %v1330 = vmul.f32 %v1300, %v1258
        %v1331 = vmul.f32 %v1300, %v1259
        %v1332 = vmul.f32 %v1300, %v1260
        %v1333 = vadd.f32 %v1265, %v1301
        %v1334 = vadd.f32 %v1266, %v1302
        %v1335 = vadd.f32 %v1267, %v1303
        %v1336 = vadd.f32 %v1268, %v1304
        %v1337 = vadd.f32 %v1269, %v1305
        %v1338 = vadd.f32 %v1270, %v1306
        %v1339 = vadd.f32 %v1271, %v1307
        %v1340 = vadd.f32 %v1272, %v1308
        %v1341 = vadd.f32 %v1273, %v1309
        %v1342 = vadd.f32 %v1274, %v1310
        %v1343 = vadd.f32 %v1275, %v1311
        %v1344 = vadd.f32 %v1276, %v1312
        %v1345 = vadd.f32 %v1277, %v1313
        %v1346 = vadd.f32 %v1278, %v1314
        %v1347 = vadd.f32 %v1279, %v1315
        %v1348 = vadd.f32 %v1280, %v1316
        %v1349 = vadd.f32 %v1281, %v1317
        %v1350 = vadd.f32 %v1282, %v1318
        %v1351 = vadd.f32 %v1283, %v1319
        %v1352 = vadd.f32 %v1284, %v1320
        %v1353 = vadd.f32 %v1285, %v1321
        %v1354 = vadd.f32 %v1286, %v1322
        %v1355 = vadd.f32 %v1287, %v1323
        %v1356 = vadd.f32 %v1288, %v1324
        %v1357 = vadd.f32 %v1289, %v1325
        %v1358 = vadd.f32 %v1290, %v1326
        %v1359 = vadd.f32 %v1291, %v1327
        %v1360 = vadd.f32 %v1292, %v1328
        %v1361 = vadd.f32 %v1293, %v1329
        %v1362 = vadd.f32 %v1294, %v1330
        %v1363 = vadd.f32 %v1295, %v1331
        %v1364 = vadd.f32 %v1296, %v1332
        %v1365 = vsub.f32 1.0, %v960
        %v1366 = vsub.f32 %v1365, %v958
        %v1367 = vlaneseq
        %v1368 = vshrl.u32 %v1367, 7
        %v1369 = vsub.s32 0, %v1368
        %v1370 = vrot.slane %v1366, %v1369
        %v1371 = vmul.f32 %v1370, %v698
        %v1372 = vmul.f32 %v1370, %v700
        %v1373 = vmul.f32 %v1370, %v702
        %v1374 = vmul.f32 %v1370, %v704
        %v1375 = vmul.f32 %v1370, %v706
        %v1376 = vmul.f32 %v1370, %v708
        %v1377 = vmul.f32 %v1370, %v710
        %v1378 = vmul.f32 %v1370, %v712
        %v1379 = vmul.f32 %v1370, %v714
        %v1380 = vmul.f32 %v1370, %v716
        %v1381 = vmul.f32 %v1370, %v718
        %v1382 = vmul.f32 %v1370, %v720
        %v1383 = vmul.f32 %v1370, %v722
        %v1384 = vmul.f32 %v1370, %v724
        %v1385 = vmul.f32 %v1370, %v726
        %v1386 = vmul.f32 %v1370, %v728
        %v1387 = vmul.f32 %v1370, %v730
        %v1388 = vmul.f32 %v1370, %v732
        %v1389 = vmul.f32 %v1370, %v734
        %v1390 = vmul.f32 %v1370, %v736
        %v1391 = vmul.f32 %v1370, %v738
        %v1392 = vmul.f32 %v1370, %v740
        %v1393 = vmul.f32 %v1370, %v742
        %v1394 = vmul.f32 %v1370, %v744
        %v1395 = vmul.f32 %v1370, %v746
        %v1396 = vmul.f32 %v1370, %v748
        %v1397 = vmul.f32 %v1370, %v750
        %v1398 = vmul.f32 %v1370, %v752
        %v1399 = vmul.f32 %v1370, %v754
        %v1400 = vmul.f32 %v1370, %v756
        %v1401 = vmul.f32 %v1370, %v758
        %v1402 = vmul.f32 %v1370, %v760
        %v1403 = vadd.f32 %v1333, %v1371
        %v1404 = vadd.f32 %v1334, %v1372
        %v1405 = vadd.f32 %v1335, %v1373
        %v1406 = vadd.f32 %v1336, %v1374
        %v1407 = vadd.f32 %v1337, %v1375
        %v1408 = vadd.f32 %v1338, %v1376
        %v1409 = vadd.f32 %v1339, %v1377
        %v1410 = vadd.f32 %v1340, %v1378
        %v1411 = vadd.f32 %v1341, %v1379
        %v1412 = vadd.f32 %v1342, %v1380
        %v1413 = vadd.f32 %v1343, %v1381
        %v1414 = vadd.f32 %v1344, %v1382
        %v1415 = vadd.f32 %v1345, %v1383
        %v1416 = vadd.f32 %v1346, %v1384
        %v1417 = vadd.f32 %v1347, %v1385
        %v1418 = vadd.f32 %v1348, %v1386
        %v1419 = vadd.f32 %v1349, %v1387
        %v1420 = vadd.f32 %v1350, %v1388
        %v1421 = vadd.f32 %v1351, %v1389
        %v1422 = vadd.f32 %v1352, %v1390
        %v1423 = vadd.f32 %v1353, %v1391
        %v1424 = vadd.f32 %v1354, %v1392
        %v1425 = vadd.f32 %v1355, %v1393
        %v1426 = vadd.f32 %v1356, %v1394
        %v1427 = vadd.f32 %v1357, %v1395
        %v1428 = vadd.f32 %v1358, %v1396
        %v1429 = vadd.f32 %v1359, %v1397
        %v1430 = vadd.f32 %v1360, %v1398
        %v1431 = vadd.f32 %v1361, %v1399
        %v1432 = vadd.f32 %v1362, %v1400
        %v1433 = vadd.f32 %v1363, %v1401
        %v1434 = vadd.f32 %v1364, %v1402
        %vm1435 = vcmask 64512
        %1436 = vst.msk [vmem:[%s214] sm:$0xff] %vm1435, %v443
        %1437 = vst.msk [vmem:[%s214 + $0x8] sm:$0xff] %vm1435, %v446
        %1438 = vst.msk [vmem:[%s214 + $0x10] sm:$0xff] %vm1435, %v451
        %1439 = vst.msk [vmem:[%s214 + $0x18] sm:$0xff] %vm1435, %v454
        %1440 = vst.msk [vmem:[%s214 + $0x20] sm:$0xff] %vm1435, %v459
        %1441 = vst.msk [vmem:[%s214 + $0x28] sm:$0xff] %vm1435, %v462
        %1442 = vst.msk [vmem:[%s214 + $0x30] sm:$0xff] %vm1435, %v467
        %1443 = vst.msk [vmem:[%s214 + $0x38] sm:$0xff] %vm1435, %v470
        %1444 = vst.msk [vmem:[%s214 + $0x40] sm:$0xff] %vm1435, %v475
        %1445 = vst.msk [vmem:[%s214 + $0x48] sm:$0xff] %vm1435, %v478
        %1446 = vst.msk [vmem:[%s214 + $0x50] sm:$0xff] %vm1435, %v483
        %1447 = vst.msk [vmem:[%s214 + $0x58] sm:$0xff] %vm1435, %v486
        %1448 = vst.msk [vmem:[%s214 + $0x60] sm:$0xff] %vm1435, %v491
        %1449 = vst.msk [vmem:[%s214 + $0x68] sm:$0xff] %vm1435, %v494
        %1450 = vst.msk [vmem:[%s214 + $0x70] sm:$0xff] %vm1435, %v499
        %1451 = vst.msk [vmem:[%s214 + $0x78] sm:$0xff] %vm1435, %v502
        %1452 = vst.msk [vmem:[%s214 + $0x80] sm:$0xff] %vm1435, %v507
        %1453 = vst.msk [vmem:[%s214 + $0x88] sm:$0xff] %vm1435, %v510
        %1454 = vst.msk [vmem:[%s214 + $0x90] sm:$0xff] %vm1435, %v515
        %1455 = vst.msk [vmem:[%s214 + $0x98] sm:$0xff] %vm1435, %v518
        %1456 = vst.msk [vmem:[%s214 + $0xa0] sm:$0xff] %vm1435, %v523
        %1457 = vst.msk [vmem:[%s214 + $0xa8] sm:$0xff] %vm1435, %v526
        %1458 = vst.msk [vmem:[%s214 + $0xb0] sm:$0xff] %vm1435, %v531
        %1459 = vst.msk [vmem:[%s214 + $0xb8] sm:$0xff] %vm1435, %v534
        %1460 = vst.msk [vmem:[%s214 + $0xc0] sm:$0xff] %vm1435, %v539
        %1461 = vst.msk [vmem:[%s214 + $0xc8] sm:$0xff] %vm1435, %v542
        %1462 = vst.msk [vmem:[%s214 + $0xd0] sm:$0xff] %vm1435, %v547
        %1463 = vst.msk [vmem:[%s214 + $0xd8] sm:$0xff] %vm1435, %v550
        %1464 = vst.msk [vmem:[%s214 + $0xe0] sm:$0xff] %vm1435, %v555
        %1465 = vst.msk [vmem:[%s214 + $0xe8] sm:$0xff] %vm1435, %v558
        %1466 = vst.msk [vmem:[%s214 + $0xf0] sm:$0xff] %vm1435, %v563
        %1467 = vst.msk [vmem:[%s214 + $0xf8] sm:$0xff] %vm1435, %v566
        %1468 = vst.msk [vmem:[%s220] sm:$0xff] %vm1435, %v1403
        %1469 = vst.msk [vmem:[%s220 + $0x8] sm:$0xff] %vm1435, %v1404
        %1470 = vst.msk [vmem:[%s220 + $0x10] sm:$0xff] %vm1435, %v1405
        %1471 = vst.msk [vmem:[%s220 + $0x18] sm:$0xff] %vm1435, %v1406
        %1472 = vst.msk [vmem:[%s220 + $0x20] sm:$0xff] %vm1435, %v1407
        %1473 = vst.msk [vmem:[%s220 + $0x28] sm:$0xff] %vm1435, %v1408
        %1474 = vst.msk [vmem:[%s220 + $0x30] sm:$0xff] %vm1435, %v1409
        %1475 = vst.msk [vmem:[%s220 + $0x38] sm:$0xff] %vm1435, %v1410
        %1476 = vst.msk [vmem:[%s220 + $0x40] sm:$0xff] %vm1435, %v1411
        %1477 = vst.msk [vmem:[%s220 + $0x48] sm:$0xff] %vm1435, %v1412
        %1478 = vst.msk [vmem:[%s220 + $0x50] sm:$0xff] %vm1435, %v1413
        %1479 = vst.msk [vmem:[%s220 + $0x58] sm:$0xff] %vm1435, %v1414
        %1480 = vst.msk [vmem:[%s220 + $0x60] sm:$0xff] %vm1435, %v1415
        %1481 = vst.msk [vmem:[%s220 + $0x68] sm:$0xff] %vm1435, %v1416
        %1482 = vst.msk [vmem:[%s220 + $0x70] sm:$0xff] %vm1435, %v1417
        %1483 = vst.msk [vmem:[%s220 + $0x78] sm:$0xff] %vm1435, %v1418
        %1484 = vst.msk [vmem:[%s220 + $0x80] sm:$0xff] %vm1435, %v1419
        %1485 = vst.msk [vmem:[%s220 + $0x88] sm:$0xff] %vm1435, %v1420
        %1486 = vst.msk [vmem:[%s220 + $0x90] sm:$0xff] %vm1435, %v1421
        %1487 = vst.msk [vmem:[%s220 + $0x98] sm:$0xff] %vm1435, %v1422
        %1488 = vst.msk [vmem:[%s220 + $0xa0] sm:$0xff] %vm1435, %v1423
        %1489 = vst.msk [vmem:[%s220 + $0xa8] sm:$0xff] %vm1435, %v1424
        %1490 = vst.msk [vmem:[%s220 + $0xb0] sm:$0xff] %vm1435, %v1425
        %1491 = vst.msk [vmem:[%s220 + $0xb8] sm:$0xff] %vm1435, %v1426
        %1492 = vst.msk [vmem:[%s220 + $0xc0] sm:$0xff] %vm1435, %v1427
        %1493 = vst.msk [vmem:[%s220 + $0xc8] sm:$0xff] %vm1435, %v1428
        %1494 = vst.msk [vmem:[%s220 + $0xd0] sm:$0xff] %vm1435, %v1429
        %1495 = vst.msk [vmem:[%s220 + $0xd8] sm:$0xff] %vm1435, %v1430
        %1496 = vst.msk [vmem:[%s220 + $0xe0] sm:$0xff] %vm1435, %v1431
        %1497 = vst.msk [vmem:[%s220 + $0xe8] sm:$0xff] %vm1435, %v1432
        %1498 = vst.msk [vmem:[%s220 + $0xf0] sm:$0xff] %vm1435, %v1433
        %1499 = vst.msk [vmem:[%s220 + $0xf8] sm:$0xff] %vm1435, %v1434
        %1532 = vrot.lane.b32.xlu0 %v443, 120
        %v1533 = vpop.permute.xlu0 %1532
        %1534 = vrot.lane.b32.xlu0 %v446, 120
        %v1535 = vpop.permute.xlu0 %1534
        %1536 = vrot.lane.b32.xlu0 %v451, 120
        %v1537 = vpop.permute.xlu0 %1536
        %1538 = vrot.lane.b32.xlu0 %v454, 120
        %v1539 = vpop.permute.xlu0 %1538
        %1540 = vrot.lane.b32.xlu0 %v459, 120
        %v1541 = vpop.permute.xlu0 %1540
        %1542 = vrot.lane.b32.xlu0 %v462, 120
        %v1543 = vpop.permute.xlu0 %1542
        %1544 = vrot.lane.b32.xlu0 %v467, 120
        %v1545 = vpop.permute.xlu0 %1544
        %1546 = vrot.lane.b32.xlu0 %v470, 120
        %v1547 = vpop.permute.xlu0 %1546
        %1548 = vrot.lane.b32.xlu0 %v475, 120
        %v1549 = vpop.permute.xlu0 %1548
        %1550 = vrot.lane.b32.xlu0 %v478, 120
        %v1551 = vpop.permute.xlu0 %1550
        %1552 = vrot.lane.b32.xlu0 %v483, 120
        %v1553 = vpop.permute.xlu0 %1552
        %1554 = vrot.lane.b32.xlu0 %v486, 120
        %v1555 = vpop.permute.xlu0 %1554
        %1556 = vrot.lane.b32.xlu0 %v491, 120
        %v1557 = vpop.permute.xlu0 %1556
        %1558 = vrot.lane.b32.xlu0 %v494, 120
        %v1559 = vpop.permute.xlu0 %1558
        %1560 = vrot.lane.b32.xlu0 %v499, 120
        %v1561 = vpop.permute.xlu0 %1560
        %1562 = vrot.lane.b32.xlu0 %v502, 120
        %v1563 = vpop.permute.xlu0 %1562
        %1564 = vrot.lane.b32.xlu0 %v507, 120
        %v1565 = vpop.permute.xlu0 %1564
        %1566 = vrot.lane.b32.xlu0 %v510, 120
        %v1567 = vpop.permute.xlu0 %1566
        %1568 = vrot.lane.b32.xlu0 %v515, 120
        %v1569 = vpop.permute.xlu0 %1568
        %1570 = vrot.lane.b32.xlu0 %v518, 120
        %v1571 = vpop.permute.xlu0 %1570
        %1572 = vrot.lane.b32.xlu0 %v523, 120
        %v1573 = vpop.permute.xlu0 %1572
        %1574 = vrot.lane.b32.xlu0 %v526, 120
        %v1575 = vpop.permute.xlu0 %1574
        %1576 = vrot.lane.b32.xlu0 %v531, 120
        %v1577 = vpop.permute.xlu0 %1576
        %1578 = vrot.lane.b32.xlu0 %v534, 120
        %v1579 = vpop.permute.xlu0 %1578
        %1580 = vrot.lane.b32.xlu0 %v539, 120
        %v1581 = vpop.permute.xlu0 %1580
        %1582 = vrot.lane.b32.xlu0 %v542, 120
        %v1583 = vpop.permute.xlu0 %1582
        %1584 = vrot.lane.b32.xlu0 %v547, 120
        %v1585 = vpop.permute.xlu0 %1584
        %1586 = vrot.lane.b32.xlu0 %v550, 120
        %v1587 = vpop.permute.xlu0 %1586
        %1588 = vrot.lane.b32.xlu0 %v555, 120
        %v1589 = vpop.permute.xlu0 %1588
        %1590 = vrot.lane.b32.xlu0 %v558, 120
        %v1591 = vpop.permute.xlu0 %1590
        %1592 = vrot.lane.b32.xlu0 %v563, 120
        %v1593 = vpop.permute.xlu0 %1592
        %1594 = vrot.lane.b32.xlu0 %v566, 120
        %v1595 = vpop.permute.xlu0 %1594
        %s1628 = scalar_lea.vmem %s214, 256 [#allocation2]
        %1629 = vst.msk [vmem:[%s1628] sm:$0xff] %vm1435, %v1533
        %1630 = vst.msk [vmem:[%s1628 + $0x8] sm:$0xff] %vm1435, %v1535
        %1631 = vst.msk [vmem:[%s1628 + $0x10] sm:$0xff] %vm1435, %v1537
        %1632 = vst.msk [vmem:[%s1628 + $0x18] sm:$0xff] %vm1435, %v1539
        %1633 = vst.msk [vmem:[%s1628 + $0x20] sm:$0xff] %vm1435, %v1541
        %1634 = vst.msk [vmem:[%s1628 + $0x28] sm:$0xff] %vm1435, %v1543
        %1635 = vst.msk [vmem:[%s1628 + $0x30] sm:$0xff] %vm1435, %v1545
        %1636 = vst.msk [vmem:[%s1628 + $0x38] sm:$0xff] %vm1435, %v1547
        %1637 = vst.msk [vmem:[%s1628 + $0x40] sm:$0xff] %vm1435, %v1549
        %1638 = vst.msk [vmem:[%s1628 + $0x48] sm:$0xff] %vm1435, %v1551
        %1639 = vst.msk [vmem:[%s1628 + $0x50] sm:$0xff] %vm1435, %v1553
        %1640 = vst.msk [vmem:[%s1628 + $0x58] sm:$0xff] %vm1435, %v1555
        %1641 = vst.msk [vmem:[%s1628 + $0x60] sm:$0xff] %vm1435, %v1557
        %1642 = vst.msk [vmem:[%s1628 + $0x68] sm:$0xff] %vm1435, %v1559
        %1643 = vst.msk [vmem:[%s1628 + $0x70] sm:$0xff] %vm1435, %v1561
        %1644 = vst.msk [vmem:[%s1628 + $0x78] sm:$0xff] %vm1435, %v1563
        %1645 = vst.msk [vmem:[%s1628 + $0x80] sm:$0xff] %vm1435, %v1565
        %1646 = vst.msk [vmem:[%s1628 + $0x88] sm:$0xff] %vm1435, %v1567
        %1647 = vst.msk [vmem:[%s1628 + $0x90] sm:$0xff] %vm1435, %v1569
        %1648 = vst.msk [vmem:[%s1628 + $0x98] sm:$0xff] %vm1435, %v1571
        %1649 = vst.msk [vmem:[%s1628 + $0xa0] sm:$0xff] %vm1435, %v1573
        %1650 = vst.msk [vmem:[%s1628 + $0xa8] sm:$0xff] %vm1435, %v1575
        %1651 = vst.msk [vmem:[%s1628 + $0xb0] sm:$0xff] %vm1435, %v1577
        %1652 = vst.msk [vmem:[%s1628 + $0xb8] sm:$0xff] %vm1435, %v1579
        %1653 = vst.msk [vmem:[%s1628 + $0xc0] sm:$0xff] %vm1435, %v1581
        %1654 = vst.msk [vmem:[%s1628 + $0xc8] sm:$0xff] %vm1435, %v1583
        %1655 = vst.msk [vmem:[%s1628 + $0xd0] sm:$0xff] %vm1435, %v1585
        %1656 = vst.msk [vmem:[%s1628 + $0xd8] sm:$0xff] %vm1435, %v1587
        %1657 = vst.msk [vmem:[%s1628 + $0xe0] sm:$0xff] %vm1435, %v1589
        %1658 = vst.msk [vmem:[%s1628 + $0xe8] sm:$0xff] %vm1435, %v1591
        %1659 = vst.msk [vmem:[%s1628 + $0xf0] sm:$0xff] %vm1435, %v1593
        %1660 = vst.msk [vmem:[%s1628 + $0xf8] sm:$0xff] %vm1435, %v1595
        %1693 = vrot.lane.b32.xlu0 %v1403, 120
        %v1694 = vpop.permute.xlu0 %1693
        %1695 = vrot.lane.b32.xlu0 %v1404, 120
        %v1696 = vpop.permute.xlu0 %1695
        %1697 = vrot.lane.b32.xlu0 %v1405, 120
        %v1698 = vpop.permute.xlu0 %1697
        %1699 = vrot.lane.b32.xlu0 %v1406, 120
        %v1700 = vpop.permute.xlu0 %1699
        %1701 = vrot.lane.b32.xlu0 %v1407, 120
        %v1702 = vpop.permute.xlu0 %1701
        %1703 = vrot.lane.b32.xlu0 %v1408, 120
        %v1704 = vpop.permute.xlu0 %1703
        %1705 = vrot.lane.b32.xlu0 %v1409, 120
        %v1706 = vpop.permute.xlu0 %1705
        %1707 = vrot.lane.b32.xlu0 %v1410, 120
        %v1708 = vpop.permute.xlu0 %1707
        %1709 = vrot.lane.b32.xlu0 %v1411, 120
        %v1710 = vpop.permute.xlu0 %1709
        %1711 = vrot.lane.b32.xlu0 %v1412, 120
        %v1712 = vpop.permute.xlu0 %1711
        %1713 = vrot.lane.b32.xlu0 %v1413, 120
        %v1714 = vpop.permute.xlu0 %1713
        %1715 = vrot.lane.b32.xlu0 %v1414, 120
        %v1716 = vpop.permute.xlu0 %1715
        %1717 = vrot.lane.b32.xlu0 %v1415, 120
        %v1718 = vpop.permute.xlu0 %1717
        %1719 = vrot.lane.b32.xlu0 %v1416, 120
        %v1720 = vpop.permute.xlu0 %1719
        %1721 = vrot.lane.b32.xlu0 %v1417, 120
        %v1722 = vpop.permute.xlu0 %1721
        %1723 = vrot.lane.b32.xlu0 %v1418, 120
        %v1724 = vpop.permute.xlu0 %1723
        %1725 = vrot.lane.b32.xlu0 %v1419, 120
        %v1726 = vpop.permute.xlu0 %1725
        %1727 = vrot.lane.b32.xlu0 %v1420, 120
        %v1728 = vpop.permute.xlu0 %1727
        %1729 = vrot.lane.b32.xlu0 %v1421, 120
        %v1730 = vpop.permute.xlu0 %1729
        %1731 = vrot.lane.b32.xlu0 %v1422, 120
        %v1732 = vpop.permute.xlu0 %1731
        %1733 = vrot.lane.b32.xlu0 %v1423, 120
        %v1734 = vpop.permute.xlu0 %1733
        %1735 = vrot.lane.b32.xlu0 %v1424, 120
        %v1736 = vpop.permute.xlu0 %1735
        %1737 = vrot.lane.b32.xlu0 %v1425, 120
        %v1738 = vpop.permute.xlu0 %1737
        %1739 = vrot.lane.b32.xlu0 %v1426, 120
        %v1740 = vpop.permute.xlu0 %1739
        %1741 = vrot.lane.b32.xlu0 %v1427, 120
        %v1742 = vpop.permute.xlu0 %1741
        %1743 = vrot.lane.b32.xlu0 %v1428, 120
        %v1744 = vpop.permute.xlu0 %1743
        %1745 = vrot.lane.b32.xlu0 %v1429, 120
        %v1746 = vpop.permute.xlu0 %1745
        %1747 = vrot.lane.b32.xlu0 %v1430, 120
        %v1748 = vpop.permute.xlu0 %1747
        %1749 = vrot.lane.b32.xlu0 %v1431, 120
        %v1750 = vpop.permute.xlu0 %1749
        %1751 = vrot.lane.b32.xlu0 %v1432, 120
        %v1752 = vpop.permute.xlu0 %1751
        %1753 = vrot.lane.b32.xlu0 %v1433, 120
        %v1754 = vpop.permute.xlu0 %1753
        %1755 = vrot.lane.b32.xlu0 %v1434, 120
        %v1756 = vpop.permute.xlu0 %1755
        %s1789 = scalar_lea.vmem %s220, 256 [#allocation3]
        %1790 = vst.msk [vmem:[%s1789] sm:$0xff] %vm1435, %v1694
        %1791 = vst.msk [vmem:[%s1789 + $0x8] sm:$0xff] %vm1435, %v1696
        %1792 = vst.msk [vmem:[%s1789 + $0x10] sm:$0xff] %vm1435, %v1698
        %1793 = vst.msk [vmem:[%s1789 + $0x18] sm:$0xff] %vm1435, %v1700
        %1794 = vst.msk [vmem:[%s1789 + $0x20] sm:$0xff] %vm1435, %v1702
        %1795 = vst.msk [vmem:[%s1789 + $0x28] sm:$0xff] %vm1435, %v1704
        %1796 = vst.msk [vmem:[%s1789 + $0x30] sm:$0xff] %vm1435, %v1706
        %1797 = vst.msk [vmem:[%s1789 + $0x38] sm:$0xff] %vm1435, %v1708
        %1798 = vst.msk [vmem:[%s1789 + $0x40] sm:$0xff] %vm1435, %v1710
        %1799 = vst.msk [vmem:[%s1789 + $0x48] sm:$0xff] %vm1435, %v1712
        %1800 = vst.msk [vmem:[%s1789 + $0x50] sm:$0xff] %vm1435, %v1714
        %1801 = vst.msk [vmem:[%s1789 + $0x58] sm:$0xff] %vm1435, %v1716
        %1802 = vst.msk [vmem:[%s1789 + $0x60] sm:$0xff] %vm1435, %v1718
        %1803 = vst.msk [vmem:[%s1789 + $0x68] sm:$0xff] %vm1435, %v1720
        %1804 = vst.msk [vmem:[%s1789 + $0x70] sm:$0xff] %vm1435, %v1722
        %1805 = vst.msk [vmem:[%s1789 + $0x78] sm:$0xff] %vm1435, %v1724
        %1806 = vst.msk [vmem:[%s1789 + $0x80] sm:$0xff] %vm1435, %v1726
        %1807 = vst.msk [vmem:[%s1789 + $0x88] sm:$0xff] %vm1435, %v1728
        %1808 = vst.msk [vmem:[%s1789 + $0x90] sm:$0xff] %vm1435, %v1730
        %1809 = vst.msk [vmem:[%s1789 + $0x98] sm:$0xff] %vm1435, %v1732
        %1810 = vst.msk [vmem:[%s1789 + $0xa0] sm:$0xff] %vm1435, %v1734
        %1811 = vst.msk [vmem:[%s1789 + $0xa8] sm:$0xff] %vm1435, %v1736
        %1812 = vst.msk [vmem:[%s1789 + $0xb0] sm:$0xff] %vm1435, %v1738
        %1813 = vst.msk [vmem:[%s1789 + $0xb8] sm:$0xff] %vm1435, %v1740
        %1814 = vst.msk [vmem:[%s1789 + $0xc0] sm:$0xff] %vm1435, %v1742
        %1815 = vst.msk [vmem:[%s1789 + $0xc8] sm:$0xff] %vm1435, %v1744
        %1816 = vst.msk [vmem:[%s1789 + $0xd0] sm:$0xff] %vm1435, %v1746
        %1817 = vst.msk [vmem:[%s1789 + $0xd8] sm:$0xff] %vm1435, %v1748
        %1818 = vst.msk [vmem:[%s1789 + $0xe0] sm:$0xff] %vm1435, %v1750
        %1819 = vst.msk [vmem:[%s1789 + $0xe8] sm:$0xff] %vm1435, %v1752
        %1820 = vst.msk [vmem:[%s1789 + $0xf0] sm:$0xff] %vm1435, %v1754
        %1821 = vst.msk [vmem:[%s1789 + $0xf8] sm:$0xff] %vm1435, %v1756
        %1822 = vrot.lane.b32.xlu0 %v443, 112
        %v1823 = vpop.permute.xlu0 %1822
        %1824 = vrot.lane.b32.xlu0 %v446, 112
        %v1825 = vpop.permute.xlu0 %1824
        %1826 = vrot.lane.b32.xlu0 %v451, 112
        %v1827 = vpop.permute.xlu0 %1826
        %1828 = vrot.lane.b32.xlu0 %v454, 112
        %v1829 = vpop.permute.xlu0 %1828
        %1830 = vrot.lane.b32.xlu0 %v459, 112
        %v1831 = vpop.permute.xlu0 %1830
        %1832 = vrot.lane.b32.xlu0 %v462, 112
        %v1833 = vpop.permute.xlu0 %1832
        %1834 = vrot.lane.b32.xlu0 %v467, 112
        %v1835 = vpop.permute.xlu0 %1834
        %1836 = vrot.lane.b32.xlu0 %v470, 112
        %v1837 = vpop.permute.xlu0 %1836
        %1838 = vrot.lane.b32.xlu0 %v475, 112
        %v1839 = vpop.permute.xlu0 %1838
        %1840 = vrot.lane.b32.xlu0 %v478, 112
        %v1841 = vpop.permute.xlu0 %1840
        %1842 = vrot.lane.b32.xlu0 %v483, 112
        %v1843 = vpop.permute.xlu0 %1842
        %1844 = vrot.lane.b32.xlu0 %v486, 112
        %v1845 = vpop.permute.xlu0 %1844
        %1846 = vrot.lane.b32.xlu0 %v491, 112
        %v1847 = vpop.permute.xlu0 %1846
        %1848 = vrot.lane.b32.xlu0 %v494, 112
        %v1849 = vpop.permute.xlu0 %1848
        %1850 = vrot.lane.b32.xlu0 %v499, 112
        %v1851 = vpop.permute.xlu0 %1850
        %1852 = vrot.lane.b32.xlu0 %v502, 112
        %v1853 = vpop.permute.xlu0 %1852
        %1854 = vrot.lane.b32.xlu0 %v507, 112
        %v1855 = vpop.permute.xlu0 %1854
        %1856 = vrot.lane.b32.xlu0 %v510, 112
        %v1857 = vpop.permute.xlu0 %1856
        %1858 = vrot.lane.b32.xlu0 %v515, 112
        %v1859 = vpop.permute.xlu0 %1858
        %1860 = vrot.lane.b32.xlu0 %v518, 112
        %v1861 = vpop.permute.xlu0 %1860
        %1862 = vrot.lane.b32.xlu0 %v523, 112
        %v1863 = vpop.permute.xlu0 %1862
        %1864 = vrot.lane.b32.xlu0 %v526, 112
        %v1865 = vpop.permute.xlu0 %1864
        %1866 = vrot.lane.b32.xlu0 %v531, 112
        %v1867 = vpop.permute.xlu0 %1866
        %1868 = vrot.lane.b32.xlu0 %v534, 112
        %v1869 = vpop.permute.xlu0 %1868
        %1870 = vrot.lane.b32.xlu0 %v539, 112
        %v1871 = vpop.permute.xlu0 %1870
        %1872 = vrot.lane.b32.xlu0 %v542, 112
        %v1873 = vpop.permute.xlu0 %1872
        %1874 = vrot.lane.b32.xlu0 %v547, 112
        %v1875 = vpop.permute.xlu0 %1874
        %1876 = vrot.lane.b32.xlu0 %v550, 112
        %v1877 = vpop.permute.xlu0 %1876
        %1878 = vrot.lane.b32.xlu0 %v555, 112
        %v1879 = vpop.permute.xlu0 %1878
        %1880 = vrot.lane.b32.xlu0 %v558, 112
        %v1881 = vpop.permute.xlu0 %1880
        %1882 = vrot.lane.b32.xlu0 %v563, 112
        %v1883 = vpop.permute.xlu0 %1882
        %1884 = vrot.lane.b32.xlu0 %v566, 112
        %v1885 = vpop.permute.xlu0 %1884
        %s1918 = scalar_lea.vmem %s214, 512 [#allocation2]
        %1919 = vst.msk [vmem:[%s1918] sm:$0xff] %vm1435, %v1823
        %1920 = vst.msk [vmem:[%s1918 + $0x8] sm:$0xff] %vm1435, %v1825
        %1921 = vst.msk [vmem:[%s1918 + $0x10] sm:$0xff] %vm1435, %v1827
        %1922 = vst.msk [vmem:[%s1918 + $0x18] sm:$0xff] %vm1435, %v1829
        %1923 = vst.msk [vmem:[%s1918 + $0x20] sm:$0xff] %vm1435, %v1831
        %1924 = vst.msk [vmem:[%s1918 + $0x28] sm:$0xff] %vm1435, %v1833
        %1925 = vst.msk [vmem:[%s1918 + $0x30] sm:$0xff] %vm1435, %v1835
        %1926 = vst.msk [vmem:[%s1918 + $0x38] sm:$0xff] %vm1435, %v1837
        %1927 = vst.msk [vmem:[%s1918 + $0x40] sm:$0xff] %vm1435, %v1839
        %1928 = vst.msk [vmem:[%s1918 + $0x48] sm:$0xff] %vm1435, %v1841
        %1929 = vst.msk [vmem:[%s1918 + $0x50] sm:$0xff] %vm1435, %v1843
        %1930 = vst.msk [vmem:[%s1918 + $0x58] sm:$0xff] %vm1435, %v1845
        %1931 = vst.msk [vmem:[%s1918 + $0x60] sm:$0xff] %vm1435, %v1847
        %1932 = vst.msk [vmem:[%s1918 + $0x68] sm:$0xff] %vm1435, %v1849
        %1933 = vst.msk [vmem:[%s1918 + $0x70] sm:$0xff] %vm1435, %v1851
        %1934 = vst.msk [vmem:[%s1918 + $0x78] sm:$0xff] %vm1435, %v1853
        %1935 = vst.msk [vmem:[%s1918 + $0x80] sm:$0xff] %vm1435, %v1855
        %1936 = vst.msk [vmem:[%s1918 + $0x88] sm:$0xff] %vm1435, %v1857
        %1937 = vst.msk [vmem:[%s1918 + $0x90] sm:$0xff] %vm1435, %v1859
        %1938 = vst.msk [vmem:[%s1918 + $0x98] sm:$0xff] %vm1435, %v1861
        %1939 = vst.msk [vmem:[%s1918 + $0xa0] sm:$0xff] %vm1435, %v1863
        %1940 = vst.msk [vmem:[%s1918 + $0xa8] sm:$0xff] %vm1435, %v1865
        %1941 = vst.msk [vmem:[%s1918 + $0xb0] sm:$0xff] %vm1435, %v1867
        %1942 = vst.msk [vmem:[%s1918 + $0xb8] sm:$0xff] %vm1435, %v1869
        %1943 = vst.msk [vmem:[%s1918 + $0xc0] sm:$0xff] %vm1435, %v1871
        %1944 = vst.msk [vmem:[%s1918 + $0xc8] sm:$0xff] %vm1435, %v1873
        %1945 = vst.msk [vmem:[%s1918 + $0xd0] sm:$0xff] %vm1435, %v1875
        %1946 = vst.msk [vmem:[%s1918 + $0xd8] sm:$0xff] %vm1435, %v1877
        %1947 = vst.msk [vmem:[%s1918 + $0xe0] sm:$0xff] %vm1435, %v1879
        %1948 = vst.msk [vmem:[%s1918 + $0xe8] sm:$0xff] %vm1435, %v1881
        %1949 = vst.msk [vmem:[%s1918 + $0xf0] sm:$0xff] %vm1435, %v1883
        %1950 = vst.msk [vmem:[%s1918 + $0xf8] sm:$0xff] %vm1435, %v1885
        %1951 = vrot.lane.b32.xlu0 %v1403, 112
        %v1952 = vpop.permute.xlu0 %1951
        %1953 = vrot.lane.b32.xlu0 %v1404, 112
        %v1954 = vpop.permute.xlu0 %1953
        %1955 = vrot.lane.b32.xlu0 %v1405, 112
        %v1956 = vpop.permute.xlu0 %1955
        %1957 = vrot.lane.b32.xlu0 %v1406, 112
        %v1958 = vpop.permute.xlu0 %1957
        %1959 = vrot.lane.b32.xlu0 %v1407, 112
        %v1960 = vpop.permute.xlu0 %1959
        %1961 = vrot.lane.b32.xlu0 %v1408, 112
        %v1962 = vpop.permute.xlu0 %1961
        %1963 = vrot.lane.b32.xlu0 %v1409, 112
        %v1964 = vpop.permute.xlu0 %1963
        %1965 = vrot.lane.b32.xlu0 %v1410, 112
        %v1966 = vpop.permute.xlu0 %1965
        %1967 = vrot.lane.b32.xlu0 %v1411, 112
        %v1968 = vpop.permute.xlu0 %1967
        %1969 = vrot.lane.b32.xlu0 %v1412, 112
        %v1970 = vpop.permute.xlu0 %1969
        %1971 = vrot.lane.b32.xlu0 %v1413, 112
        %v1972 = vpop.permute.xlu0 %1971
        %1973 = vrot.lane.b32.xlu0 %v1414, 112
        %v1974 = vpop.permute.xlu0 %1973
        %1975 = vrot.lane.b32.xlu0 %v1415, 112
        %v1976 = vpop.permute.xlu0 %1975
        %1977 = vrot.lane.b32.xlu0 %v1416, 112
        %v1978 = vpop.permute.xlu0 %1977
        %1979 = vrot.lane.b32.xlu0 %v1417, 112
        %v1980 = vpop.permute.xlu0 %1979
        %1981 = vrot.lane.b32.xlu0 %v1418, 112
        %v1982 = vpop.permute.xlu0 %1981
        %1983 = vrot.lane.b32.xlu0 %v1419, 112
        %v1984 = vpop.permute.xlu0 %1983
        %1985 = vrot.lane.b32.xlu0 %v1420, 112
        %v1986 = vpop.permute.xlu0 %1985
        %1987 = vrot.lane.b32.xlu0 %v1421, 112
        %v1988 = vpop.permute.xlu0 %1987
        %1989 = vrot.lane.b32.xlu0 %v1422, 112
        %v1990 = vpop.permute.xlu0 %1989
        %1991 = vrot.lane.b32.xlu0 %v1423, 112
        %v1992 = vpop.permute.xlu0 %1991
        %1993 = vrot.lane.b32.xlu0 %v1424, 112
        %v1994 = vpop.permute.xlu0 %1993
        %1995 = vrot.lane.b32.xlu0 %v1425, 112
        %v1996 = vpop.permute.xlu0 %1995
        %1997 = vrot.lane.b32.xlu0 %v1426, 112
        %v1998 = vpop.permute.xlu0 %1997
        %1999 = vrot.lane.b32.xlu0 %v1427, 112
        %v2000 = vpop.permute.xlu0 %1999
        %2001 = vrot.lane.b32.xlu0 %v1428, 112
        %v2002 = vpop.permute.xlu0 %2001
        %2003 = vrot.lane.b32.xlu0 %v1429, 112
        %v2004 = vpop.permute.xlu0 %2003
        %2005 = vrot.lane.b32.xlu0 %v1430, 112
        %v2006 = vpop.permute.xlu0 %2005
        %2007 = vrot.lane.b32.xlu0 %v1431, 112
        %v2008 = vpop.permute.xlu0 %2007
        %2009 = vrot.lane.b32.xlu0 %v1432, 112
        %v2010 = vpop.permute.xlu0 %2009
        %2011 = vrot.lane.b32.xlu0 %v1433, 112
        %v2012 = vpop.permute.xlu0 %2011
        %2013 = vrot.lane.b32.xlu0 %v1434, 112
        %v2014 = vpop.permute.xlu0 %2013
        %s2047 = scalar_lea.vmem %s220, 512 [#allocation3]
        %2048 = vst.msk [vmem:[%s2047] sm:$0xff] %vm1435, %v1952
        %2049 = vst.msk [vmem:[%s2047 + $0x8] sm:$0xff] %vm1435, %v1954
        %2050 = vst.msk [vmem:[%s2047 + $0x10] sm:$0xff] %vm1435, %v1956
        %2051 = vst.msk [vmem:[%s2047 + $0x18] sm:$0xff] %vm1435, %v1958
        %2052 = vst.msk [vmem:[%s2047 + $0x20] sm:$0xff] %vm1435, %v1960
        %2053 = vst.msk [vmem:[%s2047 + $0x28] sm:$0xff] %vm1435, %v1962
        %2054 = vst.msk [vmem:[%s2047 + $0x30] sm:$0xff] %vm1435, %v1964
        %2055 = vst.msk [vmem:[%s2047 + $0x38] sm:$0xff] %vm1435, %v1966
        %2056 = vst.msk [vmem:[%s2047 + $0x40] sm:$0xff] %vm1435, %v1968
        %2057 = vst.msk [vmem:[%s2047 + $0x48] sm:$0xff] %vm1435, %v1970
        %2058 = vst.msk [vmem:[%s2047 + $0x50] sm:$0xff] %vm1435, %v1972
        %2059 = vst.msk [vmem:[%s2047 + $0x58] sm:$0xff] %vm1435, %v1974
        %2060 = vst.msk [vmem:[%s2047 + $0x60] sm:$0xff] %vm1435, %v1976
        %2061 = vst.msk [vmem:[%s2047 + $0x68] sm:$0xff] %vm1435, %v1978
        %2062 = vst.msk [vmem:[%s2047 + $0x70] sm:$0xff] %vm1435, %v1980
        %2063 = vst.msk [vmem:[%s2047 + $0x78] sm:$0xff] %vm1435, %v1982
        %2064 = vst.msk [vmem:[%s2047 + $0x80] sm:$0xff] %vm1435, %v1984
        %2065 = vst.msk [vmem:[%s2047 + $0x88] sm:$0xff] %vm1435, %v1986
        %2066 = vst.msk [vmem:[%s2047 + $0x90] sm:$0xff] %vm1435, %v1988
        %2067 = vst.msk [vmem:[%s2047 + $0x98] sm:$0xff] %vm1435, %v1990
        %2068 = vst.msk [vmem:[%s2047 + $0xa0] sm:$0xff] %vm1435, %v1992
        %2069 = vst.msk [vmem:[%s2047 + $0xa8] sm:$0xff] %vm1435, %v1994
        %2070 = vst.msk [vmem:[%s2047 + $0xb0] sm:$0xff] %vm1435, %v1996
        %2071 = vst.msk [vmem:[%s2047 + $0xb8] sm:$0xff] %vm1435, %v1998
        %2072 = vst.msk [vmem:[%s2047 + $0xc0] sm:$0xff] %vm1435, %v2000
        %2073 = vst.msk [vmem:[%s2047 + $0xc8] sm:$0xff] %vm1435, %v2002
        %2074 = vst.msk [vmem:[%s2047 + $0xd0] sm:$0xff] %vm1435, %v2004
        %2075 = vst.msk [vmem:[%s2047 + $0xd8] sm:$0xff] %vm1435, %v2006
        %2076 = vst.msk [vmem:[%s2047 + $0xe0] sm:$0xff] %vm1435, %v2008
        %2077 = vst.msk [vmem:[%s2047 + $0xe8] sm:$0xff] %vm1435, %v2010
        %2078 = vst.msk [vmem:[%s2047 + $0xf0] sm:$0xff] %vm1435, %v2012
        %2079 = vst.msk [vmem:[%s2047 + $0xf8] sm:$0xff] %vm1435, %v2014
        %s2080 = sand.u32 %s108, 1
        %s2081 = sand.u32 %s108, 1
        %s2082 = smul.addr %s2081, 768
        %s2083 = scalar_lea.vmem [#allocation2], %s2082
        %s2084 = sand.u32 %s136, 1
        %s2085 = sand.u32 %s136, 1
        %s2086 = smul.addr %s2085, 768
        %s2087 = scalar_lea.vmem [#allocation3], %s2086
        // Predicated region
        $region33: #{_lambda_.9} parent=31 // pred_check
          %p2088 = pneg %p118
        $region34: #{_lambda_.9} parent=31 // pred_check_branch
          %2090 = sbr.rel (%p2088) target = $region36
        $region35: #{_lambda_.9} parent=31 // pred_region
          %s2091 = smul.u32 32, %s21
          %s2092 = smul.addr %s20, 384
          %s2093 = sadd.s32 %s2091, %s2092
          %s2094 = smul.addr %s2093, 8
          %s2095 = scalar_lea.vmem %s3, %s2094
          // Predicated region
          $region37: #{_lambda_.9} parent=35 // pred_check
            _
          $region38: #{_lambda_.9} parent=35 // pred_check_branch
            %2097 = sbr.rel (0) target = $region40
          $region39: #{_lambda_.9} parent=35 // pred_region
            // Predicated region
            $region41: #{_lambda_.9} parent=39 // pred_check
              _
            $region42: #{_lambda_.9} parent=39 // pred_check_branch
              %2099 = sbr.rel (0) target = $region44
            $region43: #{_lambda_.9} parent=39 // pred_region
              // Predicated region
              $region56: #{_lambda_.9} parent=43 // pred_check
                _
              $region57: #{_lambda_.9} parent=43 // pred_check_branch
                %2304 = sbr.rel (0) target = $region59
              $region58: #{_lambda_.9} parent=43 // pred_region
                loop: start=0, step=1, limit=1
                $region60: #{_lambda_.9} parent=58 // loop_pre_header
                  _
                $region61: #{_lambda_.9} parent=58 // loop_header
                  %s2306 = sphi 0, %s2310
                  %p2307 = scmp.ge.s32.totalorder %s2306, 1
                  %s2311 = sphi %s2083, %s2083
                  %s2312 = sphi %s2095, %s2095
                $region62: #{_lambda_.9} parent=58 // loop_header_branch
                  %2309 = sbr.rel (%p2307) target = $region66
                $region63: #{_lambda_.9} parent=58 // loop_body
                  %v2313 = vld [vmem:[%s2311] sm:$0xff]
                  %2314 = vst [vmem:[%s2312] sm:$0xff] %v2313
                  %v2315 = vld [vmem:[%s2311 + $0x8] sm:$0xff]
                  %2316 = vst [vmem:[%s2312 + $0x8] sm:$0xff] %v2315
                  %v2317 = vld [vmem:[%s2311 + $0x10] sm:$0xff]
                  %2318 = vst [vmem:[%s2312 + $0x10] sm:$0xff] %v2317
                  %v2319 = vld [vmem:[%s2311 + $0x18] sm:$0xff]
                  %2320 = vst [vmem:[%s2312 + $0x18] sm:$0xff] %v2319
                  %v2321 = vld [vmem:[%s2311 + $0x20] sm:$0xff]
                  %2322 = vst [vmem:[%s2312 + $0x20] sm:$0xff] %v2321
                  %v2323 = vld [vmem:[%s2311 + $0x28] sm:$0xff]
                  %2324 = vst [vmem:[%s2312 + $0x28] sm:$0xff] %v2323
                  %v2325 = vld [vmem:[%s2311 + $0x30] sm:$0xff]
                  %2326 = vst [vmem:[%s2312 + $0x30] sm:$0xff] %v2325
                  %v2327 = vld [vmem:[%s2311 + $0x38] sm:$0xff]
                  %2328 = vst [vmem:[%s2312 + $0x38] sm:$0xff] %v2327
                  %v2329 = vld [vmem:[%s2311 + $0x40] sm:$0xff]
                  %2330 = vst [vmem:[%s2312 + $0x40] sm:$0xff] %v2329
                  %v2331 = vld [vmem:[%s2311 + $0x48] sm:$0xff]
                  %2332 = vst [vmem:[%s2312 + $0x48] sm:$0xff] %v2331
                  %v2333 = vld [vmem:[%s2311 + $0x50] sm:$0xff]
                  %2334 = vst [vmem:[%s2312 + $0x50] sm:$0xff] %v2333
                  %v2335 = vld [vmem:[%s2311 + $0x58] sm:$0xff]
                  %2336 = vst [vmem:[%s2312 + $0x58] sm:$0xff] %v2335
                  %v2337 = vld [vmem:[%s2311 + $0x60] sm:$0xff]
                  %2338 = vst [vmem:[%s2312 + $0x60] sm:$0xff] %v2337
                  %v2339 = vld [vmem:[%s2311 + $0x68] sm:$0xff]
                  %2340 = vst [vmem:[%s2312 + $0x68] sm:$0xff] %v2339
                  %v2341 = vld [vmem:[%s2311 + $0x70] sm:$0xff]
                  %2342 = vst [vmem:[%s2312 + $0x70] sm:$0xff] %v2341
                  %v2343 = vld [vmem:[%s2311 + $0x78] sm:$0xff]
                  %2344 = vst [vmem:[%s2312 + $0x78] sm:$0xff] %v2343
                  %v2345 = vld [vmem:[%s2311 + $0x80] sm:$0xff]
                  %2346 = vst [vmem:[%s2312 + $0x80] sm:$0xff] %v2345
                  %v2347 = vld [vmem:[%s2311 + $0x88] sm:$0xff]
                  %2348 = vst [vmem:[%s2312 + $0x88] sm:$0xff] %v2347
                  %v2349 = vld [vmem:[%s2311 + $0x90] sm:$0xff]
                  %2350 = vst [vmem:[%s2312 + $0x90] sm:$0xff] %v2349
                  %v2351 = vld [vmem:[%s2311 + $0x98] sm:$0xff]
                  %2352 = vst [vmem:[%s2312 + $0x98] sm:$0xff] %v2351
                  %v2353 = vld [vmem:[%s2311 + $0xa0] sm:$0xff]
                  %2354 = vst [vmem:[%s2312 + $0xa0] sm:$0xff] %v2353
                  %v2355 = vld [vmem:[%s2311 + $0xa8] sm:$0xff]
                  %2356 = vst [vmem:[%s2312 + $0xa8] sm:$0xff] %v2355
                  %v2357 = vld [vmem:[%s2311 + $0xb0] sm:$0xff]
                  %2358 = vst [vmem:[%s2312 + $0xb0] sm:$0xff] %v2357
                  %v2359 = vld [vmem:[%s2311 + $0xb8] sm:$0xff]
                  %2360 = vst [vmem:[%s2312 + $0xb8] sm:$0xff] %v2359
                  %v2361 = vld [vmem:[%s2311 + $0xc0] sm:$0xff]
                  %2362 = vst [vmem:[%s2312 + $0xc0] sm:$0xff] %v2361
                  %v2363 = vld [vmem:[%s2311 + $0xc8] sm:$0xff]
                  %2364 = vst [vmem:[%s2312 + $0xc8] sm:$0xff] %v2363
                  %v2365 = vld [vmem:[%s2311 + $0xd0] sm:$0xff]
                  %2366 = vst [vmem:[%s2312 + $0xd0] sm:$0xff] %v2365
                  %v2367 = vld [vmem:[%s2311 + $0xd8] sm:$0xff]
                  %2368 = vst [vmem:[%s2312 + $0xd8] sm:$0xff] %v2367
                  %v2369 = vld [vmem:[%s2311 + $0xe0] sm:$0xff]
                  %2370 = vst [vmem:[%s2312 + $0xe0] sm:$0xff] %v2369
                  %v2371 = vld [vmem:[%s2311 + $0xe8] sm:$0xff]
                  %2372 = vst [vmem:[%s2312 + $0xe8] sm:$0xff] %v2371
                  %v2373 = vld [vmem:[%s2311 + $0xf0] sm:$0xff]
                  %2374 = vst [vmem:[%s2312 + $0xf0] sm:$0xff] %v2373
                  %v2375 = vld [vmem:[%s2311 + $0xf8] sm:$0xff]
                  %2376 = vst [vmem:[%s2312 + $0xf8] sm:$0xff] %v2375
                  %v2377 = vld [vmem:[%s2311 + $0x100] sm:$0xff]
                  %2378 = vst [vmem:[%s2312 + $0x400] sm:$0xff] %v2377
                  %v2379 = vld [vmem:[%s2311 + $0x108] sm:$0xff]
                  %2380 = vst [vmem:[%s2312 + $0x408] sm:$0xff] %v2379
                  %v2381 = vld [vmem:[%s2311 + $0x110] sm:$0xff]
                  %2382 = vst [vmem:[%s2312 + $0x410] sm:$0xff] %v2381
                  %v2383 = vld [vmem:[%s2311 + $0x118] sm:$0xff]
                  %2384 = vst [vmem:[%s2312 + $0x418] sm:$0xff] %v2383
                  %v2385 = vld [vmem:[%s2311 + $0x120] sm:$0xff]
                  %2386 = vst [vmem:[%s2312 + $0x420] sm:$0xff] %v2385
                  %v2387 = vld [vmem:[%s2311 + $0x128] sm:$0xff]
                  %2388 = vst [vmem:[%s2312 + $0x428] sm:$0xff] %v2387
                  %v2389 = vld [vmem:[%s2311 + $0x130] sm:$0xff]
                  %2390 = vst [vmem:[%s2312 + $0x430] sm:$0xff] %v2389
                  %v2391 = vld [vmem:[%s2311 + $0x138] sm:$0xff]
                  %2392 = vst [vmem:[%s2312 + $0x438] sm:$0xff] %v2391
                  %v2393 = vld [vmem:[%s2311 + $0x140] sm:$0xff]
                  %2394 = vst [vmem:[%s2312 + $0x440] sm:$0xff] %v2393
                  %v2395 = vld [vmem:[%s2311 + $0x148] sm:$0xff]
                  %2396 = vst [vmem:[%s2312 + $0x448] sm:$0xff] %v2395
                  %v2397 = vld [vmem:[%s2311 + $0x150] sm:$0xff]
                  %2398 = vst [vmem:[%s2312 + $0x450] sm:$0xff] %v2397
                  %v2399 = vld [vmem:[%s2311 + $0x158] sm:$0xff]
                  %2400 = vst [vmem:[%s2312 + $0x458] sm:$0xff] %v2399
                  %v2401 = vld [vmem:[%s2311 + $0x160] sm:$0xff]
                  %2402 = vst [vmem:[%s2312 + $0x460] sm:$0xff] %v2401
                  %v2403 = vld [vmem:[%s2311 + $0x168] sm:$0xff]
                  %2404 = vst [vmem:[%s2312 + $0x468] sm:$0xff] %v2403
                  %v2405 = vld [vmem:[%s2311 + $0x170] sm:$0xff]
                  %2406 = vst [vmem:[%s2312 + $0x470] sm:$0xff] %v2405
                  %v2407 = vld [vmem:[%s2311 + $0x178] sm:$0xff]
                  %2408 = vst [vmem:[%s2312 + $0x478] sm:$0xff] %v2407
                  %v2409 = vld [vmem:[%s2311 + $0x180] sm:$0xff]
                  %2410 = vst [vmem:[%s2312 + $0x480] sm:$0xff] %v2409
                  %v2411 = vld [vmem:[%s2311 + $0x188] sm:$0xff]
                  %2412 = vst [vmem:[%s2312 + $0x488] sm:$0xff] %v2411
                  %v2413 = vld [vmem:[%s2311 + $0x190] sm:$0xff]
                  %2414 = vst [vmem:[%s2312 + $0x490] sm:$0xff] %v2413
                  %v2415 = vld [vmem:[%s2311 + $0x198] sm:$0xff]
                  %2416 = vst [vmem:[%s2312 + $0x498] sm:$0xff] %v2415
                  %v2417 = vld [vmem:[%s2311 + $0x1a0] sm:$0xff]
                  %2418 = vst [vmem:[%s2312 + $0x4a0] sm:$0xff] %v2417
                  %v2419 = vld [vmem:[%s2311 + $0x1a8] sm:$0xff]
                  %2420 = vst [vmem:[%s2312 + $0x4a8] sm:$0xff] %v2419
                  %v2421 = vld [vmem:[%s2311 + $0x1b0] sm:$0xff]
                  %2422 = vst [vmem:[%s2312 + $0x4b0] sm:$0xff] %v2421
                  %v2423 = vld [vmem:[%s2311 + $0x1b8] sm:$0xff]
                  %2424 = vst [vmem:[%s2312 + $0x4b8] sm:$0xff] %v2423
                  %v2425 = vld [vmem:[%s2311 + $0x1c0] sm:$0xff]
                  %2426 = vst [vmem:[%s2312 + $0x4c0] sm:$0xff] %v2425
                  %v2427 = vld [vmem:[%s2311 + $0x1c8] sm:$0xff]
                  %2428 = vst [vmem:[%s2312 + $0x4c8] sm:$0xff] %v2427
                  %v2429 = vld [vmem:[%s2311 + $0x1d0] sm:$0xff]
                  %2430 = vst [vmem:[%s2312 + $0x4d0] sm:$0xff] %v2429
                  %v2431 = vld [vmem:[%s2311 + $0x1d8] sm:$0xff]
                  %2432 = vst [vmem:[%s2312 + $0x4d8] sm:$0xff] %v2431
                  %v2433 = vld [vmem:[%s2311 + $0x1e0] sm:$0xff]
                  %2434 = vst [vmem:[%s2312 + $0x4e0] sm:$0xff] %v2433
                  %v2435 = vld [vmem:[%s2311 + $0x1e8] sm:$0xff]
                  %2436 = vst [vmem:[%s2312 + $0x4e8] sm:$0xff] %v2435
                  %v2437 = vld [vmem:[%s2311 + $0x1f0] sm:$0xff]
                  %2438 = vst [vmem:[%s2312 + $0x4f0] sm:$0xff] %v2437
                  %v2439 = vld [vmem:[%s2311 + $0x1f8] sm:$0xff]
                  %2440 = vst [vmem:[%s2312 + $0x4f8] sm:$0xff] %v2439
                  %v2441 = vld [vmem:[%s2311 + $0x200] sm:$0xff]
                  %2442 = vst [vmem:[%s2312 + $0x800] sm:$0xff] %v2441
                  %v2443 = vld [vmem:[%s2311 + $0x208] sm:$0xff]
                  %2444 = vst [vmem:[%s2312 + $0x808] sm:$0xff] %v2443
                  %v2445 = vld [vmem:[%s2311 + $0x210] sm:$0xff]
                  %2446 = vst [vmem:[%s2312 + $0x810] sm:$0xff] %v2445
                  %v2447 = vld [vmem:[%s2311 + $0x218] sm:$0xff]
                  %2448 = vst [vmem:[%s2312 + $0x818] sm:$0xff] %v2447
                  %v2449 = vld [vmem:[%s2311 + $0x220] sm:$0xff]
                  %2450 = vst [vmem:[%s2312 + $0x820] sm:$0xff] %v2449
                  %v2451 = vld [vmem:[%s2311 + $0x228] sm:$0xff]
                  %2452 = vst [vmem:[%s2312 + $0x828] sm:$0xff] %v2451
                  %v2453 = vld [vmem:[%s2311 + $0x230] sm:$0xff]
                  %2454 = vst [vmem:[%s2312 + $0x830] sm:$0xff] %v2453
                  %v2455 = vld [vmem:[%s2311 + $0x238] sm:$0xff]
                  %2456 = vst [vmem:[%s2312 + $0x838] sm:$0xff] %v2455
                  %v2457 = vld [vmem:[%s2311 + $0x240] sm:$0xff]
                  %2458 = vst [vmem:[%s2312 + $0x840] sm:$0xff] %v2457
                  %v2459 = vld [vmem:[%s2311 + $0x248] sm:$0xff]
                  %2460 = vst [vmem:[%s2312 + $0x848] sm:$0xff] %v2459
                  %v2461 = vld [vmem:[%s2311 + $0x250] sm:$0xff]
                  %2462 = vst [vmem:[%s2312 + $0x850] sm:$0xff] %v2461
                  %v2463 = vld [vmem:[%s2311 + $0x258] sm:$0xff]
                  %2464 = vst [vmem:[%s2312 + $0x858] sm:$0xff] %v2463
                  %v2465 = vld [vmem:[%s2311 + $0x260] sm:$0xff]
                  %2466 = vst [vmem:[%s2312 + $0x860] sm:$0xff] %v2465
                  %v2467 = vld [vmem:[%s2311 + $0x268] sm:$0xff]
                  %2468 = vst [vmem:[%s2312 + $0x868] sm:$0xff] %v2467
                  %v2469 = vld [vmem:[%s2311 + $0x270] sm:$0xff]
                  %2470 = vst [vmem:[%s2312 + $0x870] sm:$0xff] %v2469
                  %v2471 = vld [vmem:[%s2311 + $0x278] sm:$0xff]
                  %2472 = vst [vmem:[%s2312 + $0x878] sm:$0xff] %v2471
                  %v2473 = vld [vmem:[%s2311 + $0x280] sm:$0xff]
                  %2474 = vst [vmem:[%s2312 + $0x880] sm:$0xff] %v2473
                  %v2475 = vld [vmem:[%s2311 + $0x288] sm:$0xff]
                  %2476 = vst [vmem:[%s2312 + $0x888] sm:$0xff] %v2475
                  %v2477 = vld [vmem:[%s2311 + $0x290] sm:$0xff]
                  %2478 = vst [vmem:[%s2312 + $0x890] sm:$0xff] %v2477
                  %v2479 = vld [vmem:[%s2311 + $0x298] sm:$0xff]
                  %2480 = vst [vmem:[%s2312 + $0x898] sm:$0xff] %v2479
                  %v2481 = vld [vmem:[%s2311 + $0x2a0] sm:$0xff]
                  %2482 = vst [vmem:[%s2312 + $0x8a0] sm:$0xff] %v2481
                  %v2483 = vld [vmem:[%s2311 + $0x2a8] sm:$0xff]
                  %2484 = vst [vmem:[%s2312 + $0x8a8] sm:$0xff] %v2483
                  %v2485 = vld [vmem:[%s2311 + $0x2b0] sm:$0xff]
                  %2486 = vst [vmem:[%s2312 + $0x8b0] sm:$0xff] %v2485
                  %v2487 = vld [vmem:[%s2311 + $0x2b8] sm:$0xff]
                  %2488 = vst [vmem:[%s2312 + $0x8b8] sm:$0xff] %v2487
                  %v2489 = vld [vmem:[%s2311 + $0x2c0] sm:$0xff]
                  %2490 = vst [vmem:[%s2312 + $0x8c0] sm:$0xff] %v2489
                  %v2491 = vld [vmem:[%s2311 + $0x2c8] sm:$0xff]
                  %2492 = vst [vmem:[%s2312 + $0x8c8] sm:$0xff] %v2491
                  %v2493 = vld [vmem:[%s2311 + $0x2d0] sm:$0xff]
                  %2494 = vst [vmem:[%s2312 + $0x8d0] sm:$0xff] %v2493
                  %v2495 = vld [vmem:[%s2311 + $0x2d8] sm:$0xff]
                  %2496 = vst [vmem:[%s2312 + $0x8d8] sm:$0xff] %v2495
                  %v2497 = vld [vmem:[%s2311 + $0x2e0] sm:$0xff]
                  %2498 = vst [vmem:[%s2312 + $0x8e0] sm:$0xff] %v2497
                  %v2499 = vld [vmem:[%s2311 + $0x2e8] sm:$0xff]
                  %2500 = vst [vmem:[%s2312 + $0x8e8] sm:$0xff] %v2499
                  %v2501 = vld [vmem:[%s2311 + $0x2f0] sm:$0xff]
                  %2502 = vst [vmem:[%s2312 + $0x8f0] sm:$0xff] %v2501
                  %v2503 = vld [vmem:[%s2311 + $0x2f8] sm:$0xff]
                  %2504 = vst [vmem:[%s2312 + $0x8f8] sm:$0xff] %v2503
                $region64: #{_lambda_.9} parent=58 // loop_footer
                  %s2310 = sadd.s32 1, %s2306
                $region65: #{_lambda_.9} parent=58 // loop_footer_branch
                  %2305 = sbr.rel target = $region61
                $region66: #{_lambda_.9} parent=58 // loop_exit
                  _
              $region59: #{_lambda_.9} parent=43 // pred_fallthru
                _
              // Predicated region
              $region67: #{_lambda_.9} parent=43 // pred_check
                _
              $region68: #{_lambda_.9} parent=43 // pred_check_branch
                %2506 = sbr.rel target = $region70
              $region69: #{_lambda_.9} parent=43 // pred_region
                _
              $region70: #{_lambda_.9} parent=43 // pred_fallthru
                _
            $region44: #{_lambda_.9} parent=39 // pred_fallthru
              _
            // Predicated region
            $region45: #{_lambda_.9} parent=39 // pred_check
              _
            $region46: #{_lambda_.9} parent=39 // pred_check_branch
              %2101 = sbr.rel target = $region48
            $region47: #{_lambda_.9} parent=39 // pred_region
              loop: start=0, step=1, limit=1
              $region49: #{_lambda_.9} parent=47 // loop_pre_header
                _
              $region50: #{_lambda_.9} parent=47 // loop_header
                %s2104 = sphi 0, %s2108
                %p2105 = scmp.ge.s32.totalorder %s2104, 1
                %s2109 = sphi %s2083, %s2083
                %s2110 = sphi %s2095, %s2095
              $region51: #{_lambda_.9} parent=47 // loop_header_branch
                %2107 = sbr.rel (%p2105) target = $region55
              $region52: #{_lambda_.9} parent=47 // loop_body
                %v2111 = vld [vmem:[%s2109] sm:$0xff]
                %2112 = vst [vmem:[%s2110] sm:$0xff] %v2111
                %v2113 = vld [vmem:[%s2109 + $0x8] sm:$0xff]
                %2114 = vst [vmem:[%s2110 + $0x8] sm:$0xff] %v2113
                %v2115 = vld [vmem:[%s2109 + $0x10] sm:$0xff]
                %2116 = vst [vmem:[%s2110 + $0x10] sm:$0xff] %v2115
                %v2117 = vld [vmem:[%s2109 + $0x18] sm:$0xff]
                %2118 = vst [vmem:[%s2110 + $0x18] sm:$0xff] %v2117
                %v2119 = vld [vmem:[%s2109 + $0x20] sm:$0xff]
                %2120 = vst [vmem:[%s2110 + $0x20] sm:$0xff] %v2119
                %v2121 = vld [vmem:[%s2109 + $0x28] sm:$0xff]
                %2122 = vst [vmem:[%s2110 + $0x28] sm:$0xff] %v2121
                %v2123 = vld [vmem:[%s2109 + $0x30] sm:$0xff]
                %2124 = vst [vmem:[%s2110 + $0x30] sm:$0xff] %v2123
                %v2125 = vld [vmem:[%s2109 + $0x38] sm:$0xff]
                %2126 = vst [vmem:[%s2110 + $0x38] sm:$0xff] %v2125
                %v2127 = vld [vmem:[%s2109 + $0x40] sm:$0xff]
                %2128 = vst [vmem:[%s2110 + $0x40] sm:$0xff] %v2127
                %v2129 = vld [vmem:[%s2109 + $0x48] sm:$0xff]
                %2130 = vst [vmem:[%s2110 + $0x48] sm:$0xff] %v2129
                %v2131 = vld [vmem:[%s2109 + $0x50] sm:$0xff]
                %2132 = vst [vmem:[%s2110 + $0x50] sm:$0xff] %v2131
                %v2133 = vld [vmem:[%s2109 + $0x58] sm:$0xff]
                %2134 = vst [vmem:[%s2110 + $0x58] sm:$0xff] %v2133
                %v2135 = vld [vmem:[%s2109 + $0x60] sm:$0xff]
                %2136 = vst [vmem:[%s2110 + $0x60] sm:$0xff] %v2135
                %v2137 = vld [vmem:[%s2109 + $0x68] sm:$0xff]
                %2138 = vst [vmem:[%s2110 + $0x68] sm:$0xff] %v2137
                %v2139 = vld [vmem:[%s2109 + $0x70] sm:$0xff]
                %2140 = vst [vmem:[%s2110 + $0x70] sm:$0xff] %v2139
                %v2141 = vld [vmem:[%s2109 + $0x78] sm:$0xff]
                %2142 = vst [vmem:[%s2110 + $0x78] sm:$0xff] %v2141
                %v2143 = vld [vmem:[%s2109 + $0x80] sm:$0xff]
                %2144 = vst [vmem:[%s2110 + $0x80] sm:$0xff] %v2143
                %v2145 = vld [vmem:[%s2109 + $0x88] sm:$0xff]
                %2146 = vst [vmem:[%s2110 + $0x88] sm:$0xff] %v2145
                %v2147 = vld [vmem:[%s2109 + $0x90] sm:$0xff]
                %2148 = vst [vmem:[%s2110 + $0x90] sm:$0xff] %v2147
                %v2149 = vld [vmem:[%s2109 + $0x98] sm:$0xff]
                %2150 = vst [vmem:[%s2110 + $0x98] sm:$0xff] %v2149
                %v2151 = vld [vmem:[%s2109 + $0xa0] sm:$0xff]
                %2152 = vst [vmem:[%s2110 + $0xa0] sm:$0xff] %v2151
                %v2153 = vld [vmem:[%s2109 + $0xa8] sm:$0xff]
                %2154 = vst [vmem:[%s2110 + $0xa8] sm:$0xff] %v2153
                %v2155 = vld [vmem:[%s2109 + $0xb0] sm:$0xff]
                %2156 = vst [vmem:[%s2110 + $0xb0] sm:$0xff] %v2155
                %v2157 = vld [vmem:[%s2109 + $0xb8] sm:$0xff]
                %2158 = vst [vmem:[%s2110 + $0xb8] sm:$0xff] %v2157
                %v2159 = vld [vmem:[%s2109 + $0xc0] sm:$0xff]
                %2160 = vst [vmem:[%s2110 + $0xc0] sm:$0xff] %v2159
                %v2161 = vld [vmem:[%s2109 + $0xc8] sm:$0xff]
                %2162 = vst [vmem:[%s2110 + $0xc8] sm:$0xff] %v2161
                %v2163 = vld [vmem:[%s2109 + $0xd0] sm:$0xff]
                %2164 = vst [vmem:[%s2110 + $0xd0] sm:$0xff] %v2163
                %v2165 = vld [vmem:[%s2109 + $0xd8] sm:$0xff]
                %2166 = vst [vmem:[%s2110 + $0xd8] sm:$0xff] %v2165
                %v2167 = vld [vmem:[%s2109 + $0xe0] sm:$0xff]
                %2168 = vst [vmem:[%s2110 + $0xe0] sm:$0xff] %v2167
                %v2169 = vld [vmem:[%s2109 + $0xe8] sm:$0xff]
                %2170 = vst [vmem:[%s2110 + $0xe8] sm:$0xff] %v2169
                %v2171 = vld [vmem:[%s2109 + $0xf0] sm:$0xff]
                %2172 = vst [vmem:[%s2110 + $0xf0] sm:$0xff] %v2171
                %v2173 = vld [vmem:[%s2109 + $0xf8] sm:$0xff]
                %2174 = vst [vmem:[%s2110 + $0xf8] sm:$0xff] %v2173
                %v2175 = vld [vmem:[%s2109 + $0x100] sm:$0xff]
                %2176 = vst [vmem:[%s2110 + $0x400] sm:$0xff] %v2175
                %v2177 = vld [vmem:[%s2109 + $0x108] sm:$0xff]
                %2178 = vst [vmem:[%s2110 + $0x408] sm:$0xff] %v2177
                %v2179 = vld [vmem:[%s2109 + $0x110] sm:$0xff]
                %2180 = vst [vmem:[%s2110 + $0x410] sm:$0xff] %v2179
                %v2181 = vld [vmem:[%s2109 + $0x118] sm:$0xff]
                %2182 = vst [vmem:[%s2110 + $0x418] sm:$0xff] %v2181
                %v2183 = vld [vmem:[%s2109 + $0x120] sm:$0xff]
                %2184 = vst [vmem:[%s2110 + $0x420] sm:$0xff] %v2183
                %v2185 = vld [vmem:[%s2109 + $0x128] sm:$0xff]
                %2186 = vst [vmem:[%s2110 + $0x428] sm:$0xff] %v2185
                %v2187 = vld [vmem:[%s2109 + $0x130] sm:$0xff]
                %2188 = vst [vmem:[%s2110 + $0x430] sm:$0xff] %v2187
                %v2189 = vld [vmem:[%s2109 + $0x138] sm:$0xff]
                %2190 = vst [vmem:[%s2110 + $0x438] sm:$0xff] %v2189
                %v2191 = vld [vmem:[%s2109 + $0x140] sm:$0xff]
                %2192 = vst [vmem:[%s2110 + $0x440] sm:$0xff] %v2191
                %v2193 = vld [vmem:[%s2109 + $0x148] sm:$0xff]
                %2194 = vst [vmem:[%s2110 + $0x448] sm:$0xff] %v2193
                %v2195 = vld [vmem:[%s2109 + $0x150] sm:$0xff]
                %2196 = vst [vmem:[%s2110 + $0x450] sm:$0xff] %v2195
                %v2197 = vld [vmem:[%s2109 + $0x158] sm:$0xff]
                %2198 = vst [vmem:[%s2110 + $0x458] sm:$0xff] %v2197
                %v2199 = vld [vmem:[%s2109 + $0x160] sm:$0xff]
                %2200 = vst [vmem:[%s2110 + $0x460] sm:$0xff] %v2199
                %v2201 = vld [vmem:[%s2109 + $0x168] sm:$0xff]
                %2202 = vst [vmem:[%s2110 + $0x468] sm:$0xff] %v2201
                %v2203 = vld [vmem:[%s2109 + $0x170] sm:$0xff]
                %2204 = vst [vmem:[%s2110 + $0x470] sm:$0xff] %v2203
                %v2205 = vld [vmem:[%s2109 + $0x178] sm:$0xff]
                %2206 = vst [vmem:[%s2110 + $0x478] sm:$0xff] %v2205
                %v2207 = vld [vmem:[%s2109 + $0x180] sm:$0xff]
                %2208 = vst [vmem:[%s2110 + $0x480] sm:$0xff] %v2207
                %v2209 = vld [vmem:[%s2109 + $0x188] sm:$0xff]
                %2210 = vst [vmem:[%s2110 + $0x488] sm:$0xff] %v2209
                %v2211 = vld [vmem:[%s2109 + $0x190] sm:$0xff]
                %2212 = vst [vmem:[%s2110 + $0x490] sm:$0xff] %v2211
                %v2213 = vld [vmem:[%s2109 + $0x198] sm:$0xff]
                %2214 = vst [vmem:[%s2110 + $0x498] sm:$0xff] %v2213
                %v2215 = vld [vmem:[%s2109 + $0x1a0] sm:$0xff]
                %2216 = vst [vmem:[%s2110 + $0x4a0] sm:$0xff] %v2215
                %v2217 = vld [vmem:[%s2109 + $0x1a8] sm:$0xff]
                %2218 = vst [vmem:[%s2110 + $0x4a8] sm:$0xff] %v2217
                %v2219 = vld [vmem:[%s2109 + $0x1b0] sm:$0xff]
                %2220 = vst [vmem:[%s2110 + $0x4b0] sm:$0xff] %v2219
                %v2221 = vld [vmem:[%s2109 + $0x1b8] sm:$0xff]
                %2222 = vst [vmem:[%s2110 + $0x4b8] sm:$0xff] %v2221
                %v2223 = vld [vmem:[%s2109 + $0x1c0] sm:$0xff]
                %2224 = vst [vmem:[%s2110 + $0x4c0] sm:$0xff] %v2223
                %v2225 = vld [vmem:[%s2109 + $0x1c8] sm:$0xff]
                %2226 = vst [vmem:[%s2110 + $0x4c8] sm:$0xff] %v2225
                %v2227 = vld [vmem:[%s2109 + $0x1d0] sm:$0xff]
                %2228 = vst [vmem:[%s2110 + $0x4d0] sm:$0xff] %v2227
                %v2229 = vld [vmem:[%s2109 + $0x1d8] sm:$0xff]
                %2230 = vst [vmem:[%s2110 + $0x4d8] sm:$0xff] %v2229
                %v2231 = vld [vmem:[%s2109 + $0x1e0] sm:$0xff]
                %2232 = vst [vmem:[%s2110 + $0x4e0] sm:$0xff] %v2231
                %v2233 = vld [vmem:[%s2109 + $0x1e8] sm:$0xff]
                %2234 = vst [vmem:[%s2110 + $0x4e8] sm:$0xff] %v2233
                %v2235 = vld [vmem:[%s2109 + $0x1f0] sm:$0xff]
                %2236 = vst [vmem:[%s2110 + $0x4f0] sm:$0xff] %v2235
                %v2237 = vld [vmem:[%s2109 + $0x1f8] sm:$0xff]
                %2238 = vst [vmem:[%s2110 + $0x4f8] sm:$0xff] %v2237
                %v2239 = vld [vmem:[%s2109 + $0x200] sm:$0xff]
                %2240 = vst [vmem:[%s2110 + $0x800] sm:$0xff] %v2239
                %v2241 = vld [vmem:[%s2109 + $0x208] sm:$0xff]
                %2242 = vst [vmem:[%s2110 + $0x808] sm:$0xff] %v2241
                %v2243 = vld [vmem:[%s2109 + $0x210] sm:$0xff]
                %2244 = vst [vmem:[%s2110 + $0x810] sm:$0xff] %v2243
                %v2245 = vld [vmem:[%s2109 + $0x218] sm:$0xff]
                %2246 = vst [vmem:[%s2110 + $0x818] sm:$0xff] %v2245
                %v2247 = vld [vmem:[%s2109 + $0x220] sm:$0xff]
                %2248 = vst [vmem:[%s2110 + $0x820] sm:$0xff] %v2247
                %v2249 = vld [vmem:[%s2109 + $0x228] sm:$0xff]
                %2250 = vst [vmem:[%s2110 + $0x828] sm:$0xff] %v2249
                %v2251 = vld [vmem:[%s2109 + $0x230] sm:$0xff]
                %2252 = vst [vmem:[%s2110 + $0x830] sm:$0xff] %v2251
                %v2253 = vld [vmem:[%s2109 + $0x238] sm:$0xff]
                %2254 = vst [vmem:[%s2110 + $0x838] sm:$0xff] %v2253
                %v2255 = vld [vmem:[%s2109 + $0x240] sm:$0xff]
                %2256 = vst [vmem:[%s2110 + $0x840] sm:$0xff] %v2255
                %v2257 = vld [vmem:[%s2109 + $0x248] sm:$0xff]
                %2258 = vst [vmem:[%s2110 + $0x848] sm:$0xff] %v2257
                %v2259 = vld [vmem:[%s2109 + $0x250] sm:$0xff]
                %2260 = vst [vmem:[%s2110 + $0x850] sm:$0xff] %v2259
                %v2261 = vld [vmem:[%s2109 + $0x258] sm:$0xff]
                %2262 = vst [vmem:[%s2110 + $0x858] sm:$0xff] %v2261
                %v2263 = vld [vmem:[%s2109 + $0x260] sm:$0xff]
                %2264 = vst [vmem:[%s2110 + $0x860] sm:$0xff] %v2263
                %v2265 = vld [vmem:[%s2109 + $0x268] sm:$0xff]
                %2266 = vst [vmem:[%s2110 + $0x868] sm:$0xff] %v2265
                %v2267 = vld [vmem:[%s2109 + $0x270] sm:$0xff]
                %2268 = vst [vmem:[%s2110 + $0x870] sm:$0xff] %v2267
                %v2269 = vld [vmem:[%s2109 + $0x278] sm:$0xff]
                %2270 = vst [vmem:[%s2110 + $0x878] sm:$0xff] %v2269
                %v2271 = vld [vmem:[%s2109 + $0x280] sm:$0xff]
                %2272 = vst [vmem:[%s2110 + $0x880] sm:$0xff] %v2271
                %v2273 = vld [vmem:[%s2109 + $0x288] sm:$0xff]
                %2274 = vst [vmem:[%s2110 + $0x888] sm:$0xff] %v2273
                %v2275 = vld [vmem:[%s2109 + $0x290] sm:$0xff]
                %2276 = vst [vmem:[%s2110 + $0x890] sm:$0xff] %v2275
                %v2277 = vld [vmem:[%s2109 + $0x298] sm:$0xff]
                %2278 = vst [vmem:[%s2110 + $0x898] sm:$0xff] %v2277
                %v2279 = vld [vmem:[%s2109 + $0x2a0] sm:$0xff]
                %2280 = vst [vmem:[%s2110 + $0x8a0] sm:$0xff] %v2279
                %v2281 = vld [vmem:[%s2109 + $0x2a8] sm:$0xff]
                %2282 = vst [vmem:[%s2110 + $0x8a8] sm:$0xff] %v2281
                %v2283 = vld [vmem:[%s2109 + $0x2b0] sm:$0xff]
                %2284 = vst [vmem:[%s2110 + $0x8b0] sm:$0xff] %v2283
                %v2285 = vld [vmem:[%s2109 + $0x2b8] sm:$0xff]
                %2286 = vst [vmem:[%s2110 + $0x8b8] sm:$0xff] %v2285
                %v2287 = vld [vmem:[%s2109 + $0x2c0] sm:$0xff]
                %2288 = vst [vmem:[%s2110 + $0x8c0] sm:$0xff] %v2287
                %v2289 = vld [vmem:[%s2109 + $0x2c8] sm:$0xff]
                %2290 = vst [vmem:[%s2110 + $0x8c8] sm:$0xff] %v2289
                %v2291 = vld [vmem:[%s2109 + $0x2d0] sm:$0xff]
                %2292 = vst [vmem:[%s2110 + $0x8d0] sm:$0xff] %v2291
                %v2293 = vld [vmem:[%s2109 + $0x2d8] sm:$0xff]
                %2294 = vst [vmem:[%s2110 + $0x8d8] sm:$0xff] %v2293
                %v2295 = vld [vmem:[%s2109 + $0x2e0] sm:$0xff]
                %2296 = vst [vmem:[%s2110 + $0x8e0] sm:$0xff] %v2295
                %v2297 = vld [vmem:[%s2109 + $0x2e8] sm:$0xff]
                %2298 = vst [vmem:[%s2110 + $0x8e8] sm:$0xff] %v2297
                %v2299 = vld [vmem:[%s2109 + $0x2f0] sm:$0xff]
                %2300 = vst [vmem:[%s2110 + $0x8f0] sm:$0xff] %v2299
                %v2301 = vld [vmem:[%s2109 + $0x2f8] sm:$0xff]
                %2302 = vst [vmem:[%s2110 + $0x8f8] sm:$0xff] %v2301
              $region53: #{_lambda_.9} parent=47 // loop_footer
                %s2108 = sadd.s32 1, %s2104
              $region54: #{_lambda_.9} parent=47 // loop_footer_branch
                %2103 = sbr.rel target = $region50
              $region55: #{_lambda_.9} parent=47 // loop_exit
                _
            $region48: #{_lambda_.9} parent=39 // pred_fallthru
              _
          $region40: #{_lambda_.9} parent=35 // pred_fallthru
            _
          %2507 = vnop
        $region36: #{_lambda_.9} parent=31 // pred_fallthru
          _
        // Predicated region
        $region71: #{_lambda_.9} parent=31 // pred_check
          %p2508 = pneg %p146
        $region72: #{_lambda_.9} parent=31 // pred_check_branch
          %2510 = sbr.rel (%p2508) target = $region74
        $region73: #{_lambda_.9} parent=31 // pred_region
          %s2511 = smul.u32 32, %s21
          %s2512 = smul.addr %s20, 384
          %s2513 = sadd.s32 %s2511, %s2512
          %s2514 = smul.addr %s2513, 8
          %s2515 = scalar_lea.vmem %s4, %s2514
          // Predicated region
          $region75: #{_lambda_.9} parent=73 // pred_check
            _
          $region76: #{_lambda_.9} parent=73 // pred_check_branch
            %2517 = sbr.rel (0) target = $region78
          $region77: #{_lambda_.9} parent=73 // pred_region
            // Predicated region
            $region79: #{_lambda_.9} parent=77 // pred_check
              _
            $region80: #{_lambda_.9} parent=77 // pred_check_branch
              %2519 = sbr.rel (0) target = $region82
            $region81: #{_lambda_.9} parent=77 // pred_region
              // Predicated region
              $region94: #{_lambda_.9} parent=81 // pred_check
                _
              $region95: #{_lambda_.9} parent=81 // pred_check_branch
                %2724 = sbr.rel (0) target = $region97
              $region96: #{_lambda_.9} parent=81 // pred_region
                loop: start=0, step=1, limit=1
                $region98: #{_lambda_.9} parent=96 // loop_pre_header
                  _
                $region99: #{_lambda_.9} parent=96 // loop_header
                  %s2726 = sphi 0, %s2730
                  %p2727 = scmp.ge.s32.totalorder %s2726, 1
                  %s2731 = sphi %s2087, %s2087
                  %s2732 = sphi %s2515, %s2515
                $region100: #{_lambda_.9} parent=96 // loop_header_branch
                  %2729 = sbr.rel (%p2727) target = $region104
                $region101: #{_lambda_.9} parent=96 // loop_body
                  %v2733 = vld [vmem:[%s2731] sm:$0xff]
                  %2734 = vst [vmem:[%s2732] sm:$0xff] %v2733
                  %v2735 = vld [vmem:[%s2731 + $0x8] sm:$0xff]
                  %2736 = vst [vmem:[%s2732 + $0x8] sm:$0xff] %v2735
                  %v2737 = vld [vmem:[%s2731 + $0x10] sm:$0xff]
                  %2738 = vst [vmem:[%s2732 + $0x10] sm:$0xff] %v2737
                  %v2739 = vld [vmem:[%s2731 + $0x18] sm:$0xff]
                  %2740 = vst [vmem:[%s2732 + $0x18] sm:$0xff] %v2739
                  %v2741 = vld [vmem:[%s2731 + $0x20] sm:$0xff]
                  %2742 = vst [vmem:[%s2732 + $0x20] sm:$0xff] %v2741
                  %v2743 = vld [vmem:[%s2731 + $0x28] sm:$0xff]
                  %2744 = vst [vmem:[%s2732 + $0x28] sm:$0xff] %v2743
                  %v2745 = vld [vmem:[%s2731 + $0x30] sm:$0xff]
                  %2746 = vst [vmem:[%s2732 + $0x30] sm:$0xff] %v2745
                  %v2747 = vld [vmem:[%s2731 + $0x38] sm:$0xff]
                  %2748 = vst [vmem:[%s2732 + $0x38] sm:$0xff] %v2747
                  %v2749 = vld [vmem:[%s2731 + $0x40] sm:$0xff]
                  %2750 = vst [vmem:[%s2732 + $0x40] sm:$0xff] %v2749
                  %v2751 = vld [vmem:[%s2731 + $0x48] sm:$0xff]
                  %2752 = vst [vmem:[%s2732 + $0x48] sm:$0xff] %v2751
                  %v2753 = vld [vmem:[%s2731 + $0x50] sm:$0xff]
                  %2754 = vst [vmem:[%s2732 + $0x50] sm:$0xff] %v2753
                  %v2755 = vld [vmem:[%s2731 + $0x58] sm:$0xff]
                  %2756 = vst [vmem:[%s2732 + $0x58] sm:$0xff] %v2755
                  %v2757 = vld [vmem:[%s2731 + $0x60] sm:$0xff]
                  %2758 = vst [vmem:[%s2732 + $0x60] sm:$0xff] %v2757
                  %v2759 = vld [vmem:[%s2731 + $0x68] sm:$0xff]
                  %2760 = vst [vmem:[%s2732 + $0x68] sm:$0xff] %v2759
                  %v2761 = vld [vmem:[%s2731 + $0x70] sm:$0xff]
                  %2762 = vst [vmem:[%s2732 + $0x70] sm:$0xff] %v2761
                  %v2763 = vld [vmem:[%s2731 + $0x78] sm:$0xff]
                  %2764 = vst [vmem:[%s2732 + $0x78] sm:$0xff] %v2763
                  %v2765 = vld [vmem:[%s2731 + $0x80] sm:$0xff]
                  %2766 = vst [vmem:[%s2732 + $0x80] sm:$0xff] %v2765
                  %v2767 = vld [vmem:[%s2731 + $0x88] sm:$0xff]
                  %2768 = vst [vmem:[%s2732 + $0x88] sm:$0xff] %v2767
                  %v2769 = vld [vmem:[%s2731 + $0x90] sm:$0xff]
                  %2770 = vst [vmem:[%s2732 + $0x90] sm:$0xff] %v2769
                  %v2771 = vld [vmem:[%s2731 + $0x98] sm:$0xff]
                  %2772 = vst [vmem:[%s2732 + $0x98] sm:$0xff] %v2771
                  %v2773 = vld [vmem:[%s2731 + $0xa0] sm:$0xff]
                  %2774 = vst [vmem:[%s2732 + $0xa0] sm:$0xff] %v2773
                  %v2775 = vld [vmem:[%s2731 + $0xa8] sm:$0xff]
                  %2776 = vst [vmem:[%s2732 + $0xa8] sm:$0xff] %v2775
                  %v2777 = vld [vmem:[%s2731 + $0xb0] sm:$0xff]
                  %2778 = vst [vmem:[%s2732 + $0xb0] sm:$0xff] %v2777
                  %v2779 = vld [vmem:[%s2731 + $0xb8] sm:$0xff]
                  %2780 = vst [vmem:[%s2732 + $0xb8] sm:$0xff] %v2779
                  %v2781 = vld [vmem:[%s2731 + $0xc0] sm:$0xff]
                  %2782 = vst [vmem:[%s2732 + $0xc0] sm:$0xff] %v2781
                  %v2783 = vld [vmem:[%s2731 + $0xc8] sm:$0xff]
                  %2784 = vst [vmem:[%s2732 + $0xc8] sm:$0xff] %v2783
                  %v2785 = vld [vmem:[%s2731 + $0xd0] sm:$0xff]
                  %2786 = vst [vmem:[%s2732 + $0xd0] sm:$0xff] %v2785
                  %v2787 = vld [vmem:[%s2731 + $0xd8] sm:$0xff]
                  %2788 = vst [vmem:[%s2732 + $0xd8] sm:$0xff] %v2787
                  %v2789 = vld [vmem:[%s2731 + $0xe0] sm:$0xff]
                  %2790 = vst [vmem:[%s2732 + $0xe0] sm:$0xff] %v2789
                  %v2791 = vld [vmem:[%s2731 + $0xe8] sm:$0xff]
                  %2792 = vst [vmem:[%s2732 + $0xe8] sm:$0xff] %v2791
                  %v2793 = vld [vmem:[%s2731 + $0xf0] sm:$0xff]
                  %2794 = vst [vmem:[%s2732 + $0xf0] sm:$0xff] %v2793
                  %v2795 = vld [vmem:[%s2731 + $0xf8] sm:$0xff]
                  %2796 = vst [vmem:[%s2732 + $0xf8] sm:$0xff] %v2795
                  %v2797 = vld [vmem:[%s2731 + $0x100] sm:$0xff]
                  %2798 = vst [vmem:[%s2732 + $0x400] sm:$0xff] %v2797
                  %v2799 = vld [vmem:[%s2731 + $0x108] sm:$0xff]
                  %2800 = vst [vmem:[%s2732 + $0x408] sm:$0xff] %v2799
                  %v2801 = vld [vmem:[%s2731 + $0x110] sm:$0xff]
                  %2802 = vst [vmem:[%s2732 + $0x410] sm:$0xff] %v2801
                  %v2803 = vld [vmem:[%s2731 + $0x118] sm:$0xff]
                  %2804 = vst [vmem:[%s2732 + $0x418] sm:$0xff] %v2803
                  %v2805 = vld [vmem:[%s2731 + $0x120] sm:$0xff]
                  %2806 = vst [vmem:[%s2732 + $0x420] sm:$0xff] %v2805
                  %v2807 = vld [vmem:[%s2731 + $0x128] sm:$0xff]
                  %2808 = vst [vmem:[%s2732 + $0x428] sm:$0xff] %v2807
                  %v2809 = vld [vmem:[%s2731 + $0x130] sm:$0xff]
                  %2810 = vst [vmem:[%s2732 + $0x430] sm:$0xff] %v2809
                  %v2811 = vld [vmem:[%s2731 + $0x138] sm:$0xff]
                  %2812 = vst [vmem:[%s2732 + $0x438] sm:$0xff] %v2811
                  %v2813 = vld [vmem:[%s2731 + $0x140] sm:$0xff]
                  %2814 = vst [vmem:[%s2732 + $0x440] sm:$0xff] %v2813
                  %v2815 = vld [vmem:[%s2731 + $0x148] sm:$0xff]
                  %2816 = vst [vmem:[%s2732 + $0x448] sm:$0xff] %v2815
                  %v2817 = vld [vmem:[%s2731 + $0x150] sm:$0xff]
                  %2818 = vst [vmem:[%s2732 + $0x450] sm:$0xff] %v2817
                  %v2819 = vld [vmem:[%s2731 + $0x158] sm:$0xff]
                  %2820 = vst [vmem:[%s2732 + $0x458] sm:$0xff] %v2819
                  %v2821 = vld [vmem:[%s2731 + $0x160] sm:$0xff]
                  %2822 = vst [vmem:[%s2732 + $0x460] sm:$0xff] %v2821
                  %v2823 = vld [vmem:[%s2731 + $0x168] sm:$0xff]
                  %2824 = vst [vmem:[%s2732 + $0x468] sm:$0xff] %v2823
                  %v2825 = vld [vmem:[%s2731 + $0x170] sm:$0xff]
                  %2826 = vst [vmem:[%s2732 + $0x470] sm:$0xff] %v2825
                  %v2827 = vld [vmem:[%s2731 + $0x178] sm:$0xff]
                  %2828 = vst [vmem:[%s2732 + $0x478] sm:$0xff] %v2827
                  %v2829 = vld [vmem:[%s2731 + $0x180] sm:$0xff]
                  %2830 = vst [vmem:[%s2732 + $0x480] sm:$0xff] %v2829
                  %v2831 = vld [vmem:[%s2731 + $0x188] sm:$0xff]
                  %2832 = vst [vmem:[%s2732 + $0x488] sm:$0xff] %v2831
                  %v2833 = vld [vmem:[%s2731 + $0x190] sm:$0xff]
                  %2834 = vst [vmem:[%s2732 + $0x490] sm:$0xff] %v2833
                  %v2835 = vld [vmem:[%s2731 + $0x198] sm:$0xff]
                  %2836 = vst [vmem:[%s2732 + $0x498] sm:$0xff] %v2835
                  %v2837 = vld [vmem:[%s2731 + $0x1a0] sm:$0xff]
                  %2838 = vst [vmem:[%s2732 + $0x4a0] sm:$0xff] %v2837
                  %v2839 = vld [vmem:[%s2731 + $0x1a8] sm:$0xff]
                  %2840 = vst [vmem:[%s2732 + $0x4a8] sm:$0xff] %v2839
                  %v2841 = vld [vmem:[%s2731 + $0x1b0] sm:$0xff]
                  %2842 = vst [vmem:[%s2732 + $0x4b0] sm:$0xff] %v2841
                  %v2843 = vld [vmem:[%s2731 + $0x1b8] sm:$0xff]
                  %2844 = vst [vmem:[%s2732 + $0x4b8] sm:$0xff] %v2843
                  %v2845 = vld [vmem:[%s2731 + $0x1c0] sm:$0xff]
                  %2846 = vst [vmem:[%s2732 + $0x4c0] sm:$0xff] %v2845
                  %v2847 = vld [vmem:[%s2731 + $0x1c8] sm:$0xff]
                  %2848 = vst [vmem:[%s2732 + $0x4c8] sm:$0xff] %v2847
                  %v2849 = vld [vmem:[%s2731 + $0x1d0] sm:$0xff]
                  %2850 = vst [vmem:[%s2732 + $0x4d0] sm:$0xff] %v2849
                  %v2851 = vld [vmem:[%s2731 + $0x1d8] sm:$0xff]
                  %2852 = vst [vmem:[%s2732 + $0x4d8] sm:$0xff] %v2851
                  %v2853 = vld [vmem:[%s2731 + $0x1e0] sm:$0xff]
                  %2854 = vst [vmem:[%s2732 + $0x4e0] sm:$0xff] %v2853
                  %v2855 = vld [vmem:[%s2731 + $0x1e8] sm:$0xff]
                  %2856 = vst [vmem:[%s2732 + $0x4e8] sm:$0xff] %v2855
                  %v2857 = vld [vmem:[%s2731 + $0x1f0] sm:$0xff]
                  %2858 = vst [vmem:[%s2732 + $0x4f0] sm:$0xff] %v2857
                  %v2859 = vld [vmem:[%s2731 + $0x1f8] sm:$0xff]
                  %2860 = vst [vmem:[%s2732 + $0x4f8] sm:$0xff] %v2859
                  %v2861 = vld [vmem:[%s2731 + $0x200] sm:$0xff]
                  %2862 = vst [vmem:[%s2732 + $0x800] sm:$0xff] %v2861
                  %v2863 = vld [vmem:[%s2731 + $0x208] sm:$0xff]
                  %2864 = vst [vmem:[%s2732 + $0x808] sm:$0xff] %v2863
                  %v2865 = vld [vmem:[%s2731 + $0x210] sm:$0xff]
                  %2866 = vst [vmem:[%s2732 + $0x810] sm:$0xff] %v2865
                  %v2867 = vld [vmem:[%s2731 + $0x218] sm:$0xff]
                  %2868 = vst [vmem:[%s2732 + $0x818] sm:$0xff] %v2867
                  %v2869 = vld [vmem:[%s2731 + $0x220] sm:$0xff]
                  %2870 = vst [vmem:[%s2732 + $0x820] sm:$0xff] %v2869
                  %v2871 = vld [vmem:[%s2731 + $0x228] sm:$0xff]
                  %2872 = vst [vmem:[%s2732 + $0x828] sm:$0xff] %v2871
                  %v2873 = vld [vmem:[%s2731 + $0x230] sm:$0xff]
                  %2874 = vst [vmem:[%s2732 + $0x830] sm:$0xff] %v2873
                  %v2875 = vld [vmem:[%s2731 + $0x238] sm:$0xff]
                  %2876 = vst [vmem:[%s2732 + $0x838] sm:$0xff] %v2875
                  %v2877 = vld [vmem:[%s2731 + $0x240] sm:$0xff]
                  %2878 = vst [vmem:[%s2732 + $0x840] sm:$0xff] %v2877
                  %v2879 = vld [vmem:[%s2731 + $0x248] sm:$0xff]
                  %2880 = vst [vmem:[%s2732 + $0x848] sm:$0xff] %v2879
                  %v2881 = vld [vmem:[%s2731 + $0x250] sm:$0xff]
                  %2882 = vst [vmem:[%s2732 + $0x850] sm:$0xff] %v2881
                  %v2883 = vld [vmem:[%s2731 + $0x258] sm:$0xff]
                  %2884 = vst [vmem:[%s2732 + $0x858] sm:$0xff] %v2883
                  %v2885 = vld [vmem:[%s2731 + $0x260] sm:$0xff]
                  %2886 = vst [vmem:[%s2732 + $0x860] sm:$0xff] %v2885
                  %v2887 = vld [vmem:[%s2731 + $0x268] sm:$0xff]
                  %2888 = vst [vmem:[%s2732 + $0x868] sm:$0xff] %v2887
                  %v2889 = vld [vmem:[%s2731 + $0x270] sm:$0xff]
                  %2890 = vst [vmem:[%s2732 + $0x870] sm:$0xff] %v2889
                  %v2891 = vld [vmem:[%s2731 + $0x278] sm:$0xff]
                  %2892 = vst [vmem:[%s2732 + $0x878] sm:$0xff] %v2891
                  %v2893 = vld [vmem:[%s2731 + $0x280] sm:$0xff]
                  %2894 = vst [vmem:[%s2732 + $0x880] sm:$0xff] %v2893
                  %v2895 = vld [vmem:[%s2731 + $0x288] sm:$0xff]
                  %2896 = vst [vmem:[%s2732 + $0x888] sm:$0xff] %v2895
                  %v2897 = vld [vmem:[%s2731 + $0x290] sm:$0xff]
                  %2898 = vst [vmem:[%s2732 + $0x890] sm:$0xff] %v2897
                  %v2899 = vld [vmem:[%s2731 + $0x298] sm:$0xff]
                  %2900 = vst [vmem:[%s2732 + $0x898] sm:$0xff] %v2899
                  %v2901 = vld [vmem:[%s2731 + $0x2a0] sm:$0xff]
                  %2902 = vst [vmem:[%s2732 + $0x8a0] sm:$0xff] %v2901
                  %v2903 = vld [vmem:[%s2731 + $0x2a8] sm:$0xff]
                  %2904 = vst [vmem:[%s2732 + $0x8a8] sm:$0xff] %v2903
                  %v2905 = vld [vmem:[%s2731 + $0x2b0] sm:$0xff]
                  %2906 = vst [vmem:[%s2732 + $0x8b0] sm:$0xff] %v2905
                  %v2907 = vld [vmem:[%s2731 + $0x2b8] sm:$0xff]
                  %2908 = vst [vmem:[%s2732 + $0x8b8] sm:$0xff] %v2907
                  %v2909 = vld [vmem:[%s2731 + $0x2c0] sm:$0xff]
                  %2910 = vst [vmem:[%s2732 + $0x8c0] sm:$0xff] %v2909
                  %v2911 = vld [vmem:[%s2731 + $0x2c8] sm:$0xff]
                  %2912 = vst [vmem:[%s2732 + $0x8c8] sm:$0xff] %v2911
                  %v2913 = vld [vmem:[%s2731 + $0x2d0] sm:$0xff]
                  %2914 = vst [vmem:[%s2732 + $0x8d0] sm:$0xff] %v2913
                  %v2915 = vld [vmem:[%s2731 + $0x2d8] sm:$0xff]
                  %2916 = vst [vmem:[%s2732 + $0x8d8] sm:$0xff] %v2915
                  %v2917 = vld [vmem:[%s2731 + $0x2e0] sm:$0xff]
                  %2918 = vst [vmem:[%s2732 + $0x8e0] sm:$0xff] %v2917
                  %v2919 = vld [vmem:[%s2731 + $0x2e8] sm:$0xff]
                  %2920 = vst [vmem:[%s2732 + $0x8e8] sm:$0xff] %v2919
                  %v2921 = vld [vmem:[%s2731 + $0x2f0] sm:$0xff]
                  %2922 = vst [vmem:[%s2732 + $0x8f0] sm:$0xff] %v2921
                  %v2923 = vld [vmem:[%s2731 + $0x2f8] sm:$0xff]
                  %2924 = vst [vmem:[%s2732 + $0x8f8] sm:$0xff] %v2923
                $region102: #{_lambda_.9} parent=96 // loop_footer
                  %s2730 = sadd.s32 1, %s2726
                $region103: #{_lambda_.9} parent=96 // loop_footer_branch
                  %2725 = sbr.rel target = $region99
                $region104: #{_lambda_.9} parent=96 // loop_exit
                  _
              $region97: #{_lambda_.9} parent=81 // pred_fallthru
                _
              // Predicated region
              $region105: #{_lambda_.9} parent=81 // pred_check
                _
              $region106: #{_lambda_.9} parent=81 // pred_check_branch
                %2926 = sbr.rel target = $region108
              $region107: #{_lambda_.9} parent=81 // pred_region
                _
              $region108: #{_lambda_.9} parent=81 // pred_fallthru
                _
            $region82: #{_lambda_.9} parent=77 // pred_fallthru
              _
            // Predicated region
            $region83: #{_lambda_.9} parent=77 // pred_check
              _
            $region84: #{_lambda_.9} parent=77 // pred_check_branch
              %2521 = sbr.rel target = $region86
            $region85: #{_lambda_.9} parent=77 // pred_region
              loop: start=0, step=1, limit=1
              $region87: #{_lambda_.9} parent=85 // loop_pre_header
                _
              $region88: #{_lambda_.9} parent=85 // loop_header
                %s2524 = sphi 0, %s2528
                %p2525 = scmp.ge.s32.totalorder %s2524, 1
                %s2529 = sphi %s2087, %s2087
                %s2530 = sphi %s2515, %s2515
              $region89: #{_lambda_.9} parent=85 // loop_header_branch
                %2527 = sbr.rel (%p2525) target = $region93
              $region90: #{_lambda_.9} parent=85 // loop_body
                %v2531 = vld [vmem:[%s2529] sm:$0xff]
                %2532 = vst [vmem:[%s2530] sm:$0xff] %v2531
                %v2533 = vld [vmem:[%s2529 + $0x8] sm:$0xff]
                %2534 = vst [vmem:[%s2530 + $0x8] sm:$0xff] %v2533
                %v2535 = vld [vmem:[%s2529 + $0x10] sm:$0xff]
                %2536 = vst [vmem:[%s2530 + $0x10] sm:$0xff] %v2535
                %v2537 = vld [vmem:[%s2529 + $0x18] sm:$0xff]
                %2538 = vst [vmem:[%s2530 + $0x18] sm:$0xff] %v2537
                %v2539 = vld [vmem:[%s2529 + $0x20] sm:$0xff]
                %2540 = vst [vmem:[%s2530 + $0x20] sm:$0xff] %v2539
                %v2541 = vld [vmem:[%s2529 + $0x28] sm:$0xff]
                %2542 = vst [vmem:[%s2530 + $0x28] sm:$0xff] %v2541
                %v2543 = vld [vmem:[%s2529 + $0x30] sm:$0xff]
                %2544 = vst [vmem:[%s2530 + $0x30] sm:$0xff] %v2543
                %v2545 = vld [vmem:[%s2529 + $0x38] sm:$0xff]
                %2546 = vst [vmem:[%s2530 + $0x38] sm:$0xff] %v2545
                %v2547 = vld [vmem:[%s2529 + $0x40] sm:$0xff]
                %2548 = vst [vmem:[%s2530 + $0x40] sm:$0xff] %v2547
                %v2549 = vld [vmem:[%s2529 + $0x48] sm:$0xff]
                %2550 = vst [vmem:[%s2530 + $0x48] sm:$0xff] %v2549
                %v2551 = vld [vmem:[%s2529 + $0x50] sm:$0xff]
                %2552 = vst [vmem:[%s2530 + $0x50] sm:$0xff] %v2551
                %v2553 = vld [vmem:[%s2529 + $0x58] sm:$0xff]
                %2554 = vst [vmem:[%s2530 + $0x58] sm:$0xff] %v2553
                %v2555 = vld [vmem:[%s2529 + $0x60] sm:$0xff]
                %2556 = vst [vmem:[%s2530 + $0x60] sm:$0xff] %v2555
                %v2557 = vld [vmem:[%s2529 + $0x68] sm:$0xff]
                %2558 = vst [vmem:[%s2530 + $0x68] sm:$0xff] %v2557
                %v2559 = vld [vmem:[%s2529 + $0x70] sm:$0xff]
                %2560 = vst [vmem:[%s2530 + $0x70] sm:$0xff] %v2559
                %v2561 = vld [vmem:[%s2529 + $0x78] sm:$0xff]
                %2562 = vst [vmem:[%s2530 + $0x78] sm:$0xff] %v2561
                %v2563 = vld [vmem:[%s2529 + $0x80] sm:$0xff]
                %2564 = vst [vmem:[%s2530 + $0x80] sm:$0xff] %v2563
                %v2565 = vld [vmem:[%s2529 + $0x88] sm:$0xff]
                %2566 = vst [vmem:[%s2530 + $0x88] sm:$0xff] %v2565
                %v2567 = vld [vmem:[%s2529 + $0x90] sm:$0xff]
                %2568 = vst [vmem:[%s2530 + $0x90] sm:$0xff] %v2567
                %v2569 = vld [vmem:[%s2529 + $0x98] sm:$0xff]
                %2570 = vst [vmem:[%s2530 + $0x98] sm:$0xff] %v2569
                %v2571 = vld [vmem:[%s2529 + $0xa0] sm:$0xff]
                %2572 = vst [vmem:[%s2530 + $0xa0] sm:$0xff] %v2571
                %v2573 = vld [vmem:[%s2529 + $0xa8] sm:$0xff]
                %2574 = vst [vmem:[%s2530 + $0xa8] sm:$0xff] %v2573
                %v2575 = vld [vmem:[%s2529 + $0xb0] sm:$0xff]
                %2576 = vst [vmem:[%s2530 + $0xb0] sm:$0xff] %v2575
                %v2577 = vld [vmem:[%s2529 + $0xb8] sm:$0xff]
                %2578 = vst [vmem:[%s2530 + $0xb8] sm:$0xff] %v2577
                %v2579 = vld [vmem:[%s2529 + $0xc0] sm:$0xff]
                %2580 = vst [vmem:[%s2530 + $0xc0] sm:$0xff] %v2579
                %v2581 = vld [vmem:[%s2529 + $0xc8] sm:$0xff]
                %2582 = vst [vmem:[%s2530 + $0xc8] sm:$0xff] %v2581
                %v2583 = vld [vmem:[%s2529 + $0xd0] sm:$0xff]
                %2584 = vst [vmem:[%s2530 + $0xd0] sm:$0xff] %v2583
                %v2585 = vld [vmem:[%s2529 + $0xd8] sm:$0xff]
                %2586 = vst [vmem:[%s2530 + $0xd8] sm:$0xff] %v2585
                %v2587 = vld [vmem:[%s2529 + $0xe0] sm:$0xff]
                %2588 = vst [vmem:[%s2530 + $0xe0] sm:$0xff] %v2587
                %v2589 = vld [vmem:[%s2529 + $0xe8] sm:$0xff]
                %2590 = vst [vmem:[%s2530 + $0xe8] sm:$0xff] %v2589
                %v2591 = vld [vmem:[%s2529 + $0xf0] sm:$0xff]
                %2592 = vst [vmem:[%s2530 + $0xf0] sm:$0xff] %v2591
                %v2593 = vld [vmem:[%s2529 + $0xf8] sm:$0xff]
                %2594 = vst [vmem:[%s2530 + $0xf8] sm:$0xff] %v2593
                %v2595 = vld [vmem:[%s2529 + $0x100] sm:$0xff]
                %2596 = vst [vmem:[%s2530 + $0x400] sm:$0xff] %v2595
                %v2597 = vld [vmem:[%s2529 + $0x108] sm:$0xff]
                %2598 = vst [vmem:[%s2530 + $0x408] sm:$0xff] %v2597
                %v2599 = vld [vmem:[%s2529 + $0x110] sm:$0xff]
                %2600 = vst [vmem:[%s2530 + $0x410] sm:$0xff] %v2599
                %v2601 = vld [vmem:[%s2529 + $0x118] sm:$0xff]
                %2602 = vst [vmem:[%s2530 + $0x418] sm:$0xff] %v2601
                %v2603 = vld [vmem:[%s2529 + $0x120] sm:$0xff]
                %2604 = vst [vmem:[%s2530 + $0x420] sm:$0xff] %v2603
                %v2605 = vld [vmem:[%s2529 + $0x128] sm:$0xff]
                %2606 = vst [vmem:[%s2530 + $0x428] sm:$0xff] %v2605
                %v2607 = vld [vmem:[%s2529 + $0x130] sm:$0xff]
                %2608 = vst [vmem:[%s2530 + $0x430] sm:$0xff] %v2607
                %v2609 = vld [vmem:[%s2529 + $0x138] sm:$0xff]
                %2610 = vst [vmem:[%s2530 + $0x438] sm:$0xff] %v2609
                %v2611 = vld [vmem:[%s2529 + $0x140] sm:$0xff]
                %2612 = vst [vmem:[%s2530 + $0x440] sm:$0xff] %v2611
                %v2613 = vld [vmem:[%s2529 + $0x148] sm:$0xff]
                %2614 = vst [vmem:[%s2530 + $0x448] sm:$0xff] %v2613
                %v2615 = vld [vmem:[%s2529 + $0x150] sm:$0xff]
                %2616 = vst [vmem:[%s2530 + $0x450] sm:$0xff] %v2615
                %v2617 = vld [vmem:[%s2529 + $0x158] sm:$0xff]
                %2618 = vst [vmem:[%s2530 + $0x458] sm:$0xff] %v2617
                %v2619 = vld [vmem:[%s2529 + $0x160] sm:$0xff]
                %2620 = vst [vmem:[%s2530 + $0x460] sm:$0xff] %v2619
                %v2621 = vld [vmem:[%s2529 + $0x168] sm:$0xff]
                %2622 = vst [vmem:[%s2530 + $0x468] sm:$0xff] %v2621
                %v2623 = vld [vmem:[%s2529 + $0x170] sm:$0xff]
                %2624 = vst [vmem:[%s2530 + $0x470] sm:$0xff] %v2623
                %v2625 = vld [vmem:[%s2529 + $0x178] sm:$0xff]
                %2626 = vst [vmem:[%s2530 + $0x478] sm:$0xff] %v2625
                %v2627 = vld [vmem:[%s2529 + $0x180] sm:$0xff]
                %2628 = vst [vmem:[%s2530 + $0x480] sm:$0xff] %v2627
                %v2629 = vld [vmem:[%s2529 + $0x188] sm:$0xff]
                %2630 = vst [vmem:[%s2530 + $0x488] sm:$0xff] %v2629
                %v2631 = vld [vmem:[%s2529 + $0x190] sm:$0xff]
                %2632 = vst [vmem:[%s2530 + $0x490] sm:$0xff] %v2631
                %v2633 = vld [vmem:[%s2529 + $0x198] sm:$0xff]
                %2634 = vst [vmem:[%s2530 + $0x498] sm:$0xff] %v2633
                %v2635 = vld [vmem:[%s2529 + $0x1a0] sm:$0xff]
                %2636 = vst [vmem:[%s2530 + $0x4a0] sm:$0xff] %v2635
                %v2637 = vld [vmem:[%s2529 + $0x1a8] sm:$0xff]
                %2638 = vst [vmem:[%s2530 + $0x4a8] sm:$0xff] %v2637
                %v2639 = vld [vmem:[%s2529 + $0x1b0] sm:$0xff]
                %2640 = vst [vmem:[%s2530 + $0x4b0] sm:$0xff] %v2639
                %v2641 = vld [vmem:[%s2529 + $0x1b8] sm:$0xff]
                %2642 = vst [vmem:[%s2530 + $0x4b8] sm:$0xff] %v2641
                %v2643 = vld [vmem:[%s2529 + $0x1c0] sm:$0xff]
                %2644 = vst [vmem:[%s2530 + $0x4c0] sm:$0xff] %v2643
                %v2645 = vld [vmem:[%s2529 + $0x1c8] sm:$0xff]
                %2646 = vst [vmem:[%s2530 + $0x4c8] sm:$0xff] %v2645
                %v2647 = vld [vmem:[%s2529 + $0x1d0] sm:$0xff]
                %2648 = vst [vmem:[%s2530 + $0x4d0] sm:$0xff] %v2647
                %v2649 = vld [vmem:[%s2529 + $0x1d8] sm:$0xff]
                %2650 = vst [vmem:[%s2530 + $0x4d8] sm:$0xff] %v2649
                %v2651 = vld [vmem:[%s2529 + $0x1e0] sm:$0xff]
                %2652 = vst [vmem:[%s2530 + $0x4e0] sm:$0xff] %v2651
                %v2653 = vld [vmem:[%s2529 + $0x1e8] sm:$0xff]
                %2654 = vst [vmem:[%s2530 + $0x4e8] sm:$0xff] %v2653
                %v2655 = vld [vmem:[%s2529 + $0x1f0] sm:$0xff]
                %2656 = vst [vmem:[%s2530 + $0x4f0] sm:$0xff] %v2655
                %v2657 = vld [vmem:[%s2529 + $0x1f8] sm:$0xff]
                %2658 = vst [vmem:[%s2530 + $0x4f8] sm:$0xff] %v2657
                %v2659 = vld [vmem:[%s2529 + $0x200] sm:$0xff]
                %2660 = vst [vmem:[%s2530 + $0x800] sm:$0xff] %v2659
                %v2661 = vld [vmem:[%s2529 + $0x208] sm:$0xff]
                %2662 = vst [vmem:[%s2530 + $0x808] sm:$0xff] %v2661
                %v2663 = vld [vmem:[%s2529 + $0x210] sm:$0xff]
                %2664 = vst [vmem:[%s2530 + $0x810] sm:$0xff] %v2663
                %v2665 = vld [vmem:[%s2529 + $0x218] sm:$0xff]
                %2666 = vst [vmem:[%s2530 + $0x818] sm:$0xff] %v2665
                %v2667 = vld [vmem:[%s2529 + $0x220] sm:$0xff]
                %2668 = vst [vmem:[%s2530 + $0x820] sm:$0xff] %v2667
                %v2669 = vld [vmem:[%s2529 + $0x228] sm:$0xff]
                %2670 = vst [vmem:[%s2530 + $0x828] sm:$0xff] %v2669
                %v2671 = vld [vmem:[%s2529 + $0x230] sm:$0xff]
                %2672 = vst [vmem:[%s2530 + $0x830] sm:$0xff] %v2671
                %v2673 = vld [vmem:[%s2529 + $0x238] sm:$0xff]
                %2674 = vst [vmem:[%s2530 + $0x838] sm:$0xff] %v2673
                %v2675 = vld [vmem:[%s2529 + $0x240] sm:$0xff]
                %2676 = vst [vmem:[%s2530 + $0x840] sm:$0xff] %v2675
                %v2677 = vld [vmem:[%s2529 + $0x248] sm:$0xff]
                %2678 = vst [vmem:[%s2530 + $0x848] sm:$0xff] %v2677
                %v2679 = vld [vmem:[%s2529 + $0x250] sm:$0xff]
                %2680 = vst [vmem:[%s2530 + $0x850] sm:$0xff] %v2679
                %v2681 = vld [vmem:[%s2529 + $0x258] sm:$0xff]
                %2682 = vst [vmem:[%s2530 + $0x858] sm:$0xff] %v2681
                %v2683 = vld [vmem:[%s2529 + $0x260] sm:$0xff]
                %2684 = vst [vmem:[%s2530 + $0x860] sm:$0xff] %v2683
                %v2685 = vld [vmem:[%s2529 + $0x268] sm:$0xff]
                %2686 = vst [vmem:[%s2530 + $0x868] sm:$0xff] %v2685
                %v2687 = vld [vmem:[%s2529 + $0x270] sm:$0xff]
                %2688 = vst [vmem:[%s2530 + $0x870] sm:$0xff] %v2687
                %v2689 = vld [vmem:[%s2529 + $0x278] sm:$0xff]
                %2690 = vst [vmem:[%s2530 + $0x878] sm:$0xff] %v2689
                %v2691 = vld [vmem:[%s2529 + $0x280] sm:$0xff]
                %2692 = vst [vmem:[%s2530 + $0x880] sm:$0xff] %v2691
                %v2693 = vld [vmem:[%s2529 + $0x288] sm:$0xff]
                %2694 = vst [vmem:[%s2530 + $0x888] sm:$0xff] %v2693
                %v2695 = vld [vmem:[%s2529 + $0x290] sm:$0xff]
                %2696 = vst [vmem:[%s2530 + $0x890] sm:$0xff] %v2695
                %v2697 = vld [vmem:[%s2529 + $0x298] sm:$0xff]
                %2698 = vst [vmem:[%s2530 + $0x898] sm:$0xff] %v2697
                %v2699 = vld [vmem:[%s2529 + $0x2a0] sm:$0xff]
                %2700 = vst [vmem:[%s2530 + $0x8a0] sm:$0xff] %v2699
                %v2701 = vld [vmem:[%s2529 + $0x2a8] sm:$0xff]
                %2702 = vst [vmem:[%s2530 + $0x8a8] sm:$0xff] %v2701
                %v2703 = vld [vmem:[%s2529 + $0x2b0] sm:$0xff]
                %2704 = vst [vmem:[%s2530 + $0x8b0] sm:$0xff] %v2703
                %v2705 = vld [vmem:[%s2529 + $0x2b8] sm:$0xff]
                %2706 = vst [vmem:[%s2530 + $0x8b8] sm:$0xff] %v2705
                %v2707 = vld [vmem:[%s2529 + $0x2c0] sm:$0xff]
                %2708 = vst [vmem:[%s2530 + $0x8c0] sm:$0xff] %v2707
                %v2709 = vld [vmem:[%s2529 + $0x2c8] sm:$0xff]
                %2710 = vst [vmem:[%s2530 + $0x8c8] sm:$0xff] %v2709
                %v2711 = vld [vmem:[%s2529 + $0x2d0] sm:$0xff]
                %2712 = vst [vmem:[%s2530 + $0x8d0] sm:$0xff] %v2711
                %v2713 = vld [vmem:[%s2529 + $0x2d8] sm:$0xff]
                %2714 = vst [vmem:[%s2530 + $0x8d8] sm:$0xff] %v2713
                %v2715 = vld [vmem:[%s2529 + $0x2e0] sm:$0xff]
                %2716 = vst [vmem:[%s2530 + $0x8e0] sm:$0xff] %v2715
                %v2717 = vld [vmem:[%s2529 + $0x2e8] sm:$0xff]
                %2718 = vst [vmem:[%s2530 + $0x8e8] sm:$0xff] %v2717
                %v2719 = vld [vmem:[%s2529 + $0x2f0] sm:$0xff]
                %2720 = vst [vmem:[%s2530 + $0x8f0] sm:$0xff] %v2719
                %v2721 = vld [vmem:[%s2529 + $0x2f8] sm:$0xff]
                %2722 = vst [vmem:[%s2530 + $0x8f8] sm:$0xff] %v2721
              $region91: #{_lambda_.9} parent=85 // loop_footer
                %s2528 = sadd.s32 1, %s2524
              $region92: #{_lambda_.9} parent=85 // loop_footer_branch
                %2523 = sbr.rel target = $region88
              $region93: #{_lambda_.9} parent=85 // loop_exit
                _
            $region86: #{_lambda_.9} parent=77 // pred_fallthru
              _
          $region78: #{_lambda_.9} parent=73 // pred_fallthru
            _
          %2927 = vnop
        $region74: #{_lambda_.9} parent=31 // pred_fallthru
          _
      $region32: #{_lambda_.9} parent=5 // pred_fallthru
        _
      %p2928 = scmp.le.s32.totalorder 2, %s11
      // Predicated region
      $region109: #{_lambda_.9} parent=5 // pred_check
        %p2929 = pneg %p2928
      $region110: #{_lambda_.9} parent=5 // pred_check_branch
        %2931 = sbr.rel (%p2929) target = $region112
      $region111: #{_lambda_.9} parent=5 // pred_region
        %s2932 = ssub.s32 %s11, 2
        // Predicated region
        $region113: #{_lambda_.9} parent=111 // pred_check
          %p2933 = pneg %p124
        $region114: #{_lambda_.9} parent=111 // pred_check_branch
          %2935 = sbr.rel (%p2933) target = $region116
        $region115: #{_lambda_.9} parent=111 // pred_region
          %s2936 = sand.u32 %s109, 1
          %s2937 = sand.u32 %s109, 1
          %s2938 = smul.addr %s2937, 768
          %s2939 = scalar_lea.vmem [#allocation2], %s2938
        $region116: #{_lambda_.9} parent=111 // pred_fallthru
          _
        // Predicated region
        $region117: #{_lambda_.9} parent=111 // pred_check
          %p2940 = pneg %p152
        $region118: #{_lambda_.9} parent=111 // pred_check_branch
          %2942 = sbr.rel (%p2940) target = $region120
        $region119: #{_lambda_.9} parent=111 // pred_region
          %s2943 = sand.u32 %s137, 1
          %s2944 = sand.u32 %s137, 1
          %s2945 = smul.addr %s2944, 768
          %s2946 = scalar_lea.vmem [#allocation3], %s2945
        $region120: #{_lambda_.9} parent=111 // pred_fallthru
          _
      $region112: #{_lambda_.9} parent=5 // pred_fallthru
        _
    $region6: #{_lambda_.9} parent=1 // loop_footer
      %s15 = sadd.s32 1, %s11
    $region7: #{_lambda_.9} parent=1 // loop_footer_branch
      %10 = sbr.rel target = $region3
    $region8: #{_lambda_.9} parent=1 // loop_exit
      _

</llo_original>
